<compile_context>
chip_gen: v5e
topology: v5e:2x2
jax: 0.10.0
libtpu: 0.0.40
codegen_flags: <defaults>
</compile_context>

<pallas_src>
import math
import numpy as np

import jax
import jax.numpy as jnp
from jax import lax
from jax.experimental import pallas as pl
from jax.experimental.pallas import tpu as pltpu

# ----------------- small, architecture-faithful configuration -----------------
B         = 2     # batch
F         = 4     # number_features (enc_in = dec_in = c_out)
L_ENC     = 8     # lag_size (encoder sequence length)
L_DEC     = 8     # decoder (seq_y) sequence length
PRED_SIZE = 3     # prediction_size
D_MODEL   = 32
N_HEADS   = 4
D_HEAD    = D_MODEL // N_HEADS
E_LAYERS  = 2     # encoder layers (distil=True -> E_LAYERS-1 ConvLayers)
D_LAYERS  = 1     # decoder layers
D_FF      = 32
PRED_LEN  = 1
LN_EPS    = 1e-5
BN_EPS    = 1e-5
_NEG      = -1e30

assert L_DEC % N_HEADS == 0, "mix=True row remapping assumes L_DEC % N_HEADS == 0"
assert E_LAYERS - 1 <= 1, "single distil stage assumed"


# ===================== fixed sinusoid tables (host-side) =====================

def sinusoid_table(n_pos, d_model):
    pos = np.arange(n_pos, dtype=np.float32)[:, None]
    div = np.exp(np.arange(0, d_model, 2, dtype=np.float32) * -(math.log(10000.0) / d_model))
    tab = np.zeros((n_pos, d_model), np.float32)
    tab[:, 0::2] = np.sin(pos * div)
    tab[:, 1::2] = np.cos(pos * div)
    return jnp.asarray(tab)


_POS_ENC     = sinusoid_table(L_ENC, D_MODEL)
_POS_DEC     = sinusoid_table(L_DEC, D_MODEL)
_TAB_MONTH   = sinusoid_table(13, D_MODEL)
_TAB_DAY     = sinusoid_table(32, D_MODEL)
_TAB_WEEKDAY = sinusoid_table(7, D_MODEL)
_TAB_HOUR    = sinusoid_table(24, D_MODEL)


# ===================== parameter slab layout (static, shared host/kernel) =====================

SLAB_COLS = 128


def _build_layouts():
    wblocks = []
    def addw(name, r, c):
        assert c <= SLAB_COLS
        wblocks.append((name, r, c))
    addw("enc_tok_w", 3 * F, D_MODEL)
    addw("dec_tok_w", 3 * F, D_MODEL)
    for i in range(E_LAYERS):
        addw(f"enc{i}_qkv_w", D_MODEL, 3 * D_MODEL)
        addw(f"enc{i}_o_w", D_MODEL, D_MODEL)
        addw(f"enc{i}_ff1_w", D_MODEL, D_FF)
        addw(f"enc{i}_ff2_w", D_FF, D_MODEL)
    for i in range(E_LAYERS - 1):
        addw(f"distil{i}_w", 3 * D_MODEL, D_MODEL)
    for i in range(D_LAYERS):
        addw(f"dec{i}_self_qkv_w", D_MODEL, 3 * D_MODEL)
        addw(f"dec{i}_self_o_w", D_MODEL, D_MODEL)
        addw(f"dec{i}_cross_q_w", D_MODEL, D_MODEL)
        addw(f"dec{i}_cross_kv_w", D_MODEL, 2 * D_MODEL)
        addw(f"dec{i}_cross_o_w", D_MODEL, D_MODEL)
        addw(f"dec{i}_ff1_w", D_MODEL, D_FF)
        addw(f"dec{i}_ff2_w", D_FF, D_MODEL)
    addw("proj_w", D_MODEL, F)
    addw("out_w", F * PRED_LEN, PRED_SIZE)
    addw("mix_perm", B * N_HEADS * L_DEC, B * N_HEADS * L_DEC)

    woff, off = {}, 0
    for name, r, c in wblocks:
        woff[name] = (off, r, c)
        off += ((r + 7) // 8) * 8
    wrows = ((off + 7) // 8) * 8

    bblocks = []
    def addb(name, c):
        assert c <= SLAB_COLS
        bblocks.append((name, c))
    addb("enc_tok_b", D_MODEL)
    addb("dec_tok_b", D_MODEL)
    for i in range(E_LAYERS):
        addb(f"enc{i}_qkv_b", 3 * D_MODEL); addb(f"enc{i}_o_b", D_MODEL)
        addb(f"enc{i}_ff1_b", D_FF); addb(f"enc{i}_ff2_b", D_MODEL)
        addb(f"enc{i}_ln1_g", D_MODEL); addb(f"enc{i}_ln1_b", D_MODEL)
        addb(f"enc{i}_ln2_g", D_MODEL); addb(f"enc{i}_ln2_b", D_MODEL)
    for i in range(E_LAYERS - 1):
        addb(f"distil{i}_b", D_MODEL)
        addb(f"distil{i}_bn_scale", D_MODEL)
        addb(f"distil{i}_bn_shift", D_MODEL)
    addb("enc_norm_g", D_MODEL); addb("enc_norm_b", D_MODEL)
    for i in range(D_LAYERS):
        addb(f"dec{i}_self_qkv_b", 3 * D_MODEL); addb(f"dec{i}_self_o_b", D_MODEL)
        addb(f"dec{i}_cross_q_b", D_MODEL); addb(f"dec{i}_cross_kv_b", 2 * D_MODEL)
        addb(f"dec{i}_cross_o_b", D_MODEL)
        addb(f"dec{i}_ff1_b", D_FF); addb(f"dec{i}_ff2_b", D_MODEL)
        addb(f"dec{i}_ln1_g", D_MODEL); addb(f"dec{i}_ln1_b", D_MODEL)
        addb(f"dec{i}_ln2_g", D_MODEL); addb(f"dec{i}_ln2_b", D_MODEL)
        addb(f"dec{i}_ln3_g", D_MODEL); addb(f"dec{i}_ln3_b", D_MODEL)
    addb("dec_norm_g", D_MODEL); addb("dec_norm_b", D_MODEL)
    addb("proj_b", F); addb("out_b", PRED_SIZE)

    boff = {n: (i, c) for i, (n, c) in enumerate(bblocks)}
    brows = ((len(bblocks) + 7) // 8) * 8
    return woff, wrows, boff, brows


W_OFF, W_ROWS, B_OFF, B_ROWS = _build_layouts()


def _mix_perm_matrix():
    """0/1 matrix realising torch mix=True: (B,L,H,dh)->transpose(2,1).contiguous().view(B,L,H*dh).

    Applied to the (b,h)-stacked per-head outputs O[(b*H+h)*L + l, :dh]; result rows are
    ordered (seg, b, l') so that segment blocks can be accumulated into the out-projection.
    """
    Hh, L, rph = N_HEADS, L_DEC, L_DEC // N_HEADS
    n = B * Hh * L
    m = np.zeros((n, n), np.float32)
    for seg in range(Hh):
        for b in range(B):
            for lp in range(L):
                dst = seg * (B * L) + b * L + lp
                h = lp // rph
                lsrc = (lp % rph) * Hh + seg
                m[dst, (b * Hh + h) * L + lsrc] = 1.0
    return m


# ============================ in-kernel math helpers ============================

def _mmq(a, b):
    """Single-pass MXU GEMM: bf16 inputs, f32 accumulation."""
    return jnp.dot(a.astype(jnp.bfloat16), b.astype(jnp.bfloat16),
                   preferred_element_type=jnp.float32)


def _layernorm_2d(x, g, b):
    mu = jnp.mean(x, axis=-1, keepdims=True)
    xc = x - mu
    var = jnp.mean(xc * xc, axis=-1, keepdims=True)
    return xc * lax.rsqrt(var + LN_EPS) * g + b


def _erf(x):
    # Abramowitz & Stegun 7.1.26 (|error| < 1.5e-7)
    p = 0.3275911
    a1, a2, a3, a4, a5 = 0.254829592, -0.284496736, 1.421413741, -1.453152027, 1.061405429
    ax = jnp.abs(x)
    t = 1.0 / (1.0 + p * ax)
    poly = ((((a5 * t + a4) * t + a3) * t + a2) * t + a1) * t
    y = 1.0 - poly * jnp.exp(-ax * ax)
    return jnp.where(x < 0, -y, y)


def _gelu(x):
    return 0.5 * x * (1.0 + _erf(x * (1.0 / math.sqrt(2.0))))


def _elu(x):
    return jnp.where(x > 0, x, jnp.exp(jnp.minimum(x, 0.0)) - 1.0)


# ================================ the fused kernel ================================

def _fused_informer_kernel(x_ref, emb_ref, w_ref, b_ref, out_ref):
    NE = B * L_ENC
    ND = B * L_DEC
    xe = x_ref[0:NE, :]
    xd = x_ref[NE:NE + ND, :]
    emb_e = emb_ref[0:NE, :]
    emb_d = emb_ref[NE:NE + ND, :]

    def W(name):
        off, r, c = W_OFF[name]
        return w_ref[off:off + r, 0:c]

    def Bv(name):
        i, c = B_OFF[name]
        return b_ref[i:i + 1, 0:c]

    def layernorm(x2d, name):
        return _layernorm_2d(x2d, Bv(name + "_g"), Bv(name + "_b"))

    # --- circular Conv1d(k=3, padding=1, padding_mode='circular'); taps from one stacked block ---
    def circular_conv(x2d, Bb, L, wname, bname):
        wblk = W(wname)                          # (3*C, Cout)
        C = wblk.shape[0] // 3
        prevs, nxts = [], []
        for b in range(Bb):
            xb = x2d[b * L:(b + 1) * L, :]
            prevs.append(jnp.concatenate([xb[L - 1:L, :], xb[0:L - 1, :]], axis=0))
            nxts.append(jnp.concatenate([xb[1:L, :], xb[0:1, :]], axis=0))
        xprev = jnp.concatenate(prevs, axis=0)
        xnext = jnp.concatenate(nxts, axis=0)
        return (_mmq(xprev, wblk[0:C, :]) + _mmq(x2d, wblk[C:2 * C, :])
                + _mmq(xnext, wblk[2 * C:3 * C, :]) + Bv(bname))

    # --- multi-head attention (all (b,h) pairs, batched softmax) fused with the out-projection ---
    def mha_proj(q2d, k2d, v2d, Bb, Lq, S, causal, mix, o_wname, o_bname):
        # per-(b,h) score blocks, stacked along sublanes for a single softmax
        sblocks = []
        for b in range(Bb):
            for h in range(N_HEADS):
                qh = q2d[b * Lq:(b + 1) * Lq, h * D_HEAD:(h + 1) * D_HEAD]
                kh = k2d[b * S:(b + 1) * S, h * D_HEAD:(h + 1) * D_HEAD]
                sblocks.append(lax.dot_general(
                    qh.astype(jnp.bfloat16), kh.astype(jnp.bfloat16),
                    (((1,), (1,)), ((), ())),
                    preferred_element_type=jnp.float32))
        s = jnp.concatenate(sblocks, axis=0)                  # (Bb*H*Lq, S)
        if causal:
            assert Lq == S and (Lq & (Lq - 1)) == 0
            ri = lax.broadcasted_iota(jnp.int32, s.shape, 0) & (Lq - 1)
            ci = lax.broadcasted_iota(jnp.int32, s.shape, 1)
            s = jnp.where(ci <= ri, s, _NEG)
        mrow = jnp.max(s, axis=-1, keepdims=True)
        e = jnp.exp(s - mrow)
        p = e * pl.reciprocal(jnp.sum(e, axis=-1, keepdims=True), approx=True)

        o_w = W(o_wname)                                      # (D_MODEL, D_MODEL)

        def pv(b, h):
            idx = b * N_HEADS + h
            pbh = p[idx * Lq:(idx + 1) * Lq, :]
            vh = v2d[b * S:(b + 1) * S, h * D_HEAD:(h + 1) * D_HEAD]
            return jnp.dot(pbh.astype(jnp.bfloat16), vh.astype(jnp.bfloat16),
                           preferred_element_type=jnp.float32)          # (Lq, dh)

        acc = None
        if not mix:
            # out = concat_h(oh_h) @ W_o  ==  sum_h  oh_h @ W_o[h-block]   (no lane concat)
            for h in range(N_HEADS):
                oh_all = jnp.concatenate([pv(b, h) for b in range(Bb)], axis=0)   # (Bb*Lq, dh)
                term = _mmq(oh_all, o_w[h * D_HEAD:(h + 1) * D_HEAD, :])
                acc = term if acc is None else acc + term
        else:
            # torch mix=True reinterpretation via one exact 0/1 permutation matmul,
            # then per-segment accumulation into the out-projection.
            oblocks = [pv(b, h) for b in range(Bb) for h in range(N_HEADS)]
            ostack = jnp.concatenate(oblocks, axis=0)                             # (Bb*H*Lq, dh)
            r = jnp.dot(W("mix_perm"), ostack, precision=lax.Precision.HIGHEST,
                        preferred_element_type=jnp.float32)
            for seg in range(N_HEADS):
                m_seg = r[seg * Bb * Lq:(seg + 1) * Bb * Lq, :]                    # (Bb*Lq, dh)
                term = _mmq(m_seg, o_w[seg * D_HEAD:(seg + 1) * D_HEAD, :])
                acc = term if acc is None else acc + term
        return acc + Bv(o_bname)

    def self_attn(x2d, Bb, L, pfx, causal, mix):
        qkv = _mmq(x2d, W(pfx + "qkv_w")) + Bv(pfx + "qkv_b")   # fused QKV GEMM (D -> 3D)
        return mha_proj(qkv[:, 0:D_MODEL], qkv[:, D_MODEL:2 * D_MODEL],
                        qkv[:, 2 * D_MODEL:3 * D_MODEL],
                        Bb, L, L, causal, mix, pfx + "o_w", pfx + "o_b")

    def cross_attn(x2d, cr2d, Bb, Lq, S, pfx):
        q = _mmq(x2d, W(pfx + "q_w")) + Bv(pfx + "q_b")
        kv = _mmq(cr2d, W(pfx + "kv_w")) + Bv(pfx + "kv_b")     # fused KV GEMM (D -> 2D)
        return mha_proj(q, kv[:, 0:D_MODEL], kv[:, D_MODEL:2 * D_MODEL],
                        Bb, Lq, S, False, False, pfx + "o_w", pfx + "o_b")

    def ffn(x2d, pfx):                                          # conv1 -> GELU -> conv2 (k=1)
        y = _gelu(_mmq(x2d, W(pfx + "ff1_w")) + Bv(pfx + "ff1_b"))
        return _mmq(y, W(pfx + "ff2_w")) + Bv(pfx + "ff2_b")

    def encoder_layer(x2d, Bb, L, pfx):
        x = x2d + self_attn(x2d, Bb, L, pfx, causal=False, mix=False)
        x = layernorm(x, pfx + "ln1")
        y = ffn(x, pfx)
        return layernorm(x + y, pfx + "ln2")

    def distil_layer(x2d, Bb, L, pfx):
        y = circular_conv(x2d, Bb, L, pfx + "w", pfx + "b")
        y = y * Bv(pfx + "bn_scale") + Bv(pfx + "bn_shift")     # folded BatchNorm (inference)
        y = _elu(y)
        # MaxPool1d(kernel=3, stride=2, padding=1): clamped neighbour max + stride-2 row select
        Lout = (L + 2 - 3) // 2 + 1
        assert 2 * (Lout - 1) + 1 <= L - 1, "clamped-shift pooling needs the right edge untouched"
        outs = []
        for b in range(Bb):
            yb = y[b * L:(b + 1) * L, :]
            prev = jnp.concatenate([yb[0:1, :], yb[0:L - 1, :]], axis=0)
            nxt = jnp.concatenate([yb[1:L, :], yb[L - 1:L, :]], axis=0)
            z = jnp.maximum(jnp.maximum(prev, yb), nxt)
            outs.append(jnp.concatenate([z[2 * i:2 * i + 1, :] for i in range(Lout)], axis=0))
        return jnp.concatenate(outs, axis=0)

    def decoder_layer(x2d, cr2d, Bb, Lq, S, pfx):
        x = x2d + self_attn(x2d, Bb, Lq, pfx + "self_", causal=True, mix=True)
        x = layernorm(x, pfx + "ln1")
        x = x + cross_attn(x, cr2d, Bb, Lq, S, pfx + "cross_")
        x = layernorm(x, pfx + "ln2")
        y = ffn(x, pfx)
        return layernorm(x + y, pfx + "ln3")

    # ------------------------------ forward pass ------------------------------
    enc = circular_conv(xe, B, L_ENC, "enc_tok_w", "enc_tok_b") + emb_e     # DataEmbedding
    dec = circular_conv(xd, B, L_DEC, "dec_tok_w", "dec_tok_b") + emb_d

    cur_l = L_ENC
    for i in range(E_LAYERS - 1):
        enc = encoder_layer(enc, B, cur_l, f"enc{i}_")
        enc = distil_layer(enc, B, cur_l, f"distil{i}_")
        cur_l = (cur_l + 2 - 3) // 2 + 1
    enc = encoder_layer(enc, B, cur_l, f"enc{E_LAYERS - 1}_")
    enc = layernorm(enc, "enc_norm")
    s_enc = cur_l

    for i in range(D_LAYERS):
        dec = decoder_layer(dec, enc, B, L_DEC, s_enc, f"dec{i}_")
    dec = layernorm(dec, "dec_norm")

    # last position per batch FIRST, then the two tiny projection GEMMs, single store
    last = jnp.concatenate(
        [dec[b * L_DEC + L_DEC - 1: b * L_DEC + L_DEC, :] for b in range(B)], axis=0)   # (B, D)
    proj = _mmq(last, W("proj_w")) + Bv("proj_b")               # (B, F)
    out = _mmq(proj, W("out_w")) + Bv("out_b")                  # (B, PRED_SIZE)
    out_ref[...] = out


# ================================ host-side wrapper ================================

def _embedding_add_terms(marks, pos_tab):
    # PositionalEmbedding + fixed (sinusoid) TemporalEmbedding, freq='h'
    temporal = (_TAB_HOUR[marks[:, :, 3]] + _TAB_WEEKDAY[marks[:, :, 2]]
                + _TAB_DAY[marks[:, :, 1]] + _TAB_MONTH[marks[:, :, 0]])
    return temporal + pos_tab[None]


def informer_forward(packed, seq_x, seq_x_mark, seq_y, seq_y_mark):
    # torch forward: transpose(1,2) moves channels last; flatten to [rows, features]
    x_enc = jnp.transpose(seq_x, (0, 2, 1)).reshape(B * L_ENC, F)
    x_dec = jnp.transpose(seq_y, (0, 2, 1)).reshape(B * L_DEC, F)
    emb_e = _embedding_add_terms(seq_x_mark, _POS_ENC).reshape(B * L_ENC, D_MODEL)
    emb_d = _embedding_add_terms(seq_y_mark, _POS_DEC).reshape(B * L_DEC, D_MODEL)
    x_cat = jnp.concatenate([x_enc, x_dec], axis=0)
    emb_cat = jnp.concatenate([emb_e, emb_d], axis=0)

    vmem = pl.BlockSpec(memory_space=pltpu.MemorySpace.VMEM)
    return pl.pallas_call(
        _fused_informer_kernel,
        out_shape=jax.ShapeDtypeStruct((B, PRED_SIZE), jnp.float32),
        in_specs=[vmem, vmem, vmem, vmem],
        out_specs=vmem,
    )(x_cat, emb_cat, packed["wslab"], packed["bslab"])


# ============================ deterministic parameter init ============================

def _key_stream(seed):
    k = jax.random.PRNGKey(seed)
    while True:
        k, sub = jax.random.split(k)
        yield sub


def init_params(seed=1234):
    """Raw parameters in torch layout (Linear: (out,in); Conv1d: (out,in,k))."""
    ks = _key_stream(seed)

    def lin(out_d, in_d):
        k1, k2 = jax.random.split(next(ks))
        return {"w": jax.random.normal(k1, (out_d, in_d), jnp.float32) / math.sqrt(in_d),
                "b": jax.random.normal(k2, (out_d,), jnp.float32) * 0.01}

    def conv(out_c, in_c, ksz):
        k1, k2 = jax.random.split(next(ks))
        return {"w": jax.random.normal(k1, (out_c, in_c, ksz), jnp.float32) / math.sqrt(in_c * ksz),
                "b": jax.random.normal(k2, (out_c,), jnp.float32) * 0.01}

    def ln():
        return {"g": jnp.ones((D_MODEL,), jnp.float32), "b": jnp.zeros((D_MODEL,), jnp.float32)}

    def attn_layer():
        return {"q": lin(D_MODEL, D_MODEL), "k": lin(D_MODEL, D_MODEL),
                "v": lin(D_MODEL, D_MODEL), "o": lin(D_MODEL, D_MODEL)}

    def enc_layer():
        return {"attn": attn_layer(),
                "conv1": conv(D_FF, D_MODEL, 1), "conv2": conv(D_MODEL, D_FF, 1),
                "ln1": ln(), "ln2": ln()}

    def conv_layer():
        return {"conv": conv(D_MODEL, D_MODEL, 3),
                "bn_g": jnp.ones((D_MODEL,), jnp.float32),
                "bn_b": jnp.zeros((D_MODEL,), jnp.float32),
                "bn_rm": jnp.zeros((D_MODEL,), jnp.float32),
                "bn_rv": jnp.ones((D_MODEL,), jnp.float32)}

    def dec_layer():
        return {"self_attn": attn_layer(), "cross_attn": attn_layer(),
                "conv1": conv(D_FF, D_MODEL, 1), "conv2": conv(D_MODEL, D_FF, 1),
                "ln1": ln(), "ln2": ln(), "ln3": ln()}

    return {
        "enc_emb_tok": conv(D_MODEL, F, 3),
        "dec_emb_tok": conv(D_MODEL, F, 3),
        "enc_layers": [enc_layer() for _ in range(E_LAYERS)],
        "conv_layers": [conv_layer() for _ in range(E_LAYERS - 1)],
        "enc_norm": ln(),
        "dec_layers": [dec_layer() for _ in range(D_LAYERS)],
        "dec_norm": ln(),
        "proj": lin(F, D_MODEL),
        "out_mod": lin(PRED_SIZE, F * PRED_LEN),
    }


def pack_params(raw):
    """Pre-transpose / fuse / fold all weights ONCE into two kernel-ready f32 slabs."""
    wslab = np.zeros((W_ROWS, SLAB_COLS), np.float32)
    bslab = np.zeros((B_ROWS, SLAB_COLS), np.float32)

    def putw(name, mat):
        off, r, c = W_OFF[name]
        mat = np.asarray(mat, np.float32)
        assert mat.shape == (r, c), (name, mat.shape, (r, c))
        wslab[off:off + r, 0:c] = mat

    def putb(name, vec):
        i, c = B_OFF[name]
        vec = np.asarray(vec, np.float32).reshape(-1)
        assert vec.shape[0] == c, (name, vec.shape, c)
        bslab[i, 0:c] = vec

    def t(w):                                   # torch (out,in) -> (in,out)
        return np.asarray(w, np.float32).T

    def conv3(w):                               # (out,in,3) -> (3*in,out), tap-major [prev|x|next]
        w = np.asarray(w, np.float32)
        return np.concatenate([w[:, :, k].T for k in range(3)], axis=0)

    scale = 1.0 / math.sqrt(D_HEAD)             # folded into the Q projections

    putw("enc_tok_w", conv3(raw["enc_emb_tok"]["w"])); putb("enc_tok_b", raw["enc_emb_tok"]["b"])
    putw("dec_tok_w", conv3(raw["dec_emb_tok"]["w"])); putb("dec_tok_b", raw["dec_emb_tok"]["b"])

    for i, lyr in enumerate(raw["enc_layers"]):
        a = lyr["attn"]
        putw(f"enc{i}_qkv_w",
             np.concatenate([t(a["q"]["w"]) * scale, t(a["k"]["w"]), t(a["v"]["w"])], axis=1))
        putb(f"enc{i}_qkv_b",
             np.concatenate([np.asarray(a["q"]["b"], np.float32) * scale,
                             np.asarray(a["k"]["b"], np.float32),
                             np.asarray(a["v"]["b"], np.float32)]))
        putw(f"enc{i}_o_w", t(a["o"]["w"])); putb(f"enc{i}_o_b", a["o"]["b"])
        putw(f"enc{i}_ff1_w", t(lyr["conv1"]["w"][:, :, 0])); putb(f"enc{i}_ff1_b", lyr["conv1"]["b"])
        putw(f"enc{i}_ff2_w", t(lyr["conv2"]["w"][:, :, 0])); putb(f"enc{i}_ff2_b", lyr["conv2"]["b"])
        putb(f"enc{i}_ln1_g", lyr["ln1"]["g"]); putb(f"enc{i}_ln1_b", lyr["ln1"]["b"])
        putb(f"enc{i}_ln2_g", lyr["ln2"]["g"]); putb(f"enc{i}_ln2_b", lyr["ln2"]["b"])

    for i, cl in enumerate(raw["conv_layers"]):
        putw(f"distil{i}_w", conv3(cl["conv"]["w"])); putb(f"distil{i}_b", cl["conv"]["b"])
        g = np.asarray(cl["bn_g"], np.float32); bb = np.asarray(cl["bn_b"], np.float32)
        rm = np.asarray(cl["bn_rm"], np.float32); rv = np.asarray(cl["bn_rv"], np.float32)
        sc = g / np.sqrt(rv + BN_EPS)
        putb(f"distil{i}_bn_scale", sc)
        putb(f"distil{i}_bn_shift", bb - rm * sc)

    putb("enc_norm_g", raw["enc_norm"]["g"]); putb("enc_norm_b", raw["enc_norm"]["b"])

    for i, lyr in enumerate(raw["dec_layers"]):
        a = lyr["self_attn"]
        putw(f"dec{i}_self_qkv_w",
             np.concatenate([t(a["q"]["w"]) * scale, t(a["k"]["w"]), t(a["v"]["w"])], axis=1))
        putb(f"dec{i}_self_qkv_b",
             np.concatenate([np.asarray(a["q"]["b"], np.float32) * scale,
                             np.asarray(a["k"]["b"], np.float32),
                             np.asarray(a["v"]["b"], np.float32)]))
        putw(f"dec{i}_self_o_w", t(a["o"]["w"])); putb(f"dec{i}_self_o_b", a["o"]["b"])
        c = lyr["cross_attn"]
        putw(f"dec{i}_cross_q_w", t(c["q"]["w"]) * scale)
        putb(f"dec{i}_cross_q_b", np.asarray(c["q"]["b"], np.float32) * scale)
        putw(f"dec{i}_cross_kv_w", np.concatenate([t(c["k"]["w"]), t(c["v"]["w"])], axis=1))
        putb(f"dec{i}_cross_kv_b",
             np.concatenate([np.asarray(c["k"]["b"], np.float32),
                             np.asarray(c["v"]["b"], np.float32)]))
        putw(f"dec{i}_cross_o_w", t(c["o"]["w"])); putb(f"dec{i}_cross_o_b", c["o"]["b"])
        putw(f"dec{i}_ff1_w", t(lyr["conv1"]["w"][:, :, 0])); putb(f"dec{i}_ff1_b", lyr["conv1"]["b"])
        putw(f"dec{i}_ff2_w", t(lyr["conv2"]["w"][:, :, 0])); putb(f"dec{i}_ff2_b", lyr["conv2"]["b"])
        putb(f"dec{i}_ln1_g", lyr["ln1"]["g"]); putb(f"dec{i}_ln1_b", lyr["ln1"]["b"])
        putb(f"dec{i}_ln2_g", lyr["ln2"]["g"]); putb(f"dec{i}_ln2_b", lyr["ln2"]["b"])
        putb(f"dec{i}_ln3_g", lyr["ln3"]["g"]); putb(f"dec{i}_ln3_b", lyr["ln3"]["b"])

    putb("dec_norm_g", raw["dec_norm"]["g"]); putb("dec_norm_b", raw["dec_norm"]["b"])
    putw("proj_w", t(raw["proj"]["w"])); putb("proj_b", raw["proj"]["b"])
    putw("out_w", t(raw["out_mod"]["w"])); putb("out_b", raw["out_mod"]["b"])
    putw("mix_perm", _mix_perm_matrix())

    return {"wslab": jnp.asarray(wslab), "bslab": jnp.asarray(bslab)}


# ===================== pure-JAX (XLA) reference for self-verification =====================
# Mirrors the kernel's bf16-input / f32-accumulate matmul casting so the check stays tight.

def _rmm(a, b):
    return jnp.dot(a.astype(jnp.bfloat16), b.astype(jnp.bfloat16),
                   preferred_element_type=jnp.float32)


def _ref_linear(x, p):
    return _rmm(x, jnp.transpose(p["w"])) + p["b"]


def _ref_layernorm(x, p):
    mu = jnp.mean(x, axis=-1, keepdims=True)
    xc = x - mu
    var = jnp.mean(xc * xc, axis=-1, keepdims=True)
    return xc * lax.rsqrt(var + LN_EPS) * p["g"] + p["b"]


def _ref_circular_conv_k3(x, conv):           # x: (B, L, Cin)
    Bb, Ll, Cin = x.shape
    Cout = conv["w"].shape[0]
    xp = jnp.concatenate([x[:, -1:, :], x, x[:, :1, :]], axis=1)
    cols = jnp.stack([xp[:, k:k + Ll, :] for k in range(3)], axis=-1).reshape(Bb * Ll, Cin * 3)
    y = _rmm(cols, jnp.transpose(conv["w"].reshape(Cout, Cin * 3))) + conv["b"]
    return y.reshape(Bb, Ll, Cout)


def _ref_attention_layer(q_in, k_in, v_in, p, causal, mix):
    Bb, Lq, _ = q_in.shape
    S = k_in.shape[1]
    q = _ref_linear(q_in, p["q"]).reshape(Bb, Lq, N_HEADS, D_HEAD)
    k = _ref_linear(k_in, p["k"]).reshape(Bb, S, N_HEADS, D_HEAD)
    v = _ref_linear(v_in, p["v"]).reshape(Bb, S, N_HEADS, D_HEAD)
    s = jnp.einsum("blhd,bshd->bhls", q.astype(jnp.bfloat16), k.astype(jnp.bfloat16),
                   preferred_element_type=jnp.float32) / math.sqrt(D_HEAD)
    if causal:
        mask = jnp.tril(jnp.ones((Lq, S), bool))
        s = jnp.where(mask[None, None], s, -jnp.inf)
    a = jax.nn.softmax(s, axis=-1)
    oh = jnp.einsum("bhls,bshd->bhld", a.astype(jnp.bfloat16), v.astype(jnp.bfloat16),
                    preferred_element_type=jnp.float32)        # (B, H, L, dh)
    if mix:
        out = oh.reshape(Bb, Lq, N_HEADS * D_HEAD)             # torch transpose(2,1).view(...)
    else:
        out = oh.transpose(0, 2, 1, 3).reshape(Bb, Lq, N_HEADS * D_HEAD)
    return _ref_linear(out, p["o"])


def _ref_ffn(x, lyr):
    y = _ref_linear(x, {"w": lyr["conv1"]["w"][:, :, 0], "b": lyr["conv1"]["b"]})
    y = jax.nn.gelu(y, approximate=False)
    return _ref_linear(y, {"w": lyr["conv2"]["w"][:, :, 0], "b": lyr["conv2"]["b"]})


def _ref_encoder_layer(x, p):
    x = x + _ref_attention_layer(x, x, x, p["attn"], causal=False, mix=False)
    x = _ref_layernorm(x, p["ln1"])
    y = _ref_ffn(x, p)
    return _ref_layernorm(x + y, p["ln2"])


def _ref_distil(x, cl):
    Bb, Ll, _ = x.shape
    y = _ref_circular_conv_k3(x, cl["conv"])
    y = (y - cl["bn_rm"]) / jnp.sqrt(cl["bn_rv"] + BN_EPS) * cl["bn_g"] + cl["bn_b"]
    y = jax.nn.elu(y)
    yp = jnp.pad(y, ((0, 0), (1, 1), (0, 0)), constant_values=-jnp.inf)
    lout = (Ll + 2 - 3) // 2 + 1
    win = jnp.stack([yp[:, 2 * i:2 * i + 3, :] for i in range(lout)], axis=1)
    return jnp.max(win, axis=2)


def _ref_decoder_layer(x, cross, p):
    x = x + _ref_attention_layer(x, x, x, p["self_attn"], causal=True, mix=True)
    x = _ref_layernorm(x, p["ln1"])
    x = x + _ref_attention_layer(x, cross, cross, p["cross_attn"], causal=False, mix=False)
    x = _ref_layernorm(x, p["ln2"])
    y = _ref_ffn(x, p)
    return _ref_layernorm(x + y, p["ln3"])


def _ref_embedding(x, marks, tok_conv, pos_tab):
    return _ref_circular_conv_k3(x, tok_conv) + _embedding_add_terms(marks, pos_tab)


def informer_reference(raw, seq_x, seq_x_mark, seq_y, seq_y_mark):
    x_enc = jnp.transpose(seq_x, (0, 2, 1))
    x_dec = jnp.transpose(seq_y, (0, 2, 1))
    enc = _ref_embedding(x_enc, seq_x_mark, raw["enc_emb_tok"], _POS_ENC)
    for i in range(E_LAYERS - 1):
        enc = _ref_encoder_layer(enc, raw["enc_layers"][i])
        enc = _ref_distil(enc, raw["conv_layers"][i])
    enc = _ref_encoder_layer(enc, raw["enc_layers"][-1])
    enc = _ref_layernorm(enc, raw["enc_norm"])
    dec = _ref_embedding(x_dec, seq_y_mark, raw["dec_emb_tok"], _POS_DEC)
    for i in range(D_LAYERS):
        dec = _ref_decoder_layer(dec, enc, raw["dec_layers"][i])
    dec = _ref_layernorm(dec, raw["dec_norm"])
    dec = _ref_linear(dec, raw["proj"])[:, -PRED_LEN:, :]
    flat = dec.reshape(dec.shape[0], F * PRED_LEN)
    return _ref_linear(flat, raw["out_mod"])


# ====================================== main ======================================

if __name__ == "__main__":
    key = jax.random.PRNGKey(0)
    k_x, k_y, k_xm, k_ym = jax.random.split(key, 4)

    # forward() receives x = (seq_x, seq_x_mark, seq_y, seq_y_mark) with
    # seq_x / seq_y in (B, features, length) and marks in (B, length, 4) = [month, day, weekday, hour]
    seq_x = jax.random.normal(k_x, (B, F, L_ENC), jnp.float32)
    seq_y = jax.random.normal(k_y, (B, F, L_DEC), jnp.float32)

    def make_marks(k, L):
        k0, k1, k2, k3 = jax.random.split(k, 4)
        return jnp.stack([
            jax.random.randint(k0, (B, L), 0, 13),   # month
            jax.random.randint(k1, (B, L), 0, 32),   # day
            jax.random.randint(k2, (B, L), 0, 7),    # weekday
            jax.random.randint(k3, (B, L), 0, 24),   # hour
        ], axis=-1).astype(jnp.int32)

    seq_x_mark = make_marks(k_xm, L_ENC)
    seq_y_mark = make_marks(k_ym, L_DEC)

    raw_params = init_params(1234)
    packed_params = pack_params(raw_params)

    fwd = jax.jit(informer_forward)
    out = jax.block_until_ready(fwd(packed_params, seq_x, seq_x_mark, seq_y, seq_y_mark))

    assert out.shape == (B, PRED_SIZE), out.shape
    assert bool(jnp.all(jnp.isfinite(out)))

    # cross-check the fused Pallas kernel against the pure-JAX reference
    ref = informer_reference(raw_params, seq_x, seq_x_mark, seq_y, seq_y_mark)
    max_err = float(jnp.max(jnp.abs(out - ref)))
    assert max_err < 2e-2, f"kernel/reference mismatch: {max_err}"

    print("KERNEL_OK")
</pallas_src>

<mosaic_0001>
module attributes {stable_mosaic.version = 11 : i64} {
  func.func @_fused_informer_kernel(%arg0: memref<32x4xf32, #tpu.memory_space<vmem>>, %arg1: memref<32x32xf32, #tpu.memory_space<vmem>>, %arg2: memref<712x128xf32, #tpu.memory_space<vmem>>, %arg3: memref<40x128xf32, #tpu.memory_space<vmem>>, %arg4: memref<2x3xf32, #tpu.memory_space<vmem>>) attributes {dimension_semantics = [], scalar_prefetch = 0 : i64, scratch_operands = 0 : i64, tpu.core_type = #tpu.core_type<tc>} {
    %c0 = arith.constant 0 : index
    %c0_0 = arith.constant 0 : index
    %0 = vector.load %arg0[%c0, %c0_0] : memref<32x4xf32, #tpu.memory_space<vmem>>, vector<16x4xf32>
    %c16 = arith.constant 16 : index
    %c0_1 = arith.constant 0 : index
    %1 = vector.load %arg0[%c16, %c0_1] : memref<32x4xf32, #tpu.memory_space<vmem>>, vector<16x4xf32>
    %c0_2 = arith.constant 0 : index
    %c0_3 = arith.constant 0 : index
    %2 = vector.load %arg1[%c0_2, %c0_3] : memref<32x32xf32, #tpu.memory_space<vmem>>, vector<16x32xf32>
    %c16_4 = arith.constant 16 : index
    %c0_5 = arith.constant 0 : index
    %3 = vector.load %arg1[%c16_4, %c0_5] : memref<32x32xf32, #tpu.memory_space<vmem>>, vector<16x32xf32>
    %c0_6 = arith.constant 0 : index
    %c0_7 = arith.constant 0 : index
    %4 = vector.load %arg2[%c0_6, %c0_7] : memref<712x128xf32, #tpu.memory_space<vmem>>, vector<12x32xf32>
    %5 = vector.extract_strided_slice %0 {offsets = [0, 0], sizes = [8, 4], strides = [1, 1]} : vector<16x4xf32> to vector<8x4xf32>
    %6 = vector.extract_strided_slice %5 {offsets = [7, 0], sizes = [1, 4], strides = [1, 1]} : vector<8x4xf32> to vector<1x4xf32>
    %7 = vector.extract_strided_slice %5 {offsets = [0, 0], sizes = [7, 4], strides = [1, 1]} : vector<8x4xf32> to vector<7x4xf32>
    %8 = tpu.concatenate %6, %7 in 0 : vector<1x4xf32>, vector<7x4xf32> -> vector<8x4xf32>
    %9 = vector.extract_strided_slice %5 {offsets = [1, 0], sizes = [7, 4], strides = [1, 1]} : vector<8x4xf32> to vector<7x4xf32>
    %10 = vector.extract_strided_slice %5 {offsets = [0, 0], sizes = [1, 4], strides = [1, 1]} : vector<8x4xf32> to vector<1x4xf32>
    %11 = tpu.concatenate %9, %10 in 0 : vector<7x4xf32>, vector<1x4xf32> -> vector<8x4xf32>
    %12 = vector.extract_strided_slice %0 {offsets = [8, 0], sizes = [8, 4], strides = [1, 1]} : vector<16x4xf32> to vector<8x4xf32>
    %13 = vector.extract_strided_slice %12 {offsets = [7, 0], sizes = [1, 4], strides = [1, 1]} : vector<8x4xf32> to vector<1x4xf32>
    %14 = vector.extract_strided_slice %12 {offsets = [0, 0], sizes = [7, 4], strides = [1, 1]} : vector<8x4xf32> to vector<7x4xf32>
    %15 = tpu.concatenate %13, %14 in 0 : vector<1x4xf32>, vector<7x4xf32> -> vector<8x4xf32>
    %16 = vector.extract_strided_slice %12 {offsets = [1, 0], sizes = [7, 4], strides = [1, 1]} : vector<8x4xf32> to vector<7x4xf32>
    %17 = vector.extract_strided_slice %12 {offsets = [0, 0], sizes = [1, 4], strides = [1, 1]} : vector<8x4xf32> to vector<1x4xf32>
    %18 = tpu.concatenate %16, %17 in 0 : vector<7x4xf32>, vector<1x4xf32> -> vector<8x4xf32>
    %19 = tpu.concatenate %8, %15 in 0 : vector<8x4xf32>, vector<8x4xf32> -> vector<16x4xf32>
    %20 = tpu.concatenate %11, %18 in 0 : vector<8x4xf32>, vector<8x4xf32> -> vector<16x4xf32>
    %21 = vector.extract_strided_slice %4 {offsets = [0, 0], sizes = [4, 32], strides = [1, 1]} : vector<12x32xf32> to vector<4x32xf32>
    %22 = arith.truncf %19 : vector<16x4xf32> to vector<16x4xbf16>
    %23 = arith.truncf %21 : vector<4x32xf32> to vector<4x32xbf16>
    %cst = arith.constant dense<0.000000e+00> : vector<16x32xf32>
    %24 = tpu.matmul %22, %23, %cst {dimension_numbers = #tpu.dot_dimension_numbers<[1], [0], [0], [1], [0, 0, 1, 1], [], []>} : vector<16x4xbf16>, vector<4x32xbf16>, vector<16x32xf32> -> vector<16x32xf32>
    %25 = vector.extract_strided_slice %4 {offsets = [4, 0], sizes = [4, 32], strides = [1, 1]} : vector<12x32xf32> to vector<4x32xf32>
    %26 = arith.truncf %0 : vector<16x4xf32> to vector<16x4xbf16>
    %27 = arith.truncf %25 : vector<4x32xf32> to vector<4x32xbf16>
    %cst_8 = arith.constant dense<0.000000e+00> : vector<16x32xf32>
    %28 = tpu.matmul %26, %27, %cst_8 {dimension_numbers = #tpu.dot_dimension_numbers<[1], [0], [0], [1], [0, 0, 1, 1], [], []>} : vector<16x4xbf16>, vector<4x32xbf16>, vector<16x32xf32> -> vector<16x32xf32>
    %29 = arith.addf %24, %28 : vector<16x32xf32>
    %30 = vector.extract_strided_slice %4 {offsets = [8, 0], sizes = [4, 32], strides = [1, 1]} : vector<12x32xf32> to vector<4x32xf32>
    %31 = arith.truncf %20 : vector<16x4xf32> to vector<16x4xbf16>
    %32 = arith.truncf %30 : vector<4x32xf32> to vector<4x32xbf16>
    %cst_9 = arith.constant dense<0.000000e+00> : vector<16x32xf32>
    %33 = tpu.matmul %31, %32, %cst_9 {dimension_numbers = #tpu.dot_dimension_numbers<[1], [0], [0], [1], [0, 0, 1, 1], [], []>} : vector<16x4xbf16>, vector<4x32xbf16>, vector<16x32xf32> -> vector<16x32xf32>
    %34 = arith.addf %29, %33 : vector<16x32xf32>
    %c0_10 = arith.constant 0 : index
    %c0_11 = arith.constant 0 : index
    %35 = vector.load %arg3[%c0_10, %c0_11] : memref<40x128xf32, #tpu.memory_space<vmem>>, vector<1x32xf32>
    %36 = vector.broadcast %35 : vector<1x32xf32> to vector<16x32xf32>
    %37 = arith.addf %34, %36 : vector<16x32xf32>
    %38 = arith.addf %37, %2 : vector<16x32xf32>
    %c16_12 = arith.constant 16 : index
    %c0_13 = arith.constant 0 : index
    %39 = vector.load %arg2[%c16_12, %c0_13] : memref<712x128xf32, #tpu.memory_space<vmem>>, vector<12x32xf32>
    %40 = vector.extract_strided_slice %1 {offsets = [0, 0], sizes = [8, 4], strides = [1, 1]} : vector<16x4xf32> to vector<8x4xf32>
    %41 = vector.extract_strided_slice %40 {offsets = [7, 0], sizes = [1, 4], strides = [1, 1]} : vector<8x4xf32> to vector<1x4xf32>
    %42 = vector.extract_strided_slice %40 {offsets = [0, 0], sizes = [7, 4], strides = [1, 1]} : vector<8x4xf32> to vector<7x4xf32>
    %43 = tpu.concatenate %41, %42 in 0 : vector<1x4xf32>, vector<7x4xf32> -> vector<8x4xf32>
    %44 = vector.extract_strided_slice %40 {offsets = [1, 0], sizes = [7, 4], strides = [1, 1]} : vector<8x4xf32> to vector<7x4xf32>
    %45 = vector.extract_strided_slice %40 {offsets = [0, 0], sizes = [1, 4], strides = [1, 1]} : vector<8x4xf32> to vector<1x4xf32>
    %46 = tpu.concatenate %44, %45 in 0 : vector<7x4xf32>, vector<1x4xf32> -> vector<8x4xf32>
    %47 = vector.extract_strided_slice %1 {offsets = [8, 0], sizes = [8, 4], strides = [1, 1]} : vector<16x4xf32> to vector<8x4xf32>
    %48 = vector.extract_strided_slice %47 {offsets = [7, 0], sizes = [1, 4], strides = [1, 1]} : vector<8x4xf32> to vector<1x4xf32>
    %49 = vector.extract_strided_slice %47 {offsets = [0, 0], sizes = [7, 4], strides = [1, 1]} : vector<8x4xf32> to vector<7x4xf32>
    %50 = tpu.concatenate %48, %49 in 0 : vector<1x4xf32>, vector<7x4xf32> -> vector<8x4xf32>
    %51 = vector.extract_strided_slice %47 {offsets = [1, 0], sizes = [7, 4], strides = [1, 1]} : vector<8x4xf32> to vector<7x4xf32>
    %52 = vector.extract_strided_slice %47 {offsets = [0, 0], sizes = [1, 4], strides = [1, 1]} : vector<8x4xf32> to vector<1x4xf32>
    %53 = tpu.concatenate %51, %52 in 0 : vector<7x4xf32>, vector<1x4xf32> -> vector<8x4xf32>
    %54 = tpu.concatenate %43, %50 in 0 : vector<8x4xf32>, vector<8x4xf32> -> vector<16x4xf32>
    %55 = tpu.concatenate %46, %53 in 0 : vector<8x4xf32>, vector<8x4xf32> -> vector<16x4xf32>
    %56 = vector.extract_strided_slice %39 {offsets = [0, 0], sizes = [4, 32], strides = [1, 1]} : vector<12x32xf32> to vector<4x32xf32>
    %57 = arith.truncf %54 : vector<16x4xf32> to vector<16x4xbf16>
    %58 = arith.truncf %56 : vector<4x32xf32> to vector<4x32xbf16>
    %cst_14 = arith.constant dense<0.000000e+00> : vector<16x32xf32>
    %59 = tpu.matmul %57, %58, %cst_14 {dimension_numbers = #tpu.dot_dimension_numbers<[1], [0], [0], [1], [0, 0, 1, 1], [], []>} : vector<16x4xbf16>, vector<4x32xbf16>, vector<16x32xf32> -> vector<16x32xf32>
    %60 = vector.extract_strided_slice %39 {offsets = [4, 0], sizes = [4, 32], strides = [1, 1]} : vector<12x32xf32> to vector<4x32xf32>
    %61 = arith.truncf %1 : vector<16x4xf32> to vector<16x4xbf16>
    %62 = arith.truncf %60 : vector<4x32xf32> to vector<4x32xbf16>
    %cst_15 = arith.constant dense<0.000000e+00> : vector<16x32xf32>
    %63 = tpu.matmul %61, %62, %cst_15 {dimension_numbers = #tpu.dot_dimension_numbers<[1], [0], [0], [1], [0, 0, 1, 1], [], []>} : vector<16x4xbf16>, vector<4x32xbf16>, vector<16x32xf32> -> vector<16x32xf32>
    %64 = arith.addf %59, %63 : vector<16x32xf32>
    %65 = vector.extract_strided_slice %39 {offsets = [8, 0], sizes = [4, 32], strides = [1, 1]} : vector<12x32xf32> to vector<4x32xf32>
    %66 = arith.truncf %55 : vector<16x4xf32> to vector<16x4xbf16>
    %67 = arith.truncf %65 : vector<4x32xf32> to vector<4x32xbf16>
    %cst_16 = arith.constant dense<0.000000e+00> : vector<16x32xf32>
    %68 = tpu.matmul %66, %67, %cst_16 {dimension_numbers = #tpu.dot_dimension_numbers<[1], [0], [0], [1], [0, 0, 1, 1], [], []>} : vector<16x4xbf16>, vector<4x32xbf16>, vector<16x32xf32> -> vector<16x32xf32>
    %69 = arith.addf %64, %68 : vector<16x32xf32>
    %c1 = arith.constant 1 : index
    %c0_17 = arith.constant 0 : index
    %70 = vector.load %arg3[%c1, %c0_17] : memref<40x128xf32, #tpu.memory_space<vmem>>, vector<1x32xf32>
    %71 = vector.broadcast %70 : vector<1x32xf32> to vector<16x32xf32>
    %72 = arith.addf %69, %71 : vector<16x32xf32>
    %73 = arith.addf %72, %3 : vector<16x32xf32>
    %c32 = arith.constant 32 : index
    %c0_18 = arith.constant 0 : index
    %74 = vector.load %arg2[%c32, %c0_18] : memref<712x128xf32, #tpu.memory_space<vmem>>, vector<32x96xf32>
    %75 = arith.truncf %38 : vector<16x32xf32> to vector<16x32xbf16>
    %76 = arith.truncf %74 : vector<32x96xf32> to vector<32x96xbf16>
    %cst_19 = arith.constant dense<0.000000e+00> : vector<16x96xf32>
    %77 = tpu.matmul %75, %76, %cst_19 {dimension_numbers = #tpu.dot_dimension_numbers<[1], [0], [0], [1], [0, 0, 1, 1], [], []>} : vector<16x32xbf16>, vector<32x96xbf16>, vector<16x96xf32> -> vector<16x96xf32>
    %c2 = arith.constant 2 : index
    %c0_20 = arith.constant 0 : index
    %78 = vector.load %arg3[%c2, %c0_20] : memref<40x128xf32, #tpu.memory_space<vmem>>, vector<1x96xf32>
    %79 = vector.broadcast %78 : vector<1x96xf32> to vector<16x96xf32>
    %80 = arith.addf %77, %79 : vector<16x96xf32>
    %81 = vector.extract_strided_slice %80 {offsets = [0, 0], sizes = [16, 32], strides = [1, 1]} : vector<16x96xf32> to vector<16x32xf32>
    %82 = vector.extract_strided_slice %80 {offsets = [0, 32], sizes = [16, 32], strides = [1, 1]} : vector<16x96xf32> to vector<16x32xf32>
    %83 = vector.extract_strided_slice %80 {offsets = [0, 64], sizes = [16, 32], strides = [1, 1]} : vector<16x96xf32> to vector<16x32xf32>
    %84 = vector.extract_strided_slice %81 {offsets = [0, 0], sizes = [8, 8], strides = [1, 1]} : vector<16x32xf32> to vector<8x8xf32>
    %85 = vector.extract_strided_slice %82 {offsets = [0, 0], sizes = [8, 8], strides = [1, 1]} : vector<16x32xf32> to vector<8x8xf32>
    %86 = arith.truncf %84 : vector<8x8xf32> to vector<8x8xbf16>
    %87 = arith.truncf %85 : vector<8x8xf32> to vector<8x8xbf16>
    %cst_21 = arith.constant dense<0.000000e+00> : vector<8x8xf32>
    %88 = tpu.matmul %86, %87, %cst_21 {dimension_numbers = #tpu.dot_dimension_numbers<[1], [1], [0], [0], [0, 0, 1, 0], [], []>} : vector<8x8xbf16>, vector<8x8xbf16>, vector<8x8xf32> -> vector<8x8xf32>
    %89 = vector.extract_strided_slice %81 {offsets = [0, 8], sizes = [8, 8], strides = [1, 1]} : vector<16x32xf32> to vector<8x8xf32>
    %90 = vector.extract_strided_slice %82 {offsets = [0, 8], sizes = [8, 8], strides = [1, 1]} : vector<16x32xf32> to vector<8x8xf32>
    %91 = arith.truncf %89 : vector<8x8xf32> to vector<8x8xbf16>
    %92 = arith.truncf %90 : vector<8x8xf32> to vector<8x8xbf16>
    %cst_22 = arith.constant dense<0.000000e+00> : vector<8x8xf32>
    %93 = tpu.matmul %91, %92, %cst_22 {dimension_numbers = #tpu.dot_dimension_numbers<[1], [1], [0], [0], [0, 0, 1, 0], [], []>} : vector<8x8xbf16>, vector<8x8xbf16>, vector<8x8xf32> -> vector<8x8xf32>
    %94 = vector.extract_strided_slice %81 {offsets = [0, 16], sizes = [8, 8], strides = [1, 1]} : vector<16x32xf32> to vector<8x8xf32>
    %95 = vector.extract_strided_slice %82 {offsets = [0, 16], sizes = [8, 8], strides = [1, 1]} : vector<16x32xf32> to vector<8x8xf32>
    %96 = arith.truncf %94 : vector<8x8xf32> to vector<8x8xbf16>
    %97 = arith.truncf %95 : vector<8x8xf32> to vector<8x8xbf16>
    %cst_23 = arith.constant dense<0.000000e+00> : vector<8x8xf32>
    %98 = tpu.matmul %96, %97, %cst_23 {dimension_numbers = #tpu.dot_dimension_numbers<[1], [1], [0], [0], [0, 0, 1, 0], [], []>} : vector<8x8xbf16>, vector<8x8xbf16>, vector<8x8xf32> -> vector<8x8xf32>
    %99 = vector.extract_strided_slice %81 {offsets = [0, 24], sizes = [8, 8], strides = [1, 1]} : vector<16x32xf32> to vector<8x8xf32>
    %100 = vector.extract_strided_slice %82 {offsets = [0, 24], sizes = [8, 8], strides = [1, 1]} : vector<16x32xf32> to vector<8x8xf32>
    %101 = arith.truncf %99 : vector<8x8xf32> to vector<8x8xbf16>
    %102 = arith.truncf %100 : vector<8x8xf32> to vector<8x8xbf16>
    %cst_24 = arith.constant dense<0.000000e+00> : vector<8x8xf32>
    %103 = tpu.matmul %101, %102, %cst_24 {dimension_numbers = #tpu.dot_dimension_numbers<[1], [1], [0], [0], [0, 0, 1, 0], [], []>} : vector<8x8xbf16>, vector<8x8xbf16>, vector<8x8xf32> -> vector<8x8xf32>
    %104 = vector.extract_strided_slice %81 {offsets = [8, 0], sizes = [8, 8], strides = [1, 1]} : vector<16x32xf32> to vector<8x8xf32>
    %105 = vector.extract_strided_slice %82 {offsets = [8, 0], sizes = [8, 8], strides = [1, 1]} : vector<16x32xf32> to vector<8x8xf32>
    %106 = arith.truncf %104 : vector<8x8xf32> to vector<8x8xbf16>
    %107 = arith.truncf %105 : vector<8x8xf32> to vector<8x8xbf16>
    %cst_25 = arith.constant dense<0.000000e+00> : vector<8x8xf32>
    %108 = tpu.matmul %106, %107, %cst_25 {dimension_numbers = #tpu.dot_dimension_numbers<[1], [1], [0], [0], [0, 0, 1, 0], [], []>} : vector<8x8xbf16>, vector<8x8xbf16>, vector<8x8xf32> -> vector<8x8xf32>
    %109 = vector.extract_strided_slice %81 {offsets = [8, 8], sizes = [8, 8], strides = [1, 1]} : vector<16x32xf32> to vector<8x8xf32>
    %110 = vector.extract_strided_slice %82 {offsets = [8, 8], sizes = [8, 8], strides = [1, 1]} : vector<16x32xf32> to vector<8x8xf32>
    %111 = arith.truncf %109 : vector<8x8xf32> to vector<8x8xbf16>
    %112 = arith.truncf %110 : vector<8x8xf32> to vector<8x8xbf16>
    %cst_26 = arith.constant dense<0.000000e+00> : vector<8x8xf32>
    %113 = tpu.matmul %111, %112, %cst_26 {dimension_numbers = #tpu.dot_dimension_numbers<[1], [1], [0], [0], [0, 0, 1, 0], [], []>} : vector<8x8xbf16>, vector<8x8xbf16>, vector<8x8xf32> -> vector<8x8xf32>
    %114 = vector.extract_strided_slice %81 {offsets = [8, 16], sizes = [8, 8], strides = [1, 1]} : vector<16x32xf32> to vector<8x8xf32>
    %115 = vector.extract_strided_slice %82 {offsets = [8, 16], sizes = [8, 8], strides = [1, 1]} : vector<16x32xf32> to vector<8x8xf32>
    %116 = arith.truncf %114 : vector<8x8xf32> to vector<8x8xbf16>
    %117 = arith.truncf %115 : vector<8x8xf32> to vector<8x8xbf16>
    %cst_27 = arith.constant dense<0.000000e+00> : vector<8x8xf32>
    %118 = tpu.matmul %116, %117, %cst_27 {dimension_numbers = #tpu.dot_dimension_numbers<[1], [1], [0], [0], [0, 0, 1, 0], [], []>} : vector<8x8xbf16>, vector<8x8xbf16>, vector<8x8xf32> -> vector<8x8xf32>
    %119 = vector.extract_strided_slice %81 {offsets = [8, 24], sizes = [8, 8], strides = [1, 1]} : vector<16x32xf32> to vector<8x8xf32>
    %120 = vector.extract_strided_slice %82 {offsets = [8, 24], sizes = [8, 8], strides = [1, 1]} : vector<16x32xf32> to vector<8x8xf32>
    %121 = arith.truncf %119 : vector<8x8xf32> to vector<8x8xbf16>
    %122 = arith.truncf %120 : vector<8x8xf32> to vector<8x8xbf16>
    %cst_28 = arith.constant dense<0.000000e+00> : vector<8x8xf32>
    %123 = tpu.matmul %121, %122, %cst_28 {dimension_numbers = #tpu.dot_dimension_numbers<[1], [1], [0], [0], [0, 0, 1, 0], [], []>} : vector<8x8xbf16>, vector<8x8xbf16>, vector<8x8xf32> -> vector<8x8xf32>
    %124 = tpu.concatenate %88, %93, %98, %103, %108, %113, %118, %123 in 0 : vector<8x8xf32>, vector<8x8xf32>, vector<8x8xf32>, vector<8x8xf32>, vector<8x8xf32>, vector<8x8xf32>, vector<8x8xf32>, vector<8x8xf32> -> vector<64x8xf32>
    %cst_29 = arith.constant dense<0xFF800000> : vector<64xf32>
    %125 = vector.multi_reduction <maximumf>, %124, %cst_29 [1] : vector<64x8xf32> to vector<64xf32>
    %126 = vector.shape_cast %125 : vector<64xf32> to vector<64x1xf32>
    %127 = vector.broadcast %126 : vector<64x1xf32> to vector<64x8xf32>
    %128 = arith.subf %124, %127 : vector<64x8xf32>
    %129 = math.exp %128 : vector<64x8xf32>
    %cst_30 = arith.constant dense<0.000000e+00> : vector<64xf32>
    %130 = vector.multi_reduction <add>, %129, %cst_30 [1] : vector<64x8xf32> to vector<64xf32>
    %131 = vector.shape_cast %130 : vector<64xf32> to vector<64x1xf32>
    %132 = tpu.reciprocal %131 {approx = true} : vector<64x1xf32> -> vector<64x1xf32>
    %133 = vector.broadcast %132 : vector<64x1xf32> to vector<64x8xf32>
    %134 = arith.mulf %129, %133 : vector<64x8xf32>
    %c64 = arith.constant 64 : index
    %c0_31 = arith.constant 0 : index
    %135 = vector.load %arg2[%c64, %c0_31] : memref<712x128xf32, #tpu.memory_space<vmem>>, vector<32x32xf32>
    %136 = vector.extract_strided_slice %134 {offsets = [0, 0], sizes = [8, 8], strides = [1, 1]} : vector<64x8xf32> to vector<8x8xf32>
    %137 = vector.extract_strided_slice %83 {offsets = [0, 0], sizes = [8, 8], strides = [1, 1]} : vector<16x32xf32> to vector<8x8xf32>
    %138 = arith.truncf %136 : vector<8x8xf32> to vector<8x8xbf16>
    %139 = arith.truncf %137 : vector<8x8xf32> to vector<8x8xbf16>
    %cst_32 = arith.constant dense<0.000000e+00> : vector<8x8xf32>
    %140 = tpu.matmul %138, %139, %cst_32 {dimension_numbers = #tpu.dot_dimension_numbers<[1], [0], [0], [1], [0, 0, 1, 1], [], []>} : vector<8x8xbf16>, vector<8x8xbf16>, vector<8x8xf32> -> vector<8x8xf32>
    %141 = vector.extract_strided_slice %134 {offsets = [32, 0], sizes = [8, 8], strides = [1, 1]} : vector<64x8xf32> to vector<8x8xf32>
    %142 = vector.extract_strided_slice %83 {offsets = [8, 0], sizes = [8, 8], strides = [1, 1]} : vector<16x32xf32> to vector<8x8xf32>
    %143 = arith.truncf %141 : vector<8x8xf32> to vector<8x8xbf16>
    %144 = arith.truncf %142 : vector<8x8xf32> to vector<8x8xbf16>
    %cst_33 = arith.constant dense<0.000000e+00> : vector<8x8xf32>
    %145 = tpu.matmul %143, %144, %cst_33 {dimension_numbers = #tpu.dot_dimension_numbers<[1], [0], [0], [1], [0, 0, 1, 1], [], []>} : vector<8x8xbf16>, vector<8x8xbf16>, vector<8x8xf32> -> vector<8x8xf32>
    %146 = tpu.concatenate %140, %145 in 0 : vector<8x8xf32>, vector<8x8xf32> -> vector<16x8xf32>
    %147 = vector.extract_strided_slice %135 {offsets = [0, 0], sizes = [8, 32], strides = [1, 1]} : vector<32x32xf32> to vector<8x32xf32>
    %148 = arith.truncf %146 : vector<16x8xf32> to vector<16x8xbf16>
    %149 = arith.truncf %147 : vector<8x32xf32> to vector<8x32xbf16>
    %cst_34 = arith.constant dense<0.000000e+00> : vector<16x32xf32>
    %150 = tpu.matmul %148, %149, %cst_34 {dimension_numbers = #tpu.dot_dimension_numbers<[1], [0], [0], [1], [0, 0, 1, 1], [], []>} : vector<16x8xbf16>, vector<8x32xbf16>, vector<16x32xf32> -> vector<16x32xf32>
    %151 = vector.extract_strided_slice %134 {offsets = [8, 0], sizes = [8, 8], strides = [1, 1]} : vector<64x8xf32> to vector<8x8xf32>
    %152 = vector.extract_strided_slice %83 {offsets = [0, 8], sizes = [8, 8], strides = [1, 1]} : vector<16x32xf32> to vector<8x8xf32>
    %153 = arith.truncf %151 : vector<8x8xf32> to vector<8x8xbf16>
    %154 = arith.truncf %152 : vector<8x8xf32> to vector<8x8xbf16>
    %cst_35 = arith.constant dense<0.000000e+00> : vector<8x8xf32>
    %155 = tpu.matmul %153, %154, %cst_35 {dimension_numbers = #tpu.dot_dimension_numbers<[1], [0], [0], [1], [0, 0, 1, 1], [], []>} : vector<8x8xbf16>, vector<8x8xbf16>, vector<8x8xf32> -> vector<8x8xf32>
    %156 = vector.extract_strided_slice %134 {offsets = [40, 0], sizes = [8, 8], strides = [1, 1]} : vector<64x8xf32> to vector<8x8xf32>
    %157 = vector.extract_strided_slice %83 {offsets = [8, 8], sizes = [8, 8], strides = [1, 1]} : vector<16x32xf32> to vector<8x8xf32>
    %158 = arith.truncf %156 : vector<8x8xf32> to vector<8x8xbf16>
    %159 = arith.truncf %157 : vector<8x8xf32> to vector<8x8xbf16>
    %cst_36 = arith.constant dense<0.000000e+00> : vector<8x8xf32>
    %160 = tpu.matmul %158, %159, %cst_36 {dimension_numbers = #tpu.dot_dimension_numbers<[1], [0], [0], [1], [0, 0, 1, 1], [], []>} : vector<8x8xbf16>, vector<8x8xbf16>, vector<8x8xf32> -> vector<8x8xf32>
    %161 = tpu.concatenate %155, %160 in 0 : vector<8x8xf32>, vector<8x8xf32> -> vector<16x8xf32>
    %162 = vector.extract_strided_slice %135 {offsets = [8, 0], sizes = [8, 32], strides = [1, 1]} : vector<32x32xf32> to vector<8x32xf32>
    %163 = arith.truncf %161 : vector<16x8xf32> to vector<16x8xbf16>
    %164 = arith.truncf %162 : vector<8x32xf32> to vector<8x32xbf16>
    %cst_37 = arith.constant dense<0.000000e+00> : vector<16x32xf32>
    %165 = tpu.matmul %163, %164, %cst_37 {dimension_numbers = #tpu.dot_dimension_numbers<[1], [0], [0], [1], [0, 0, 1, 1], [], []>} : vector<16x8xbf16>, vector<8x32xbf16>, vector<16x32xf32> -> vector<16x32xf32>
    %166 = arith.addf %150, %165 : vector<16x32xf32>
    %167 = vector.extract_strided_slice %134 {offsets = [16, 0], sizes = [8, 8], strides = [1, 1]} : vector<64x8xf32> to vector<8x8xf32>
    %168 = vector.extract_strided_slice %83 {offsets = [0, 16], sizes = [8, 8], strides = [1, 1]} : vector<16x32xf32> to vector<8x8xf32>
    %169 = arith.truncf %167 : vector<8x8xf32> to vector<8x8xbf16>
    %170 = arith.truncf %168 : vector<8x8xf32> to vector<8x8xbf16>
    %cst_38 = arith.constant dense<0.000000e+00> : vector<8x8xf32>
    %171 = tpu.matmul %169, %170, %cst_38 {dimension_numbers = #tpu.dot_dimension_numbers<[1], [0], [0], [1], [0, 0, 1, 1], [], []>} : vector<8x8xbf16>, vector<8x8xbf16>, vector<8x8xf32> -> vector<8x8xf32>
    %172 = vector.extract_strided_slice %134 {offsets = [48, 0], sizes = [8, 8], strides = [1, 1]} : vector<64x8xf32> to vector<8x8xf32>
    %173 = vector.extract_strided_slice %83 {offsets = [8, 16], sizes = [8, 8], strides = [1, 1]} : vector<16x32xf32> to vector<8x8xf32>
    %174 = arith.truncf %172 : vector<8x8xf32> to vector<8x8xbf16>
    %175 = arith.truncf %173 : vector<8x8xf32> to vector<8x8xbf16>
    %cst_39 = arith.constant dense<0.000000e+00> : vector<8x8xf32>
    %176 = tpu.matmul %174, %175, %cst_39 {dimension_numbers = #tpu.dot_dimension_numbers<[1], [0], [0], [1], [0, 0, 1, 1], [], []>} : vector<8x8xbf16>, vector<8x8xbf16>, vector<8x8xf32> -> vector<8x8xf32>
    %177 = tpu.concatenate %171, %176 in 0 : vector<8x8xf32>, vector<8x8xf32> -> vector<16x8xf32>
    %178 = vector.extract_strided_slice %135 {offsets = [16, 0], sizes = [8, 32], strides = [1, 1]} : vector<32x32xf32> to vector<8x32xf32>
    %179 = arith.truncf %177 : vector<16x8xf32> to vector<16x8xbf16>
    %180 = arith.truncf %178 : vector<8x32xf32> to vector<8x32xbf16>
    %cst_40 = arith.constant dense<0.000000e+00> : vector<16x32xf32>
    %181 = tpu.matmul %179, %180, %cst_40 {dimension_numbers = #tpu.dot_dimension_numbers<[1], [0], [0], [1], [0, 0, 1, 1], [], []>} : vector<16x8xbf16>, vector<8x32xbf16>, vector<16x32xf32> -> vector<16x32xf32>
    %182 = arith.addf %166, %181 : vector<16x32xf32>
    %183 = vector.extract_strided_slice %134 {offsets = [24, 0], sizes = [8, 8], strides = [1, 1]} : vector<64x8xf32> to vector<8x8xf32>
    %184 = vector.extract_strided_slice %83 {offsets = [0, 24], sizes = [8, 8], strides = [1, 1]} : vector<16x32xf32> to vector<8x8xf32>
    %185 = arith.truncf %183 : vector<8x8xf32> to vector<8x8xbf16>
    %186 = arith.truncf %184 : vector<8x8xf32> to vector<8x8xbf16>
    %cst_41 = arith.constant dense<0.000000e+00> : vector<8x8xf32>
    %187 = tpu.matmul %185, %186, %cst_41 {dimension_numbers = #tpu.dot_dimension_numbers<[1], [0], [0], [1], [0, 0, 1, 1], [], []>} : vector<8x8xbf16>, vector<8x8xbf16>, vector<8x8xf32> -> vector<8x8xf32>
    %188 = vector.extract_strided_slice %134 {offsets = [56, 0], sizes = [8, 8], strides = [1, 1]} : vector<64x8xf32> to vector<8x8xf32>
    %189 = vector.extract_strided_slice %83 {offsets = [8, 24], sizes = [8, 8], strides = [1, 1]} : vector<16x32xf32> to vector<8x8xf32>
    %190 = arith.truncf %188 : vector<8x8xf32> to vector<8x8xbf16>
    %191 = arith.truncf %189 : vector<8x8xf32> to vector<8x8xbf16>
    %cst_42 = arith.constant dense<0.000000e+00> : vector<8x8xf32>
    %192 = tpu.matmul %190, %191, %cst_42 {dimension_numbers = #tpu.dot_dimension_numbers<[1], [0], [0], [1], [0, 0, 1, 1], [], []>} : vector<8x8xbf16>, vector<8x8xbf16>, vector<8x8xf32> -> vector<8x8xf32>
    %193 = tpu.concatenate %187, %192 in 0 : vector<8x8xf32>, vector<8x8xf32> -> vector<16x8xf32>
    %194 = vector.extract_strided_slice %135 {offsets = [24, 0], sizes = [8, 32], strides = [1, 1]} : vector<32x32xf32> to vector<8x32xf32>
    %195 = arith.truncf %193 : vector<16x8xf32> to vector<16x8xbf16>
    %196 = arith.truncf %194 : vector<8x32xf32> to vector<8x32xbf16>
    %cst_43 = arith.constant dense<0.000000e+00> : vector<16x32xf32>
    %197 = tpu.matmul %195, %196, %cst_43 {dimension_numbers = #tpu.dot_dimension_numbers<[1], [0], [0], [1], [0, 0, 1, 1], [], []>} : vector<16x8xbf16>, vector<8x32xbf16>, vector<16x32xf32> -> vector<16x32xf32>
    %198 = arith.addf %182, %197 : vector<16x32xf32>
    %c3 = arith.constant 3 : index
    %c0_44 = arith.constant 0 : index
    %199 = vector.load %arg3[%c3, %c0_44] : memref<40x128xf32, #tpu.memory_space<vmem>>, vector<1x32xf32>
    %200 = vector.broadcast %199 : vector<1x32xf32> to vector<16x32xf32>
    %201 = arith.addf %198, %200 : vector<16x32xf32>
    %202 = arith.addf %38, %201 : vector<16x32xf32>
    %c6 = arith.constant 6 : index
    %c0_45 = arith.constant 0 : index
    %203 = vector.load %arg3[%c6, %c0_45] : memref<40x128xf32, #tpu.memory_space<vmem>>, vector<1x32xf32>
    %c7 = arith.constant 7 : index
    %c0_46 = arith.constant 0 : index
    %204 = vector.load %arg3[%c7, %c0_46] : memref<40x128xf32, #tpu.memory_space<vmem>>, vector<1x32xf32>
    %cst_47 = arith.constant dense<0.000000e+00> : vector<16xf32>
    %205 = vector.multi_reduction <add>, %202, %cst_47 [1] : vector<16x32xf32> to vector<16xf32>
    %206 = vector.shape_cast %205 : vector<16xf32> to vector<16x1xf32>
    %cst_48 = arith.constant 3.200000e+01 : f32
    %207 = vector.broadcast %cst_48 : f32 to vector<16x1xf32>
    %208 = arith.divf %206, %207 : vector<16x1xf32>
    %209 = vector.broadcast %208 : vector<16x1xf32> to vector<16x32xf32>
    %210 = arith.subf %202, %209 : vector<16x32xf32>
    %211 = arith.mulf %210, %210 : vector<16x32xf32>
    %cst_49 = arith.constant dense<0.000000e+00> : vector<16xf32>
    %212 = vector.multi_reduction <add>, %211, %cst_49 [1] : vector<16x32xf32> to vector<16xf32>
    %213 = vector.shape_cast %212 : vector<16xf32> to vector<16x1xf32>
    %cst_50 = arith.constant 3.200000e+01 : f32
    %214 = vector.broadcast %cst_50 : f32 to vector<16x1xf32>
    %215 = arith.divf %213, %214 : vector<16x1xf32>
    %cst_51 = arith.constant 9.99999974E-6 : f32
    %216 = vector.broadcast %cst_51 : f32 to vector<16x1xf32>
    %217 = arith.addf %215, %216 : vector<16x1xf32>
    %218 = math.rsqrt %217 : vector<16x1xf32>
    %219 = vector.broadcast %218 : vector<16x1xf32> to vector<16x32xf32>
    %220 = arith.mulf %210, %219 : vector<16x32xf32>
    %221 = vector.broadcast %203 : vector<1x32xf32> to vector<16x32xf32>
    %222 = arith.mulf %220, %221 : vector<16x32xf32>
    %223 = vector.broadcast %204 : vector<1x32xf32> to vector<16x32xf32>
    %224 = arith.addf %222, %223 : vector<16x32xf32>
    %c96 = arith.constant 96 : index
    %c0_52 = arith.constant 0 : index
    %225 = vector.load %arg2[%c96, %c0_52] : memref<712x128xf32, #tpu.memory_space<vmem>>, vector<32x32xf32>
    %226 = arith.truncf %224 : vector<16x32xf32> to vector<16x32xbf16>
    %227 = arith.truncf %225 : vector<32x32xf32> to vector<32x32xbf16>
    %cst_53 = arith.constant dense<0.000000e+00> : vector<16x32xf32>
    %228 = tpu.matmul %226, %227, %cst_53 {dimension_numbers = #tpu.dot_dimension_numbers<[1], [0], [0], [1], [0, 0, 1, 1], [], []>} : vector<16x32xbf16>, vector<32x32xbf16>, vector<16x32xf32> -> vector<16x32xf32>
    %c4 = arith.constant 4 : index
    %c0_54 = arith.constant 0 : index
    %229 = vector.load %arg3[%c4, %c0_54] : memref<40x128xf32, #tpu.memory_space<vmem>>, vector<1x32xf32>
    %230 = vector.broadcast %229 : vector<1x32xf32> to vector<16x32xf32>
    %231 = arith.addf %228, %230 : vector<16x32xf32>
    %cst_55 = arith.constant 5.000000e-01 : f32
    %232 = vector.broadcast %cst_55 : f32 to vector<16x32xf32>
    %233 = arith.mulf %232, %231 : vector<16x32xf32>
    %cst_56 = arith.constant 0.707106769 : f32
    %234 = vector.broadcast %cst_56 : f32 to vector<16x32xf32>
    %235 = arith.mulf %231, %234 : vector<16x32xf32>
    %236 = math.absf %235 : vector<16x32xf32>
    %cst_57 = arith.constant 0.327591091 : f32
    %237 = vector.broadcast %cst_57 : f32 to vector<16x32xf32>
    %238 = arith.mulf %237, %236 : vector<16x32xf32>
    %cst_58 = arith.constant 1.000000e+00 : f32
    %239 = vector.broadcast %cst_58 : f32 to vector<16x32xf32>
    %240 = arith.addf %239, %238 : vector<16x32xf32>
    %cst_59 = arith.constant 1.000000e+00 : f32
    %241 = vector.broadcast %cst_59 : f32 to vector<16x32xf32>
    %242 = arith.divf %241, %240 : vector<16x32xf32>
    %cst_60 = arith.constant 1.06140542 : f32
    %243 = vector.broadcast %cst_60 : f32 to vector<16x32xf32>
    %244 = arith.mulf %243, %242 : vector<16x32xf32>
    %cst_61 = arith.constant -1.45315206 : f32
    %245 = vector.broadcast %cst_61 : f32 to vector<16x32xf32>
    %246 = arith.addf %244, %245 : vector<16x32xf32>
    %247 = arith.mulf %246, %242 : vector<16x32xf32>
    %cst_62 = arith.constant 1.42141378 : f32
    %248 = vector.broadcast %cst_62 : f32 to vector<16x32xf32>
    %249 = arith.addf %247, %248 : vector<16x32xf32>
    %250 = arith.mulf %249, %242 : vector<16x32xf32>
    %cst_63 = arith.constant -0.284496725 : f32
    %251 = vector.broadcast %cst_63 : f32 to vector<16x32xf32>
    %252 = arith.addf %250, %251 : vector<16x32xf32>
    %253 = arith.mulf %252, %242 : vector<16x32xf32>
    %cst_64 = arith.constant 0.254829586 : f32
    %254 = vector.broadcast %cst_64 : f32 to vector<16x32xf32>
    %255 = arith.addf %253, %254 : vector<16x32xf32>
    %256 = arith.mulf %255, %242 : vector<16x32xf32>
    %cst_65 = arith.constant 0.000000e+00 : f32
    %257 = vector.broadcast %cst_65 : f32 to vector<16x32xf32>
    %258 = arith.subf %257, %236 : vector<16x32xf32>
    %259 = arith.mulf %258, %236 : vector<16x32xf32>
    %260 = math.exp %259 : vector<16x32xf32>
    %261 = arith.mulf %256, %260 : vector<16x32xf32>
    %cst_66 = arith.constant 1.000000e+00 : f32
    %262 = vector.broadcast %cst_66 : f32 to vector<16x32xf32>
    %263 = arith.subf %262, %261 : vector<16x32xf32>
    %cst_67 = arith.constant 0.000000e+00 : f32
    %264 = vector.broadcast %cst_67 : f32 to vector<16x32xf32>
    %265 = arith.cmpf olt, %235, %264 : vector<16x32xf32>
    %cst_68 = arith.constant 0.000000e+00 : f32
    %266 = vector.broadcast %cst_68 : f32 to vector<16x32xf32>
    %267 = arith.subf %266, %263 : vector<16x32xf32>
    %268 = arith.select %265, %267, %263 : vector<16x32xi1>, vector<16x32xf32>
    %cst_69 = arith.constant 1.000000e+00 : f32
    %269 = vector.broadcast %cst_69 : f32 to vector<16x32xf32>
    %270 = arith.addf %269, %268 : vector<16x32xf32>
    %271 = arith.mulf %233, %270 : vector<16x32xf32>
    %c128 = arith.constant 128 : index
    %c0_70 = arith.constant 0 : index
    %272 = vector.load %arg2[%c128, %c0_70] : memref<712x128xf32, #tpu.memory_space<vmem>>, vector<32x32xf32>
    %273 = arith.truncf %271 : vector<16x32xf32> to vector<16x32xbf16>
    %274 = arith.truncf %272 : vector<32x32xf32> to vector<32x32xbf16>
    %cst_71 = arith.constant dense<0.000000e+00> : vector<16x32xf32>
    %275 = tpu.matmul %273, %274, %cst_71 {dimension_numbers = #tpu.dot_dimension_numbers<[1], [0], [0], [1], [0, 0, 1, 1], [], []>} : vector<16x32xbf16>, vector<32x32xbf16>, vector<16x32xf32> -> vector<16x32xf32>
    %c5 = arith.constant 5 : index
    %c0_72 = arith.constant 0 : index
    %276 = vector.load %arg3[%c5, %c0_72] : memref<40x128xf32, #tpu.memory_space<vmem>>, vector<1x32xf32>
    %277 = vector.broadcast %276 : vector<1x32xf32> to vector<16x32xf32>
    %278 = arith.addf %275, %277 : vector<16x32xf32>
    %279 = arith.addf %224, %278 : vector<16x32xf32>
    %c8 = arith.constant 8 : index
    %c0_73 = arith.constant 0 : index
    %280 = vector.load %arg3[%c8, %c0_73] : memref<40x128xf32, #tpu.memory_space<vmem>>, vector<1x32xf32>
    %c9 = arith.constant 9 : index
    %c0_74 = arith.constant 0 : index
    %281 = vector.load %arg3[%c9, %c0_74] : memref<40x128xf32, #tpu.memory_space<vmem>>, vector<1x32xf32>
    %cst_75 = arith.constant dense<0.000000e+00> : vector<16xf32>
    %282 = vector.multi_reduction <add>, %279, %cst_75 [1] : vector<16x32xf32> to vector<16xf32>
    %283 = vector.shape_cast %282 : vector<16xf32> to vector<16x1xf32>
    %cst_76 = arith.constant 3.200000e+01 : f32
    %284 = vector.broadcast %cst_76 : f32 to vector<16x1xf32>
    %285 = arith.divf %283, %284 : vector<16x1xf32>
    %286 = vector.broadcast %285 : vector<16x1xf32> to vector<16x32xf32>
    %287 = arith.subf %279, %286 : vector<16x32xf32>
    %288 = arith.mulf %287, %287 : vector<16x32xf32>
    %cst_77 = arith.constant dense<0.000000e+00> : vector<16xf32>
    %289 = vector.multi_reduction <add>, %288, %cst_77 [1] : vector<16x32xf32> to vector<16xf32>
    %290 = vector.shape_cast %289 : vector<16xf32> to vector<16x1xf32>
    %cst_78 = arith.constant 3.200000e+01 : f32
    %291 = vector.broadcast %cst_78 : f32 to vector<16x1xf32>
    %292 = arith.divf %290, %291 : vector<16x1xf32>
    %cst_79 = arith.constant 9.99999974E-6 : f32
    %293 = vector.broadcast %cst_79 : f32 to vector<16x1xf32>
    %294 = arith.addf %292, %293 : vector<16x1xf32>
    %295 = math.rsqrt %294 : vector<16x1xf32>
    %296 = vector.broadcast %295 : vector<16x1xf32> to vector<16x32xf32>
    %297 = arith.mulf %287, %296 : vector<16x32xf32>
    %298 = vector.broadcast %280 : vector<1x32xf32> to vector<16x32xf32>
    %299 = arith.mulf %297, %298 : vector<16x32xf32>
    %300 = vector.broadcast %281 : vector<1x32xf32> to vector<16x32xf32>
    %301 = arith.addf %299, %300 : vector<16x32xf32>
    %c288 = arith.constant 288 : index
    %c0_80 = arith.constant 0 : index
    %302 = vector.load %arg2[%c288, %c0_80] : memref<712x128xf32, #tpu.memory_space<vmem>>, vector<96x32xf32>
    %303 = vector.extract_strided_slice %301 {offsets = [0, 0], sizes = [8, 32], strides = [1, 1]} : vector<16x32xf32> to vector<8x32xf32>
    %304 = vector.extract_strided_slice %303 {offsets = [7, 0], sizes = [1, 32], strides = [1, 1]} : vector<8x32xf32> to vector<1x32xf32>
    %305 = vector.extract_strided_slice %303 {offsets = [0, 0], sizes = [7, 32], strides = [1, 1]} : vector<8x32xf32> to vector<7x32xf32>
    %306 = tpu.concatenate %304, %305 in 0 : vector<1x32xf32>, vector<7x32xf32> -> vector<8x32xf32>
    %307 = vector.extract_strided_slice %303 {offsets = [1, 0], sizes = [7, 32], strides = [1, 1]} : vector<8x32xf32> to vector<7x32xf32>
    %308 = vector.extract_strided_slice %303 {offsets = [0, 0], sizes = [1, 32], strides = [1, 1]} : vector<8x32xf32> to vector<1x32xf32>
    %309 = tpu.concatenate %307, %308 in 0 : vector<7x32xf32>, vector<1x32xf32> -> vector<8x32xf32>
    %310 = vector.extract_strided_slice %301 {offsets = [8, 0], sizes = [8, 32], strides = [1, 1]} : vector<16x32xf32> to vector<8x32xf32>
    %311 = vector.extract_strided_slice %310 {offsets = [7, 0], sizes = [1, 32], strides = [1, 1]} : vector<8x32xf32> to vector<1x32xf32>
    %312 = vector.extract_strided_slice %310 {offsets = [0, 0], sizes = [7, 32], strides = [1, 1]} : vector<8x32xf32> to vector<7x32xf32>
    %313 = tpu.concatenate %311, %312 in 0 : vector<1x32xf32>, vector<7x32xf32> -> vector<8x32xf32>
    %314 = vector.extract_strided_slice %310 {offsets = [1, 0], sizes = [7, 32], strides = [1, 1]} : vector<8x32xf32> to vector<7x32xf32>
    %315 = vector.extract_strided_slice %310 {offsets = [0, 0], sizes = [1, 32], strides = [1, 1]} : vector<8x32xf32> to vector<1x32xf32>
    %316 = tpu.concatenate %314, %315 in 0 : vector<7x32xf32>, vector<1x32xf32> -> vector<8x32xf32>
    %317 = tpu.concatenate %306, %313 in 0 : vector<8x32xf32>, vector<8x32xf32> -> vector<16x32xf32>
    %318 = tpu.concatenate %309, %316 in 0 : vector<8x32xf32>, vector<8x32xf32> -> vector<16x32xf32>
    %319 = vector.extract_strided_slice %302 {offsets = [0, 0], sizes = [32, 32], strides = [1, 1]} : vector<96x32xf32> to vector<32x32xf32>
    %320 = arith.truncf %317 : vector<16x32xf32> to vector<16x32xbf16>
    %321 = arith.truncf %319 : vector<32x32xf32> to vector<32x32xbf16>
    %cst_81 = arith.constant dense<0.000000e+00> : vector<16x32xf32>
    %322 = tpu.matmul %320, %321, %cst_81 {dimension_numbers = #tpu.dot_dimension_numbers<[1], [0], [0], [1], [0, 0, 1, 1], [], []>} : vector<16x32xbf16>, vector<32x32xbf16>, vector<16x32xf32> -> vector<16x32xf32>
    %323 = vector.extract_strided_slice %302 {offsets = [32, 0], sizes = [32, 32], strides = [1, 1]} : vector<96x32xf32> to vector<32x32xf32>
    %324 = arith.truncf %301 : vector<16x32xf32> to vector<16x32xbf16>
    %325 = arith.truncf %323 : vector<32x32xf32> to vector<32x32xbf16>
    %cst_82 = arith.constant dense<0.000000e+00> : vector<16x32xf32>
    %326 = tpu.matmul %324, %325, %cst_82 {dimension_numbers = #tpu.dot_dimension_numbers<[1], [0], [0], [1], [0, 0, 1, 1], [], []>} : vector<16x32xbf16>, vector<32x32xbf16>, vector<16x32xf32> -> vector<16x32xf32>
    %327 = arith.addf %322, %326 : vector<16x32xf32>
    %328 = vector.extract_strided_slice %302 {offsets = [64, 0], sizes = [32, 32], strides = [1, 1]} : vector<96x32xf32> to vector<32x32xf32>
    %329 = arith.truncf %318 : vector<16x32xf32> to vector<16x32xbf16>
    %330 = arith.truncf %328 : vector<32x32xf32> to vector<32x32xbf16>
    %cst_83 = arith.constant dense<0.000000e+00> : vector<16x32xf32>
    %331 = tpu.matmul %329, %330, %cst_83 {dimension_numbers = #tpu.dot_dimension_numbers<[1], [0], [0], [1], [0, 0, 1, 1], [], []>} : vector<16x32xbf16>, vector<32x32xbf16>, vector<16x32xf32> -> vector<16x32xf32>
    %332 = arith.addf %327, %331 : vector<16x32xf32>
    %c18 = arith.constant 18 : index
    %c0_84 = arith.constant 0 : index
    %333 = vector.load %arg3[%c18, %c0_84] : memref<40x128xf32, #tpu.memory_space<vmem>>, vector<1x32xf32>
    %334 = vector.broadcast %333 : vector<1x32xf32> to vector<16x32xf32>
    %335 = arith.addf %332, %334 : vector<16x32xf32>
    %c19 = arith.constant 19 : index
    %c0_85 = arith.constant 0 : index
    %336 = vector.load %arg3[%c19, %c0_85] : memref<40x128xf32, #tpu.memory_space<vmem>>, vector<1x32xf32>
    %337 = vector.broadcast %336 : vector<1x32xf32> to vector<16x32xf32>
    %338 = arith.mulf %335, %337 : vector<16x32xf32>
    %c20 = arith.constant 20 : index
    %c0_86 = arith.constant 0 : index
    %339 = vector.load %arg3[%c20, %c0_86] : memref<40x128xf32, #tpu.memory_space<vmem>>, vector<1x32xf32>
    %340 = vector.broadcast %339 : vector<1x32xf32> to vector<16x32xf32>
    %341 = arith.addf %338, %340 : vector<16x32xf32>
    %cst_87 = arith.constant 0.000000e+00 : f32
    %342 = vector.broadcast %cst_87 : f32 to vector<16x32xf32>
    %343 = arith.cmpf ogt, %341, %342 : vector<16x32xf32>
    %cst_88 = arith.constant 0.000000e+00 : f32
    %344 = vector.broadcast %cst_88 : f32 to vector<16x32xf32>
    %345 = arith.minimumf %341, %344 : vector<16x32xf32>
    %346 = math.exp %345 : vector<16x32xf32>
    %cst_89 = arith.constant 1.000000e+00 : f32
    %347 = vector.broadcast %cst_89 : f32 to vector<16x32xf32>
    %348 = arith.subf %346, %347 : vector<16x32xf32>
    %349 = arith.select %343, %341, %348 : vector<16x32xi1>, vector<16x32xf32>
    %350 = vector.extract_strided_slice %349 {offsets = [0, 0], sizes = [8, 32], strides = [1, 1]} : vector<16x32xf32> to vector<8x32xf32>
    %351 = vector.extract_strided_slice %350 {offsets = [0, 0], sizes = [1, 32], strides = [1, 1]} : vector<8x32xf32> to vector<1x32xf32>
    %352 = vector.extract_strided_slice %350 {offsets = [0, 0], sizes = [7, 32], strides = [1, 1]} : vector<8x32xf32> to vector<7x32xf32>
    %353 = tpu.concatenate %351, %352 in 0 : vector<1x32xf32>, vector<7x32xf32> -> vector<8x32xf32>
    %354 = vector.extract_strided_slice %350 {offsets = [1, 0], sizes = [7, 32], strides = [1, 1]} : vector<8x32xf32> to vector<7x32xf32>
    %355 = vector.extract_strided_slice %350 {offsets = [7, 0], sizes = [1, 32], strides = [1, 1]} : vector<8x32xf32> to vector<1x32xf32>
    %356 = tpu.concatenate %354, %355 in 0 : vector<7x32xf32>, vector<1x32xf32> -> vector<8x32xf32>
    %357 = arith.maximumf %353, %350 : vector<8x32xf32>
    %358 = arith.maximumf %357, %356 : vector<8x32xf32>
    %359 = vector.extract_strided_slice %358 {offsets = [0, 0], sizes = [1, 32], strides = [1, 1]} : vector<8x32xf32> to vector<1x32xf32>
    %360 = vector.extract_strided_slice %358 {offsets = [2, 0], sizes = [1, 32], strides = [1, 1]} : vector<8x32xf32> to vector<1x32xf32>
    %361 = vector.extract_strided_slice %358 {offsets = [4, 0], sizes = [1, 32], strides = [1, 1]} : vector<8x32xf32> to vector<1x32xf32>
    %362 = vector.extract_strided_slice %358 {offsets = [6, 0], sizes = [1, 32], strides = [1, 1]} : vector<8x32xf32> to vector<1x32xf32>
    %363 = tpu.concatenate %359, %360, %361, %362 in 0 : vector<1x32xf32>, vector<1x32xf32>, vector<1x32xf32>, vector<1x32xf32> -> vector<4x32xf32>
    %364 = vector.extract_strided_slice %349 {offsets = [8, 0], sizes = [8, 32], strides = [1, 1]} : vector<16x32xf32> to vector<8x32xf32>
    %365 = vector.extract_strided_slice %364 {offsets = [0, 0], sizes = [1, 32], strides = [1, 1]} : vector<8x32xf32> to vector<1x32xf32>
    %366 = vector.extract_strided_slice %364 {offsets = [0, 0], sizes = [7, 32], strides = [1, 1]} : vector<8x32xf32> to vector<7x32xf32>
    %367 = tpu.concatenate %365, %366 in 0 : vector<1x32xf32>, vector<7x32xf32> -> vector<8x32xf32>
    %368 = vector.extract_strided_slice %364 {offsets = [1, 0], sizes = [7, 32], strides = [1, 1]} : vector<8x32xf32> to vector<7x32xf32>
    %369 = vector.extract_strided_slice %364 {offsets = [7, 0], sizes = [1, 32], strides = [1, 1]} : vector<8x32xf32> to vector<1x32xf32>
    %370 = tpu.concatenate %368, %369 in 0 : vector<7x32xf32>, vector<1x32xf32> -> vector<8x32xf32>
    %371 = arith.maximumf %367, %364 : vector<8x32xf32>
    %372 = arith.maximumf %371, %370 : vector<8x32xf32>
    %373 = vector.extract_strided_slice %372 {offsets = [0, 0], sizes = [1, 32], strides = [1, 1]} : vector<8x32xf32> to vector<1x32xf32>
    %374 = vector.extract_strided_slice %372 {offsets = [2, 0], sizes = [1, 32], strides = [1, 1]} : vector<8x32xf32> to vector<1x32xf32>
    %375 = vector.extract_strided_slice %372 {offsets = [4, 0], sizes = [1, 32], strides = [1, 1]} : vector<8x32xf32> to vector<1x32xf32>
    %376 = vector.extract_strided_slice %372 {offsets = [6, 0], sizes = [1, 32], strides = [1, 1]} : vector<8x32xf32> to vector<1x32xf32>
    %377 = tpu.concatenate %373, %374, %375, %376 in 0 : vector<1x32xf32>, vector<1x32xf32>, vector<1x32xf32>, vector<1x32xf32> -> vector<4x32xf32>
    %378 = tpu.concatenate %363, %377 in 0 : vector<4x32xf32>, vector<4x32xf32> -> vector<8x32xf32>
    %c160 = arith.constant 160 : index
    %c0_90 = arith.constant 0 : index
    %379 = vector.load %arg2[%c160, %c0_90] : memref<712x128xf32, #tpu.memory_space<vmem>>, vector<32x96xf32>
    %380 = arith.truncf %378 : vector<8x32xf32> to vector<8x32xbf16>
    %381 = arith.truncf %379 : vector<32x96xf32> to vector<32x96xbf16>
    %cst_91 = arith.constant dense<0.000000e+00> : vector<8x96xf32>
    %382 = tpu.matmul %380, %381, %cst_91 {dimension_numbers = #tpu.dot_dimension_numbers<[1], [0], [0], [1], [0, 0, 1, 1], [], []>} : vector<8x32xbf16>, vector<32x96xbf16>, vector<8x96xf32> -> vector<8x96xf32>
    %c10 = arith.constant 10 : index
    %c0_92 = arith.constant 0 : index
    %383 = vector.load %arg3[%c10, %c0_92] : memref<40x128xf32, #tpu.memory_space<vmem>>, vector<1x96xf32>
    %384 = vector.broadcast %383 : vector<1x96xf32> to vector<8x96xf32>
    %385 = arith.addf %382, %384 : vector<8x96xf32>
    %386 = vector.extract_strided_slice %385 {offsets = [0, 0], sizes = [8, 32], strides = [1, 1]} : vector<8x96xf32> to vector<8x32xf32>
    %387 = vector.extract_strided_slice %385 {offsets = [0, 32], sizes = [8, 32], strides = [1, 1]} : vector<8x96xf32> to vector<8x32xf32>
    %388 = vector.extract_strided_slice %385 {offsets = [0, 64], sizes = [8, 32], strides = [1, 1]} : vector<8x96xf32> to vector<8x32xf32>
    %389 = vector.extract_strided_slice %386 {offsets = [0, 0], sizes = [4, 8], strides = [1, 1]} : vector<8x32xf32> to vector<4x8xf32>
    %390 = vector.extract_strided_slice %387 {offsets = [0, 0], sizes = [4, 8], strides = [1, 1]} : vector<8x32xf32> to vector<4x8xf32>
    %391 = arith.truncf %389 : vector<4x8xf32> to vector<4x8xbf16>
    %392 = arith.truncf %390 : vector<4x8xf32> to vector<4x8xbf16>
    %cst_93 = arith.constant dense<0.000000e+00> : vector<4x4xf32>
    %393 = tpu.matmul %391, %392, %cst_93 {dimension_numbers = #tpu.dot_dimension_numbers<[1], [1], [0], [0], [0, 0, 1, 0], [], []>} : vector<4x8xbf16>, vector<4x8xbf16>, vector<4x4xf32> -> vector<4x4xf32>
    %394 = vector.extract_strided_slice %386 {offsets = [0, 8], sizes = [4, 8], strides = [1, 1]} : vector<8x32xf32> to vector<4x8xf32>
    %395 = vector.extract_strided_slice %387 {offsets = [0, 8], sizes = [4, 8], strides = [1, 1]} : vector<8x32xf32> to vector<4x8xf32>
    %396 = arith.truncf %394 : vector<4x8xf32> to vector<4x8xbf16>
    %397 = arith.truncf %395 : vector<4x8xf32> to vector<4x8xbf16>
    %cst_94 = arith.constant dense<0.000000e+00> : vector<4x4xf32>
    %398 = tpu.matmul %396, %397, %cst_94 {dimension_numbers = #tpu.dot_dimension_numbers<[1], [1], [0], [0], [0, 0, 1, 0], [], []>} : vector<4x8xbf16>, vector<4x8xbf16>, vector<4x4xf32> -> vector<4x4xf32>
    %399 = vector.extract_strided_slice %386 {offsets = [0, 16], sizes = [4, 8], strides = [1, 1]} : vector<8x32xf32> to vector<4x8xf32>
    %400 = vector.extract_strided_slice %387 {offsets = [0, 16], sizes = [4, 8], strides = [1, 1]} : vector<8x32xf32> to vector<4x8xf32>
    %401 = arith.truncf %399 : vector<4x8xf32> to vector<4x8xbf16>
    %402 = arith.truncf %400 : vector<4x8xf32> to vector<4x8xbf16>
    %cst_95 = arith.constant dense<0.000000e+00> : vector<4x4xf32>
    %403 = tpu.matmul %401, %402, %cst_95 {dimension_numbers = #tpu.dot_dimension_numbers<[1], [1], [0], [0], [0, 0, 1, 0], [], []>} : vector<4x8xbf16>, vector<4x8xbf16>, vector<4x4xf32> -> vector<4x4xf32>
    %404 = vector.extract_strided_slice %386 {offsets = [0, 24], sizes = [4, 8], strides = [1, 1]} : vector<8x32xf32> to vector<4x8xf32>
    %405 = vector.extract_strided_slice %387 {offsets = [0, 24], sizes = [4, 8], strides = [1, 1]} : vector<8x32xf32> to vector<4x8xf32>
    %406 = arith.truncf %404 : vector<4x8xf32> to vector<4x8xbf16>
    %407 = arith.truncf %405 : vector<4x8xf32> to vector<4x8xbf16>
    %cst_96 = arith.constant dense<0.000000e+00> : vector<4x4xf32>
    %408 = tpu.matmul %406, %407, %cst_96 {dimension_numbers = #tpu.dot_dimension_numbers<[1], [1], [0], [0], [0, 0, 1, 0], [], []>} : vector<4x8xbf16>, vector<4x8xbf16>, vector<4x4xf32> -> vector<4x4xf32>
    %409 = vector.extract_strided_slice %386 {offsets = [4, 0], sizes = [4, 8], strides = [1, 1]} : vector<8x32xf32> to vector<4x8xf32>
    %410 = vector.extract_strided_slice %387 {offsets = [4, 0], sizes = [4, 8], strides = [1, 1]} : vector<8x32xf32> to vector<4x8xf32>
    %411 = arith.truncf %409 : vector<4x8xf32> to vector<4x8xbf16>
    %412 = arith.truncf %410 : vector<4x8xf32> to vector<4x8xbf16>
    %cst_97 = arith.constant dense<0.000000e+00> : vector<4x4xf32>
    %413 = tpu.matmul %411, %412, %cst_97 {dimension_numbers = #tpu.dot_dimension_numbers<[1], [1], [0], [0], [0, 0, 1, 0], [], []>} : vector<4x8xbf16>, vector<4x8xbf16>, vector<4x4xf32> -> vector<4x4xf32>
    %414 = vector.extract_strided_slice %386 {offsets = [4, 8], sizes = [4, 8], strides = [1, 1]} : vector<8x32xf32> to vector<4x8xf32>
    %415 = vector.extract_strided_slice %387 {offsets = [4, 8], sizes = [4, 8], strides = [1, 1]} : vector<8x32xf32> to vector<4x8xf32>
    %416 = arith.truncf %414 : vector<4x8xf32> to vector<4x8xbf16>
    %417 = arith.truncf %415 : vector<4x8xf32> to vector<4x8xbf16>
    %cst_98 = arith.constant dense<0.000000e+00> : vector<4x4xf32>
    %418 = tpu.matmul %416, %417, %cst_98 {dimension_numbers = #tpu.dot_dimension_numbers<[1], [1], [0], [0], [0, 0, 1, 0], [], []>} : vector<4x8xbf16>, vector<4x8xbf16>, vector<4x4xf32> -> vector<4x4xf32>
    %419 = vector.extract_strided_slice %386 {offsets = [4, 16], sizes = [4, 8], strides = [1, 1]} : vector<8x32xf32> to vector<4x8xf32>
    %420 = vector.extract_strided_slice %387 {offsets = [4, 16], sizes = [4, 8], strides = [1, 1]} : vector<8x32xf32> to vector<4x8xf32>
    %421 = arith.truncf %419 : vector<4x8xf32> to vector<4x8xbf16>
    %422 = arith.truncf %420 : vector<4x8xf32> to vector<4x8xbf16>
    %cst_99 = arith.constant dense<0.000000e+00> : vector<4x4xf32>
    %423 = tpu.matmul %421, %422, %cst_99 {dimension_numbers = #tpu.dot_dimension_numbers<[1], [1], [0], [0], [0, 0, 1, 0], [], []>} : vector<4x8xbf16>, vector<4x8xbf16>, vector<4x4xf32> -> vector<4x4xf32>
    %424 = vector.extract_strided_slice %386 {offsets = [4, 24], sizes = [4, 8], strides = [1, 1]} : vector<8x32xf32> to vector<4x8xf32>
    %425 = vector.extract_strided_slice %387 {offsets = [4, 24], sizes = [4, 8], strides = [1, 1]} : vector<8x32xf32> to vector<4x8xf32>
    %426 = arith.truncf %424 : vector<4x8xf32> to vector<4x8xbf16>
    %427 = arith.truncf %425 : vector<4x8xf32> to vector<4x8xbf16>
    %cst_100 = arith.constant dense<0.000000e+00> : vector<4x4xf32>
    %428 = tpu.matmul %426, %427, %cst_100 {dimension_numbers = #tpu.dot_dimension_numbers<[1], [1], [0], [0], [0, 0, 1, 0], [], []>} : vector<4x8xbf16>, vector<4x8xbf16>, vector<4x4xf32> -> vector<4x4xf32>
    %429 = tpu.concatenate %393, %398, %403, %408, %413, %418, %423, %428 in 0 : vector<4x4xf32>, vector<4x4xf32>, vector<4x4xf32>, vector<4x4xf32>, vector<4x4xf32>, vector<4x4xf32>, vector<4x4xf32>, vector<4x4xf32> -> vector<32x4xf32>
    %cst_101 = arith.constant dense<0xFF800000> : vector<32xf32>
    %430 = vector.multi_reduction <maximumf>, %429, %cst_101 [1] : vector<32x4xf32> to vector<32xf32>
    %431 = vector.shape_cast %430 : vector<32xf32> to vector<32x1xf32>
    %432 = vector.broadcast %431 : vector<32x1xf32> to vector<32x4xf32>
    %433 = arith.subf %429, %432 : vector<32x4xf32>
    %434 = math.exp %433 : vector<32x4xf32>
    %cst_102 = arith.constant dense<0.000000e+00> : vector<32xf32>
    %435 = vector.multi_reduction <add>, %434, %cst_102 [1] : vector<32x4xf32> to vector<32xf32>
    %436 = vector.shape_cast %435 : vector<32xf32> to vector<32x1xf32>
    %437 = tpu.reciprocal %436 {approx = true} : vector<32x1xf32> -> vector<32x1xf32>
    %438 = vector.broadcast %437 : vector<32x1xf32> to vector<32x4xf32>
    %439 = arith.mulf %434, %438 : vector<32x4xf32>
    %c192 = arith.constant 192 : index
    %c0_103 = arith.constant 0 : index
    %440 = vector.load %arg2[%c192, %c0_103] : memref<712x128xf32, #tpu.memory_space<vmem>>, vector<32x32xf32>
    %441 = vector.extract_strided_slice %439 {offsets = [0, 0], sizes = [4, 4], strides = [1, 1]} : vector<32x4xf32> to vector<4x4xf32>
    %442 = vector.extract_strided_slice %388 {offsets = [0, 0], sizes = [4, 8], strides = [1, 1]} : vector<8x32xf32> to vector<4x8xf32>
    %443 = arith.truncf %441 : vector<4x4xf32> to vector<4x4xbf16>
    %444 = arith.truncf %442 : vector<4x8xf32> to vector<4x8xbf16>
    %cst_104 = arith.constant dense<0.000000e+00> : vector<4x8xf32>
    %445 = tpu.matmul %443, %444, %cst_104 {dimension_numbers = #tpu.dot_dimension_numbers<[1], [0], [0], [1], [0, 0, 1, 1], [], []>} : vector<4x4xbf16>, vector<4x8xbf16>, vector<4x8xf32> -> vector<4x8xf32>
    %446 = vector.extract_strided_slice %439 {offsets = [16, 0], sizes = [4, 4], strides = [1, 1]} : vector<32x4xf32> to vector<4x4xf32>
    %447 = vector.extract_strided_slice %388 {offsets = [4, 0], sizes = [4, 8], strides = [1, 1]} : vector<8x32xf32> to vector<4x8xf32>
    %448 = arith.truncf %446 : vector<4x4xf32> to vector<4x4xbf16>
    %449 = arith.truncf %447 : vector<4x8xf32> to vector<4x8xbf16>
    %cst_105 = arith.constant dense<0.000000e+00> : vector<4x8xf32>
    %450 = tpu.matmul %448, %449, %cst_105 {dimension_numbers = #tpu.dot_dimension_numbers<[1], [0], [0], [1], [0, 0, 1, 1], [], []>} : vector<4x4xbf16>, vector<4x8xbf16>, vector<4x8xf32> -> vector<4x8xf32>
    %451 = tpu.concatenate %445, %450 in 0 : vector<4x8xf32>, vector<4x8xf32> -> vector<8x8xf32>
    %452 = vector.extract_strided_slice %440 {offsets = [0, 0], sizes = [8, 32], strides = [1, 1]} : vector<32x32xf32> to vector<8x32xf32>
    %453 = arith.truncf %451 : vector<8x8xf32> to vector<8x8xbf16>
    %454 = arith.truncf %452 : vector<8x32xf32> to vector<8x32xbf16>
    %cst_106 = arith.constant dense<0.000000e+00> : vector<8x32xf32>
    %455 = tpu.matmul %453, %454, %cst_106 {dimension_numbers = #tpu.dot_dimension_numbers<[1], [0], [0], [1], [0, 0, 1, 1], [], []>} : vector<8x8xbf16>, vector<8x32xbf16>, vector<8x32xf32> -> vector<8x32xf32>
    %456 = vector.extract_strided_slice %439 {offsets = [4, 0], sizes = [4, 4], strides = [1, 1]} : vector<32x4xf32> to vector<4x4xf32>
    %457 = vector.extract_strided_slice %388 {offsets = [0, 8], sizes = [4, 8], strides = [1, 1]} : vector<8x32xf32> to vector<4x8xf32>
    %458 = arith.truncf %456 : vector<4x4xf32> to vector<4x4xbf16>
    %459 = arith.truncf %457 : vector<4x8xf32> to vector<4x8xbf16>
    %cst_107 = arith.constant dense<0.000000e+00> : vector<4x8xf32>
    %460 = tpu.matmul %458, %459, %cst_107 {dimension_numbers = #tpu.dot_dimension_numbers<[1], [0], [0], [1], [0, 0, 1, 1], [], []>} : vector<4x4xbf16>, vector<4x8xbf16>, vector<4x8xf32> -> vector<4x8xf32>
    %461 = vector.extract_strided_slice %439 {offsets = [20, 0], sizes = [4, 4], strides = [1, 1]} : vector<32x4xf32> to vector<4x4xf32>
    %462 = vector.extract_strided_slice %388 {offsets = [4, 8], sizes = [4, 8], strides = [1, 1]} : vector<8x32xf32> to vector<4x8xf32>
    %463 = arith.truncf %461 : vector<4x4xf32> to vector<4x4xbf16>
    %464 = arith.truncf %462 : vector<4x8xf32> to vector<4x8xbf16>
    %cst_108 = arith.constant dense<0.000000e+00> : vector<4x8xf32>
    %465 = tpu.matmul %463, %464, %cst_108 {dimension_numbers = #tpu.dot_dimension_numbers<[1], [0], [0], [1], [0, 0, 1, 1], [], []>} : vector<4x4xbf16>, vector<4x8xbf16>, vector<4x8xf32> -> vector<4x8xf32>
    %466 = tpu.concatenate %460, %465 in 0 : vector<4x8xf32>, vector<4x8xf32> -> vector<8x8xf32>
    %467 = vector.extract_strided_slice %440 {offsets = [8, 0], sizes = [8, 32], strides = [1, 1]} : vector<32x32xf32> to vector<8x32xf32>
    %468 = arith.truncf %466 : vector<8x8xf32> to vector<8x8xbf16>
    %469 = arith.truncf %467 : vector<8x32xf32> to vector<8x32xbf16>
    %cst_109 = arith.constant dense<0.000000e+00> : vector<8x32xf32>
    %470 = tpu.matmul %468, %469, %cst_109 {dimension_numbers = #tpu.dot_dimension_numbers<[1], [0], [0], [1], [0, 0, 1, 1], [], []>} : vector<8x8xbf16>, vector<8x32xbf16>, vector<8x32xf32> -> vector<8x32xf32>
    %471 = arith.addf %455, %470 : vector<8x32xf32>
    %472 = vector.extract_strided_slice %439 {offsets = [8, 0], sizes = [4, 4], strides = [1, 1]} : vector<32x4xf32> to vector<4x4xf32>
    %473 = vector.extract_strided_slice %388 {offsets = [0, 16], sizes = [4, 8], strides = [1, 1]} : vector<8x32xf32> to vector<4x8xf32>
    %474 = arith.truncf %472 : vector<4x4xf32> to vector<4x4xbf16>
    %475 = arith.truncf %473 : vector<4x8xf32> to vector<4x8xbf16>
    %cst_110 = arith.constant dense<0.000000e+00> : vector<4x8xf32>
    %476 = tpu.matmul %474, %475, %cst_110 {dimension_numbers = #tpu.dot_dimension_numbers<[1], [0], [0], [1], [0, 0, 1, 1], [], []>} : vector<4x4xbf16>, vector<4x8xbf16>, vector<4x8xf32> -> vector<4x8xf32>
    %477 = vector.extract_strided_slice %439 {offsets = [24, 0], sizes = [4, 4], strides = [1, 1]} : vector<32x4xf32> to vector<4x4xf32>
    %478 = vector.extract_strided_slice %388 {offsets = [4, 16], sizes = [4, 8], strides = [1, 1]} : vector<8x32xf32> to vector<4x8xf32>
    %479 = arith.truncf %477 : vector<4x4xf32> to vector<4x4xbf16>
    %480 = arith.truncf %478 : vector<4x8xf32> to vector<4x8xbf16>
    %cst_111 = arith.constant dense<0.000000e+00> : vector<4x8xf32>
    %481 = tpu.matmul %479, %480, %cst_111 {dimension_numbers = #tpu.dot_dimension_numbers<[1], [0], [0], [1], [0, 0, 1, 1], [], []>} : vector<4x4xbf16>, vector<4x8xbf16>, vector<4x8xf32> -> vector<4x8xf32>
    %482 = tpu.concatenate %476, %481 in 0 : vector<4x8xf32>, vector<4x8xf32> -> vector<8x8xf32>
    %483 = vector.extract_strided_slice %440 {offsets = [16, 0], sizes = [8, 32], strides = [1, 1]} : vector<32x32xf32> to vector<8x32xf32>
    %484 = arith.truncf %482 : vector<8x8xf32> to vector<8x8xbf16>
    %485 = arith.truncf %483 : vector<8x32xf32> to vector<8x32xbf16>
    %cst_112 = arith.constant dense<0.000000e+00> : vector<8x32xf32>
    %486 = tpu.matmul %484, %485, %cst_112 {dimension_numbers = #tpu.dot_dimension_numbers<[1], [0], [0], [1], [0, 0, 1, 1], [], []>} : vector<8x8xbf16>, vector<8x32xbf16>, vector<8x32xf32> -> vector<8x32xf32>
    %487 = arith.addf %471, %486 : vector<8x32xf32>
    %488 = vector.extract_strided_slice %439 {offsets = [12, 0], sizes = [4, 4], strides = [1, 1]} : vector<32x4xf32> to vector<4x4xf32>
    %489 = vector.extract_strided_slice %388 {offsets = [0, 24], sizes = [4, 8], strides = [1, 1]} : vector<8x32xf32> to vector<4x8xf32>
    %490 = arith.truncf %488 : vector<4x4xf32> to vector<4x4xbf16>
    %491 = arith.truncf %489 : vector<4x8xf32> to vector<4x8xbf16>
    %cst_113 = arith.constant dense<0.000000e+00> : vector<4x8xf32>
    %492 = tpu.matmul %490, %491, %cst_113 {dimension_numbers = #tpu.dot_dimension_numbers<[1], [0], [0], [1], [0, 0, 1, 1], [], []>} : vector<4x4xbf16>, vector<4x8xbf16>, vector<4x8xf32> -> vector<4x8xf32>
    %493 = vector.extract_strided_slice %439 {offsets = [28, 0], sizes = [4, 4], strides = [1, 1]} : vector<32x4xf32> to vector<4x4xf32>
    %494 = vector.extract_strided_slice %388 {offsets = [4, 24], sizes = [4, 8], strides = [1, 1]} : vector<8x32xf32> to vector<4x8xf32>
    %495 = arith.truncf %493 : vector<4x4xf32> to vector<4x4xbf16>
    %496 = arith.truncf %494 : vector<4x8xf32> to vector<4x8xbf16>
    %cst_114 = arith.constant dense<0.000000e+00> : vector<4x8xf32>
    %497 = tpu.matmul %495, %496, %cst_114 {dimension_numbers = #tpu.dot_dimension_numbers<[1], [0], [0], [1], [0, 0, 1, 1], [], []>} : vector<4x4xbf16>, vector<4x8xbf16>, vector<4x8xf32> -> vector<4x8xf32>
    %498 = tpu.concatenate %492, %497 in 0 : vector<4x8xf32>, vector<4x8xf32> -> vector<8x8xf32>
    %499 = vector.extract_strided_slice %440 {offsets = [24, 0], sizes = [8, 32], strides = [1, 1]} : vector<32x32xf32> to vector<8x32xf32>
    %500 = arith.truncf %498 : vector<8x8xf32> to vector<8x8xbf16>
    %501 = arith.truncf %499 : vector<8x32xf32> to vector<8x32xbf16>
    %cst_115 = arith.constant dense<0.000000e+00> : vector<8x32xf32>
    %502 = tpu.matmul %500, %501, %cst_115 {dimension_numbers = #tpu.dot_dimension_numbers<[1], [0], [0], [1], [0, 0, 1, 1], [], []>} : vector<8x8xbf16>, vector<8x32xbf16>, vector<8x32xf32> -> vector<8x32xf32>
    %503 = arith.addf %487, %502 : vector<8x32xf32>
    %c11 = arith.constant 11 : index
    %c0_116 = arith.constant 0 : index
    %504 = vector.load %arg3[%c11, %c0_116] : memref<40x128xf32, #tpu.memory_space<vmem>>, vector<1x32xf32>
    %505 = vector.broadcast %504 : vector<1x32xf32> to vector<8x32xf32>
    %506 = arith.addf %503, %505 : vector<8x32xf32>
    %507 = arith.addf %378, %506 : vector<8x32xf32>
    %c14 = arith.constant 14 : index
    %c0_117 = arith.constant 0 : index
    %508 = vector.load %arg3[%c14, %c0_117] : memref<40x128xf32, #tpu.memory_space<vmem>>, vector<1x32xf32>
    %c15 = arith.constant 15 : index
    %c0_118 = arith.constant 0 : index
    %509 = vector.load %arg3[%c15, %c0_118] : memref<40x128xf32, #tpu.memory_space<vmem>>, vector<1x32xf32>
    %cst_119 = arith.constant dense<0.000000e+00> : vector<8xf32>
    %510 = vector.multi_reduction <add>, %507, %cst_119 [1] : vector<8x32xf32> to vector<8xf32>
    %511 = vector.shape_cast %510 : vector<8xf32> to vector<8x1xf32>
    %cst_120 = arith.constant 3.200000e+01 : f32
    %512 = vector.broadcast %cst_120 : f32 to vector<8x1xf32>
    %513 = arith.divf %511, %512 : vector<8x1xf32>
    %514 = vector.broadcast %513 : vector<8x1xf32> to vector<8x32xf32>
    %515 = arith.subf %507, %514 : vector<8x32xf32>
    %516 = arith.mulf %515, %515 : vector<8x32xf32>
    %cst_121 = arith.constant dense<0.000000e+00> : vector<8xf32>
    %517 = vector.multi_reduction <add>, %516, %cst_121 [1] : vector<8x32xf32> to vector<8xf32>
    %518 = vector.shape_cast %517 : vector<8xf32> to vector<8x1xf32>
    %cst_122 = arith.constant 3.200000e+01 : f32
    %519 = vector.broadcast %cst_122 : f32 to vector<8x1xf32>
    %520 = arith.divf %518, %519 : vector<8x1xf32>
    %cst_123 = arith.constant 9.99999974E-6 : f32
    %521 = vector.broadcast %cst_123 : f32 to vector<8x1xf32>
    %522 = arith.addf %520, %521 : vector<8x1xf32>
    %523 = math.rsqrt %522 : vector<8x1xf32>
    %524 = vector.broadcast %523 : vector<8x1xf32> to vector<8x32xf32>
    %525 = arith.mulf %515, %524 : vector<8x32xf32>
    %526 = vector.broadcast %508 : vector<1x32xf32> to vector<8x32xf32>
    %527 = arith.mulf %525, %526 : vector<8x32xf32>
    %528 = vector.broadcast %509 : vector<1x32xf32> to vector<8x32xf32>
    %529 = arith.addf %527, %528 : vector<8x32xf32>
    %c224 = arith.constant 224 : index
    %c0_124 = arith.constant 0 : index
    %530 = vector.load %arg2[%c224, %c0_124] : memref<712x128xf32, #tpu.memory_space<vmem>>, vector<32x32xf32>
    %531 = arith.truncf %529 : vector<8x32xf32> to vector<8x32xbf16>
    %532 = arith.truncf %530 : vector<32x32xf32> to vector<32x32xbf16>
    %cst_125 = arith.constant dense<0.000000e+00> : vector<8x32xf32>
    %533 = tpu.matmul %531, %532, %cst_125 {dimension_numbers = #tpu.dot_dimension_numbers<[1], [0], [0], [1], [0, 0, 1, 1], [], []>} : vector<8x32xbf16>, vector<32x32xbf16>, vector<8x32xf32> -> vector<8x32xf32>
    %c12 = arith.constant 12 : index
    %c0_126 = arith.constant 0 : index
    %534 = vector.load %arg3[%c12, %c0_126] : memref<40x128xf32, #tpu.memory_space<vmem>>, vector<1x32xf32>
    %535 = vector.broadcast %534 : vector<1x32xf32> to vector<8x32xf32>
    %536 = arith.addf %533, %535 : vector<8x32xf32>
    %cst_127 = arith.constant 5.000000e-01 : f32
    %537 = vector.broadcast %cst_127 : f32 to vector<8x32xf32>
    %538 = arith.mulf %537, %536 : vector<8x32xf32>
    %cst_128 = arith.constant 0.707106769 : f32
    %539 = vector.broadcast %cst_128 : f32 to vector<8x32xf32>
    %540 = arith.mulf %536, %539 : vector<8x32xf32>
    %541 = math.absf %540 : vector<8x32xf32>
    %cst_129 = arith.constant 0.327591091 : f32
    %542 = vector.broadcast %cst_129 : f32 to vector<8x32xf32>
    %543 = arith.mulf %542, %541 : vector<8x32xf32>
    %cst_130 = arith.constant 1.000000e+00 : f32
    %544 = vector.broadcast %cst_130 : f32 to vector<8x32xf32>
    %545 = arith.addf %544, %543 : vector<8x32xf32>
    %cst_131 = arith.constant 1.000000e+00 : f32
    %546 = vector.broadcast %cst_131 : f32 to vector<8x32xf32>
    %547 = arith.divf %546, %545 : vector<8x32xf32>
    %cst_132 = arith.constant 1.06140542 : f32
    %548 = vector.broadcast %cst_132 : f32 to vector<8x32xf32>
    %549 = arith.mulf %548, %547 : vector<8x32xf32>
    %cst_133 = arith.constant -1.45315206 : f32
    %550 = vector.broadcast %cst_133 : f32 to vector<8x32xf32>
    %551 = arith.addf %549, %550 : vector<8x32xf32>
    %552 = arith.mulf %551, %547 : vector<8x32xf32>
    %cst_134 = arith.constant 1.42141378 : f32
    %553 = vector.broadcast %cst_134 : f32 to vector<8x32xf32>
    %554 = arith.addf %552, %553 : vector<8x32xf32>
    %555 = arith.mulf %554, %547 : vector<8x32xf32>
    %cst_135 = arith.constant -0.284496725 : f32
    %556 = vector.broadcast %cst_135 : f32 to vector<8x32xf32>
    %557 = arith.addf %555, %556 : vector<8x32xf32>
    %558 = arith.mulf %557, %547 : vector<8x32xf32>
    %cst_136 = arith.constant 0.254829586 : f32
    %559 = vector.broadcast %cst_136 : f32 to vector<8x32xf32>
    %560 = arith.addf %558, %559 : vector<8x32xf32>
    %561 = arith.mulf %560, %547 : vector<8x32xf32>
    %cst_137 = arith.constant 0.000000e+00 : f32
    %562 = vector.broadcast %cst_137 : f32 to vector<8x32xf32>
    %563 = arith.subf %562, %541 : vector<8x32xf32>
    %564 = arith.mulf %563, %541 : vector<8x32xf32>
    %565 = math.exp %564 : vector<8x32xf32>
    %566 = arith.mulf %561, %565 : vector<8x32xf32>
    %cst_138 = arith.constant 1.000000e+00 : f32
    %567 = vector.broadcast %cst_138 : f32 to vector<8x32xf32>
    %568 = arith.subf %567, %566 : vector<8x32xf32>
    %cst_139 = arith.constant 0.000000e+00 : f32
    %569 = vector.broadcast %cst_139 : f32 to vector<8x32xf32>
    %570 = arith.cmpf olt, %540, %569 : vector<8x32xf32>
    %cst_140 = arith.constant 0.000000e+00 : f32
    %571 = vector.broadcast %cst_140 : f32 to vector<8x32xf32>
    %572 = arith.subf %571, %568 : vector<8x32xf32>
    %573 = arith.select %570, %572, %568 : vector<8x32xi1>, vector<8x32xf32>
    %cst_141 = arith.constant 1.000000e+00 : f32
    %574 = vector.broadcast %cst_141 : f32 to vector<8x32xf32>
    %575 = arith.addf %574, %573 : vector<8x32xf32>
    %576 = arith.mulf %538, %575 : vector<8x32xf32>
    %c256 = arith.constant 256 : index
    %c0_142 = arith.constant 0 : index
    %577 = vector.load %arg2[%c256, %c0_142] : memref<712x128xf32, #tpu.memory_space<vmem>>, vector<32x32xf32>
    %578 = arith.truncf %576 : vector<8x32xf32> to vector<8x32xbf16>
    %579 = arith.truncf %577 : vector<32x32xf32> to vector<32x32xbf16>
    %cst_143 = arith.constant dense<0.000000e+00> : vector<8x32xf32>
    %580 = tpu.matmul %578, %579, %cst_143 {dimension_numbers = #tpu.dot_dimension_numbers<[1], [0], [0], [1], [0, 0, 1, 1], [], []>} : vector<8x32xbf16>, vector<32x32xbf16>, vector<8x32xf32> -> vector<8x32xf32>
    %c13 = arith.constant 13 : index
    %c0_144 = arith.constant 0 : index
    %581 = vector.load %arg3[%c13, %c0_144] : memref<40x128xf32, #tpu.memory_space<vmem>>, vector<1x32xf32>
    %582 = vector.broadcast %581 : vector<1x32xf32> to vector<8x32xf32>
    %583 = arith.addf %580, %582 : vector<8x32xf32>
    %584 = arith.addf %529, %583 : vector<8x32xf32>
    %c16_145 = arith.constant 16 : index
    %c0_146 = arith.constant 0 : index
    %585 = vector.load %arg3[%c16_145, %c0_146] : memref<40x128xf32, #tpu.memory_space<vmem>>, vector<1x32xf32>
    %c17 = arith.constant 17 : index
    %c0_147 = arith.constant 0 : index
    %586 = vector.load %arg3[%c17, %c0_147] : memref<40x128xf32, #tpu.memory_space<vmem>>, vector<1x32xf32>
    %cst_148 = arith.constant dense<0.000000e+00> : vector<8xf32>
    %587 = vector.multi_reduction <add>, %584, %cst_148 [1] : vector<8x32xf32> to vector<8xf32>
    %588 = vector.shape_cast %587 : vector<8xf32> to vector<8x1xf32>
    %cst_149 = arith.constant 3.200000e+01 : f32
    %589 = vector.broadcast %cst_149 : f32 to vector<8x1xf32>
    %590 = arith.divf %588, %589 : vector<8x1xf32>
    %591 = vector.broadcast %590 : vector<8x1xf32> to vector<8x32xf32>
    %592 = arith.subf %584, %591 : vector<8x32xf32>
    %593 = arith.mulf %592, %592 : vector<8x32xf32>
    %cst_150 = arith.constant dense<0.000000e+00> : vector<8xf32>
    %594 = vector.multi_reduction <add>, %593, %cst_150 [1] : vector<8x32xf32> to vector<8xf32>
    %595 = vector.shape_cast %594 : vector<8xf32> to vector<8x1xf32>
    %cst_151 = arith.constant 3.200000e+01 : f32
    %596 = vector.broadcast %cst_151 : f32 to vector<8x1xf32>
    %597 = arith.divf %595, %596 : vector<8x1xf32>
    %cst_152 = arith.constant 9.99999974E-6 : f32
    %598 = vector.broadcast %cst_152 : f32 to vector<8x1xf32>
    %599 = arith.addf %597, %598 : vector<8x1xf32>
    %600 = math.rsqrt %599 : vector<8x1xf32>
    %601 = vector.broadcast %600 : vector<8x1xf32> to vector<8x32xf32>
    %602 = arith.mulf %592, %601 : vector<8x32xf32>
    %603 = vector.broadcast %585 : vector<1x32xf32> to vector<8x32xf32>
    %604 = arith.mulf %602, %603 : vector<8x32xf32>
    %605 = vector.broadcast %586 : vector<1x32xf32> to vector<8x32xf32>
    %606 = arith.addf %604, %605 : vector<8x32xf32>
    %c21 = arith.constant 21 : index
    %c0_153 = arith.constant 0 : index
    %607 = vector.load %arg3[%c21, %c0_153] : memref<40x128xf32, #tpu.memory_space<vmem>>, vector<1x32xf32>
    %c22 = arith.constant 22 : index
    %c0_154 = arith.constant 0 : index
    %608 = vector.load %arg3[%c22, %c0_154] : memref<40x128xf32, #tpu.memory_space<vmem>>, vector<1x32xf32>
    %cst_155 = arith.constant dense<0.000000e+00> : vector<8xf32>
    %609 = vector.multi_reduction <add>, %606, %cst_155 [1] : vector<8x32xf32> to vector<8xf32>
    %610 = vector.shape_cast %609 : vector<8xf32> to vector<8x1xf32>
    %cst_156 = arith.constant 3.200000e+01 : f32
    %611 = vector.broadcast %cst_156 : f32 to vector<8x1xf32>
    %612 = arith.divf %610, %611 : vector<8x1xf32>
    %613 = vector.broadcast %612 : vector<8x1xf32> to vector<8x32xf32>
    %614 = arith.subf %606, %613 : vector<8x32xf32>
    %615 = arith.mulf %614, %614 : vector<8x32xf32>
    %cst_157 = arith.constant dense<0.000000e+00> : vector<8xf32>
    %616 = vector.multi_reduction <add>, %615, %cst_157 [1] : vector<8x32xf32> to vector<8xf32>
    %617 = vector.shape_cast %616 : vector<8xf32> to vector<8x1xf32>
    %cst_158 = arith.constant 3.200000e+01 : f32
    %618 = vector.broadcast %cst_158 : f32 to vector<8x1xf32>
    %619 = arith.divf %617, %618 : vector<8x1xf32>
    %cst_159 = arith.constant 9.99999974E-6 : f32
    %620 = vector.broadcast %cst_159 : f32 to vector<8x1xf32>
    %621 = arith.addf %619, %620 : vector<8x1xf32>
    %622 = math.rsqrt %621 : vector<8x1xf32>
    %623 = vector.broadcast %622 : vector<8x1xf32> to vector<8x32xf32>
    %624 = arith.mulf %614, %623 : vector<8x32xf32>
    %625 = vector.broadcast %607 : vector<1x32xf32> to vector<8x32xf32>
    %626 = arith.mulf %624, %625 : vector<8x32xf32>
    %627 = vector.broadcast %608 : vector<1x32xf32> to vector<8x32xf32>
    %628 = arith.addf %626, %627 : vector<8x32xf32>
    %c384 = arith.constant 384 : index
    %c0_160 = arith.constant 0 : index
    %629 = vector.load %arg2[%c384, %c0_160] : memref<712x128xf32, #tpu.memory_space<vmem>>, vector<32x96xf32>
    %630 = arith.truncf %73 : vector<16x32xf32> to vector<16x32xbf16>
    %631 = arith.truncf %629 : vector<32x96xf32> to vector<32x96xbf16>
    %cst_161 = arith.constant dense<0.000000e+00> : vector<16x96xf32>
    %632 = tpu.matmul %630, %631, %cst_161 {dimension_numbers = #tpu.dot_dimension_numbers<[1], [0], [0], [1], [0, 0, 1, 1], [], []>} : vector<16x32xbf16>, vector<32x96xbf16>, vector<16x96xf32> -> vector<16x96xf32>
    %c23 = arith.constant 23 : index
    %c0_162 = arith.constant 0 : index
    %633 = vector.load %arg3[%c23, %c0_162] : memref<40x128xf32, #tpu.memory_space<vmem>>, vector<1x96xf32>
    %634 = vector.broadcast %633 : vector<1x96xf32> to vector<16x96xf32>
    %635 = arith.addf %632, %634 : vector<16x96xf32>
    %636 = vector.extract_strided_slice %635 {offsets = [0, 0], sizes = [16, 32], strides = [1, 1]} : vector<16x96xf32> to vector<16x32xf32>
    %637 = vector.extract_strided_slice %635 {offsets = [0, 32], sizes = [16, 32], strides = [1, 1]} : vector<16x96xf32> to vector<16x32xf32>
    %638 = vector.extract_strided_slice %635 {offsets = [0, 64], sizes = [16, 32], strides = [1, 1]} : vector<16x96xf32> to vector<16x32xf32>
    %639 = vector.extract_strided_slice %636 {offsets = [0, 0], sizes = [8, 8], strides = [1, 1]} : vector<16x32xf32> to vector<8x8xf32>
    %640 = vector.extract_strided_slice %637 {offsets = [0, 0], sizes = [8, 8], strides = [1, 1]} : vector<16x32xf32> to vector<8x8xf32>
    %641 = arith.truncf %639 : vector<8x8xf32> to vector<8x8xbf16>
    %642 = arith.truncf %640 : vector<8x8xf32> to vector<8x8xbf16>
    %cst_163 = arith.constant dense<0.000000e+00> : vector<8x8xf32>
    %643 = tpu.matmul %641, %642, %cst_163 {dimension_numbers = #tpu.dot_dimension_numbers<[1], [1], [0], [0], [0, 0, 1, 0], [], []>} : vector<8x8xbf16>, vector<8x8xbf16>, vector<8x8xf32> -> vector<8x8xf32>
    %644 = vector.extract_strided_slice %636 {offsets = [0, 8], sizes = [8, 8], strides = [1, 1]} : vector<16x32xf32> to vector<8x8xf32>
    %645 = vector.extract_strided_slice %637 {offsets = [0, 8], sizes = [8, 8], strides = [1, 1]} : vector<16x32xf32> to vector<8x8xf32>
    %646 = arith.truncf %644 : vector<8x8xf32> to vector<8x8xbf16>
    %647 = arith.truncf %645 : vector<8x8xf32> to vector<8x8xbf16>
    %cst_164 = arith.constant dense<0.000000e+00> : vector<8x8xf32>
    %648 = tpu.matmul %646, %647, %cst_164 {dimension_numbers = #tpu.dot_dimension_numbers<[1], [1], [0], [0], [0, 0, 1, 0], [], []>} : vector<8x8xbf16>, vector<8x8xbf16>, vector<8x8xf32> -> vector<8x8xf32>
    %649 = vector.extract_strided_slice %636 {offsets = [0, 16], sizes = [8, 8], strides = [1, 1]} : vector<16x32xf32> to vector<8x8xf32>
    %650 = vector.extract_strided_slice %637 {offsets = [0, 16], sizes = [8, 8], strides = [1, 1]} : vector<16x32xf32> to vector<8x8xf32>
    %651 = arith.truncf %649 : vector<8x8xf32> to vector<8x8xbf16>
    %652 = arith.truncf %650 : vector<8x8xf32> to vector<8x8xbf16>
    %cst_165 = arith.constant dense<0.000000e+00> : vector<8x8xf32>
    %653 = tpu.matmul %651, %652, %cst_165 {dimension_numbers = #tpu.dot_dimension_numbers<[1], [1], [0], [0], [0, 0, 1, 0], [], []>} : vector<8x8xbf16>, vector<8x8xbf16>, vector<8x8xf32> -> vector<8x8xf32>
    %654 = vector.extract_strided_slice %636 {offsets = [0, 24], sizes = [8, 8], strides = [1, 1]} : vector<16x32xf32> to vector<8x8xf32>
    %655 = vector.extract_strided_slice %637 {offsets = [0, 24], sizes = [8, 8], strides = [1, 1]} : vector<16x32xf32> to vector<8x8xf32>
    %656 = arith.truncf %654 : vector<8x8xf32> to vector<8x8xbf16>
    %657 = arith.truncf %655 : vector<8x8xf32> to vector<8x8xbf16>
    %cst_166 = arith.constant dense<0.000000e+00> : vector<8x8xf32>
    %658 = tpu.matmul %656, %657, %cst_166 {dimension_numbers = #tpu.dot_dimension_numbers<[1], [1], [0], [0], [0, 0, 1, 0], [], []>} : vector<8x8xbf16>, vector<8x8xbf16>, vector<8x8xf32> -> vector<8x8xf32>
    %659 = vector.extract_strided_slice %636 {offsets = [8, 0], sizes = [8, 8], strides = [1, 1]} : vector<16x32xf32> to vector<8x8xf32>
    %660 = vector.extract_strided_slice %637 {offsets = [8, 0], sizes = [8, 8], strides = [1, 1]} : vector<16x32xf32> to vector<8x8xf32>
    %661 = arith.truncf %659 : vector<8x8xf32> to vector<8x8xbf16>
    %662 = arith.truncf %660 : vector<8x8xf32> to vector<8x8xbf16>
    %cst_167 = arith.constant dense<0.000000e+00> : vector<8x8xf32>
    %663 = tpu.matmul %661, %662, %cst_167 {dimension_numbers = #tpu.dot_dimension_numbers<[1], [1], [0], [0], [0, 0, 1, 0], [], []>} : vector<8x8xbf16>, vector<8x8xbf16>, vector<8x8xf32> -> vector<8x8xf32>
    %664 = vector.extract_strided_slice %636 {offsets = [8, 8], sizes = [8, 8], strides = [1, 1]} : vector<16x32xf32> to vector<8x8xf32>
    %665 = vector.extract_strided_slice %637 {offsets = [8, 8], sizes = [8, 8], strides = [1, 1]} : vector<16x32xf32> to vector<8x8xf32>
    %666 = arith.truncf %664 : vector<8x8xf32> to vector<8x8xbf16>
    %667 = arith.truncf %665 : vector<8x8xf32> to vector<8x8xbf16>
    %cst_168 = arith.constant dense<0.000000e+00> : vector<8x8xf32>
    %668 = tpu.matmul %666, %667, %cst_168 {dimension_numbers = #tpu.dot_dimension_numbers<[1], [1], [0], [0], [0, 0, 1, 0], [], []>} : vector<8x8xbf16>, vector<8x8xbf16>, vector<8x8xf32> -> vector<8x8xf32>
    %669 = vector.extract_strided_slice %636 {offsets = [8, 16], sizes = [8, 8], strides = [1, 1]} : vector<16x32xf32> to vector<8x8xf32>
    %670 = vector.extract_strided_slice %637 {offsets = [8, 16], sizes = [8, 8], strides = [1, 1]} : vector<16x32xf32> to vector<8x8xf32>
    %671 = arith.truncf %669 : vector<8x8xf32> to vector<8x8xbf16>
    %672 = arith.truncf %670 : vector<8x8xf32> to vector<8x8xbf16>
    %cst_169 = arith.constant dense<0.000000e+00> : vector<8x8xf32>
    %673 = tpu.matmul %671, %672, %cst_169 {dimension_numbers = #tpu.dot_dimension_numbers<[1], [1], [0], [0], [0, 0, 1, 0], [], []>} : vector<8x8xbf16>, vector<8x8xbf16>, vector<8x8xf32> -> vector<8x8xf32>
    %674 = vector.extract_strided_slice %636 {offsets = [8, 24], sizes = [8, 8], strides = [1, 1]} : vector<16x32xf32> to vector<8x8xf32>
    %675 = vector.extract_strided_slice %637 {offsets = [8, 24], sizes = [8, 8], strides = [1, 1]} : vector<16x32xf32> to vector<8x8xf32>
    %676 = arith.truncf %674 : vector<8x8xf32> to vector<8x8xbf16>
    %677 = arith.truncf %675 : vector<8x8xf32> to vector<8x8xbf16>
    %cst_170 = arith.constant dense<0.000000e+00> : vector<8x8xf32>
    %678 = tpu.matmul %676, %677, %cst_170 {dimension_numbers = #tpu.dot_dimension_numbers<[1], [1], [0], [0], [0, 0, 1, 0], [], []>} : vector<8x8xbf16>, vector<8x8xbf16>, vector<8x8xf32> -> vector<8x8xf32>
    %679 = tpu.concatenate %643, %648, %653, %658, %663, %668, %673, %678 in 0 : vector<8x8xf32>, vector<8x8xf32>, vector<8x8xf32>, vector<8x8xf32>, vector<8x8xf32>, vector<8x8xf32>, vector<8x8xf32>, vector<8x8xf32> -> vector<64x8xf32>
    %680 = tpu.iota {dimensions = array<i32: 0>} : vector<64x8xi32>
    %c7_i32 = arith.constant 7 : i32
    %681 = vector.broadcast %c7_i32 : i32 to vector<64x8xi32>
    %682 = arith.andi %680, %681 : vector<64x8xi32>
    %683 = tpu.iota {dimensions = array<i32: 1>} : vector<64x8xi32>
    %684 = arith.cmpi sle, %683, %682 : vector<64x8xi32>
    %cst_171 = arith.constant -1.000000e+30 : f32
    %685 = vector.broadcast %cst_171 : f32 to vector<64x8xf32>
    %686 = arith.select %684, %679, %685 : vector<64x8xi1>, vector<64x8xf32>
    %cst_172 = arith.constant dense<0xFF800000> : vector<64xf32>
    %687 = vector.multi_reduction <maximumf>, %686, %cst_172 [1] : vector<64x8xf32> to vector<64xf32>
    %688 = vector.shape_cast %687 : vector<64xf32> to vector<64x1xf32>
    %689 = vector.broadcast %688 : vector<64x1xf32> to vector<64x8xf32>
    %690 = arith.subf %686, %689 : vector<64x8xf32>
    %691 = math.exp %690 : vector<64x8xf32>
    %cst_173 = arith.constant dense<0.000000e+00> : vector<64xf32>
    %692 = vector.multi_reduction <add>, %691, %cst_173 [1] : vector<64x8xf32> to vector<64xf32>
    %693 = vector.shape_cast %692 : vector<64xf32> to vector<64x1xf32>
    %694 = tpu.reciprocal %693 {approx = true} : vector<64x1xf32> -> vector<64x1xf32>
    %695 = vector.broadcast %694 : vector<64x1xf32> to vector<64x8xf32>
    %696 = arith.mulf %691, %695 : vector<64x8xf32>
    %c416 = arith.constant 416 : index
    %c0_174 = arith.constant 0 : index
    %697 = vector.load %arg2[%c416, %c0_174] : memref<712x128xf32, #tpu.memory_space<vmem>>, vector<32x32xf32>
    %698 = vector.extract_strided_slice %696 {offsets = [0, 0], sizes = [8, 8], strides = [1, 1]} : vector<64x8xf32> to vector<8x8xf32>
    %699 = vector.extract_strided_slice %638 {offsets = [0, 0], sizes = [8, 8], strides = [1, 1]} : vector<16x32xf32> to vector<8x8xf32>
    %700 = arith.truncf %698 : vector<8x8xf32> to vector<8x8xbf16>
    %701 = arith.truncf %699 : vector<8x8xf32> to vector<8x8xbf16>
    %cst_175 = arith.constant dense<0.000000e+00> : vector<8x8xf32>
    %702 = tpu.matmul %700, %701, %cst_175 {dimension_numbers = #tpu.dot_dimension_numbers<[1], [0], [0], [1], [0, 0, 1, 1], [], []>} : vector<8x8xbf16>, vector<8x8xbf16>, vector<8x8xf32> -> vector<8x8xf32>
    %703 = vector.extract_strided_slice %696 {offsets = [8, 0], sizes = [8, 8], strides = [1, 1]} : vector<64x8xf32> to vector<8x8xf32>
    %704 = vector.extract_strided_slice %638 {offsets = [0, 8], sizes = [8, 8], strides = [1, 1]} : vector<16x32xf32> to vector<8x8xf32>
    %705 = arith.truncf %703 : vector<8x8xf32> to vector<8x8xbf16>
    %706 = arith.truncf %704 : vector<8x8xf32> to vector<8x8xbf16>
    %cst_176 = arith.constant dense<0.000000e+00> : vector<8x8xf32>
    %707 = tpu.matmul %705, %706, %cst_176 {dimension_numbers = #tpu.dot_dimension_numbers<[1], [0], [0], [1], [0, 0, 1, 1], [], []>} : vector<8x8xbf16>, vector<8x8xbf16>, vector<8x8xf32> -> vector<8x8xf32>
    %708 = vector.extract_strided_slice %696 {offsets = [16, 0], sizes = [8, 8], strides = [1, 1]} : vector<64x8xf32> to vector<8x8xf32>
    %709 = vector.extract_strided_slice %638 {offsets = [0, 16], sizes = [8, 8], strides = [1, 1]} : vector<16x32xf32> to vector<8x8xf32>
    %710 = arith.truncf %708 : vector<8x8xf32> to vector<8x8xbf16>
    %711 = arith.truncf %709 : vector<8x8xf32> to vector<8x8xbf16>
    %cst_177 = arith.constant dense<0.000000e+00> : vector<8x8xf32>
    %712 = tpu.matmul %710, %711, %cst_177 {dimension_numbers = #tpu.dot_dimension_numbers<[1], [0], [0], [1], [0, 0, 1, 1], [], []>} : vector<8x8xbf16>, vector<8x8xbf16>, vector<8x8xf32> -> vector<8x8xf32>
    %713 = vector.extract_strided_slice %696 {offsets = [24, 0], sizes = [8, 8], strides = [1, 1]} : vector<64x8xf32> to vector<8x8xf32>
    %714 = vector.extract_strided_slice %638 {offsets = [0, 24], sizes = [8, 8], strides = [1, 1]} : vector<16x32xf32> to vector<8x8xf32>
    %715 = arith.truncf %713 : vector<8x8xf32> to vector<8x8xbf16>
    %716 = arith.truncf %714 : vector<8x8xf32> to vector<8x8xbf16>
    %cst_178 = arith.constant dense<0.000000e+00> : vector<8x8xf32>
    %717 = tpu.matmul %715, %716, %cst_178 {dimension_numbers = #tpu.dot_dimension_numbers<[1], [0], [0], [1], [0, 0, 1, 1], [], []>} : vector<8x8xbf16>, vector<8x8xbf16>, vector<8x8xf32> -> vector<8x8xf32>
    %718 = vector.extract_strided_slice %696 {offsets = [32, 0], sizes = [8, 8], strides = [1, 1]} : vector<64x8xf32> to vector<8x8xf32>
    %719 = vector.extract_strided_slice %638 {offsets = [8, 0], sizes = [8, 8], strides = [1, 1]} : vector<16x32xf32> to vector<8x8xf32>
    %720 = arith.truncf %718 : vector<8x8xf32> to vector<8x8xbf16>
    %721 = arith.truncf %719 : vector<8x8xf32> to vector<8x8xbf16>
    %cst_179 = arith.constant dense<0.000000e+00> : vector<8x8xf32>
    %722 = tpu.matmul %720, %721, %cst_179 {dimension_numbers = #tpu.dot_dimension_numbers<[1], [0], [0], [1], [0, 0, 1, 1], [], []>} : vector<8x8xbf16>, vector<8x8xbf16>, vector<8x8xf32> -> vector<8x8xf32>
    %723 = vector.extract_strided_slice %696 {offsets = [40, 0], sizes = [8, 8], strides = [1, 1]} : vector<64x8xf32> to vector<8x8xf32>
    %724 = vector.extract_strided_slice %638 {offsets = [8, 8], sizes = [8, 8], strides = [1, 1]} : vector<16x32xf32> to vector<8x8xf32>
    %725 = arith.truncf %723 : vector<8x8xf32> to vector<8x8xbf16>
    %726 = arith.truncf %724 : vector<8x8xf32> to vector<8x8xbf16>
    %cst_180 = arith.constant dense<0.000000e+00> : vector<8x8xf32>
    %727 = tpu.matmul %725, %726, %cst_180 {dimension_numbers = #tpu.dot_dimension_numbers<[1], [0], [0], [1], [0, 0, 1, 1], [], []>} : vector<8x8xbf16>, vector<8x8xbf16>, vector<8x8xf32> -> vector<8x8xf32>
    %728 = vector.extract_strided_slice %696 {offsets = [48, 0], sizes = [8, 8], strides = [1, 1]} : vector<64x8xf32> to vector<8x8xf32>
    %729 = vector.extract_strided_slice %638 {offsets = [8, 16], sizes = [8, 8], strides = [1, 1]} : vector<16x32xf32> to vector<8x8xf32>
    %730 = arith.truncf %728 : vector<8x8xf32> to vector<8x8xbf16>
    %731 = arith.truncf %729 : vector<8x8xf32> to vector<8x8xbf16>
    %cst_181 = arith.constant dense<0.000000e+00> : vector<8x8xf32>
    %732 = tpu.matmul %730, %731, %cst_181 {dimension_numbers = #tpu.dot_dimension_numbers<[1], [0], [0], [1], [0, 0, 1, 1], [], []>} : vector<8x8xbf16>, vector<8x8xbf16>, vector<8x8xf32> -> vector<8x8xf32>
    %733 = vector.extract_strided_slice %696 {offsets = [56, 0], sizes = [8, 8], strides = [1, 1]} : vector<64x8xf32> to vector<8x8xf32>
    %734 = vector.extract_strided_slice %638 {offsets = [8, 24], sizes = [8, 8], strides = [1, 1]} : vector<16x32xf32> to vector<8x8xf32>
    %735 = arith.truncf %733 : vector<8x8xf32> to vector<8x8xbf16>
    %736 = arith.truncf %734 : vector<8x8xf32> to vector<8x8xbf16>
    %cst_182 = arith.constant dense<0.000000e+00> : vector<8x8xf32>
    %737 = tpu.matmul %735, %736, %cst_182 {dimension_numbers = #tpu.dot_dimension_numbers<[1], [0], [0], [1], [0, 0, 1, 1], [], []>} : vector<8x8xbf16>, vector<8x8xbf16>, vector<8x8xf32> -> vector<8x8xf32>
    %738 = tpu.concatenate %702, %707, %712, %717, %722, %727, %732, %737 in 0 : vector<8x8xf32>, vector<8x8xf32>, vector<8x8xf32>, vector<8x8xf32>, vector<8x8xf32>, vector<8x8xf32>, vector<8x8xf32>, vector<8x8xf32> -> vector<64x8xf32>
    %c648 = arith.constant 648 : index
    %c0_183 = arith.constant 0 : index
    %739 = vector.load %arg2[%c648, %c0_183] : memref<712x128xf32, #tpu.memory_space<vmem>>, vector<64x64xf32>
    %cst_184 = arith.constant dense<0.000000e+00> : vector<64x8xf32>
    %740 = tpu.matmul %739, %738, %cst_184 {dimension_numbers = #tpu.dot_dimension_numbers<[1], [0], [0], [1], [0, 0, 1, 1], [], []>, precision = #tpu.contract_precision<fp32>} : vector<64x64xf32>, vector<64x8xf32>, vector<64x8xf32> -> vector<64x8xf32>
    %741 = vector.extract_strided_slice %740 {offsets = [0, 0], sizes = [16, 8], strides = [1, 1]} : vector<64x8xf32> to vector<16x8xf32>
    %742 = vector.extract_strided_slice %697 {offsets = [0, 0], sizes = [8, 32], strides = [1, 1]} : vector<32x32xf32> to vector<8x32xf32>
    %743 = arith.truncf %741 : vector<16x8xf32> to vector<16x8xbf16>
    %744 = arith.truncf %742 : vector<8x32xf32> to vector<8x32xbf16>
    %cst_185 = arith.constant dense<0.000000e+00> : vector<16x32xf32>
    %745 = tpu.matmul %743, %744, %cst_185 {dimension_numbers = #tpu.dot_dimension_numbers<[1], [0], [0], [1], [0, 0, 1, 1], [], []>} : vector<16x8xbf16>, vector<8x32xbf16>, vector<16x32xf32> -> vector<16x32xf32>
    %746 = vector.extract_strided_slice %740 {offsets = [16, 0], sizes = [16, 8], strides = [1, 1]} : vector<64x8xf32> to vector<16x8xf32>
    %747 = vector.extract_strided_slice %697 {offsets = [8, 0], sizes = [8, 32], strides = [1, 1]} : vector<32x32xf32> to vector<8x32xf32>
    %748 = arith.truncf %746 : vector<16x8xf32> to vector<16x8xbf16>
    %749 = arith.truncf %747 : vector<8x32xf32> to vector<8x32xbf16>
    %cst_186 = arith.constant dense<0.000000e+00> : vector<16x32xf32>
    %750 = tpu.matmul %748, %749, %cst_186 {dimension_numbers = #tpu.dot_dimension_numbers<[1], [0], [0], [1], [0, 0, 1, 1], [], []>} : vector<16x8xbf16>, vector<8x32xbf16>, vector<16x32xf32> -> vector<16x32xf32>
    %751 = arith.addf %745, %750 : vector<16x32xf32>
    %752 = vector.extract_strided_slice %740 {offsets = [32, 0], sizes = [16, 8], strides = [1, 1]} : vector<64x8xf32> to vector<16x8xf32>
    %753 = vector.extract_strided_slice %697 {offsets = [16, 0], sizes = [8, 32], strides = [1, 1]} : vector<32x32xf32> to vector<8x32xf32>
    %754 = arith.truncf %752 : vector<16x8xf32> to vector<16x8xbf16>
    %755 = arith.truncf %753 : vector<8x32xf32> to vector<8x32xbf16>
    %cst_187 = arith.constant dense<0.000000e+00> : vector<16x32xf32>
    %756 = tpu.matmul %754, %755, %cst_187 {dimension_numbers = #tpu.dot_dimension_numbers<[1], [0], [0], [1], [0, 0, 1, 1], [], []>} : vector<16x8xbf16>, vector<8x32xbf16>, vector<16x32xf32> -> vector<16x32xf32>
    %757 = arith.addf %751, %756 : vector<16x32xf32>
    %758 = vector.extract_strided_slice %740 {offsets = [48, 0], sizes = [16, 8], strides = [1, 1]} : vector<64x8xf32> to vector<16x8xf32>
    %759 = vector.extract_strided_slice %697 {offsets = [24, 0], sizes = [8, 32], strides = [1, 1]} : vector<32x32xf32> to vector<8x32xf32>
    %760 = arith.truncf %758 : vector<16x8xf32> to vector<16x8xbf16>
    %761 = arith.truncf %759 : vector<8x32xf32> to vector<8x32xbf16>
    %cst_188 = arith.constant dense<0.000000e+00> : vector<16x32xf32>
    %762 = tpu.matmul %760, %761, %cst_188 {dimension_numbers = #tpu.dot_dimension_numbers<[1], [0], [0], [1], [0, 0, 1, 1], [], []>} : vector<16x8xbf16>, vector<8x32xbf16>, vector<16x32xf32> -> vector<16x32xf32>
    %763 = arith.addf %757, %762 : vector<16x32xf32>
    %c24 = arith.constant 24 : index
    %c0_189 = arith.constant 0 : index
    %764 = vector.load %arg3[%c24, %c0_189] : memref<40x128xf32, #tpu.memory_space<vmem>>, vector<1x32xf32>
    %765 = vector.broadcast %764 : vector<1x32xf32> to vector<16x32xf32>
    %766 = arith.addf %763, %765 : vector<16x32xf32>
    %767 = arith.addf %73, %766 : vector<16x32xf32>
    %c30 = arith.constant 30 : index
    %c0_190 = arith.constant 0 : index
    %768 = vector.load %arg3[%c30, %c0_190] : memref<40x128xf32, #tpu.memory_space<vmem>>, vector<1x32xf32>
    %c31 = arith.constant 31 : index
    %c0_191 = arith.constant 0 : index
    %769 = vector.load %arg3[%c31, %c0_191] : memref<40x128xf32, #tpu.memory_space<vmem>>, vector<1x32xf32>
    %cst_192 = arith.constant dense<0.000000e+00> : vector<16xf32>
    %770 = vector.multi_reduction <add>, %767, %cst_192 [1] : vector<16x32xf32> to vector<16xf32>
    %771 = vector.shape_cast %770 : vector<16xf32> to vector<16x1xf32>
    %cst_193 = arith.constant 3.200000e+01 : f32
    %772 = vector.broadcast %cst_193 : f32 to vector<16x1xf32>
    %773 = arith.divf %771, %772 : vector<16x1xf32>
    %774 = vector.broadcast %773 : vector<16x1xf32> to vector<16x32xf32>
    %775 = arith.subf %767, %774 : vector<16x32xf32>
    %776 = arith.mulf %775, %775 : vector<16x32xf32>
    %cst_194 = arith.constant dense<0.000000e+00> : vector<16xf32>
    %777 = vector.multi_reduction <add>, %776, %cst_194 [1] : vector<16x32xf32> to vector<16xf32>
    %778 = vector.shape_cast %777 : vector<16xf32> to vector<16x1xf32>
    %cst_195 = arith.constant 3.200000e+01 : f32
    %779 = vector.broadcast %cst_195 : f32 to vector<16x1xf32>
    %780 = arith.divf %778, %779 : vector<16x1xf32>
    %cst_196 = arith.constant 9.99999974E-6 : f32
    %781 = vector.broadcast %cst_196 : f32 to vector<16x1xf32>
    %782 = arith.addf %780, %781 : vector<16x1xf32>
    %783 = math.rsqrt %782 : vector<16x1xf32>
    %784 = vector.broadcast %783 : vector<16x1xf32> to vector<16x32xf32>
    %785 = arith.mulf %775, %784 : vector<16x32xf32>
    %786 = vector.broadcast %768 : vector<1x32xf32> to vector<16x32xf32>
    %787 = arith.mulf %785, %786 : vector<16x32xf32>
    %788 = vector.broadcast %769 : vector<1x32xf32> to vector<16x32xf32>
    %789 = arith.addf %787, %788 : vector<16x32xf32>
    %c448 = arith.constant 448 : index
    %c0_197 = arith.constant 0 : index
    %790 = vector.load %arg2[%c448, %c0_197] : memref<712x128xf32, #tpu.memory_space<vmem>>, vector<32x32xf32>
    %791 = arith.truncf %789 : vector<16x32xf32> to vector<16x32xbf16>
    %792 = arith.truncf %790 : vector<32x32xf32> to vector<32x32xbf16>
    %cst_198 = arith.constant dense<0.000000e+00> : vector<16x32xf32>
    %793 = tpu.matmul %791, %792, %cst_198 {dimension_numbers = #tpu.dot_dimension_numbers<[1], [0], [0], [1], [0, 0, 1, 1], [], []>} : vector<16x32xbf16>, vector<32x32xbf16>, vector<16x32xf32> -> vector<16x32xf32>
    %c25 = arith.constant 25 : index
    %c0_199 = arith.constant 0 : index
    %794 = vector.load %arg3[%c25, %c0_199] : memref<40x128xf32, #tpu.memory_space<vmem>>, vector<1x32xf32>
    %795 = vector.broadcast %794 : vector<1x32xf32> to vector<16x32xf32>
    %796 = arith.addf %793, %795 : vector<16x32xf32>
    %c480 = arith.constant 480 : index
    %c0_200 = arith.constant 0 : index
    %797 = vector.load %arg2[%c480, %c0_200] : memref<712x128xf32, #tpu.memory_space<vmem>>, vector<32x64xf32>
    %798 = arith.truncf %628 : vector<8x32xf32> to vector<8x32xbf16>
    %799 = arith.truncf %797 : vector<32x64xf32> to vector<32x64xbf16>
    %cst_201 = arith.constant dense<0.000000e+00> : vector<8x64xf32>
    %800 = tpu.matmul %798, %799, %cst_201 {dimension_numbers = #tpu.dot_dimension_numbers<[1], [0], [0], [1], [0, 0, 1, 1], [], []>} : vector<8x32xbf16>, vector<32x64xbf16>, vector<8x64xf32> -> vector<8x64xf32>
    %c26 = arith.constant 26 : index
    %c0_202 = arith.constant 0 : index
    %801 = vector.load %arg3[%c26, %c0_202] : memref<40x128xf32, #tpu.memory_space<vmem>>, vector<1x64xf32>
    %802 = vector.broadcast %801 : vector<1x64xf32> to vector<8x64xf32>
    %803 = arith.addf %800, %802 : vector<8x64xf32>
    %804 = vector.extract_strided_slice %803 {offsets = [0, 0], sizes = [8, 32], strides = [1, 1]} : vector<8x64xf32> to vector<8x32xf32>
    %805 = vector.extract_strided_slice %803 {offsets = [0, 32], sizes = [8, 32], strides = [1, 1]} : vector<8x64xf32> to vector<8x32xf32>
    %806 = vector.extract_strided_slice %796 {offsets = [0, 0], sizes = [8, 8], strides = [1, 1]} : vector<16x32xf32> to vector<8x8xf32>
    %807 = vector.extract_strided_slice %804 {offsets = [0, 0], sizes = [4, 8], strides = [1, 1]} : vector<8x32xf32> to vector<4x8xf32>
    %808 = arith.truncf %806 : vector<8x8xf32> to vector<8x8xbf16>
    %809 = arith.truncf %807 : vector<4x8xf32> to vector<4x8xbf16>
    %cst_203 = arith.constant dense<0.000000e+00> : vector<8x4xf32>
    %810 = tpu.matmul %808, %809, %cst_203 {dimension_numbers = #tpu.dot_dimension_numbers<[1], [1], [0], [0], [0, 0, 1, 0], [], []>} : vector<8x8xbf16>, vector<4x8xbf16>, vector<8x4xf32> -> vector<8x4xf32>
    %811 = vector.extract_strided_slice %796 {offsets = [0, 8], sizes = [8, 8], strides = [1, 1]} : vector<16x32xf32> to vector<8x8xf32>
    %812 = vector.extract_strided_slice %804 {offsets = [0, 8], sizes = [4, 8], strides = [1, 1]} : vector<8x32xf32> to vector<4x8xf32>
    %813 = arith.truncf %811 : vector<8x8xf32> to vector<8x8xbf16>
    %814 = arith.truncf %812 : vector<4x8xf32> to vector<4x8xbf16>
    %cst_204 = arith.constant dense<0.000000e+00> : vector<8x4xf32>
    %815 = tpu.matmul %813, %814, %cst_204 {dimension_numbers = #tpu.dot_dimension_numbers<[1], [1], [0], [0], [0, 0, 1, 0], [], []>} : vector<8x8xbf16>, vector<4x8xbf16>, vector<8x4xf32> -> vector<8x4xf32>
    %816 = vector.extract_strided_slice %796 {offsets = [0, 16], sizes = [8, 8], strides = [1, 1]} : vector<16x32xf32> to vector<8x8xf32>
    %817 = vector.extract_strided_slice %804 {offsets = [0, 16], sizes = [4, 8], strides = [1, 1]} : vector<8x32xf32> to vector<4x8xf32>
    %818 = arith.truncf %816 : vector<8x8xf32> to vector<8x8xbf16>
    %819 = arith.truncf %817 : vector<4x8xf32> to vector<4x8xbf16>
    %cst_205 = arith.constant dense<0.000000e+00> : vector<8x4xf32>
    %820 = tpu.matmul %818, %819, %cst_205 {dimension_numbers = #tpu.dot_dimension_numbers<[1], [1], [0], [0], [0, 0, 1, 0], [], []>} : vector<8x8xbf16>, vector<4x8xbf16>, vector<8x4xf32> -> vector<8x4xf32>
    %821 = vector.extract_strided_slice %796 {offsets = [0, 24], sizes = [8, 8], strides = [1, 1]} : vector<16x32xf32> to vector<8x8xf32>
    %822 = vector.extract_strided_slice %804 {offsets = [0, 24], sizes = [4, 8], strides = [1, 1]} : vector<8x32xf32> to vector<4x8xf32>
    %823 = arith.truncf %821 : vector<8x8xf32> to vector<8x8xbf16>
    %824 = arith.truncf %822 : vector<4x8xf32> to vector<4x8xbf16>
    %cst_206 = arith.constant dense<0.000000e+00> : vector<8x4xf32>
    %825 = tpu.matmul %823, %824, %cst_206 {dimension_numbers = #tpu.dot_dimension_numbers<[1], [1], [0], [0], [0, 0, 1, 0], [], []>} : vector<8x8xbf16>, vector<4x8xbf16>, vector<8x4xf32> -> vector<8x4xf32>
    %826 = vector.extract_strided_slice %796 {offsets = [8, 0], sizes = [8, 8], strides = [1, 1]} : vector<16x32xf32> to vector<8x8xf32>
    %827 = vector.extract_strided_slice %804 {offsets = [4, 0], sizes = [4, 8], strides = [1, 1]} : vector<8x32xf32> to vector<4x8xf32>
    %828 = arith.truncf %826 : vector<8x8xf32> to vector<8x8xbf16>
    %829 = arith.truncf %827 : vector<4x8xf32> to vector<4x8xbf16>
    %cst_207 = arith.constant dense<0.000000e+00> : vector<8x4xf32>
    %830 = tpu.matmul %828, %829, %cst_207 {dimension_numbers = #tpu.dot_dimension_numbers<[1], [1], [0], [0], [0, 0, 1, 0], [], []>} : vector<8x8xbf16>, vector<4x8xbf16>, vector<8x4xf32> -> vector<8x4xf32>
    %831 = vector.extract_strided_slice %796 {offsets = [8, 8], sizes = [8, 8], strides = [1, 1]} : vector<16x32xf32> to vector<8x8xf32>
    %832 = vector.extract_strided_slice %804 {offsets = [4, 8], sizes = [4, 8], strides = [1, 1]} : vector<8x32xf32> to vector<4x8xf32>
    %833 = arith.truncf %831 : vector<8x8xf32> to vector<8x8xbf16>
    %834 = arith.truncf %832 : vector<4x8xf32> to vector<4x8xbf16>
    %cst_208 = arith.constant dense<0.000000e+00> : vector<8x4xf32>
    %835 = tpu.matmul %833, %834, %cst_208 {dimension_numbers = #tpu.dot_dimension_numbers<[1], [1], [0], [0], [0, 0, 1, 0], [], []>} : vector<8x8xbf16>, vector<4x8xbf16>, vector<8x4xf32> -> vector<8x4xf32>
    %836 = vector.extract_strided_slice %796 {offsets = [8, 16], sizes = [8, 8], strides = [1, 1]} : vector<16x32xf32> to vector<8x8xf32>
    %837 = vector.extract_strided_slice %804 {offsets = [4, 16], sizes = [4, 8], strides = [1, 1]} : vector<8x32xf32> to vector<4x8xf32>
    %838 = arith.truncf %836 : vector<8x8xf32> to vector<8x8xbf16>
    %839 = arith.truncf %837 : vector<4x8xf32> to vector<4x8xbf16>
    %cst_209 = arith.constant dense<0.000000e+00> : vector<8x4xf32>
    %840 = tpu.matmul %838, %839, %cst_209 {dimension_numbers = #tpu.dot_dimension_numbers<[1], [1], [0], [0], [0, 0, 1, 0], [], []>} : vector<8x8xbf16>, vector<4x8xbf16>, vector<8x4xf32> -> vector<8x4xf32>
    %841 = vector.extract_strided_slice %796 {offsets = [8, 24], sizes = [8, 8], strides = [1, 1]} : vector<16x32xf32> to vector<8x8xf32>
    %842 = vector.extract_strided_slice %804 {offsets = [4, 24], sizes = [4, 8], strides = [1, 1]} : vector<8x32xf32> to vector<4x8xf32>
    %843 = arith.truncf %841 : vector<8x8xf32> to vector<8x8xbf16>
    %844 = arith.truncf %842 : vector<4x8xf32> to vector<4x8xbf16>
    %cst_210 = arith.constant dense<0.000000e+00> : vector<8x4xf32>
    %845 = tpu.matmul %843, %844, %cst_210 {dimension_numbers = #tpu.dot_dimension_numbers<[1], [1], [0], [0], [0, 0, 1, 0], [], []>} : vector<8x8xbf16>, vector<4x8xbf16>, vector<8x4xf32> -> vector<8x4xf32>
    %846 = tpu.concatenate %810, %815, %820, %825, %830, %835, %840, %845 in 0 : vector<8x4xf32>, vector<8x4xf32>, vector<8x4xf32>, vector<8x4xf32>, vector<8x4xf32>, vector<8x4xf32>, vector<8x4xf32>, vector<8x4xf32> -> vector<64x4xf32>
    %cst_211 = arith.constant dense<0xFF800000> : vector<64xf32>
    %847 = vector.multi_reduction <maximumf>, %846, %cst_211 [1] : vector<64x4xf32> to vector<64xf32>
    %848 = vector.shape_cast %847 : vector<64xf32> to vector<64x1xf32>
    %849 = vector.broadcast %848 : vector<64x1xf32> to vector<64x4xf32>
    %850 = arith.subf %846, %849 : vector<64x4xf32>
    %851 = math.exp %850 : vector<64x4xf32>
    %cst_212 = arith.constant dense<0.000000e+00> : vector<64xf32>
    %852 = vector.multi_reduction <add>, %851, %cst_212 [1] : vector<64x4xf32> to vector<64xf32>
    %853 = vector.shape_cast %852 : vector<64xf32> to vector<64x1xf32>
    %854 = tpu.reciprocal %853 {approx = true} : vector<64x1xf32> -> vector<64x1xf32>
    %855 = vector.broadcast %854 : vector<64x1xf32> to vector<64x4xf32>
    %856 = arith.mulf %851, %855 : vector<64x4xf32>
    %c512 = arith.constant 512 : index
    %c0_213 = arith.constant 0 : index
    %857 = vector.load %arg2[%c512, %c0_213] : memref<712x128xf32, #tpu.memory_space<vmem>>, vector<32x32xf32>
    %858 = vector.extract_strided_slice %856 {offsets = [0, 0], sizes = [8, 4], strides = [1, 1]} : vector<64x4xf32> to vector<8x4xf32>
    %859 = vector.extract_strided_slice %805 {offsets = [0, 0], sizes = [4, 8], strides = [1, 1]} : vector<8x32xf32> to vector<4x8xf32>
    %860 = arith.truncf %858 : vector<8x4xf32> to vector<8x4xbf16>
    %861 = arith.truncf %859 : vector<4x8xf32> to vector<4x8xbf16>
    %cst_214 = arith.constant dense<0.000000e+00> : vector<8x8xf32>
    %862 = tpu.matmul %860, %861, %cst_214 {dimension_numbers = #tpu.dot_dimension_numbers<[1], [0], [0], [1], [0, 0, 1, 1], [], []>} : vector<8x4xbf16>, vector<4x8xbf16>, vector<8x8xf32> -> vector<8x8xf32>
    %863 = vector.extract_strided_slice %856 {offsets = [32, 0], sizes = [8, 4], strides = [1, 1]} : vector<64x4xf32> to vector<8x4xf32>
    %864 = vector.extract_strided_slice %805 {offsets = [4, 0], sizes = [4, 8], strides = [1, 1]} : vector<8x32xf32> to vector<4x8xf32>
    %865 = arith.truncf %863 : vector<8x4xf32> to vector<8x4xbf16>
    %866 = arith.truncf %864 : vector<4x8xf32> to vector<4x8xbf16>
    %cst_215 = arith.constant dense<0.000000e+00> : vector<8x8xf32>
    %867 = tpu.matmul %865, %866, %cst_215 {dimension_numbers = #tpu.dot_dimension_numbers<[1], [0], [0], [1], [0, 0, 1, 1], [], []>} : vector<8x4xbf16>, vector<4x8xbf16>, vector<8x8xf32> -> vector<8x8xf32>
    %868 = tpu.concatenate %862, %867 in 0 : vector<8x8xf32>, vector<8x8xf32> -> vector<16x8xf32>
    %869 = vector.extract_strided_slice %857 {offsets = [0, 0], sizes = [8, 32], strides = [1, 1]} : vector<32x32xf32> to vector<8x32xf32>
    %870 = arith.truncf %868 : vector<16x8xf32> to vector<16x8xbf16>
    %871 = arith.truncf %869 : vector<8x32xf32> to vector<8x32xbf16>
    %cst_216 = arith.constant dense<0.000000e+00> : vector<16x32xf32>
    %872 = tpu.matmul %870, %871, %cst_216 {dimension_numbers = #tpu.dot_dimension_numbers<[1], [0], [0], [1], [0, 0, 1, 1], [], []>} : vector<16x8xbf16>, vector<8x32xbf16>, vector<16x32xf32> -> vector<16x32xf32>
    %873 = vector.extract_strided_slice %856 {offsets = [8, 0], sizes = [8, 4], strides = [1, 1]} : vector<64x4xf32> to vector<8x4xf32>
    %874 = vector.extract_strided_slice %805 {offsets = [0, 8], sizes = [4, 8], strides = [1, 1]} : vector<8x32xf32> to vector<4x8xf32>
    %875 = arith.truncf %873 : vector<8x4xf32> to vector<8x4xbf16>
    %876 = arith.truncf %874 : vector<4x8xf32> to vector<4x8xbf16>
    %cst_217 = arith.constant dense<0.000000e+00> : vector<8x8xf32>
    %877 = tpu.matmul %875, %876, %cst_217 {dimension_numbers = #tpu.dot_dimension_numbers<[1], [0], [0], [1], [0, 0, 1, 1], [], []>} : vector<8x4xbf16>, vector<4x8xbf16>, vector<8x8xf32> -> vector<8x8xf32>
    %878 = vector.extract_strided_slice %856 {offsets = [40, 0], sizes = [8, 4], strides = [1, 1]} : vector<64x4xf32> to vector<8x4xf32>
    %879 = vector.extract_strided_slice %805 {offsets = [4, 8], sizes = [4, 8], strides = [1, 1]} : vector<8x32xf32> to vector<4x8xf32>
    %880 = arith.truncf %878 : vector<8x4xf32> to vector<8x4xbf16>
    %881 = arith.truncf %879 : vector<4x8xf32> to vector<4x8xbf16>
    %cst_218 = arith.constant dense<0.000000e+00> : vector<8x8xf32>
    %882 = tpu.matmul %880, %881, %cst_218 {dimension_numbers = #tpu.dot_dimension_numbers<[1], [0], [0], [1], [0, 0, 1, 1], [], []>} : vector<8x4xbf16>, vector<4x8xbf16>, vector<8x8xf32> -> vector<8x8xf32>
    %883 = tpu.concatenate %877, %882 in 0 : vector<8x8xf32>, vector<8x8xf32> -> vector<16x8xf32>
    %884 = vector.extract_strided_slice %857 {offsets = [8, 0], sizes = [8, 32], strides = [1, 1]} : vector<32x32xf32> to vector<8x32xf32>
    %885 = arith.truncf %883 : vector<16x8xf32> to vector<16x8xbf16>
    %886 = arith.truncf %884 : vector<8x32xf32> to vector<8x32xbf16>
    %cst_219 = arith.constant dense<0.000000e+00> : vector<16x32xf32>
    %887 = tpu.matmul %885, %886, %cst_219 {dimension_numbers = #tpu.dot_dimension_numbers<[1], [0], [0], [1], [0, 0, 1, 1], [], []>} : vector<16x8xbf16>, vector<8x32xbf16>, vector<16x32xf32> -> vector<16x32xf32>
    %888 = arith.addf %872, %887 : vector<16x32xf32>
    %889 = vector.extract_strided_slice %856 {offsets = [16, 0], sizes = [8, 4], strides = [1, 1]} : vector<64x4xf32> to vector<8x4xf32>
    %890 = vector.extract_strided_slice %805 {offsets = [0, 16], sizes = [4, 8], strides = [1, 1]} : vector<8x32xf32> to vector<4x8xf32>
    %891 = arith.truncf %889 : vector<8x4xf32> to vector<8x4xbf16>
    %892 = arith.truncf %890 : vector<4x8xf32> to vector<4x8xbf16>
    %cst_220 = arith.constant dense<0.000000e+00> : vector<8x8xf32>
    %893 = tpu.matmul %891, %892, %cst_220 {dimension_numbers = #tpu.dot_dimension_numbers<[1], [0], [0], [1], [0, 0, 1, 1], [], []>} : vector<8x4xbf16>, vector<4x8xbf16>, vector<8x8xf32> -> vector<8x8xf32>
    %894 = vector.extract_strided_slice %856 {offsets = [48, 0], sizes = [8, 4], strides = [1, 1]} : vector<64x4xf32> to vector<8x4xf32>
    %895 = vector.extract_strided_slice %805 {offsets = [4, 16], sizes = [4, 8], strides = [1, 1]} : vector<8x32xf32> to vector<4x8xf32>
    %896 = arith.truncf %894 : vector<8x4xf32> to vector<8x4xbf16>
    %897 = arith.truncf %895 : vector<4x8xf32> to vector<4x8xbf16>
    %cst_221 = arith.constant dense<0.000000e+00> : vector<8x8xf32>
    %898 = tpu.matmul %896, %897, %cst_221 {dimension_numbers = #tpu.dot_dimension_numbers<[1], [0], [0], [1], [0, 0, 1, 1], [], []>} : vector<8x4xbf16>, vector<4x8xbf16>, vector<8x8xf32> -> vector<8x8xf32>
    %899 = tpu.concatenate %893, %898 in 0 : vector<8x8xf32>, vector<8x8xf32> -> vector<16x8xf32>
    %900 = vector.extract_strided_slice %857 {offsets = [16, 0], sizes = [8, 32], strides = [1, 1]} : vector<32x32xf32> to vector<8x32xf32>
    %901 = arith.truncf %899 : vector<16x8xf32> to vector<16x8xbf16>
    %902 = arith.truncf %900 : vector<8x32xf32> to vector<8x32xbf16>
    %cst_222 = arith.constant dense<0.000000e+00> : vector<16x32xf32>
    %903 = tpu.matmul %901, %902, %cst_222 {dimension_numbers = #tpu.dot_dimension_numbers<[1], [0], [0], [1], [0, 0, 1, 1], [], []>} : vector<16x8xbf16>, vector<8x32xbf16>, vector<16x32xf32> -> vector<16x32xf32>
    %904 = arith.addf %888, %903 : vector<16x32xf32>
    %905 = vector.extract_strided_slice %856 {offsets = [24, 0], sizes = [8, 4], strides = [1, 1]} : vector<64x4xf32> to vector<8x4xf32>
    %906 = vector.extract_strided_slice %805 {offsets = [0, 24], sizes = [4, 8], strides = [1, 1]} : vector<8x32xf32> to vector<4x8xf32>
    %907 = arith.truncf %905 : vector<8x4xf32> to vector<8x4xbf16>
    %908 = arith.truncf %906 : vector<4x8xf32> to vector<4x8xbf16>
    %cst_223 = arith.constant dense<0.000000e+00> : vector<8x8xf32>
    %909 = tpu.matmul %907, %908, %cst_223 {dimension_numbers = #tpu.dot_dimension_numbers<[1], [0], [0], [1], [0, 0, 1, 1], [], []>} : vector<8x4xbf16>, vector<4x8xbf16>, vector<8x8xf32> -> vector<8x8xf32>
    %910 = vector.extract_strided_slice %856 {offsets = [56, 0], sizes = [8, 4], strides = [1, 1]} : vector<64x4xf32> to vector<8x4xf32>
    %911 = vector.extract_strided_slice %805 {offsets = [4, 24], sizes = [4, 8], strides = [1, 1]} : vector<8x32xf32> to vector<4x8xf32>
    %912 = arith.truncf %910 : vector<8x4xf32> to vector<8x4xbf16>
    %913 = arith.truncf %911 : vector<4x8xf32> to vector<4x8xbf16>
    %cst_224 = arith.constant dense<0.000000e+00> : vector<8x8xf32>
    %914 = tpu.matmul %912, %913, %cst_224 {dimension_numbers = #tpu.dot_dimension_numbers<[1], [0], [0], [1], [0, 0, 1, 1], [], []>} : vector<8x4xbf16>, vector<4x8xbf16>, vector<8x8xf32> -> vector<8x8xf32>
    %915 = tpu.concatenate %909, %914 in 0 : vector<8x8xf32>, vector<8x8xf32> -> vector<16x8xf32>
    %916 = vector.extract_strided_slice %857 {offsets = [24, 0], sizes = [8, 32], strides = [1, 1]} : vector<32x32xf32> to vector<8x32xf32>
    %917 = arith.truncf %915 : vector<16x8xf32> to vector<16x8xbf16>
    %918 = arith.truncf %916 : vector<8x32xf32> to vector<8x32xbf16>
    %cst_225 = arith.constant dense<0.000000e+00> : vector<16x32xf32>
    %919 = tpu.matmul %917, %918, %cst_225 {dimension_numbers = #tpu.dot_dimension_numbers<[1], [0], [0], [1], [0, 0, 1, 1], [], []>} : vector<16x8xbf16>, vector<8x32xbf16>, vector<16x32xf32> -> vector<16x32xf32>
    %920 = arith.addf %904, %919 : vector<16x32xf32>
    %c27 = arith.constant 27 : index
    %c0_226 = arith.constant 0 : index
    %921 = vector.load %arg3[%c27, %c0_226] : memref<40x128xf32, #tpu.memory_space<vmem>>, vector<1x32xf32>
    %922 = vector.broadcast %921 : vector<1x32xf32> to vector<16x32xf32>
    %923 = arith.addf %920, %922 : vector<16x32xf32>
    %924 = arith.addf %789, %923 : vector<16x32xf32>
    %c32_227 = arith.constant 32 : index
    %c0_228 = arith.constant 0 : index
    %925 = vector.load %arg3[%c32_227, %c0_228] : memref<40x128xf32, #tpu.memory_space<vmem>>, vector<1x32xf32>
    %c33 = arith.constant 33 : index
    %c0_229 = arith.constant 0 : index
    %926 = vector.load %arg3[%c33, %c0_229] : memref<40x128xf32, #tpu.memory_space<vmem>>, vector<1x32xf32>
    %cst_230 = arith.constant dense<0.000000e+00> : vector<16xf32>
    %927 = vector.multi_reduction <add>, %924, %cst_230 [1] : vector<16x32xf32> to vector<16xf32>
    %928 = vector.shape_cast %927 : vector<16xf32> to vector<16x1xf32>
    %cst_231 = arith.constant 3.200000e+01 : f32
    %929 = vector.broadcast %cst_231 : f32 to vector<16x1xf32>
    %930 = arith.divf %928, %929 : vector<16x1xf32>
    %931 = vector.broadcast %930 : vector<16x1xf32> to vector<16x32xf32>
    %932 = arith.subf %924, %931 : vector<16x32xf32>
    %933 = arith.mulf %932, %932 : vector<16x32xf32>
    %cst_232 = arith.constant dense<0.000000e+00> : vector<16xf32>
    %934 = vector.multi_reduction <add>, %933, %cst_232 [1] : vector<16x32xf32> to vector<16xf32>
    %935 = vector.shape_cast %934 : vector<16xf32> to vector<16x1xf32>
    %cst_233 = arith.constant 3.200000e+01 : f32
    %936 = vector.broadcast %cst_233 : f32 to vector<16x1xf32>
    %937 = arith.divf %935, %936 : vector<16x1xf32>
    %cst_234 = arith.constant 9.99999974E-6 : f32
    %938 = vector.broadcast %cst_234 : f32 to vector<16x1xf32>
    %939 = arith.addf %937, %938 : vector<16x1xf32>
    %940 = math.rsqrt %939 : vector<16x1xf32>
    %941 = vector.broadcast %940 : vector<16x1xf32> to vector<16x32xf32>
    %942 = arith.mulf %932, %941 : vector<16x32xf32>
    %943 = vector.broadcast %925 : vector<1x32xf32> to vector<16x32xf32>
    %944 = arith.mulf %942, %943 : vector<16x32xf32>
    %945 = vector.broadcast %926 : vector<1x32xf32> to vector<16x32xf32>
    %946 = arith.addf %944, %945 : vector<16x32xf32>
    %c544 = arith.constant 544 : index
    %c0_235 = arith.constant 0 : index
    %947 = vector.load %arg2[%c544, %c0_235] : memref<712x128xf32, #tpu.memory_space<vmem>>, vector<32x32xf32>
    %948 = arith.truncf %946 : vector<16x32xf32> to vector<16x32xbf16>
    %949 = arith.truncf %947 : vector<32x32xf32> to vector<32x32xbf16>
    %cst_236 = arith.constant dense<0.000000e+00> : vector<16x32xf32>
    %950 = tpu.matmul %948, %949, %cst_236 {dimension_numbers = #tpu.dot_dimension_numbers<[1], [0], [0], [1], [0, 0, 1, 1], [], []>} : vector<16x32xbf16>, vector<32x32xbf16>, vector<16x32xf32> -> vector<16x32xf32>
    %c28 = arith.constant 28 : index
    %c0_237 = arith.constant 0 : index
    %951 = vector.load %arg3[%c28, %c0_237] : memref<40x128xf32, #tpu.memory_space<vmem>>, vector<1x32xf32>
    %952 = vector.broadcast %951 : vector<1x32xf32> to vector<16x32xf32>
    %953 = arith.addf %950, %952 : vector<16x32xf32>
    %cst_238 = arith.constant 5.000000e-01 : f32
    %954 = vector.broadcast %cst_238 : f32 to vector<16x32xf32>
    %955 = arith.mulf %954, %953 : vector<16x32xf32>
    %cst_239 = arith.constant 0.707106769 : f32
    %956 = vector.broadcast %cst_239 : f32 to vector<16x32xf32>
    %957 = arith.mulf %953, %956 : vector<16x32xf32>
    %958 = math.absf %957 : vector<16x32xf32>
    %cst_240 = arith.constant 0.327591091 : f32
    %959 = vector.broadcast %cst_240 : f32 to vector<16x32xf32>
    %960 = arith.mulf %959, %958 : vector<16x32xf32>
    %cst_241 = arith.constant 1.000000e+00 : f32
    %961 = vector.broadcast %cst_241 : f32 to vector<16x32xf32>
    %962 = arith.addf %961, %960 : vector<16x32xf32>
    %cst_242 = arith.constant 1.000000e+00 : f32
    %963 = vector.broadcast %cst_242 : f32 to vector<16x32xf32>
    %964 = arith.divf %963, %962 : vector<16x32xf32>
    %cst_243 = arith.constant 1.06140542 : f32
    %965 = vector.broadcast %cst_243 : f32 to vector<16x32xf32>
    %966 = arith.mulf %965, %964 : vector<16x32xf32>
    %cst_244 = arith.constant -1.45315206 : f32
    %967 = vector.broadcast %cst_244 : f32 to vector<16x32xf32>
    %968 = arith.addf %966, %967 : vector<16x32xf32>
    %969 = arith.mulf %968, %964 : vector<16x32xf32>
    %cst_245 = arith.constant 1.42141378 : f32
    %970 = vector.broadcast %cst_245 : f32 to vector<16x32xf32>
    %971 = arith.addf %969, %970 : vector<16x32xf32>
    %972 = arith.mulf %971, %964 : vector<16x32xf32>
    %cst_246 = arith.constant -0.284496725 : f32
    %973 = vector.broadcast %cst_246 : f32 to vector<16x32xf32>
    %974 = arith.addf %972, %973 : vector<16x32xf32>
    %975 = arith.mulf %974, %964 : vector<16x32xf32>
    %cst_247 = arith.constant 0.254829586 : f32
    %976 = vector.broadcast %cst_247 : f32 to vector<16x32xf32>
    %977 = arith.addf %975, %976 : vector<16x32xf32>
    %978 = arith.mulf %977, %964 : vector<16x32xf32>
    %cst_248 = arith.constant 0.000000e+00 : f32
    %979 = vector.broadcast %cst_248 : f32 to vector<16x32xf32>
    %980 = arith.subf %979, %958 : vector<16x32xf32>
    %981 = arith.mulf %980, %958 : vector<16x32xf32>
    %982 = math.exp %981 : vector<16x32xf32>
    %983 = arith.mulf %978, %982 : vector<16x32xf32>
    %cst_249 = arith.constant 1.000000e+00 : f32
    %984 = vector.broadcast %cst_249 : f32 to vector<16x32xf32>
    %985 = arith.subf %984, %983 : vector<16x32xf32>
    %cst_250 = arith.constant 0.000000e+00 : f32
    %986 = vector.broadcast %cst_250 : f32 to vector<16x32xf32>
    %987 = arith.cmpf olt, %957, %986 : vector<16x32xf32>
    %cst_251 = arith.constant 0.000000e+00 : f32
    %988 = vector.broadcast %cst_251 : f32 to vector<16x32xf32>
    %989 = arith.subf %988, %985 : vector<16x32xf32>
    %990 = arith.select %987, %989, %985 : vector<16x32xi1>, vector<16x32xf32>
    %cst_252 = arith.constant 1.000000e+00 : f32
    %991 = vector.broadcast %cst_252 : f32 to vector<16x32xf32>
    %992 = arith.addf %991, %990 : vector<16x32xf32>
    %993 = arith.mulf %955, %992 : vector<16x32xf32>
    %c576 = arith.constant 576 : index
    %c0_253 = arith.constant 0 : index
    %994 = vector.load %arg2[%c576, %c0_253] : memref<712x128xf32, #tpu.memory_space<vmem>>, vector<32x32xf32>
    %995 = arith.truncf %993 : vector<16x32xf32> to vector<16x32xbf16>
    %996 = arith.truncf %994 : vector<32x32xf32> to vector<32x32xbf16>
    %cst_254 = arith.constant dense<0.000000e+00> : vector<16x32xf32>
    %997 = tpu.matmul %995, %996, %cst_254 {dimension_numbers = #tpu.dot_dimension_numbers<[1], [0], [0], [1], [0, 0, 1, 1], [], []>} : vector<16x32xbf16>, vector<32x32xbf16>, vector<16x32xf32> -> vector<16x32xf32>
    %c29 = arith.constant 29 : index
    %c0_255 = arith.constant 0 : index
    %998 = vector.load %arg3[%c29, %c0_255] : memref<40x128xf32, #tpu.memory_space<vmem>>, vector<1x32xf32>
    %999 = vector.broadcast %998 : vector<1x32xf32> to vector<16x32xf32>
    %1000 = arith.addf %997, %999 : vector<16x32xf32>
    %1001 = arith.addf %946, %1000 : vector<16x32xf32>
    %c34 = arith.constant 34 : index
    %c0_256 = arith.constant 0 : index
    %1002 = vector.load %arg3[%c34, %c0_256] : memref<40x128xf32, #tpu.memory_space<vmem>>, vector<1x32xf32>
    %c35 = arith.constant 35 : index
    %c0_257 = arith.constant 0 : index
    %1003 = vector.load %arg3[%c35, %c0_257] : memref<40x128xf32, #tpu.memory_space<vmem>>, vector<1x32xf32>
    %cst_258 = arith.constant dense<0.000000e+00> : vector<16xf32>
    %1004 = vector.multi_reduction <add>, %1001, %cst_258 [1] : vector<16x32xf32> to vector<16xf32>
    %1005 = vector.shape_cast %1004 : vector<16xf32> to vector<16x1xf32>
    %cst_259 = arith.constant 3.200000e+01 : f32
    %1006 = vector.broadcast %cst_259 : f32 to vector<16x1xf32>
    %1007 = arith.divf %1005, %1006 : vector<16x1xf32>
    %1008 = vector.broadcast %1007 : vector<16x1xf32> to vector<16x32xf32>
    %1009 = arith.subf %1001, %1008 : vector<16x32xf32>
    %1010 = arith.mulf %1009, %1009 : vector<16x32xf32>
    %cst_260 = arith.constant dense<0.000000e+00> : vector<16xf32>
    %1011 = vector.multi_reduction <add>, %1010, %cst_260 [1] : vector<16x32xf32> to vector<16xf32>
    %1012 = vector.shape_cast %1011 : vector<16xf32> to vector<16x1xf32>
    %cst_261 = arith.constant 3.200000e+01 : f32
    %1013 = vector.broadcast %cst_261 : f32 to vector<16x1xf32>
    %1014 = arith.divf %1012, %1013 : vector<16x1xf32>
    %cst_262 = arith.constant 9.99999974E-6 : f32
    %1015 = vector.broadcast %cst_262 : f32 to vector<16x1xf32>
    %1016 = arith.addf %1014, %1015 : vector<16x1xf32>
    %1017 = math.rsqrt %1016 : vector<16x1xf32>
    %1018 = vector.broadcast %1017 : vector<16x1xf32> to vector<16x32xf32>
    %1019 = arith.mulf %1009, %1018 : vector<16x32xf32>
    %1020 = vector.broadcast %1002 : vector<1x32xf32> to vector<16x32xf32>
    %1021 = arith.mulf %1019, %1020 : vector<16x32xf32>
    %1022 = vector.broadcast %1003 : vector<1x32xf32> to vector<16x32xf32>
    %1023 = arith.addf %1021, %1022 : vector<16x32xf32>
    %c36 = arith.constant 36 : index
    %c0_263 = arith.constant 0 : index
    %1024 = vector.load %arg3[%c36, %c0_263] : memref<40x128xf32, #tpu.memory_space<vmem>>, vector<1x32xf32>
    %c37 = arith.constant 37 : index
    %c0_264 = arith.constant 0 : index
    %1025 = vector.load %arg3[%c37, %c0_264] : memref<40x128xf32, #tpu.memory_space<vmem>>, vector<1x32xf32>
    %cst_265 = arith.constant dense<0.000000e+00> : vector<16xf32>
    %1026 = vector.multi_reduction <add>, %1023, %cst_265 [1] : vector<16x32xf32> to vector<16xf32>
    %1027 = vector.shape_cast %1026 : vector<16xf32> to vector<16x1xf32>
    %cst_266 = arith.constant 3.200000e+01 : f32
    %1028 = vector.broadcast %cst_266 : f32 to vector<16x1xf32>
    %1029 = arith.divf %1027, %1028 : vector<16x1xf32>
    %1030 = vector.broadcast %1029 : vector<16x1xf32> to vector<16x32xf32>
    %1031 = arith.subf %1023, %1030 : vector<16x32xf32>
    %1032 = arith.mulf %1031, %1031 : vector<16x32xf32>
    %cst_267 = arith.constant dense<0.000000e+00> : vector<16xf32>
    %1033 = vector.multi_reduction <add>, %1032, %cst_267 [1] : vector<16x32xf32> to vector<16xf32>
    %1034 = vector.shape_cast %1033 : vector<16xf32> to vector<16x1xf32>
    %cst_268 = arith.constant 3.200000e+01 : f32
    %1035 = vector.broadcast %cst_268 : f32 to vector<16x1xf32>
    %1036 = arith.divf %1034, %1035 : vector<16x1xf32>
    %cst_269 = arith.constant 9.99999974E-6 : f32
    %1037 = vector.broadcast %cst_269 : f32 to vector<16x1xf32>
    %1038 = arith.addf %1036, %1037 : vector<16x1xf32>
    %1039 = math.rsqrt %1038 : vector<16x1xf32>
    %1040 = vector.broadcast %1039 : vector<16x1xf32> to vector<16x32xf32>
    %1041 = arith.mulf %1031, %1040 : vector<16x32xf32>
    %1042 = vector.broadcast %1024 : vector<1x32xf32> to vector<16x32xf32>
    %1043 = arith.mulf %1041, %1042 : vector<16x32xf32>
    %1044 = vector.broadcast %1025 : vector<1x32xf32> to vector<16x32xf32>
    %1045 = arith.addf %1043, %1044 : vector<16x32xf32>
    %1046 = vector.extract_strided_slice %1045 {offsets = [7, 0], sizes = [1, 32], strides = [1, 1]} : vector<16x32xf32> to vector<1x32xf32>
    %1047 = vector.extract_strided_slice %1045 {offsets = [15, 0], sizes = [1, 32], strides = [1, 1]} : vector<16x32xf32> to vector<1x32xf32>
    %1048 = tpu.concatenate %1046, %1047 in 0 : vector<1x32xf32>, vector<1x32xf32> -> vector<2x32xf32>
    %c608 = arith.constant 608 : index
    %c0_270 = arith.constant 0 : index
    %1049 = vector.load %arg2[%c608, %c0_270] : memref<712x128xf32, #tpu.memory_space<vmem>>, vector<32x4xf32>
    %1050 = arith.truncf %1048 : vector<2x32xf32> to vector<2x32xbf16>
    %1051 = arith.truncf %1049 : vector<32x4xf32> to vector<32x4xbf16>
    %cst_271 = arith.constant dense<0.000000e+00> : vector<2x4xf32>
    %1052 = tpu.matmul %1050, %1051, %cst_271 {dimension_numbers = #tpu.dot_dimension_numbers<[1], [0], [0], [1], [0, 0, 1, 1], [], []>} : vector<2x32xbf16>, vector<32x4xbf16>, vector<2x4xf32> -> vector<2x4xf32>
    %c38 = arith.constant 38 : index
    %c0_272 = arith.constant 0 : index
    %1053 = vector.load %arg3[%c38, %c0_272] : memref<40x128xf32, #tpu.memory_space<vmem>>, vector<1x4xf32>
    %1054 = vector.broadcast %1053 : vector<1x4xf32> to vector<2x4xf32>
    %1055 = arith.addf %1052, %1054 : vector<2x4xf32>
    %c640 = arith.constant 640 : index
    %c0_273 = arith.constant 0 : index
    %1056 = vector.load %arg2[%c640, %c0_273] : memref<712x128xf32, #tpu.memory_space<vmem>>, vector<4x3xf32>
    %1057 = arith.truncf %1055 : vector<2x4xf32> to vector<2x4xbf16>
    %1058 = arith.truncf %1056 : vector<4x3xf32> to vector<4x3xbf16>
    %cst_274 = arith.constant dense<0.000000e+00> : vector<2x3xf32>
    %1059 = tpu.matmul %1057, %1058, %cst_274 {dimension_numbers = #tpu.dot_dimension_numbers<[1], [0], [0], [1], [0, 0, 1, 1], [], []>} : vector<2x4xbf16>, vector<4x3xbf16>, vector<2x3xf32> -> vector<2x3xf32>
    %c39 = arith.constant 39 : index
    %c0_275 = arith.constant 0 : index
    %1060 = vector.load %arg3[%c39, %c0_275] : memref<40x128xf32, #tpu.memory_space<vmem>>, vector<1x3xf32>
    %1061 = vector.broadcast %1060 : vector<1x3xf32> to vector<2x3xf32>
    %1062 = arith.addf %1059, %1061 : vector<2x3xf32>
    %c0_276 = arith.constant 0 : index
    %c0_277 = arith.constant 0 : index
    %1063 = vector.load %arg4[%c0_276, %c0_277] : memref<2x3xf32, #tpu.memory_space<vmem>>, vector<2x3xf32>
    tpu.vector_store %arg4[%c0_276, %c0_277], %1062 {strides = array<i32>} : memref<2x3xf32, #tpu.memory_space<vmem>>, vector<2x3xf32>,
    return
  }
}

</mosaic_0001>

<llo_original>
// kernel: informer_forward.1
$region0: #{informer_forward.1}
  #allocation0 [shape = 'u32[]', space=smem, size = 0x4, offset = 0x4, fixed_abs, tag = 'smem constant byte address 0x4 - core index']
  #allocation1 [shape = 'u32[72,128]{1,0:T(1,128)}', space=vmem, size = 0x9000, scoped, tag = 'internal scratch']
  %s0 = inlined_call_operand.vmem [shape: f32[32,4], index: 0, kind: input, shape index: {}]
  %s1 = inlined_call_operand.vmem [shape: f32[32,32], index: 1, kind: input, shape index: {}]
  %s2 = inlined_call_operand.vmem [shape: f32[712,128], index: 2, kind: input, shape index: {}]
  %s3 = inlined_call_operand.vmem [shape: f32[40,128], index: 3, kind: input, shape index: {}]
  %s4 = inlined_call_operand.hbm [shape: f32[2,3], index: 4, kind: output, shape index: {}]
  %s5 = sld [smem:[#allocation0]]
  $region26: #{informer_forward.1} parent=0
    _
  %s7 = ssub.s32 1, %s5
  %s8 = scalar_select 0, %s7, %s5
  $region1: #{informer_forward.1} parent=0
    #allocation2 [shape = 'u8[1024]{0}', space=vmem, size = 0x400, scoped, tag = 'output window, operand 0, single buffered']
    #allocation3 [shape = 's32[1]{0}', space=sflag, size = 0x4, scoped, tag = 'scoped memory for informer_forward.1']
    %9 = vsyncpa [#allocation3], 0
    // Predicated region
    $region2: #{informer_forward.1} parent=1 // pred_check
      _
    $region3: #{informer_forward.1} parent=1 // pred_check_branch
      %11 = sbr.rel (0) target = $region5
    $region4: #{informer_forward.1} parent=1 // pred_region
      _
    $region5: #{informer_forward.1} parent=1 // pred_fallthru
      _
    // Predicated region
    $region6: #{informer_forward.1} parent=1 // pred_check
      _
    $region7: #{informer_forward.1} parent=1 // pred_check_branch
      %13 = sbr.rel (0) target = $region9
    $region8: #{informer_forward.1} parent=1 // pred_region
      _
    $region9: #{informer_forward.1} parent=1 // pred_fallthru
      _
    // Predicated region
    $region10: #{informer_forward.1} parent=1 // pred_check
      _
    $region11: #{informer_forward.1} parent=1 // pred_check_branch
      %15 = sbr.rel (0) target = $region13
    $region12: #{informer_forward.1} parent=1 // pred_region
      _
    $region13: #{informer_forward.1} parent=1 // pred_fallthru
      _
    // Predicated region
    $region14: #{informer_forward.1} parent=1 // pred_check
      _
    $region15: #{informer_forward.1} parent=1 // pred_check_branch
      %17 = sbr.rel (0) target = $region17
    $region16: #{informer_forward.1} parent=1 // pred_region
      _
    $region17: #{informer_forward.1} parent=1 // pred_fallthru
      _
    %v19 = vld [vmem:[%s0] sm:$0xff]
    %v20 = vld [vmem:[%s0 + $0x8] sm:$0xff]
    %v21 = vld [vmem:[%s0 + $0x10] sm:$0xff]
    %v22 = vld [vmem:[%s0 + $0x18] sm:$0xff]
    %v23 = vld [vmem:[%s1] sm:$0xff]
    %v24 = vld [vmem:[%s1 + $0x8] sm:$0xff]
    %v25 = vld [vmem:[%s1 + $0x10] sm:$0xff]
    %v26 = vld [vmem:[%s1 + $0x18] sm:$0xff]
    %v27 = vld [vmem:[%s2] sm:$0xff]
    %v28 = vld [vmem:[%s2 + $0x8] sm:$0xf]
    %v30 = vrot.slane %v19, 7
    %vm32 = vcmask 1040384
    %v33 = vsel %vm32, %v30, %v30
    %v34 = vrot.slane %v19, 1
    %vm36 = vcmask 1046528
    %v37 = vsel %vm36, %v34, %v34
    %v39 = vrot.slane %v20, 7
    %v41 = vsel %vm32, %v39, %v39
    %v42 = vrot.slane %v20, 1
    %v44 = vsel %vm36, %v42, %v42
    %v45 = vpack.c.bf16 %v41, %v33
    %v46 = vpack.c.bf16 %v27, %v27
    %v47 = vpack.c.bf16 %v20, %v19
    %v49 = vrot.slane %v46, 2
    %vm50 = vcmask 31744
    %v52 = vsel %vm50, %v47, 0
    %vm54 = vcmask 1041408
    %v56 = vsel %vm54, %v49, 0
    %58 = vmatpush.bf16.msra.mxu0 0
    %59 = vmatpush.bf16.msra.mxu0 0
    %60 = vmatpush.bf16.msra.mxu0 0
    %61 = vmatpush.bf16.msra.mxu0 0
    %62 = vmatpush.bf16.msra.mxu0 0
    %63 = vmatpush.bf16.msra.mxu0 0
    %64 = vmatpush.bf16.msra.mxu0 0
    %65 = vmatpush.bf16.msra.mxu0 %v56
    %66 = vmatmul.bf16.gmra.mxu0 %v52
    %v67 = vpop.f32.mrf.mxu0
    %v68 = vadd.f32 0.0, %v67
    %v69 = vpop.f32.mrf.mxu0
    %v70 = vadd.f32 0.0, %v69
    %71 = vdwg.mxu0
    %v73 = vsel %vm50, %v45, 0
    %v76 = vsel %vm54, %v46, 0
    %78 = vmatpush.bf16.msra.mxu0 0
    %79 = vmatpush.bf16.msra.mxu0 0
    %80 = vmatpush.bf16.msra.mxu0 0
    %81 = vmatpush.bf16.msra.mxu0 0
    %82 = vmatpush.bf16.msra.mxu0 0
    %83 = vmatpush.bf16.msra.mxu0 0
    %84 = vmatpush.bf16.msra.mxu0 0
    %85 = vmatpush.bf16.msra.mxu0 %v76
    %86 = vmatmul.bf16.gmra.mxu0 %v73
    %v87 = vpop.f32.mrf.mxu0
    %v88 = vadd.f32 %v68, %v87
    %v89 = vpop.f32.mrf.mxu0
    %v90 = vadd.f32 %v70, %v89
    %91 = vdwg.mxu0
    %v92 = vpack.c.bf16 %v44, %v37
    %v93 = vpack.c.bf16 %v28, %v28
    %v95 = vsel %vm50, %v92, 0
    %v98 = vsel %vm54, %v93, 0
    %100 = vmatpush.bf16.msra.mxu0 0
    %101 = vmatpush.bf16.msra.mxu0 0
    %102 = vmatpush.bf16.msra.mxu0 0
    %103 = vmatpush.bf16.msra.mxu0 0
    %104 = vmatpush.bf16.msra.mxu0 0
    %105 = vmatpush.bf16.msra.mxu0 0
    %106 = vmatpush.bf16.msra.mxu0 0
    %107 = vmatpush.bf16.msra.mxu0 %v98
    %108 = vmatmul.bf16.gmra.mxu0 %v95
    %v109 = vpop.f32.mrf.mxu0
    %v110 = vadd.f32 0.0, %v109
    %v111 = vpop.f32.mrf.mxu0
    %v112 = vadd.f32 0.0, %v111
    %113 = vdwg.mxu0
    %v114 = vadd.f32 %v88, %v110
    %v115 = vadd.f32 %v90, %v112
    %v116 = vld [vmem:[%s3] sm:$0x1]
    %v117 = vperm.slane %v116, 0
    %v118 = vadd.f32 %v114, %v117
    %v119 = vadd.f32 %v115, %v117
    %v120 = vadd.f32 %v118, %v23
    %v121 = vadd.f32 %v119, %v24
    %v122 = vld [vmem:[%s2 + $0x10] sm:$0xff]
    %v123 = vld [vmem:[%s2 + $0x18] sm:$0xf]
    %v125 = vrot.slane %v21, 7
    %v127 = vsel %vm32, %v125, %v125
    %v128 = vrot.slane %v21, 1
    %v130 = vsel %vm36, %v128, %v128
    %v132 = vrot.slane %v22, 7
    %v134 = vsel %vm32, %v132, %v132
    %v135 = vrot.slane %v22, 1
    %v137 = vsel %vm36, %v135, %v135
    %v138 = vpack.c.bf16 %v134, %v127
    %v139 = vpack.c.bf16 %v122, %v122
    %v140 = vpack.c.bf16 %v22, %v21
    %v142 = vrot.slane %v139, 2
    %v144 = vsel %vm50, %v140, 0
    %v147 = vsel %vm54, %v142, 0
    %149 = vmatpush.bf16.msra.mxu0 0
    %150 = vmatpush.bf16.msra.mxu0 0
    %151 = vmatpush.bf16.msra.mxu0 0
    %152 = vmatpush.bf16.msra.mxu0 0
    %153 = vmatpush.bf16.msra.mxu0 0
    %154 = vmatpush.bf16.msra.mxu0 0
    %155 = vmatpush.bf16.msra.mxu0 0
    %156 = vmatpush.bf16.msra.mxu0 %v147
    %157 = vmatmul.bf16.gmra.mxu0 %v144
    %v158 = vpop.f32.mrf.mxu0
    %v159 = vadd.f32 0.0, %v158
    %v160 = vpop.f32.mrf.mxu0
    %v161 = vadd.f32 0.0, %v160
    %162 = vdwg.mxu0
    %v164 = vsel %vm50, %v138, 0
    %v167 = vsel %vm54, %v139, 0
    %169 = vmatpush.bf16.msra.mxu0 0
    %170 = vmatpush.bf16.msra.mxu0 0
    %171 = vmatpush.bf16.msra.mxu0 0
    %172 = vmatpush.bf16.msra.mxu0 0
    %173 = vmatpush.bf16.msra.mxu0 0
    %174 = vmatpush.bf16.msra.mxu0 0
    %175 = vmatpush.bf16.msra.mxu0 0
    %176 = vmatpush.bf16.msra.mxu0 %v167
    %177 = vmatmul.bf16.gmra.mxu0 %v164
    %v178 = vpop.f32.mrf.mxu0
    %v179 = vadd.f32 %v159, %v178
    %v180 = vpop.f32.mrf.mxu0
    %v181 = vadd.f32 %v161, %v180
    %182 = vdwg.mxu0
    %v183 = vpack.c.bf16 %v137, %v130
    %v184 = vpack.c.bf16 %v123, %v123
    %v186 = vsel %vm50, %v183, 0
    %v189 = vsel %vm54, %v184, 0
    %191 = vmatpush.bf16.msra.mxu0 0
    %192 = vmatpush.bf16.msra.mxu0 0
    %193 = vmatpush.bf16.msra.mxu0 0
    %194 = vmatpush.bf16.msra.mxu0 0
    %195 = vmatpush.bf16.msra.mxu0 0
    %196 = vmatpush.bf16.msra.mxu0 0
    %197 = vmatpush.bf16.msra.mxu0 0
    %198 = vmatpush.bf16.msra.mxu0 %v189
    %199 = vmatmul.bf16.gmra.mxu0 %v186
    %v200 = vpop.f32.mrf.mxu0
    %v201 = vadd.f32 0.0, %v200
    %v202 = vpop.f32.mrf.mxu0
    %v203 = vadd.f32 0.0, %v202
    %204 = vdwg.mxu0
    %v205 = vadd.f32 %v179, %v201
    %v206 = vadd.f32 %v181, %v203
    %v207 = vld [vmem:[%s3 + $0x1] sm:$0x1]
    %v208 = vperm.slane %v207, 0
    %v209 = vadd.f32 %v205, %v208
    %v210 = vadd.f32 %v206, %v208
    %v211 = vadd.f32 %v209, %v25
    %v212 = vadd.f32 %v210, %v26
    %v213 = vld [vmem:[%s2 + $0x20] sm:$0xff]
    %v214 = vld [vmem:[%s2 + $0x28] sm:$0xff]
    %v215 = vld [vmem:[%s2 + $0x30] sm:$0xff]
    %v216 = vld [vmem:[%s2 + $0x38] sm:$0xff]
    %v217 = vpack.c.bf16 %v121, %v120
    %v218 = vpack.c.bf16 %v214, %v213
    %v219 = vpack.c.bf16 %v216, %v215
    %v220 = vld [vmem:[%s3 + $0x2] sm:$0x1]
    %v221 = vperm.slane %v220, 0
    %vm222 = vcmask 261120
    %v224 = vsel %vm222, %v217, 0
    %226 = vmatpush.bf16.msra.mxu0 0
    %227 = vmatpush.bf16.msra.mxu0 0
    %228 = vmatpush.bf16.msra.mxu0 0
    %229 = vmatpush.bf16.msra.mxu0 0
    %230 = vmatpush.bf16.msra.mxu0 0
    %231 = vmatpush.bf16.msra.mxu0 0
    %232 = vmatpush.bf16.msra.mxu0 %v219
    %233 = vmatpush.bf16.msra.mxu0 %v218
    %234 = vmatmul.bf16.gmra.mxu0 %v224
    %v235 = vpop.f32.mrf.mxu0
    %v236 = vadd.f32 %v221, %v235
    %v237 = vpop.f32.mrf.mxu0
    %v238 = vadd.f32 %v221, %v237
    %239 = vdwg.mxu0
    %v240 = vpack.c.bf16 %v236, %v236
    %242 = vrot.lane.b32.xlu0 %v240, 96
    %v243 = vpop.permute.xlu0 %242
    %vm244 = vcmask 64512
    %v246 = vsel %vm244, %v240, 0
    %v249 = vsel %vm244, %v243, 0
    %251 = vmatpush.bf16.xpose.msra.mxu0 0
    %252 = vmatpush.bf16.xpose.msra.mxu0 0
    %253 = vmatpush.bf16.xpose.msra.mxu0 0
    %254 = vmatpush.bf16.xpose.msra.mxu0 0
    %255 = vmatpush.bf16.xpose.msra.mxu0 0
    %256 = vmatpush.bf16.xpose.msra.mxu0 0
    %257 = vmatpush.bf16.xpose.msra.mxu0 0
    %258 = vmatpush.bf16.xpose.msra.mxu0 %v249
    %259 = vmatmul.bf16.gmra.mxu0 %v246
    %v260 = vpop.f32.mrf.mxu0
    %v261 = vadd.f32 0.0, %v260
    %v262 = vpop.f32.mrf.mxu0
    %263 = vdwg.mxu0
    %264 = vrot.lane.b32.xlu0 %v240, 120
    %v265 = vpop.permute.xlu0 %264
    %266 = vrot.lane.b32.xlu0 %v240, 88
    %v267 = vpop.permute.xlu0 %266
    %v269 = vsel %vm244, %v265, 0
    %v272 = vsel %vm244, %v267, 0
    %274 = vmatpush.bf16.xpose.msra.mxu0 0
    %275 = vmatpush.bf16.xpose.msra.mxu0 0
    %276 = vmatpush.bf16.xpose.msra.mxu0 0
    %277 = vmatpush.bf16.xpose.msra.mxu0 0
    %278 = vmatpush.bf16.xpose.msra.mxu0 0
    %279 = vmatpush.bf16.xpose.msra.mxu0 0
    %280 = vmatpush.bf16.xpose.msra.mxu0 0
    %281 = vmatpush.bf16.xpose.msra.mxu0 %v272
    %282 = vmatmul.bf16.gmra.mxu0 %v269
    %v283 = vpop.f32.mrf.mxu0
    %v284 = vadd.f32 0.0, %v283
    %v285 = vpop.f32.mrf.mxu0
    %286 = vdwg.mxu0
    %287 = vrot.lane.b32.xlu0 %v240, 112
    %v288 = vpop.permute.xlu0 %287
    %289 = vrot.lane.b32.xlu0 %v240, 80
    %v290 = vpop.permute.xlu0 %289
    %v292 = vsel %vm244, %v288, 0
    %v295 = vsel %vm244, %v290, 0
    %297 = vmatpush.bf16.xpose.msra.mxu0 0
    %298 = vmatpush.bf16.xpose.msra.mxu0 0
    %299 = vmatpush.bf16.xpose.msra.mxu0 0
    %300 = vmatpush.bf16.xpose.msra.mxu0 0
    %301 = vmatpush.bf16.xpose.msra.mxu0 0
    %302 = vmatpush.bf16.xpose.msra.mxu0 0
    %303 = vmatpush.bf16.xpose.msra.mxu0 0
    %304 = vmatpush.bf16.xpose.msra.mxu0 %v295
    %305 = vmatmul.bf16.gmra.mxu0 %v292
    %v306 = vpop.f32.mrf.mxu0
    %v307 = vadd.f32 0.0, %v306
    %v308 = vpop.f32.mrf.mxu0
    %309 = vdwg.mxu0
    %310 = vrot.lane.b32.xlu0 %v240, 104
    %v311 = vpop.permute.xlu0 %310
    %312 = vrot.lane.b32.xlu0 %v240, 72
    %v313 = vpop.permute.xlu0 %312
    %v315 = vsel %vm244, %v311, 0
    %v318 = vsel %vm244, %v313, 0
    %320 = vmatpush.bf16.xpose.msra.mxu0 0
    %321 = vmatpush.bf16.xpose.msra.mxu0 0
    %322 = vmatpush.bf16.xpose.msra.mxu0 0
    %323 = vmatpush.bf16.xpose.msra.mxu0 0
    %324 = vmatpush.bf16.xpose.msra.mxu0 0
    %325 = vmatpush.bf16.xpose.msra.mxu0 0
    %326 = vmatpush.bf16.xpose.msra.mxu0 0
    %327 = vmatpush.bf16.xpose.msra.mxu0 %v318
    %328 = vmatmul.bf16.gmra.mxu0 %v315
    %v329 = vpop.f32.mrf.mxu0
    %v330 = vadd.f32 0.0, %v329
    %v331 = vpop.f32.mrf.mxu0
    %332 = vdwg.mxu0
    %v333 = vpack.c.bf16 %v238, %v238
    %335 = vrot.lane.b32.xlu0 %v333, 96
    %v336 = vpop.permute.xlu0 %335
    %v338 = vsel %vm244, %v333, 0
    %v341 = vsel %vm244, %v336, 0
    %343 = vmatpush.bf16.xpose.msra.mxu0 0
    %344 = vmatpush.bf16.xpose.msra.mxu0 0
    %345 = vmatpush.bf16.xpose.msra.mxu0 0
    %346 = vmatpush.bf16.xpose.msra.mxu0 0
    %347 = vmatpush.bf16.xpose.msra.mxu0 0
    %348 = vmatpush.bf16.xpose.msra.mxu0 0
    %349 = vmatpush.bf16.xpose.msra.mxu0 0
    %350 = vmatpush.bf16.xpose.msra.mxu0 %v341
    %351 = vmatmul.bf16.gmra.mxu0 %v338
    %v352 = vpop.f32.mrf.mxu0
    %v353 = vadd.f32 0.0, %v352
    %v354 = vpop.f32.mrf.mxu0
    %355 = vdwg.mxu0
    %356 = vrot.lane.b32.xlu0 %v333, 120
    %v357 = vpop.permute.xlu0 %356
    %358 = vrot.lane.b32.xlu0 %v333, 88
    %v359 = vpop.permute.xlu0 %358
    %v361 = vsel %vm244, %v357, 0
    %v364 = vsel %vm244, %v359, 0
    %366 = vmatpush.bf16.xpose.msra.mxu0 0
    %367 = vmatpush.bf16.xpose.msra.mxu0 0
    %368 = vmatpush.bf16.xpose.msra.mxu0 0
    %369 = vmatpush.bf16.xpose.msra.mxu0 0
    %370 = vmatpush.bf16.xpose.msra.mxu0 0
    %371 = vmatpush.bf16.xpose.msra.mxu0 0
    %372 = vmatpush.bf16.xpose.msra.mxu0 0
    %373 = vmatpush.bf16.xpose.msra.mxu0 %v364
    %374 = vmatmul.bf16.gmra.mxu0 %v361
    %v375 = vpop.f32.mrf.mxu0
    %v376 = vadd.f32 0.0, %v375
    %v377 = vpop.f32.mrf.mxu0
    %378 = vdwg.mxu0
    %379 = vrot.lane.b32.xlu0 %v333, 112
    %v380 = vpop.permute.xlu0 %379
    %381 = vrot.lane.b32.xlu0 %v333, 80
    %v382 = vpop.permute.xlu0 %381
    %v384 = vsel %vm244, %v380, 0
    %v387 = vsel %vm244, %v382, 0
    %389 = vmatpush.bf16.xpose.msra.mxu0 0
    %390 = vmatpush.bf16.xpose.msra.mxu0 0
    %391 = vmatpush.bf16.xpose.msra.mxu0 0
    %392 = vmatpush.bf16.xpose.msra.mxu0 0
    %393 = vmatpush.bf16.xpose.msra.mxu0 0
    %394 = vmatpush.bf16.xpose.msra.mxu0 0
    %395 = vmatpush.bf16.xpose.msra.mxu0 0
    %396 = vmatpush.bf16.xpose.msra.mxu0 %v387
    %397 = vmatmul.bf16.gmra.mxu0 %v384
    %v398 = vpop.f32.mrf.mxu0
    %v399 = vadd.f32 0.0, %v398
    %v400 = vpop.f32.mrf.mxu0
    %401 = vdwg.mxu0
    %402 = vrot.lane.b32.xlu0 %v333, 104
    %v403 = vpop.permute.xlu0 %402
    %404 = vrot.lane.b32.xlu0 %v333, 72
    %v405 = vpop.permute.xlu0 %404
    %v407 = vsel %vm244, %v403, 0
    %v410 = vsel %vm244, %v405, 0
    %412 = vmatpush.bf16.xpose.msra.mxu0 0
    %413 = vmatpush.bf16.xpose.msra.mxu0 0
    %414 = vmatpush.bf16.xpose.msra.mxu0 0
    %415 = vmatpush.bf16.xpose.msra.mxu0 0
    %416 = vmatpush.bf16.xpose.msra.mxu0 0
    %417 = vmatpush.bf16.xpose.msra.mxu0 0
    %418 = vmatpush.bf16.xpose.msra.mxu0 0
    %419 = vmatpush.bf16.xpose.msra.mxu0 %v410
    %420 = vmatmul.bf16.gmra.mxu0 %v407
    %v421 = vpop.f32.mrf.mxu0
    %v422 = vadd.f32 0.0, %v421
    %v423 = vpop.f32.mrf.mxu0
    %424 = vdwg.mxu0
    %v425 = vsel %vm244, %v261, -inf
    %426 = vmax.xlane.f32.xlu0 %v425
    %v427 = vpop.xlane.xlu0 %426
    %v428 = vsel %vm244, %v284, -inf
    %429 = vmax.xlane.f32.xlu0 %v428
    %v430 = vpop.xlane.xlu0 %429
    %v431 = vsel %vm244, %v307, -inf
    %432 = vmax.xlane.f32.xlu0 %v431
    %v433 = vpop.xlane.xlu0 %432
    %v434 = vsel %vm244, %v330, -inf
    %435 = vmax.xlane.f32.xlu0 %v434
    %v436 = vpop.xlane.xlu0 %435
    %v437 = vsel %vm244, %v353, -inf
    %438 = vmax.xlane.f32.xlu0 %v437
    %v439 = vpop.xlane.xlu0 %438
    %v440 = vsel %vm244, %v376, -inf
    %441 = vmax.xlane.f32.xlu0 %v440
    %v442 = vpop.xlane.xlu0 %441
    %v443 = vsel %vm244, %v399, -inf
    %444 = vmax.xlane.f32.xlu0 %v443
    %v445 = vpop.xlane.xlu0 %444
    %v446 = vsel %vm244, %v422, -inf
    %447 = vmax.xlane.f32.xlu0 %v446
    %v448 = vpop.xlane.xlu0 %447
    %v449 = vsub.f32 %v261, %v427
    %v450 = vsub.f32 %v284, %v430
    %v451 = vsub.f32 %v307, %v433
    %v452 = vsub.f32 %v330, %v436
    %v453 = vsub.f32 %v353, %v439
    %v454 = vsub.f32 %v376, %v442
    %v455 = vsub.f32 %v399, %v445
    %v456 = vsub.f32 %v422, %v448
    %v457 = vmul.f32 %v449, 1.442695
    %v458 = vpow.pop %v457
    %v459 = vmul.f32 %v450, 1.442695
    %v460 = vpow.pop %v459
    %v461 = vmul.f32 %v451, 1.442695
    %v462 = vpow.pop %v461
    %v463 = vmul.f32 %v452, 1.442695
    %v464 = vpow.pop %v463
    %v465 = vmul.f32 %v453, 1.442695
    %v466 = vpow.pop %v465
    %v467 = vmul.f32 %v454, 1.442695
    %v468 = vpow.pop %v467
    %v469 = vmul.f32 %v455, 1.442695
    %v470 = vpow.pop %v469
    %v471 = vmul.f32 %v456, 1.442695
    %v472 = vpow.pop %v471
    %v473 = vsel %vm244, %v458, 0.0
    %474 = vadd.xlane.f32.xlu0 %v473
    %v475 = vpop.xlane.xlu0 %474
    %v476 = vsel %vm244, %v460, 0.0
    %477 = vadd.xlane.f32.xlu0 %v476
    %v478 = vpop.xlane.xlu0 %477
    %v479 = vsel %vm244, %v462, 0.0
    %480 = vadd.xlane.f32.xlu0 %v479
    %v481 = vpop.xlane.xlu0 %480
    %v482 = vsel %vm244, %v464, 0.0
    %483 = vadd.xlane.f32.xlu0 %v482
    %v484 = vpop.xlane.xlu0 %483
    %v485 = vsel %vm244, %v466, 0.0
    %486 = vadd.xlane.f32.xlu0 %v485
    %v487 = vpop.xlane.xlu0 %486
    %v488 = vsel %vm244, %v468, 0.0
    %489 = vadd.xlane.f32.xlu0 %v488
    %v490 = vpop.xlane.xlu0 %489
    %v491 = vsel %vm244, %v470, 0.0
    %492 = vadd.xlane.f32.xlu0 %v491
    %v493 = vpop.xlane.xlu0 %492
    %v494 = vsel %vm244, %v472, 0.0
    %495 = vadd.xlane.f32.xlu0 %v494
    %v496 = vpop.xlane.xlu0 %495
    %v497 = vrcp.pop %v475
    %v498 = vrcp.pop %v478
    %v499 = vrcp.pop %v481
    %v500 = vrcp.pop %v484
    %v501 = vrcp.pop %v487
    %v502 = vrcp.pop %v490
    %v503 = vrcp.pop %v493
    %v504 = vrcp.pop %v496
    %v505 = vmul.f32 %v458, %v497
    %v506 = vmul.f32 %v460, %v498
    %v507 = vmul.f32 %v462, %v499
    %v508 = vmul.f32 %v464, %v500
    %v509 = vmul.f32 %v466, %v501
    %v510 = vmul.f32 %v468, %v502
    %v511 = vmul.f32 %v470, %v503
    %v512 = vmul.f32 %v472, %v504
    %v513 = vld [vmem:[%s2 + $0x40] sm:$0xff]
    %v514 = vld [vmem:[%s2 + $0x48] sm:$0xff]
    %v515 = vld [vmem:[%s2 + $0x50] sm:$0xff]
    %v516 = vld [vmem:[%s2 + $0x58] sm:$0xff]
    %v517 = vpack.c.bf16 %v505, %v505
    %518 = vrot.lane.b32.xlu0 %v240, 64
    %v519 = vpop.permute.xlu0 %518
    %v521 = vsel %vm244, %v517, 0
    %vm523 = vcmask 1043456
    %v525 = vsel %vm523, %v519, 0
    %527 = vmatpush.bf16.msra.mxu0 0
    %528 = vmatpush.bf16.msra.mxu0 0
    %529 = vmatpush.bf16.msra.mxu0 0
    %530 = vmatpush.bf16.msra.mxu0 0
    %531 = vmatpush.bf16.msra.mxu0 0
    %532 = vmatpush.bf16.msra.mxu0 0
    %533 = vmatpush.bf16.msra.mxu0 0
    %534 = vmatpush.bf16.msra.mxu0 %v525
    %535 = vmatmul.bf16.gmra.mxu0 %v521
    %v536 = vpop.f32.mrf.mxu0
    %v537 = vadd.f32 0.0, %v536
    %v538 = vpop.f32.mrf.mxu0
    %539 = vdwg.mxu0
    %v540 = vpack.c.bf16 %v509, %v509
    %541 = vrot.lane.b32.xlu0 %v333, 64
    %v542 = vpop.permute.xlu0 %541
    %v544 = vsel %vm244, %v540, 0
    %v547 = vsel %vm523, %v542, 0
    %549 = vmatpush.bf16.msra.mxu0 0
    %550 = vmatpush.bf16.msra.mxu0 0
    %551 = vmatpush.bf16.msra.mxu0 0
    %552 = vmatpush.bf16.msra.mxu0 0
    %553 = vmatpush.bf16.msra.mxu0 0
    %554 = vmatpush.bf16.msra.mxu0 0
    %555 = vmatpush.bf16.msra.mxu0 0
    %556 = vmatpush.bf16.msra.mxu0 %v547
    %557 = vmatmul.bf16.gmra.mxu0 %v544
    %v558 = vpop.f32.mrf.mxu0
    %v559 = vadd.f32 0.0, %v558
    %v560 = vpop.f32.mrf.mxu0
    %561 = vdwg.mxu0
    %v562 = vpack.c.bf16 %v559, %v537
    %v563 = vpack.c.bf16 %v513, %v513
    %v564 = vpack.c.bf16 %v506, %v506
    %565 = vrot.lane.b32.xlu0 %v240, 56
    %v566 = vpop.permute.xlu0 %565
    %v568 = vsel %vm244, %v564, 0
    %v571 = vsel %vm523, %v566, 0
    %573 = vmatpush.bf16.msra.mxu0 0
    %574 = vmatpush.bf16.msra.mxu0 0
    %575 = vmatpush.bf16.msra.mxu0 0
    %576 = vmatpush.bf16.msra.mxu0 0
    %577 = vmatpush.bf16.msra.mxu0 0
    %578 = vmatpush.bf16.msra.mxu0 0
    %579 = vmatpush.bf16.msra.mxu0 0
    %580 = vmatpush.bf16.msra.mxu0 %v571
    %581 = vmatmul.bf16.gmra.mxu0 %v568
    %v582 = vpop.f32.mrf.mxu0
    %v583 = vadd.f32 0.0, %v582
    %v584 = vpop.f32.mrf.mxu0
    %585 = vdwg.mxu0
    %v586 = vpack.c.bf16 %v510, %v510
    %587 = vrot.lane.b32.xlu0 %v333, 56
    %v588 = vpop.permute.xlu0 %587
    %v590 = vsel %vm244, %v586, 0
    %v593 = vsel %vm523, %v588, 0
    %595 = vmatpush.bf16.msra.mxu0 0
    %596 = vmatpush.bf16.msra.mxu0 0
    %597 = vmatpush.bf16.msra.mxu0 0
    %598 = vmatpush.bf16.msra.mxu0 0
    %599 = vmatpush.bf16.msra.mxu0 0
    %600 = vmatpush.bf16.msra.mxu0 0
    %601 = vmatpush.bf16.msra.mxu0 0
    %602 = vmatpush.bf16.msra.mxu0 %v593
    %603 = vmatmul.bf16.gmra.mxu0 %v590
    %v604 = vpop.f32.mrf.mxu0
    %v605 = vadd.f32 0.0, %v604
    %v606 = vpop.f32.mrf.mxu0
    %607 = vdwg.mxu0
    %v608 = vpack.c.bf16 %v605, %v583
    %v609 = vpack.c.bf16 %v514, %v514
    %v611 = vsel %vm244, %v608, 0
    %v614 = vsel %vm523, %v609, 0
    %616 = vmatpush.bf16.msra.mxu0 0
    %617 = vmatpush.bf16.msra.mxu0 0
    %618 = vmatpush.bf16.msra.mxu0 0
    %619 = vmatpush.bf16.msra.mxu0 0
    %620 = vmatpush.bf16.msra.mxu0 0
    %621 = vmatpush.bf16.msra.mxu0 0
    %622 = vmatpush.bf16.msra.mxu0 0
    %623 = vmatpush.bf16.msra.mxu0 %v614
    %624 = vmatmul.bf16.gmra.mxu0 %v611
    %v625 = vpop.f32.mrf.mxu0
    %v626 = vadd.f32 0.0, %v625
    %v627 = vpop.f32.mrf.mxu0
    %v628 = vadd.f32 0.0, %v627
    %629 = vdwg.mxu0
    %v631 = vsel %vm244, %v562, 0
    %v634 = vsel %vm523, %v563, 0
    %636 = vmatpush.bf16.msra.mxu0 0
    %637 = vmatpush.bf16.msra.mxu0 0
    %638 = vmatpush.bf16.msra.mxu0 0
    %639 = vmatpush.bf16.msra.mxu0 0
    %640 = vmatpush.bf16.msra.mxu0 0
    %641 = vmatpush.bf16.msra.mxu0 0
    %642 = vmatpush.bf16.msra.mxu0 0
    %643 = vmatpush.bf16.msra.mxu0 %v634
    %644 = vmatmul.bf16.gmra.mxu0 %v631
    %v645 = vpop.f32.mrf.mxu0
    %v646 = vadd.f32 %v626, %v645
    %v647 = vpop.f32.mrf.mxu0
    %v648 = vadd.f32 %v628, %v647
    %649 = vdwg.mxu0
    %v650 = vpack.c.bf16 %v507, %v507
    %651 = vrot.lane.b32.xlu0 %v240, 48
    %v652 = vpop.permute.xlu0 %651
    %v654 = vsel %vm244, %v650, 0
    %v657 = vsel %vm523, %v652, 0
    %659 = vmatpush.bf16.msra.mxu0 0
    %660 = vmatpush.bf16.msra.mxu0 0
    %661 = vmatpush.bf16.msra.mxu0 0
    %662 = vmatpush.bf16.msra.mxu0 0
    %663 = vmatpush.bf16.msra.mxu0 0
    %664 = vmatpush.bf16.msra.mxu0 0
    %665 = vmatpush.bf16.msra.mxu0 0
    %666 = vmatpush.bf16.msra.mxu0 %v657
    %667 = vmatmul.bf16.gmra.mxu0 %v654
    %v668 = vpop.f32.mrf.mxu0
    %v669 = vadd.f32 0.0, %v668
    %v670 = vpop.f32.mrf.mxu0
    %671 = vdwg.mxu0
    %v672 = vpack.c.bf16 %v511, %v511
    %673 = vrot.lane.b32.xlu0 %v333, 48
    %v674 = vpop.permute.xlu0 %673
    %v676 = vsel %vm244, %v672, 0
    %v679 = vsel %vm523, %v674, 0
    %681 = vmatpush.bf16.msra.mxu0 0
    %682 = vmatpush.bf16.msra.mxu0 0
    %683 = vmatpush.bf16.msra.mxu0 0
    %684 = vmatpush.bf16.msra.mxu0 0
    %685 = vmatpush.bf16.msra.mxu0 0
    %686 = vmatpush.bf16.msra.mxu0 0
    %687 = vmatpush.bf16.msra.mxu0 0
    %688 = vmatpush.bf16.msra.mxu0 %v679
    %689 = vmatmul.bf16.gmra.mxu0 %v676
    %v690 = vpop.f32.mrf.mxu0
    %v691 = vadd.f32 0.0, %v690
    %v692 = vpop.f32.mrf.mxu0
    %693 = vdwg.mxu0
    %v694 = vpack.c.bf16 %v691, %v669
    %v695 = vpack.c.bf16 %v515, %v515
    %v697 = vsel %vm244, %v694, 0
    %v700 = vsel %vm523, %v695, 0
    %702 = vmatpush.bf16.msra.mxu0 0
    %703 = vmatpush.bf16.msra.mxu0 0
    %704 = vmatpush.bf16.msra.mxu0 0
    %705 = vmatpush.bf16.msra.mxu0 0
    %706 = vmatpush.bf16.msra.mxu0 0
    %707 = vmatpush.bf16.msra.mxu0 0
    %708 = vmatpush.bf16.msra.mxu0 0
    %709 = vmatpush.bf16.msra.mxu0 %v700
    %710 = vmatmul.bf16.gmra.mxu0 %v697
    %v711 = vpop.f32.mrf.mxu0
    %v712 = vadd.f32 0.0, %v711
    %v713 = vpop.f32.mrf.mxu0
    %v714 = vadd.f32 0.0, %v713
    %715 = vdwg.mxu0
    %v716 = vadd.f32 %v646, %v712
    %v717 = vadd.f32 %v648, %v714
    %v718 = vpack.c.bf16 %v508, %v508
    %719 = vrot.lane.b32.xlu0 %v240, 40
    %v720 = vpop.permute.xlu0 %719
    %v722 = vsel %vm244, %v718, 0
    %v725 = vsel %vm523, %v720, 0
    %727 = vmatpush.bf16.msra.mxu0 0
    %728 = vmatpush.bf16.msra.mxu0 0
    %729 = vmatpush.bf16.msra.mxu0 0
    %730 = vmatpush.bf16.msra.mxu0 0
    %731 = vmatpush.bf16.msra.mxu0 0
    %732 = vmatpush.bf16.msra.mxu0 0
    %733 = vmatpush.bf16.msra.mxu0 0
    %734 = vmatpush.bf16.msra.mxu0 %v725
    %735 = vmatmul.bf16.gmra.mxu0 %v722
    %v736 = vpop.f32.mrf.mxu0
    %v737 = vadd.f32 0.0, %v736
    %v738 = vpop.f32.mrf.mxu0
    %739 = vdwg.mxu0
    %v740 = vpack.c.bf16 %v512, %v512
    %741 = vrot.lane.b32.xlu0 %v333, 40
    %v742 = vpop.permute.xlu0 %741
    %v744 = vsel %vm244, %v740, 0
    %v747 = vsel %vm523, %v742, 0
    %749 = vmatpush.bf16.msra.mxu0 0
    %750 = vmatpush.bf16.msra.mxu0 0
    %751 = vmatpush.bf16.msra.mxu0 0
    %752 = vmatpush.bf16.msra.mxu0 0
    %753 = vmatpush.bf16.msra.mxu0 0
    %754 = vmatpush.bf16.msra.mxu0 0
    %755 = vmatpush.bf16.msra.mxu0 0
    %756 = vmatpush.bf16.msra.mxu0 %v747
    %757 = vmatmul.bf16.gmra.mxu0 %v744
    %v758 = vpop.f32.mrf.mxu0
    %v759 = vadd.f32 0.0, %v758
    %v760 = vpop.f32.mrf.mxu0
    %761 = vdwg.mxu0
    %v762 = vpack.c.bf16 %v759, %v737
    %v763 = vpack.c.bf16 %v516, %v516
    %v765 = vsel %vm244, %v762, 0
    %v768 = vsel %vm523, %v763, 0
    %770 = vmatpush.bf16.msra.mxu0 0
    %771 = vmatpush.bf16.msra.mxu0 0
    %772 = vmatpush.bf16.msra.mxu0 0
    %773 = vmatpush.bf16.msra.mxu0 0
    %774 = vmatpush.bf16.msra.mxu0 0
    %775 = vmatpush.bf16.msra.mxu0 0
    %776 = vmatpush.bf16.msra.mxu0 0
    %777 = vmatpush.bf16.msra.mxu0 %v768
    %778 = vmatmul.bf16.gmra.mxu0 %v765
    %v779 = vpop.f32.mrf.mxu0
    %v780 = vadd.f32 0.0, %v779
    %v781 = vpop.f32.mrf.mxu0
    %v782 = vadd.f32 0.0, %v781
    %783 = vdwg.mxu0
    %v784 = vadd.f32 %v716, %v780
    %v785 = vadd.f32 %v717, %v782
    %v786 = vld [vmem:[%s3 + $0x3] sm:$0x1]
    %v787 = vperm.slane %v786, 0
    %v788 = vadd.f32 %v784, %v787
    %v789 = vadd.f32 %v785, %v787
    %v790 = vadd.f32 %v120, %v788
    %v791 = vadd.f32 %v121, %v789
    %v792 = vld [vmem:[%s3 + $0x6] sm:$0x1]
    %v793 = vld [vmem:[%s3 + $0x7] sm:$0x1]
    %v794 = vsel %vm222, %v790, 0.0
    %795 = vadd.xlane.f32.xlu0 %v794
    %v796 = vpop.xlane.xlu0 %795
    %v797 = vsel %vm222, %v791, 0.0
    %798 = vadd.xlane.f32.xlu0 %v797
    %v799 = vpop.xlane.xlu0 %798
    %v800 = vrcp.pop 32.0
    %v801 = vmul.f32 32.0, %v800
    %v802 = vsub.f32 1.0, %v801
    %v803 = vmul.f32 %v800, %v802
    %v804 = vadd.f32 %v800, %v803
    %vm805 = vweird.f32 %v800
    %v806 = vsel %vm805, %v800, %v804
    %v807 = vmul.f32 %v796, %v806
    %v808 = vmul.f32 %v799, %v806
    %v809 = vsub.f32 %v790, %v807
    %v810 = vsub.f32 %v791, %v808
    %v811 = vmul.f32 %v809, %v809
    %v812 = vmul.f32 %v810, %v810
    %v813 = vsel %vm222, %v811, 0.0
    %814 = vadd.xlane.f32.xlu0 %v813
    %v815 = vpop.xlane.xlu0 %814
    %v816 = vsel %vm222, %v812, 0.0
    %817 = vadd.xlane.f32.xlu0 %v816
    %v818 = vpop.xlane.xlu0 %817
    %v819 = vmul.f32 %v815, %v806
    %v820 = vmul.f32 %v818, %v806
    %v821 = vadd.f32 %v819, 1e-05
    %v822 = vadd.f32 %v820, 1e-05
    %v823 = vrsqrt.pop %v821
    %v824 = vmul.f32 %v823, %v821
    %v825 = vmul.f32 %v824, %v823
    %v826 = vmul.f32 0.5, %v825
    %v827 = vsub.f32 1.5, %v826
    %v828 = vmul.f32 %v823, %v827
    %vm829 = vweird.f32 %v821
    %vm830 = vweird.f32 %v823
    %vm831 = vmor %vm829, %vm830
    %v832 = vsel %vm831, %v823, %v828
    %v833 = vrsqrt.pop %v822
    %v834 = vmul.f32 %v833, %v822
    %v835 = vmul.f32 %v834, %v833
    %v836 = vmul.f32 0.5, %v835
    %v837 = vsub.f32 1.5, %v836
    %v838 = vmul.f32 %v833, %v837
    %vm839 = vweird.f32 %v822
    %vm840 = vweird.f32 %v833
    %vm841 = vmor %vm839, %vm840
    %v842 = vsel %vm841, %v833, %v838
    %v843 = vmul.f32 %v809, %v832
    %v844 = vmul.f32 %v810, %v842
    %v845 = vperm.slane %v792, 0
    %v846 = vmul.f32 %v843, %v845
    %v847 = vmul.f32 %v844, %v845
    %v848 = vperm.slane %v793, 0
    %v849 = vadd.f32 %v846, %v848
    %v850 = vadd.f32 %v847, %v848
    %v851 = vld [vmem:[%s2 + $0x60] sm:$0xff]
    %v852 = vld [vmem:[%s2 + $0x68] sm:$0xff]
    %v853 = vld [vmem:[%s2 + $0x70] sm:$0xff]
    %v854 = vld [vmem:[%s2 + $0x78] sm:$0xff]
    %v855 = vpack.c.bf16 %v850, %v849
    %v856 = vpack.c.bf16 %v852, %v851
    %v857 = vpack.c.bf16 %v854, %v853
    %v858 = vld [vmem:[%s3 + $0x4] sm:$0x1]
    %v859 = vperm.slane %v858, 0
    %v861 = vsel %vm222, %v855, 0
    %863 = vmatpush.bf16.msra.mxu0 0
    %864 = vmatpush.bf16.msra.mxu0 0
    %865 = vmatpush.bf16.msra.mxu0 0
    %866 = vmatpush.bf16.msra.mxu0 0
    %867 = vmatpush.bf16.msra.mxu0 0
    %868 = vmatpush.bf16.msra.mxu0 0
    %869 = vmatpush.bf16.msra.mxu0 %v857
    %870 = vmatpush.bf16.msra.mxu0 %v856
    %871 = vmatmul.bf16.gmra.mxu0 %v861
    %v872 = vpop.f32.mrf.mxu0
    %v873 = vadd.f32 %v859, %v872
    %v874 = vpop.f32.mrf.mxu0
    %v875 = vadd.f32 %v859, %v874
    %876 = vdwg.mxu0
    %v877 = vmul.f32 %v873, 0.5
    %v878 = vmul.f32 %v875, 0.5
    %v879 = vmul.f32 %v873, 0.70710677
    %v880 = vmul.f32 %v875, 0.70710677
    %v881 = vand.u32 2147483647, %v879
    %v882 = vand.u32 2147483647, %v880
    %v883 = vmul.f32 %v881, 0.3275911
    %v884 = vmul.f32 %v882, 0.3275911
    %v885 = vadd.f32 %v883, 1.0
    %v886 = vadd.f32 %v884, 1.0
    %v887 = vrcp.pop %v885
    %v888 = vmul.f32 %v885, %v887
    %v889 = vsub.f32 1.0, %v888
    %v890 = vmul.f32 %v887, %v889
    %v891 = vadd.f32 %v887, %v890
    %vm892 = vweird.f32 %v885
    %vm893 = vweird.f32 %v887
    %vm894 = vmor %vm892, %vm893
    %v895 = vsel %vm894, %v887, %v891
    %v896 = vand.u32 2147483647, %v885
    %vm897 = vcmp.eq.f32.partialorder %v896, 8.507059e+37
    %v898 = vand.u32 %v885, 2147483648
    %v899 = vor.u32 1.1754944e-38, %v898
    %v900 = vsel %vm897, %v899, %v895
    %v901 = vmul.f32 1.0, %v900
    %v902 = vrcp.pop %v886
    %v903 = vmul.f32 %v886, %v902
    %v904 = vsub.f32 1.0, %v903
    %v905 = vmul.f32 %v902, %v904
    %v906 = vadd.f32 %v902, %v905
    %vm907 = vweird.f32 %v886
    %vm908 = vweird.f32 %v902
    %vm909 = vmor %vm907, %vm908
    %v910 = vsel %vm909, %v902, %v906
    %v911 = vand.u32 2147483647, %v886
    %vm912 = vcmp.eq.f32.partialorder %v911, 8.507059e+37
    %v913 = vand.u32 %v886, 2147483648
    %v914 = vor.u32 1.1754944e-38, %v913
    %v915 = vsel %vm912, %v914, %v910
    %v916 = vmul.f32 1.0, %v915
    %v917 = vmul.f32 %v901, 1.0614054
    %v918 = vmul.f32 %v916, 1.0614054
    %v919 = vadd.f32 %v917, -1.4531521
    %v920 = vadd.f32 %v918, -1.4531521
    %v921 = vmul.f32 %v919, %v901
    %v922 = vmul.f32 %v920, %v916
    %v923 = vadd.f32 %v921, 1.4214138
    %v924 = vadd.f32 %v922, 1.4214138
    %v925 = vmul.f32 %v923, %v901
    %v926 = vmul.f32 %v924, %v916
    %v927 = vadd.f32 %v925, -0.28449672
    %v928 = vadd.f32 %v926, -0.28449672
    %v929 = vmul.f32 %v927, %v901
    %v930 = vmul.f32 %v928, %v916
    %v931 = vadd.f32 %v929, 0.2548296
    %v932 = vadd.f32 %v930, 0.2548296
    %v933 = vmul.f32 %v931, %v901
    %v934 = vmul.f32 %v932, %v916
    %v935 = vsub.f32 0.0, %v881
    %v936 = vsub.f32 0.0, %v882
    %v937 = vmul.f32 %v935, %v881
    %v938 = vmul.f32 %v936, %v882
    %v939 = vmul.f32 %v937, 1.442695
    %v940 = vpow.pop %v939
    %v941 = vmul.f32 %v938, 1.442695
    %v942 = vpow.pop %v941
    %v943 = vmul.f32 %v933, %v940
    %v944 = vmul.f32 %v934, %v942
    %v945 = vsub.f32 1.0, %v943
    %v946 = vsub.f32 1.0, %v944
    %vm947 = vcmp.lt.f32.partialorder %v879, 0.0
    %vm948 = vcmp.lt.f32.partialorder %v880, 0.0
    %v949 = vsub.f32 0.0, %v945
    %v950 = vsub.f32 0.0, %v946
    %v951 = vsel %vm947, %v949, %v945
    %v952 = vsel %vm948, %v950, %v946
    %v953 = vadd.f32 %v951, 1.0
    %v954 = vadd.f32 %v952, 1.0
    %v955 = vmul.f32 %v877, %v953
    %v956 = vmul.f32 %v878, %v954
    %v957 = vld [vmem:[%s2 + $0x80] sm:$0xff]
    %v958 = vld [vmem:[%s2 + $0x88] sm:$0xff]
    %v959 = vld [vmem:[%s2 + $0x90] sm:$0xff]
    %v960 = vld [vmem:[%s2 + $0x98] sm:$0xff]
    %v961 = vpack.c.bf16 %v956, %v955
    %v962 = vpack.c.bf16 %v958, %v957
    %v963 = vpack.c.bf16 %v960, %v959
    %v964 = vld [vmem:[%s3 + $0x5] sm:$0x1]
    %v965 = vperm.slane %v964, 0
    %v967 = vsel %vm222, %v961, 0
    %969 = vmatpush.bf16.msra.mxu0 0
    %970 = vmatpush.bf16.msra.mxu0 0
    %971 = vmatpush.bf16.msra.mxu0 0
    %972 = vmatpush.bf16.msra.mxu0 0
    %973 = vmatpush.bf16.msra.mxu0 0
    %974 = vmatpush.bf16.msra.mxu0 0
    %975 = vmatpush.bf16.msra.mxu0 %v963
    %976 = vmatpush.bf16.msra.mxu0 %v962
    %977 = vmatmul.bf16.gmra.mxu0 %v967
    %v978 = vpop.f32.mrf.mxu0
    %v979 = vadd.f32 %v965, %v978
    %v980 = vpop.f32.mrf.mxu0
    %v981 = vadd.f32 %v965, %v980
    %982 = vdwg.mxu0
    %v983 = vadd.f32 %v849, %v979
    %v984 = vadd.f32 %v850, %v981
    %v985 = vld [vmem:[%s3 + $0x8] sm:$0x1]
    %v986 = vld [vmem:[%s3 + $0x9] sm:$0x1]
    %v987 = vsel %vm222, %v983, 0.0
    %988 = vadd.xlane.f32.xlu0 %v987
    %v989 = vpop.xlane.xlu0 %988
    %v990 = vsel %vm222, %v984, 0.0
    %991 = vadd.xlane.f32.xlu0 %v990
    %v992 = vpop.xlane.xlu0 %991
    %v993 = vmul.f32 %v989, %v806
    %v994 = vmul.f32 %v992, %v806
    %v995 = vsub.f32 %v983, %v993
    %v996 = vsub.f32 %v984, %v994
    %v997 = vmul.f32 %v995, %v995
    %v998 = vmul.f32 %v996, %v996
    %v999 = vsel %vm222, %v997, 0.0
    %1000 = vadd.xlane.f32.xlu0 %v999
    %v1001 = vpop.xlane.xlu0 %1000
    %v1002 = vsel %vm222, %v998, 0.0
    %1003 = vadd.xlane.f32.xlu0 %v1002
    %v1004 = vpop.xlane.xlu0 %1003
    %v1005 = vmul.f32 %v1001, %v806
    %v1006 = vmul.f32 %v1004, %v806
    %v1007 = vadd.f32 %v1005, 1e-05
    %v1008 = vadd.f32 %v1006, 1e-05
    %v1009 = vrsqrt.pop %v1007
    %v1010 = vmul.f32 %v1009, %v1007
    %v1011 = vmul.f32 %v1010, %v1009
    %v1012 = vmul.f32 0.5, %v1011
    %v1013 = vsub.f32 1.5, %v1012
    %v1014 = vmul.f32 %v1009, %v1013
    %vm1015 = vweird.f32 %v1007
    %vm1016 = vweird.f32 %v1009
    %vm1017 = vmor %vm1015, %vm1016
    %v1018 = vsel %vm1017, %v1009, %v1014
    %v1019 = vrsqrt.pop %v1008
    %v1020 = vmul.f32 %v1019, %v1008
    %v1021 = vmul.f32 %v1020, %v1019
    %v1022 = vmul.f32 0.5, %v1021
    %v1023 = vsub.f32 1.5, %v1022
    %v1024 = vmul.f32 %v1019, %v1023
    %vm1025 = vweird.f32 %v1008
    %vm1026 = vweird.f32 %v1019
    %vm1027 = vmor %vm1025, %vm1026
    %v1028 = vsel %vm1027, %v1019, %v1024
    %v1029 = vmul.f32 %v995, %v1018
    %v1030 = vmul.f32 %v996, %v1028
    %v1031 = vperm.slane %v985, 0
    %v1032 = vmul.f32 %v1029, %v1031
    %v1033 = vmul.f32 %v1030, %v1031
    %v1034 = vperm.slane %v986, 0
    %v1035 = vadd.f32 %v1032, %v1034
    %v1036 = vadd.f32 %v1033, %v1034
    %v1037 = vld [vmem:[%s2 + $0x120] sm:$0xff]
    %v1038 = vld [vmem:[%s2 + $0x128] sm:$0xff]
    %v1039 = vld [vmem:[%s2 + $0x130] sm:$0xff]
    %v1040 = vld [vmem:[%s2 + $0x138] sm:$0xff]
    %v1041 = vld [vmem:[%s2 + $0x140] sm:$0xff]
    %v1042 = vld [vmem:[%s2 + $0x148] sm:$0xff]
    %v1043 = vld [vmem:[%s2 + $0x150] sm:$0xff]
    %v1044 = vld [vmem:[%s2 + $0x158] sm:$0xff]
    %v1045 = vld [vmem:[%s2 + $0x160] sm:$0xff]
    %v1046 = vld [vmem:[%s2 + $0x168] sm:$0xff]
    %v1047 = vld [vmem:[%s2 + $0x170] sm:$0xff]
    %v1048 = vld [vmem:[%s2 + $0x178] sm:$0xff]
    %v1050 = vrot.slane %v1035, 7
    %v1052 = vsel %vm32, %v1050, %v1050
    %v1053 = vrot.slane %v1035, 1
    %v1055 = vsel %vm36, %v1053, %v1053
    %v1057 = vrot.slane %v1036, 7
    %v1059 = vsel %vm32, %v1057, %v1057
    %v1060 = vrot.slane %v1036, 1
    %v1062 = vsel %vm36, %v1060, %v1060
    %v1063 = vpack.c.bf16 %v1059, %v1052
    %v1064 = vpack.c.bf16 %v1038, %v1037
    %v1065 = vpack.c.bf16 %v1040, %v1039
    %v1066 = vpack.c.bf16 %v1036, %v1035
    %v1067 = vpack.c.bf16 %v1042, %v1041
    %v1068 = vpack.c.bf16 %v1044, %v1043
    %v1070 = vsel %vm222, %v1066, 0
    %1072 = vmatpush.bf16.msra.mxu0 0
    %1073 = vmatpush.bf16.msra.mxu0 0
    %1074 = vmatpush.bf16.msra.mxu0 0
    %1075 = vmatpush.bf16.msra.mxu0 0
    %1076 = vmatpush.bf16.msra.mxu0 0
    %1077 = vmatpush.bf16.msra.mxu0 0
    %1078 = vmatpush.bf16.msra.mxu0 %v1068
    %1079 = vmatpush.bf16.msra.mxu0 %v1067
    %1080 = vmatmul.bf16.gmra.mxu0 %v1070
    %v1081 = vpop.f32.mrf.mxu0
    %v1082 = vadd.f32 0.0, %v1081
    %v1083 = vpop.f32.mrf.mxu0
    %v1084 = vadd.f32 0.0, %v1083
    %1085 = vdwg.mxu0
    %v1087 = vsel %vm222, %v1063, 0
    %1089 = vmatpush.bf16.msra.mxu0 0
    %1090 = vmatpush.bf16.msra.mxu0 0
    %1091 = vmatpush.bf16.msra.mxu0 0
    %1092 = vmatpush.bf16.msra.mxu0 0
    %1093 = vmatpush.bf16.msra.mxu0 0
    %1094 = vmatpush.bf16.msra.mxu0 0
    %1095 = vmatpush.bf16.msra.mxu0 %v1065
    %1096 = vmatpush.bf16.msra.mxu0 %v1064
    %1097 = vmatmul.bf16.gmra.mxu0 %v1087
    %v1098 = vpop.f32.mrf.mxu0
    %v1099 = vadd.f32 %v1082, %v1098
    %v1100 = vpop.f32.mrf.mxu0
    %v1101 = vadd.f32 %v1084, %v1100
    %1102 = vdwg.mxu0
    %v1103 = vpack.c.bf16 %v1062, %v1055
    %v1104 = vpack.c.bf16 %v1046, %v1045
    %v1105 = vpack.c.bf16 %v1048, %v1047
    %v1107 = vsel %vm222, %v1103, 0
    %1109 = vmatpush.bf16.msra.mxu0 0
    %1110 = vmatpush.bf16.msra.mxu0 0
    %1111 = vmatpush.bf16.msra.mxu0 0
    %1112 = vmatpush.bf16.msra.mxu0 0
    %1113 = vmatpush.bf16.msra.mxu0 0
    %1114 = vmatpush.bf16.msra.mxu0 0
    %1115 = vmatpush.bf16.msra.mxu0 %v1105
    %1116 = vmatpush.bf16.msra.mxu0 %v1104
    %1117 = vmatmul.bf16.gmra.mxu0 %v1107
    %v1118 = vpop.f32.mrf.mxu0
    %v1119 = vadd.f32 0.0, %v1118
    %v1120 = vpop.f32.mrf.mxu0
    %v1121 = vadd.f32 0.0, %v1120
    %1122 = vdwg.mxu0
    %v1123 = vadd.f32 %v1099, %v1119
    %v1124 = vadd.f32 %v1101, %v1121
    %v1125 = vld [vmem:[%s3 + $0x12] sm:$0x1]
    %v1126 = vperm.slane %v1125, 0
    %v1127 = vadd.f32 %v1123, %v1126
    %v1128 = vadd.f32 %v1124, %v1126
    %v1129 = vld [vmem:[%s3 + $0x13] sm:$0x1]
    %v1130 = vperm.slane %v1129, 0
    %v1131 = vmul.f32 %v1127, %v1130
    %v1132 = vmul.f32 %v1128, %v1130
    %v1133 = vld [vmem:[%s3 + $0x14] sm:$0x1]
    %v1134 = vperm.slane %v1133, 0
    %v1135 = vadd.f32 %v1131, %v1134
    %v1136 = vadd.f32 %v1132, %v1134
    %vm1137 = vcmp.gt.f32.partialorder %v1135, 0.0
    %vm1138 = vcmp.gt.f32.partialorder %v1136, 0.0
    %v1139 = vmin.f32 %v1135, 0.0
    %v1140 = vmin.f32 %v1136, 0.0
    %v1141 = vmul.f32 %v1139, 1.442695
    %v1142 = vpow.pop %v1141
    %v1143 = vmul.f32 %v1140, 1.442695
    %v1144 = vpow.pop %v1143
    %v1145 = vsub.f32 %v1142, 1.0
    %v1146 = vsub.f32 %v1144, 1.0
    %v1147 = vsel %vm1137, %v1135, %v1145
    %v1148 = vsel %vm1138, %v1136, %v1146
    %v1150 = vrot.slane %v1147, 7
    %v1152 = vsel %vm32, %v1147, %v1150
    %v1153 = vrot.slane %v1147, 1
    %v1155 = vsel %vm36, %v1153, %v1147
    %v1156 = vmax.f32 %v1152, %v1147
    %v1157 = vmax.f32 %v1156, %v1155
    %v1159 = vrot.slane %v1157, 1
    %v1161 = vrot.slane %v1157, 2
    %v1163 = vrot.slane %v1157, 3
    %v1165 = vsel %vm32, %v1157, %v1159
    %v1166 = vsel %vm54, %v1165, %v1161
    %vm1167 = vcmask 1042432
    %v1168 = vsel %vm1167, %v1166, %v1163
    %v1170 = vrot.slane %v1148, 7
    %v1172 = vsel %vm32, %v1148, %v1170
    %v1173 = vrot.slane %v1148, 1
    %v1175 = vsel %vm36, %v1173, %v1148
    %v1176 = vmax.f32 %v1172, %v1148
    %v1177 = vmax.f32 %v1176, %v1175
    %v1179 = vrot.slane %v1177, 1
    %v1181 = vrot.slane %v1177, 2
    %v1183 = vrot.slane %v1177, 3
    %v1185 = vsel %vm32, %v1177, %v1179
    %v1186 = vsel %vm54, %v1185, %v1181
    %v1187 = vsel %vm1167, %v1186, %v1183
    %v1189 = vrot.slane %v1187, 4
    %v1191 = vsel %vm523, %v1168, %v1189
    %v1192 = vld [vmem:[%s2 + $0xa0] sm:$0xff]
    %v1193 = vld [vmem:[%s2 + $0xa8] sm:$0xff]
    %v1194 = vld [vmem:[%s2 + $0xb0] sm:$0xff]
    %v1195 = vld [vmem:[%s2 + $0xb8] sm:$0xff]
    %v1196 = vpack.c.bf16 %v1191, %v1191
    %v1197 = vpack.c.bf16 %v1193, %v1192
    %v1198 = vpack.c.bf16 %v1195, %v1194
    %v1199 = vld [vmem:[%s3 + $0xa] sm:$0x1]
    %v1200 = vperm.slane %v1199, 0
    %v1202 = vsel %vm222, %v1196, 0
    %1204 = vmatpush.bf16.msra.mxu0 0
    %1205 = vmatpush.bf16.msra.mxu0 0
    %1206 = vmatpush.bf16.msra.mxu0 0
    %1207 = vmatpush.bf16.msra.mxu0 0
    %1208 = vmatpush.bf16.msra.mxu0 0
    %1209 = vmatpush.bf16.msra.mxu0 0
    %1210 = vmatpush.bf16.msra.mxu0 %v1198
    %1211 = vmatpush.bf16.msra.mxu0 %v1197
    %1212 = vmatmul.bf16.gmra.mxu0 %v1202
    %v1213 = vpop.f32.mrf.mxu0
    %v1214 = vadd.f32 %v1200, %v1213
    %v1215 = vpop.f32.mrf.mxu0
    %1216 = vdwg.mxu0
    %v1217 = vpack.c.bf16 %v1214, %v1214
    %1219 = vrot.lane.b32.xlu0 %v1217, 96
    %v1220 = vpop.permute.xlu0 %1219
    %v1222 = vsel %vm244, %v1217, 0
    %v1225 = vsel %vm244, %v1220, 0
    %1227 = vmatpush.bf16.xpose.msra.mxu0 0
    %1228 = vmatpush.bf16.xpose.msra.mxu0 0
    %1229 = vmatpush.bf16.xpose.msra.mxu0 0
    %1230 = vmatpush.bf16.xpose.msra.mxu0 0
    %1231 = vmatpush.bf16.xpose.msra.mxu0 0
    %1232 = vmatpush.bf16.xpose.msra.mxu0 0
    %1233 = vmatpush.bf16.xpose.msra.mxu0 0
    %1234 = vmatpush.bf16.xpose.msra.mxu0 %v1225
    %1235 = vmatmul.bf16.gmra.mxu0 %v1222
    %v1236 = vpop.f32.mrf.mxu0
    %v1237 = vadd.f32 0.0, %v1236
    %v1238 = vpop.f32.mrf.mxu0
    %1239 = vdwg.mxu0
    %1240 = vrot.lane.b32.xlu0 %v1217, 120
    %v1241 = vpop.permute.xlu0 %1240
    %1242 = vrot.lane.b32.xlu0 %v1217, 88
    %v1243 = vpop.permute.xlu0 %1242
    %v1245 = vsel %vm244, %v1241, 0
    %v1248 = vsel %vm244, %v1243, 0
    %1250 = vmatpush.bf16.xpose.msra.mxu0 0
    %1251 = vmatpush.bf16.xpose.msra.mxu0 0
    %1252 = vmatpush.bf16.xpose.msra.mxu0 0
    %1253 = vmatpush.bf16.xpose.msra.mxu0 0
    %1254 = vmatpush.bf16.xpose.msra.mxu0 0
    %1255 = vmatpush.bf16.xpose.msra.mxu0 0
    %1256 = vmatpush.bf16.xpose.msra.mxu0 0
    %1257 = vmatpush.bf16.xpose.msra.mxu0 %v1248
    %1258 = vmatmul.bf16.gmra.mxu0 %v1245
    %v1259 = vpop.f32.mrf.mxu0
    %v1260 = vadd.f32 0.0, %v1259
    %v1261 = vpop.f32.mrf.mxu0
    %1262 = vdwg.mxu0
    %1263 = vrot.lane.b32.xlu0 %v1217, 112
    %v1264 = vpop.permute.xlu0 %1263
    %1265 = vrot.lane.b32.xlu0 %v1217, 80
    %v1266 = vpop.permute.xlu0 %1265
    %v1268 = vsel %vm244, %v1264, 0
    %v1271 = vsel %vm244, %v1266, 0
    %1273 = vmatpush.bf16.xpose.msra.mxu0 0
    %1274 = vmatpush.bf16.xpose.msra.mxu0 0
    %1275 = vmatpush.bf16.xpose.msra.mxu0 0
    %1276 = vmatpush.bf16.xpose.msra.mxu0 0
    %1277 = vmatpush.bf16.xpose.msra.mxu0 0
    %1278 = vmatpush.bf16.xpose.msra.mxu0 0
    %1279 = vmatpush.bf16.xpose.msra.mxu0 0
    %1280 = vmatpush.bf16.xpose.msra.mxu0 %v1271
    %1281 = vmatmul.bf16.gmra.mxu0 %v1268
    %v1282 = vpop.f32.mrf.mxu0
    %v1283 = vadd.f32 0.0, %v1282
    %v1284 = vpop.f32.mrf.mxu0
    %1285 = vdwg.mxu0
    %1286 = vrot.lane.b32.xlu0 %v1217, 104
    %v1287 = vpop.permute.xlu0 %1286
    %1288 = vrot.lane.b32.xlu0 %v1217, 72
    %v1289 = vpop.permute.xlu0 %1288
    %v1291 = vsel %vm244, %v1287, 0
    %v1294 = vsel %vm244, %v1289, 0
    %1296 = vmatpush.bf16.xpose.msra.mxu0 0
    %1297 = vmatpush.bf16.xpose.msra.mxu0 0
    %1298 = vmatpush.bf16.xpose.msra.mxu0 0
    %1299 = vmatpush.bf16.xpose.msra.mxu0 0
    %1300 = vmatpush.bf16.xpose.msra.mxu0 0
    %1301 = vmatpush.bf16.xpose.msra.mxu0 0
    %1302 = vmatpush.bf16.xpose.msra.mxu0 0
    %1303 = vmatpush.bf16.xpose.msra.mxu0 %v1294
    %1304 = vmatmul.bf16.gmra.mxu0 %v1291
    %v1305 = vpop.f32.mrf.mxu0
    %v1306 = vadd.f32 0.0, %v1305
    %v1307 = vpop.f32.mrf.mxu0
    %1308 = vdwg.mxu0
    %v1309 = vrot.slane %v1217, 2
    %1310 = vrot.lane.b32.xlu0 %v1309, 96
    %v1311 = vpop.permute.xlu0 %1310
    %v1313 = vsel %vm244, %v1309, 0
    %v1316 = vsel %vm244, %v1311, 0
    %1318 = vmatpush.bf16.xpose.msra.mxu0 0
    %1319 = vmatpush.bf16.xpose.msra.mxu0 0
    %1320 = vmatpush.bf16.xpose.msra.mxu0 0
    %1321 = vmatpush.bf16.xpose.msra.mxu0 0
    %1322 = vmatpush.bf16.xpose.msra.mxu0 0
    %1323 = vmatpush.bf16.xpose.msra.mxu0 0
    %1324 = vmatpush.bf16.xpose.msra.mxu0 0
    %1325 = vmatpush.bf16.xpose.msra.mxu0 %v1316
    %1326 = vmatmul.bf16.gmra.mxu0 %v1313
    %v1327 = vpop.f32.mrf.mxu0
    %v1328 = vadd.f32 0.0, %v1327
    %v1329 = vpop.f32.mrf.mxu0
    %1330 = vdwg.mxu0
    %1331 = vrot.lane.b32.xlu0 %v1309, 120
    %v1332 = vpop.permute.xlu0 %1331
    %1333 = vrot.lane.b32.xlu0 %v1309, 88
    %v1334 = vpop.permute.xlu0 %1333
    %v1336 = vsel %vm244, %v1332, 0
    %v1339 = vsel %vm244, %v1334, 0
    %1341 = vmatpush.bf16.xpose.msra.mxu0 0
    %1342 = vmatpush.bf16.xpose.msra.mxu0 0
    %1343 = vmatpush.bf16.xpose.msra.mxu0 0
    %1344 = vmatpush.bf16.xpose.msra.mxu0 0
    %1345 = vmatpush.bf16.xpose.msra.mxu0 0
    %1346 = vmatpush.bf16.xpose.msra.mxu0 0
    %1347 = vmatpush.bf16.xpose.msra.mxu0 0
    %1348 = vmatpush.bf16.xpose.msra.mxu0 %v1339
    %1349 = vmatmul.bf16.gmra.mxu0 %v1336
    %v1350 = vpop.f32.mrf.mxu0
    %v1351 = vadd.f32 0.0, %v1350
    %v1352 = vpop.f32.mrf.mxu0
    %1353 = vdwg.mxu0
    %1354 = vrot.lane.b32.xlu0 %v1309, 112
    %v1355 = vpop.permute.xlu0 %1354
    %1356 = vrot.lane.b32.xlu0 %v1309, 80
    %v1357 = vpop.permute.xlu0 %1356
    %v1359 = vsel %vm244, %v1355, 0
    %v1362 = vsel %vm244, %v1357, 0
    %1364 = vmatpush.bf16.xpose.msra.mxu0 0
    %1365 = vmatpush.bf16.xpose.msra.mxu0 0
    %1366 = vmatpush.bf16.xpose.msra.mxu0 0
    %1367 = vmatpush.bf16.xpose.msra.mxu0 0
    %1368 = vmatpush.bf16.xpose.msra.mxu0 0
    %1369 = vmatpush.bf16.xpose.msra.mxu0 0
    %1370 = vmatpush.bf16.xpose.msra.mxu0 0
    %1371 = vmatpush.bf16.xpose.msra.mxu0 %v1362
    %1372 = vmatmul.bf16.gmra.mxu0 %v1359
    %v1373 = vpop.f32.mrf.mxu0
    %v1374 = vadd.f32 0.0, %v1373
    %v1375 = vpop.f32.mrf.mxu0
    %1376 = vdwg.mxu0
    %1377 = vrot.lane.b32.xlu0 %v1309, 104
    %v1378 = vpop.permute.xlu0 %1377
    %1379 = vrot.lane.b32.xlu0 %v1309, 72
    %v1380 = vpop.permute.xlu0 %1379
    %v1382 = vsel %vm244, %v1378, 0
    %v1385 = vsel %vm244, %v1380, 0
    %1387 = vmatpush.bf16.xpose.msra.mxu0 0
    %1388 = vmatpush.bf16.xpose.msra.mxu0 0
    %1389 = vmatpush.bf16.xpose.msra.mxu0 0
    %1390 = vmatpush.bf16.xpose.msra.mxu0 0
    %1391 = vmatpush.bf16.xpose.msra.mxu0 0
    %1392 = vmatpush.bf16.xpose.msra.mxu0 0
    %1393 = vmatpush.bf16.xpose.msra.mxu0 0
    %1394 = vmatpush.bf16.xpose.msra.mxu0 %v1385
    %1395 = vmatmul.bf16.gmra.mxu0 %v1382
    %v1396 = vpop.f32.mrf.mxu0
    %v1397 = vadd.f32 0.0, %v1396
    %v1398 = vpop.f32.mrf.mxu0
    %1399 = vdwg.mxu0
    %v1401 = vrot.slane %v1260, 4
    %v1404 = vrot.slane %v1306, 4
    %v1407 = vrot.slane %v1351, 4
    %v1410 = vrot.slane %v1397, 4
    %v1412 = vsel %vm523, %v1237, %v1401
    %v1413 = vsel %vm523, %v1283, %v1404
    %v1414 = vsel %vm523, %v1328, %v1407
    %v1415 = vsel %vm523, %v1374, %v1410
    %v1416 = vsel %vm50, %v1412, -inf
    %1417 = vmax.xlane.f32.xlu0 %v1416
    %v1418 = vpop.xlane.xlu0 %1417
    %v1419 = vsel %vm50, %v1413, -inf
    %1420 = vmax.xlane.f32.xlu0 %v1419
    %v1421 = vpop.xlane.xlu0 %1420
    %v1422 = vsel %vm50, %v1414, -inf
    %1423 = vmax.xlane.f32.xlu0 %v1422
    %v1424 = vpop.xlane.xlu0 %1423
    %v1425 = vsel %vm50, %v1415, -inf
    %1426 = vmax.xlane.f32.xlu0 %v1425
    %v1427 = vpop.xlane.xlu0 %1426
    %v1428 = vsub.f32 %v1412, %v1418
    %v1429 = vsub.f32 %v1413, %v1421
    %v1430 = vsub.f32 %v1414, %v1424
    %v1431 = vsub.f32 %v1415, %v1427
    %v1432 = vmul.f32 %v1428, 1.442695
    %v1433 = vpow.pop %v1432
    %v1434 = vmul.f32 %v1429, 1.442695
    %v1435 = vpow.pop %v1434
    %v1436 = vmul.f32 %v1430, 1.442695
    %v1437 = vpow.pop %v1436
    %v1438 = vmul.f32 %v1431, 1.442695
    %v1439 = vpow.pop %v1438
    %v1440 = vsel %vm50, %v1433, 0.0
    %1441 = vadd.xlane.f32.xlu0 %v1440
    %v1442 = vpop.xlane.xlu0 %1441
    %v1443 = vsel %vm50, %v1435, 0.0
    %1444 = vadd.xlane.f32.xlu0 %v1443
    %v1445 = vpop.xlane.xlu0 %1444
    %v1446 = vsel %vm50, %v1437, 0.0
    %1447 = vadd.xlane.f32.xlu0 %v1446
    %v1448 = vpop.xlane.xlu0 %1447
    %v1449 = vsel %vm50, %v1439, 0.0
    %1450 = vadd.xlane.f32.xlu0 %v1449
    %v1451 = vpop.xlane.xlu0 %1450
    %v1452 = vrcp.pop %v1442
    %v1453 = vrcp.pop %v1445
    %v1454 = vrcp.pop %v1448
    %v1455 = vrcp.pop %v1451
    %v1456 = vmul.f32 %v1433, %v1452
    %v1457 = vmul.f32 %v1435, %v1453
    %v1458 = vmul.f32 %v1437, %v1454
    %v1459 = vmul.f32 %v1439, %v1455
    %v1460 = vld [vmem:[%s2 + $0xc0] sm:$0xff]
    %v1461 = vld [vmem:[%s2 + $0xc8] sm:$0xff]
    %v1462 = vld [vmem:[%s2 + $0xd0] sm:$0xff]
    %v1463 = vld [vmem:[%s2 + $0xd8] sm:$0xff]
    %v1464 = vpack.c.bf16 %v1456, %v1456
    %1465 = vrot.lane.b32.xlu0 %v1217, 64
    %v1466 = vpop.permute.xlu0 %1465
    %v1468 = vsel %vm50, %v1464, 0
    %v1471 = vsel %vm54, %v1466, 0
    %1473 = vmatpush.bf16.msra.mxu0 0
    %1474 = vmatpush.bf16.msra.mxu0 0
    %1475 = vmatpush.bf16.msra.mxu0 0
    %1476 = vmatpush.bf16.msra.mxu0 0
    %1477 = vmatpush.bf16.msra.mxu0 0
    %1478 = vmatpush.bf16.msra.mxu0 0
    %1479 = vmatpush.bf16.msra.mxu0 0
    %1480 = vmatpush.bf16.msra.mxu0 %v1471
    %1481 = vmatmul.bf16.gmra.mxu0 %v1468
    %v1482 = vpop.f32.mrf.mxu0
    %v1483 = vadd.f32 0.0, %v1482
    %v1484 = vpop.f32.mrf.mxu0
    %1485 = vdwg.mxu0
    %v1486 = vpack.c.bf16 %v1458, %v1458
    %1487 = vrot.lane.b32.xlu0 %v1309, 64
    %v1488 = vpop.permute.xlu0 %1487
    %v1490 = vsel %vm50, %v1486, 0
    %v1493 = vsel %vm54, %v1488, 0
    %1495 = vmatpush.bf16.msra.mxu0 0
    %1496 = vmatpush.bf16.msra.mxu0 0
    %1497 = vmatpush.bf16.msra.mxu0 0
    %1498 = vmatpush.bf16.msra.mxu0 0
    %1499 = vmatpush.bf16.msra.mxu0 0
    %1500 = vmatpush.bf16.msra.mxu0 0
    %1501 = vmatpush.bf16.msra.mxu0 0
    %1502 = vmatpush.bf16.msra.mxu0 %v1493
    %1503 = vmatmul.bf16.gmra.mxu0 %v1490
    %v1504 = vpop.f32.mrf.mxu0
    %v1505 = vadd.f32 0.0, %v1504
    %v1506 = vpop.f32.mrf.mxu0
    %1507 = vdwg.mxu0
    %v1509 = vrot.slane %v1505, 4
    %v1511 = vsel %vm523, %v1483, %v1509
    %v1512 = vpack.c.bf16 %v1511, %v1511
    %v1513 = vpack.c.bf16 %v1460, %v1460
    %v1515 = vrot.slane %v1464, 2
    %1516 = vrot.lane.b32.xlu0 %v1217, 56
    %v1517 = vpop.permute.xlu0 %1516
    %v1519 = vsel %vm50, %v1515, 0
    %v1522 = vsel %vm54, %v1517, 0
    %1524 = vmatpush.bf16.msra.mxu0 0
    %1525 = vmatpush.bf16.msra.mxu0 0
    %1526 = vmatpush.bf16.msra.mxu0 0
    %1527 = vmatpush.bf16.msra.mxu0 0
    %1528 = vmatpush.bf16.msra.mxu0 0
    %1529 = vmatpush.bf16.msra.mxu0 0
    %1530 = vmatpush.bf16.msra.mxu0 0
    %1531 = vmatpush.bf16.msra.mxu0 %v1522
    %1532 = vmatmul.bf16.gmra.mxu0 %v1519
    %v1533 = vpop.f32.mrf.mxu0
    %v1534 = vadd.f32 0.0, %v1533
    %v1535 = vpop.f32.mrf.mxu0
    %1536 = vdwg.mxu0
    %v1538 = vrot.slane %v1486, 2
    %1539 = vrot.lane.b32.xlu0 %v1309, 56
    %v1540 = vpop.permute.xlu0 %1539
    %v1542 = vsel %vm50, %v1538, 0
    %v1545 = vsel %vm54, %v1540, 0
    %1547 = vmatpush.bf16.msra.mxu0 0
    %1548 = vmatpush.bf16.msra.mxu0 0
    %1549 = vmatpush.bf16.msra.mxu0 0
    %1550 = vmatpush.bf16.msra.mxu0 0
    %1551 = vmatpush.bf16.msra.mxu0 0
    %1552 = vmatpush.bf16.msra.mxu0 0
    %1553 = vmatpush.bf16.msra.mxu0 0
    %1554 = vmatpush.bf16.msra.mxu0 %v1545
    %1555 = vmatmul.bf16.gmra.mxu0 %v1542
    %v1556 = vpop.f32.mrf.mxu0
    %v1557 = vadd.f32 0.0, %v1556
    %v1558 = vpop.f32.mrf.mxu0
    %1559 = vdwg.mxu0
    %v1561 = vrot.slane %v1557, 4
    %v1563 = vsel %vm523, %v1534, %v1561
    %v1564 = vpack.c.bf16 %v1563, %v1563
    %v1565 = vpack.c.bf16 %v1461, %v1461
    %v1567 = vsel %vm244, %v1564, 0
    %v1570 = vsel %vm523, %v1565, 0
    %1572 = vmatpush.bf16.msra.mxu0 0
    %1573 = vmatpush.bf16.msra.mxu0 0
    %1574 = vmatpush.bf16.msra.mxu0 0
    %1575 = vmatpush.bf16.msra.mxu0 0
    %1576 = vmatpush.bf16.msra.mxu0 0
    %1577 = vmatpush.bf16.msra.mxu0 0
    %1578 = vmatpush.bf16.msra.mxu0 0
    %1579 = vmatpush.bf16.msra.mxu0 %v1570
    %1580 = vmatmul.bf16.gmra.mxu0 %v1567
    %v1581 = vpop.f32.mrf.mxu0
    %v1582 = vadd.f32 0.0, %v1581
    %v1583 = vpop.f32.mrf.mxu0
    %1584 = vdwg.mxu0
    %v1586 = vsel %vm244, %v1512, 0
    %v1589 = vsel %vm523, %v1513, 0
    %1591 = vmatpush.bf16.msra.mxu0 0
    %1592 = vmatpush.bf16.msra.mxu0 0
    %1593 = vmatpush.bf16.msra.mxu0 0
    %1594 = vmatpush.bf16.msra.mxu0 0
    %1595 = vmatpush.bf16.msra.mxu0 0
    %1596 = vmatpush.bf16.msra.mxu0 0
    %1597 = vmatpush.bf16.msra.mxu0 0
    %1598 = vmatpush.bf16.msra.mxu0 %v1589
    %1599 = vmatmul.bf16.gmra.mxu0 %v1586
    %v1600 = vpop.f32.mrf.mxu0
    %v1601 = vadd.f32 %v1582, %v1600
    %v1602 = vpop.f32.mrf.mxu0
    %1603 = vdwg.mxu0
    %v1604 = vpack.c.bf16 %v1457, %v1457
    %1605 = vrot.lane.b32.xlu0 %v1217, 48
    %v1606 = vpop.permute.xlu0 %1605
    %v1608 = vsel %vm50, %v1604, 0
    %v1611 = vsel %vm54, %v1606, 0
    %1613 = vmatpush.bf16.msra.mxu0 0
    %1614 = vmatpush.bf16.msra.mxu0 0
    %1615 = vmatpush.bf16.msra.mxu0 0
    %1616 = vmatpush.bf16.msra.mxu0 0
    %1617 = vmatpush.bf16.msra.mxu0 0
    %1618 = vmatpush.bf16.msra.mxu0 0
    %1619 = vmatpush.bf16.msra.mxu0 0
    %1620 = vmatpush.bf16.msra.mxu0 %v1611
    %1621 = vmatmul.bf16.gmra.mxu0 %v1608
    %v1622 = vpop.f32.mrf.mxu0
    %v1623 = vadd.f32 0.0, %v1622
    %v1624 = vpop.f32.mrf.mxu0
    %1625 = vdwg.mxu0
    %v1626 = vpack.c.bf16 %v1459, %v1459
    %1627 = vrot.lane.b32.xlu0 %v1309, 48
    %v1628 = vpop.permute.xlu0 %1627
    %v1630 = vsel %vm50, %v1626, 0
    %v1633 = vsel %vm54, %v1628, 0
    %1635 = vmatpush.bf16.msra.mxu0 0
    %1636 = vmatpush.bf16.msra.mxu0 0
    %1637 = vmatpush.bf16.msra.mxu0 0
    %1638 = vmatpush.bf16.msra.mxu0 0
    %1639 = vmatpush.bf16.msra.mxu0 0
    %1640 = vmatpush.bf16.msra.mxu0 0
    %1641 = vmatpush.bf16.msra.mxu0 0
    %1642 = vmatpush.bf16.msra.mxu0 %v1633
    %1643 = vmatmul.bf16.gmra.mxu0 %v1630
    %v1644 = vpop.f32.mrf.mxu0
    %v1645 = vadd.f32 0.0, %v1644
    %v1646 = vpop.f32.mrf.mxu0
    %1647 = vdwg.mxu0
    %v1649 = vrot.slane %v1645, 4
    %v1651 = vsel %vm523, %v1623, %v1649
    %v1652 = vpack.c.bf16 %v1651, %v1651
    %v1653 = vpack.c.bf16 %v1462, %v1462
    %v1655 = vsel %vm244, %v1652, 0
    %v1658 = vsel %vm523, %v1653, 0
    %1660 = vmatpush.bf16.msra.mxu0 0
    %1661 = vmatpush.bf16.msra.mxu0 0
    %1662 = vmatpush.bf16.msra.mxu0 0
    %1663 = vmatpush.bf16.msra.mxu0 0
    %1664 = vmatpush.bf16.msra.mxu0 0
    %1665 = vmatpush.bf16.msra.mxu0 0
    %1666 = vmatpush.bf16.msra.mxu0 0
    %1667 = vmatpush.bf16.msra.mxu0 %v1658
    %1668 = vmatmul.bf16.gmra.mxu0 %v1655
    %v1669 = vpop.f32.mrf.mxu0
    %v1670 = vadd.f32 0.0, %v1669
    %v1671 = vpop.f32.mrf.mxu0
    %1672 = vdwg.mxu0
    %v1673 = vadd.f32 %v1601, %v1670
    %v1675 = vrot.slane %v1604, 2
    %1676 = vrot.lane.b32.xlu0 %v1217, 40
    %v1677 = vpop.permute.xlu0 %1676
    %v1679 = vsel %vm50, %v1675, 0
    %v1682 = vsel %vm54, %v1677, 0
    %1684 = vmatpush.bf16.msra.mxu0 0
    %1685 = vmatpush.bf16.msra.mxu0 0
    %1686 = vmatpush.bf16.msra.mxu0 0
    %1687 = vmatpush.bf16.msra.mxu0 0
    %1688 = vmatpush.bf16.msra.mxu0 0
    %1689 = vmatpush.bf16.msra.mxu0 0
    %1690 = vmatpush.bf16.msra.mxu0 0
    %1691 = vmatpush.bf16.msra.mxu0 %v1682
    %1692 = vmatmul.bf16.gmra.mxu0 %v1679
    %v1693 = vpop.f32.mrf.mxu0
    %v1694 = vadd.f32 0.0, %v1693
    %v1695 = vpop.f32.mrf.mxu0
    %1696 = vdwg.mxu0
    %v1698 = vrot.slane %v1626, 2
    %1699 = vrot.lane.b32.xlu0 %v1309, 40
    %v1700 = vpop.permute.xlu0 %1699
    %v1702 = vsel %vm50, %v1698, 0
    %v1705 = vsel %vm54, %v1700, 0
    %1707 = vmatpush.bf16.msra.mxu0 0
    %1708 = vmatpush.bf16.msra.mxu0 0
    %1709 = vmatpush.bf16.msra.mxu0 0
    %1710 = vmatpush.bf16.msra.mxu0 0
    %1711 = vmatpush.bf16.msra.mxu0 0
    %1712 = vmatpush.bf16.msra.mxu0 0
    %1713 = vmatpush.bf16.msra.mxu0 0
    %1714 = vmatpush.bf16.msra.mxu0 %v1705
    %1715 = vmatmul.bf16.gmra.mxu0 %v1702
    %v1716 = vpop.f32.mrf.mxu0
    %v1717 = vadd.f32 0.0, %v1716
    %v1718 = vpop.f32.mrf.mxu0
    %1719 = vdwg.mxu0
    %v1721 = vrot.slane %v1717, 4
    %v1723 = vsel %vm523, %v1694, %v1721
    %v1724 = vpack.c.bf16 %v1723, %v1723
    %v1725 = vpack.c.bf16 %v1463, %v1463
    %v1727 = vsel %vm244, %v1724, 0
    %v1730 = vsel %vm523, %v1725, 0
    %1732 = vmatpush.bf16.msra.mxu0 0
    %1733 = vmatpush.bf16.msra.mxu0 0
    %1734 = vmatpush.bf16.msra.mxu0 0
    %1735 = vmatpush.bf16.msra.mxu0 0
    %1736 = vmatpush.bf16.msra.mxu0 0
    %1737 = vmatpush.bf16.msra.mxu0 0
    %1738 = vmatpush.bf16.msra.mxu0 0
    %1739 = vmatpush.bf16.msra.mxu0 %v1730
    %1740 = vmatmul.bf16.gmra.mxu0 %v1727
    %v1741 = vpop.f32.mrf.mxu0
    %v1742 = vadd.f32 0.0, %v1741
    %v1743 = vpop.f32.mrf.mxu0
    %1744 = vdwg.mxu0
    %v1745 = vadd.f32 %v1673, %v1742
    %v1746 = vld [vmem:[%s3 + $0xb] sm:$0x1]
    %v1747 = vperm.slane %v1746, 0
    %v1748 = vadd.f32 %v1745, %v1747
    %v1749 = vadd.f32 %v1191, %v1748
    %v1750 = vld [vmem:[%s3 + $0xe] sm:$0x1]
    %v1751 = vld [vmem:[%s3 + $0xf] sm:$0x1]
    %v1752 = vsel %vm222, %v1749, 0.0
    %1753 = vadd.xlane.f32.xlu0 %v1752
    %v1754 = vpop.xlane.xlu0 %1753
    %v1755 = vmul.f32 %v1754, %v806
    %v1756 = vsub.f32 %v1749, %v1755
    %v1757 = vmul.f32 %v1756, %v1756
    %v1758 = vsel %vm222, %v1757, 0.0
    %1759 = vadd.xlane.f32.xlu0 %v1758
    %v1760 = vpop.xlane.xlu0 %1759
    %v1761 = vmul.f32 %v1760, %v806
    %v1762 = vadd.f32 %v1761, 1e-05
    %v1763 = vrsqrt.pop %v1762
    %v1764 = vmul.f32 %v1763, %v1762
    %v1765 = vmul.f32 %v1764, %v1763
    %v1766 = vmul.f32 0.5, %v1765
    %v1767 = vsub.f32 1.5, %v1766
    %v1768 = vmul.f32 %v1763, %v1767
    %vm1769 = vweird.f32 %v1762
    %vm1770 = vweird.f32 %v1763
    %vm1771 = vmor %vm1769, %vm1770
    %v1772 = vsel %vm1771, %v1763, %v1768
    %v1773 = vmul.f32 %v1756, %v1772
    %v1774 = vperm.slane %v1750, 0
    %v1775 = vmul.f32 %v1773, %v1774
    %v1776 = vperm.slane %v1751, 0
    %v1777 = vadd.f32 %v1775, %v1776
    %v1778 = vld [vmem:[%s2 + $0xe0] sm:$0xff]
    %v1779 = vld [vmem:[%s2 + $0xe8] sm:$0xff]
    %v1780 = vld [vmem:[%s2 + $0xf0] sm:$0xff]
    %v1781 = vld [vmem:[%s2 + $0xf8] sm:$0xff]
    %v1782 = vpack.c.bf16 %v1777, %v1777
    %v1783 = vpack.c.bf16 %v1779, %v1778
    %v1784 = vpack.c.bf16 %v1781, %v1780
    %v1785 = vld [vmem:[%s3 + $0xc] sm:$0x1]
    %v1786 = vperm.slane %v1785, 0
    %v1788 = vsel %vm222, %v1782, 0
    %1790 = vmatpush.bf16.msra.mxu0 0
    %1791 = vmatpush.bf16.msra.mxu0 0
    %1792 = vmatpush.bf16.msra.mxu0 0
    %1793 = vmatpush.bf16.msra.mxu0 0
    %1794 = vmatpush.bf16.msra.mxu0 0
    %1795 = vmatpush.bf16.msra.mxu0 0
    %1796 = vmatpush.bf16.msra.mxu0 %v1784
    %1797 = vmatpush.bf16.msra.mxu0 %v1783
    %1798 = vmatmul.bf16.gmra.mxu0 %v1788
    %v1799 = vpop.f32.mrf.mxu0
    %v1800 = vadd.f32 %v1786, %v1799
    %v1801 = vpop.f32.mrf.mxu0
    %1802 = vdwg.mxu0
    %v1803 = vmul.f32 %v1800, 0.5
    %v1804 = vmul.f32 %v1800, 0.70710677
    %v1805 = vand.u32 2147483647, %v1804
    %v1806 = vmul.f32 %v1805, 0.3275911
    %v1807 = vadd.f32 %v1806, 1.0
    %v1808 = vrcp.pop %v1807
    %v1809 = vmul.f32 %v1807, %v1808
    %v1810 = vsub.f32 1.0, %v1809
    %v1811 = vmul.f32 %v1808, %v1810
    %v1812 = vadd.f32 %v1808, %v1811
    %vm1813 = vweird.f32 %v1807
    %vm1814 = vweird.f32 %v1808
    %vm1815 = vmor %vm1813, %vm1814
    %v1816 = vsel %vm1815, %v1808, %v1812
    %v1817 = vand.u32 2147483647, %v1807
    %vm1818 = vcmp.eq.f32.partialorder %v1817, 8.507059e+37
    %v1819 = vand.u32 %v1807, 2147483648
    %v1820 = vor.u32 1.1754944e-38, %v1819
    %v1821 = vsel %vm1818, %v1820, %v1816
    %v1822 = vmul.f32 1.0, %v1821
    %v1823 = vmul.f32 %v1822, 1.0614054
    %v1824 = vadd.f32 %v1823, -1.4531521
    %v1825 = vmul.f32 %v1824, %v1822
    %v1826 = vadd.f32 %v1825, 1.4214138
    %v1827 = vmul.f32 %v1826, %v1822
    %v1828 = vadd.f32 %v1827, -0.28449672
    %v1829 = vmul.f32 %v1828, %v1822
    %v1830 = vadd.f32 %v1829, 0.2548296
    %v1831 = vmul.f32 %v1830, %v1822
    %v1832 = vsub.f32 0.0, %v1805
    %v1833 = vmul.f32 %v1832, %v1805
    %v1834 = vmul.f32 %v1833, 1.442695
    %v1835 = vpow.pop %v1834
    %v1836 = vmul.f32 %v1831, %v1835
    %v1837 = vsub.f32 1.0, %v1836
    %vm1838 = vcmp.lt.f32.partialorder %v1804, 0.0
    %v1839 = vsub.f32 0.0, %v1837
    %v1840 = vsel %vm1838, %v1839, %v1837
    %v1841 = vadd.f32 %v1840, 1.0
    %v1842 = vmul.f32 %v1803, %v1841
    %v1843 = vld [vmem:[%s2 + $0x100] sm:$0xff]
    %v1844 = vld [vmem:[%s2 + $0x108] sm:$0xff]
    %v1845 = vld [vmem:[%s2 + $0x110] sm:$0xff]
    %v1846 = vld [vmem:[%s2 + $0x118] sm:$0xff]
    %v1847 = vpack.c.bf16 %v1842, %v1842
    %v1848 = vpack.c.bf16 %v1844, %v1843
    %v1849 = vpack.c.bf16 %v1846, %v1845
    %v1850 = vld [vmem:[%s3 + $0xd] sm:$0x1]
    %v1851 = vperm.slane %v1850, 0
    %v1853 = vsel %vm222, %v1847, 0
    %1855 = vmatpush.bf16.msra.mxu0 0
    %1856 = vmatpush.bf16.msra.mxu0 0
    %1857 = vmatpush.bf16.msra.mxu0 0
    %1858 = vmatpush.bf16.msra.mxu0 0
    %1859 = vmatpush.bf16.msra.mxu0 0
    %1860 = vmatpush.bf16.msra.mxu0 0
    %1861 = vmatpush.bf16.msra.mxu0 %v1849
    %1862 = vmatpush.bf16.msra.mxu0 %v1848
    %1863 = vmatmul.bf16.gmra.mxu0 %v1853
    %v1864 = vpop.f32.mrf.mxu0
    %v1865 = vadd.f32 %v1851, %v1864
    %v1866 = vpop.f32.mrf.mxu0
    %1867 = vdwg.mxu0
    %v1868 = vadd.f32 %v1777, %v1865
    %v1869 = vld [vmem:[%s3 + $0x10] sm:$0x1]
    %v1870 = vld [vmem:[%s3 + $0x11] sm:$0x1]
    %v1871 = vsel %vm222, %v1868, 0.0
    %1872 = vadd.xlane.f32.xlu0 %v1871
    %v1873 = vpop.xlane.xlu0 %1872
    %v1874 = vmul.f32 %v1873, %v806
    %v1875 = vsub.f32 %v1868, %v1874
    %v1876 = vmul.f32 %v1875, %v1875
    %v1877 = vsel %vm222, %v1876, 0.0
    %1878 = vadd.xlane.f32.xlu0 %v1877
    %v1879 = vpop.xlane.xlu0 %1878
    %v1880 = vmul.f32 %v1879, %v806
    %v1881 = vadd.f32 %v1880, 1e-05
    %v1882 = vrsqrt.pop %v1881
    %v1883 = vmul.f32 %v1882, %v1881
    %v1884 = vmul.f32 %v1883, %v1882
    %v1885 = vmul.f32 0.5, %v1884
    %v1886 = vsub.f32 1.5, %v1885
    %v1887 = vmul.f32 %v1882, %v1886
    %vm1888 = vweird.f32 %v1881
    %vm1889 = vweird.f32 %v1882
    %vm1890 = vmor %vm1888, %vm1889
    %v1891 = vsel %vm1890, %v1882, %v1887
    %v1892 = vmul.f32 %v1875, %v1891
    %v1893 = vperm.slane %v1869, 0
    %v1894 = vmul.f32 %v1892, %v1893
    %v1895 = vperm.slane %v1870, 0
    %v1896 = vadd.f32 %v1894, %v1895
    %v1897 = vld [vmem:[%s3 + $0x15] sm:$0x1]
    %v1898 = vld [vmem:[%s3 + $0x16] sm:$0x1]
    %v1899 = vsel %vm222, %v1896, 0.0
    %1900 = vadd.xlane.f32.xlu0 %v1899
    %v1901 = vpop.xlane.xlu0 %1900
    %v1902 = vmul.f32 %v1901, %v806
    %v1903 = vsub.f32 %v1896, %v1902
    %v1904 = vmul.f32 %v1903, %v1903
    %v1905 = vsel %vm222, %v1904, 0.0
    %1906 = vadd.xlane.f32.xlu0 %v1905
    %v1907 = vpop.xlane.xlu0 %1906
    %v1908 = vmul.f32 %v1907, %v806
    %v1909 = vadd.f32 %v1908, 1e-05
    %v1910 = vrsqrt.pop %v1909
    %v1911 = vmul.f32 %v1910, %v1909
    %v1912 = vmul.f32 %v1911, %v1910
    %v1913 = vmul.f32 0.5, %v1912
    %v1914 = vsub.f32 1.5, %v1913
    %v1915 = vmul.f32 %v1910, %v1914
    %vm1916 = vweird.f32 %v1909
    %vm1917 = vweird.f32 %v1910
    %vm1918 = vmor %vm1916, %vm1917
    %v1919 = vsel %vm1918, %v1910, %v1915
    %v1920 = vmul.f32 %v1903, %v1919
    %v1921 = vperm.slane %v1897, 0
    %v1922 = vmul.f32 %v1920, %v1921
    %v1923 = vperm.slane %v1898, 0
    %v1924 = vadd.f32 %v1922, %v1923
    %v1925 = vld [vmem:[%s2 + $0x180] sm:$0xff]
    %v1926 = vld [vmem:[%s2 + $0x188] sm:$0xff]
    %v1927 = vld [vmem:[%s2 + $0x190] sm:$0xff]
    %v1928 = vld [vmem:[%s2 + $0x198] sm:$0xff]
    %v1929 = vpack.c.bf16 %v212, %v211
    %v1930 = vpack.c.bf16 %v1926, %v1925
    %v1931 = vpack.c.bf16 %v1928, %v1927
    %v1932 = vld [vmem:[%s3 + $0x17] sm:$0x1]
    %v1933 = vperm.slane %v1932, 0
    %v1935 = vsel %vm222, %v1929, 0
    %1937 = vmatpush.bf16.msra.mxu0 0
    %1938 = vmatpush.bf16.msra.mxu0 0
    %1939 = vmatpush.bf16.msra.mxu0 0
    %1940 = vmatpush.bf16.msra.mxu0 0
    %1941 = vmatpush.bf16.msra.mxu0 0
    %1942 = vmatpush.bf16.msra.mxu0 0
    %1943 = vmatpush.bf16.msra.mxu0 %v1931
    %1944 = vmatpush.bf16.msra.mxu0 %v1930
    %1945 = vmatmul.bf16.gmra.mxu0 %v1935
    %v1946 = vpop.f32.mrf.mxu0
    %v1947 = vadd.f32 %v1933, %v1946
    %v1948 = vpop.f32.mrf.mxu0
    %v1949 = vadd.f32 %v1933, %v1948
    %1950 = vdwg.mxu0
    %v1951 = vpack.c.bf16 %v1947, %v1947
    %1953 = vrot.lane.b32.xlu0 %v1951, 96
    %v1954 = vpop.permute.xlu0 %1953
    %v1956 = vsel %vm244, %v1951, 0
    %v1959 = vsel %vm244, %v1954, 0
    %1961 = vmatpush.bf16.xpose.msra.mxu0 0
    %1962 = vmatpush.bf16.xpose.msra.mxu0 0
    %1963 = vmatpush.bf16.xpose.msra.mxu0 0
    %1964 = vmatpush.bf16.xpose.msra.mxu0 0
    %1965 = vmatpush.bf16.xpose.msra.mxu0 0
    %1966 = vmatpush.bf16.xpose.msra.mxu0 0
    %1967 = vmatpush.bf16.xpose.msra.mxu0 0
    %1968 = vmatpush.bf16.xpose.msra.mxu0 %v1959
    %1969 = vmatmul.bf16.gmra.mxu0 %v1956
    %v1970 = vpop.f32.mrf.mxu0
    %v1971 = vadd.f32 0.0, %v1970
    %v1972 = vpop.f32.mrf.mxu0
    %1973 = vdwg.mxu0
    %1974 = vrot.lane.b32.xlu0 %v1951, 120
    %v1975 = vpop.permute.xlu0 %1974
    %1976 = vrot.lane.b32.xlu0 %v1951, 88
    %v1977 = vpop.permute.xlu0 %1976
    %v1979 = vsel %vm244, %v1975, 0
    %v1982 = vsel %vm244, %v1977, 0
    %1984 = vmatpush.bf16.xpose.msra.mxu0 0
    %1985 = vmatpush.bf16.xpose.msra.mxu0 0
    %1986 = vmatpush.bf16.xpose.msra.mxu0 0
    %1987 = vmatpush.bf16.xpose.msra.mxu0 0
    %1988 = vmatpush.bf16.xpose.msra.mxu0 0
    %1989 = vmatpush.bf16.xpose.msra.mxu0 0
    %1990 = vmatpush.bf16.xpose.msra.mxu0 0
    %1991 = vmatpush.bf16.xpose.msra.mxu0 %v1982
    %1992 = vmatmul.bf16.gmra.mxu0 %v1979
    %v1993 = vpop.f32.mrf.mxu0
    %v1994 = vadd.f32 0.0, %v1993
    %v1995 = vpop.f32.mrf.mxu0
    %1996 = vdwg.mxu0
    %1997 = vrot.lane.b32.xlu0 %v1951, 112
    %v1998 = vpop.permute.xlu0 %1997
    %1999 = vrot.lane.b32.xlu0 %v1951, 80
    %v2000 = vpop.permute.xlu0 %1999
    %v2002 = vsel %vm244, %v1998, 0
    %v2005 = vsel %vm244, %v2000, 0
    %2007 = vmatpush.bf16.xpose.msra.mxu0 0
    %2008 = vmatpush.bf16.xpose.msra.mxu0 0
    %2009 = vmatpush.bf16.xpose.msra.mxu0 0
    %2010 = vmatpush.bf16.xpose.msra.mxu0 0
    %2011 = vmatpush.bf16.xpose.msra.mxu0 0
    %2012 = vmatpush.bf16.xpose.msra.mxu0 0
    %2013 = vmatpush.bf16.xpose.msra.mxu0 0
    %2014 = vmatpush.bf16.xpose.msra.mxu0 %v2005
    %2015 = vmatmul.bf16.gmra.mxu0 %v2002
    %v2016 = vpop.f32.mrf.mxu0
    %v2017 = vadd.f32 0.0, %v2016
    %v2018 = vpop.f32.mrf.mxu0
    %2019 = vdwg.mxu0
    %2020 = vrot.lane.b32.xlu0 %v1951, 104
    %v2021 = vpop.permute.xlu0 %2020
    %2022 = vrot.lane.b32.xlu0 %v1951, 72
    %v2023 = vpop.permute.xlu0 %2022
    %v2025 = vsel %vm244, %v2021, 0
    %v2028 = vsel %vm244, %v2023, 0
    %2030 = vmatpush.bf16.xpose.msra.mxu0 0
    %2031 = vmatpush.bf16.xpose.msra.mxu0 0
    %2032 = vmatpush.bf16.xpose.msra.mxu0 0
    %2033 = vmatpush.bf16.xpose.msra.mxu0 0
    %2034 = vmatpush.bf16.xpose.msra.mxu0 0
    %2035 = vmatpush.bf16.xpose.msra.mxu0 0
    %2036 = vmatpush.bf16.xpose.msra.mxu0 0
    %2037 = vmatpush.bf16.xpose.msra.mxu0 %v2028
    %2038 = vmatmul.bf16.gmra.mxu0 %v2025
    %v2039 = vpop.f32.mrf.mxu0
    %v2040 = vadd.f32 0.0, %v2039
    %v2041 = vpop.f32.mrf.mxu0
    %2042 = vdwg.mxu0
    %v2043 = vpack.c.bf16 %v1949, %v1949
    %2045 = vrot.lane.b32.xlu0 %v2043, 96
    %v2046 = vpop.permute.xlu0 %2045
    %v2048 = vsel %vm244, %v2043, 0
    %v2051 = vsel %vm244, %v2046, 0
    %2053 = vmatpush.bf16.xpose.msra.mxu0 0
    %2054 = vmatpush.bf16.xpose.msra.mxu0 0
    %2055 = vmatpush.bf16.xpose.msra.mxu0 0
    %2056 = vmatpush.bf16.xpose.msra.mxu0 0
    %2057 = vmatpush.bf16.xpose.msra.mxu0 0
    %2058 = vmatpush.bf16.xpose.msra.mxu0 0
    %2059 = vmatpush.bf16.xpose.msra.mxu0 0
    %2060 = vmatpush.bf16.xpose.msra.mxu0 %v2051
    %2061 = vmatmul.bf16.gmra.mxu0 %v2048
    %v2062 = vpop.f32.mrf.mxu0
    %v2063 = vadd.f32 0.0, %v2062
    %v2064 = vpop.f32.mrf.mxu0
    %2065 = vdwg.mxu0
    %2066 = vrot.lane.b32.xlu0 %v2043, 120
    %v2067 = vpop.permute.xlu0 %2066
    %2068 = vrot.lane.b32.xlu0 %v2043, 88
    %v2069 = vpop.permute.xlu0 %2068
    %v2071 = vsel %vm244, %v2067, 0
    %v2074 = vsel %vm244, %v2069, 0
    %2076 = vmatpush.bf16.xpose.msra.mxu0 0
    %2077 = vmatpush.bf16.xpose.msra.mxu0 0
    %2078 = vmatpush.bf16.xpose.msra.mxu0 0
    %2079 = vmatpush.bf16.xpose.msra.mxu0 0
    %2080 = vmatpush.bf16.xpose.msra.mxu0 0
    %2081 = vmatpush.bf16.xpose.msra.mxu0 0
    %2082 = vmatpush.bf16.xpose.msra.mxu0 0
    %2083 = vmatpush.bf16.xpose.msra.mxu0 %v2074
    %2084 = vmatmul.bf16.gmra.mxu0 %v2071
    %v2085 = vpop.f32.mrf.mxu0
    %v2086 = vadd.f32 0.0, %v2085
    %v2087 = vpop.f32.mrf.mxu0
    %2088 = vdwg.mxu0
    %2089 = vrot.lane.b32.xlu0 %v2043, 112
    %v2090 = vpop.permute.xlu0 %2089
    %2091 = vrot.lane.b32.xlu0 %v2043, 80
    %v2092 = vpop.permute.xlu0 %2091
    %v2094 = vsel %vm244, %v2090, 0
    %v2097 = vsel %vm244, %v2092, 0
    %2099 = vmatpush.bf16.xpose.msra.mxu0 0
    %2100 = vmatpush.bf16.xpose.msra.mxu0 0
    %2101 = vmatpush.bf16.xpose.msra.mxu0 0
    %2102 = vmatpush.bf16.xpose.msra.mxu0 0
    %2103 = vmatpush.bf16.xpose.msra.mxu0 0
    %2104 = vmatpush.bf16.xpose.msra.mxu0 0
    %2105 = vmatpush.bf16.xpose.msra.mxu0 0
    %2106 = vmatpush.bf16.xpose.msra.mxu0 %v2097
    %2107 = vmatmul.bf16.gmra.mxu0 %v2094
    %v2108 = vpop.f32.mrf.mxu0
    %v2109 = vadd.f32 0.0, %v2108
    %v2110 = vpop.f32.mrf.mxu0
    %2111 = vdwg.mxu0
    %2112 = vrot.lane.b32.xlu0 %v2043, 104
    %v2113 = vpop.permute.xlu0 %2112
    %2114 = vrot.lane.b32.xlu0 %v2043, 72
    %v2115 = vpop.permute.xlu0 %2114
    %v2117 = vsel %vm244, %v2113, 0
    %v2120 = vsel %vm244, %v2115, 0
    %2122 = vmatpush.bf16.xpose.msra.mxu0 0
    %2123 = vmatpush.bf16.xpose.msra.mxu0 0
    %2124 = vmatpush.bf16.xpose.msra.mxu0 0
    %2125 = vmatpush.bf16.xpose.msra.mxu0 0
    %2126 = vmatpush.bf16.xpose.msra.mxu0 0
    %2127 = vmatpush.bf16.xpose.msra.mxu0 0
    %2128 = vmatpush.bf16.xpose.msra.mxu0 0
    %2129 = vmatpush.bf16.xpose.msra.mxu0 %v2120
    %2130 = vmatmul.bf16.gmra.mxu0 %v2117
    %v2131 = vpop.f32.mrf.mxu0
    %v2132 = vadd.f32 0.0, %v2131
    %v2133 = vpop.f32.mrf.mxu0
    %2134 = vdwg.mxu0
    %v2135 = vlaneseq
    %v2136 = vshrl.u32 %v2135, 7
    %v2137 = vadd.s32 %v2136, 8
    %v2138 = vadd.s32 %v2136, 16
    %v2139 = vadd.s32 %v2136, 24
    %v2140 = vadd.s32 %v2136, 32
    %v2141 = vadd.s32 %v2136, 40
    %v2142 = vadd.s32 %v2136, 48
    %v2143 = vadd.s32 %v2136, 56
    %v2144 = vand.u32 %v2136, 7
    %v2145 = vand.u32 %v2137, 7
    %v2146 = vand.u32 %v2138, 7
    %v2147 = vand.u32 %v2139, 7
    %v2148 = vand.u32 %v2140, 7
    %v2149 = vand.u32 %v2141, 7
    %v2150 = vand.u32 %v2142, 7
    %v2151 = vand.u32 %v2143, 7
    %v2152 = vlaneseq
    %v2153 = vand.u32 %v2152, 127
    %vm2154 = vcmp.le.s32.totalorder %v2153, %v2144
    %vm2155 = vcmp.le.s32.totalorder %v2153, %v2145
    %vm2156 = vcmp.le.s32.totalorder %v2153, %v2146
    %vm2157 = vcmp.le.s32.totalorder %v2153, %v2147
    %vm2158 = vcmp.le.s32.totalorder %v2153, %v2148
    %vm2159 = vcmp.le.s32.totalorder %v2153, %v2149
    %vm2160 = vcmp.le.s32.totalorder %v2153, %v2150
    %vm2161 = vcmp.le.s32.totalorder %v2153, %v2151
    %v2162 = vsel %vm2154, %v1971, -1e+30
    %v2163 = vsel %vm2155, %v1994, -1e+30
    %v2164 = vsel %vm2156, %v2017, -1e+30
    %v2165 = vsel %vm2157, %v2040, -1e+30
    %v2166 = vsel %vm2158, %v2063, -1e+30
    %v2167 = vsel %vm2159, %v2086, -1e+30
    %v2168 = vsel %vm2160, %v2109, -1e+30
    %v2169 = vsel %vm2161, %v2132, -1e+30
    %v2170 = vsel %vm244, %v2162, -inf
    %2171 = vmax.xlane.f32.xlu0 %v2170
    %v2172 = vpop.xlane.xlu0 %2171
    %v2173 = vsel %vm244, %v2163, -inf
    %2174 = vmax.xlane.f32.xlu0 %v2173
    %v2175 = vpop.xlane.xlu0 %2174
    %v2176 = vsel %vm244, %v2164, -inf
    %2177 = vmax.xlane.f32.xlu0 %v2176
    %v2178 = vpop.xlane.xlu0 %2177
    %v2179 = vsel %vm244, %v2165, -inf
    %2180 = vmax.xlane.f32.xlu0 %v2179
    %v2181 = vpop.xlane.xlu0 %2180
    %v2182 = vsel %vm244, %v2166, -inf
    %2183 = vmax.xlane.f32.xlu0 %v2182
    %v2184 = vpop.xlane.xlu0 %2183
    %v2185 = vsel %vm244, %v2167, -inf
    %2186 = vmax.xlane.f32.xlu0 %v2185
    %v2187 = vpop.xlane.xlu0 %2186
    %v2188 = vsel %vm244, %v2168, -inf
    %2189 = vmax.xlane.f32.xlu0 %v2188
    %v2190 = vpop.xlane.xlu0 %2189
    %v2191 = vsel %vm244, %v2169, -inf
    %2192 = vmax.xlane.f32.xlu0 %v2191
    %v2193 = vpop.xlane.xlu0 %2192
    %v2194 = vsub.f32 %v2162, %v2172
    %v2195 = vsub.f32 %v2163, %v2175
    %v2196 = vsub.f32 %v2164, %v2178
    %v2197 = vsub.f32 %v2165, %v2181
    %v2198 = vsub.f32 %v2166, %v2184
    %v2199 = vsub.f32 %v2167, %v2187
    %v2200 = vsub.f32 %v2168, %v2190
    %v2201 = vsub.f32 %v2169, %v2193
    %v2202 = vmul.f32 %v2194, 1.442695
    %v2203 = vpow.pop %v2202
    %v2204 = vmul.f32 %v2195, 1.442695
    %v2205 = vpow.pop %v2204
    %v2206 = vmul.f32 %v2196, 1.442695
    %v2207 = vpow.pop %v2206
    %v2208 = vmul.f32 %v2197, 1.442695
    %v2209 = vpow.pop %v2208
    %v2210 = vmul.f32 %v2198, 1.442695
    %v2211 = vpow.pop %v2210
    %v2212 = vmul.f32 %v2199, 1.442695
    %v2213 = vpow.pop %v2212
    %v2214 = vmul.f32 %v2200, 1.442695
    %v2215 = vpow.pop %v2214
    %v2216 = vmul.f32 %v2201, 1.442695
    %v2217 = vpow.pop %v2216
    %v2218 = vsel %vm244, %v2203, 0.0
    %2219 = vadd.xlane.f32.xlu0 %v2218
    %v2220 = vpop.xlane.xlu0 %2219
    %v2221 = vsel %vm244, %v2205, 0.0
    %2222 = vadd.xlane.f32.xlu0 %v2221
    %v2223 = vpop.xlane.xlu0 %2222
    %v2224 = vsel %vm244, %v2207, 0.0
    %2225 = vadd.xlane.f32.xlu0 %v2224
    %v2226 = vpop.xlane.xlu0 %2225
    %v2227 = vsel %vm244, %v2209, 0.0
    %2228 = vadd.xlane.f32.xlu0 %v2227
    %v2229 = vpop.xlane.xlu0 %2228
    %v2230 = vsel %vm244, %v2211, 0.0
    %2231 = vadd.xlane.f32.xlu0 %v2230
    %v2232 = vpop.xlane.xlu0 %2231
    %v2233 = vsel %vm244, %v2213, 0.0
    %2234 = vadd.xlane.f32.xlu0 %v2233
    %v2235 = vpop.xlane.xlu0 %2234
    %v2236 = vsel %vm244, %v2215, 0.0
    %2237 = vadd.xlane.f32.xlu0 %v2236
    %v2238 = vpop.xlane.xlu0 %2237
    %v2239 = vsel %vm244, %v2217, 0.0
    %2240 = vadd.xlane.f32.xlu0 %v2239
    %v2241 = vpop.xlane.xlu0 %2240
    %v2242 = vrcp.pop %v2220
    %v2243 = vrcp.pop %v2223
    %v2244 = vrcp.pop %v2226
    %v2245 = vrcp.pop %v2229
    %v2246 = vrcp.pop %v2232
    %v2247 = vrcp.pop %v2235
    %v2248 = vrcp.pop %v2238
    %v2249 = vrcp.pop %v2241
    %v2250 = vmul.f32 %v2203, %v2242
    %v2251 = vmul.f32 %v2205, %v2243
    %v2252 = vmul.f32 %v2207, %v2244
    %v2253 = vmul.f32 %v2209, %v2245
    %v2254 = vmul.f32 %v2211, %v2246
    %v2255 = vmul.f32 %v2213, %v2247
    %v2256 = vmul.f32 %v2215, %v2248
    %v2257 = vmul.f32 %v2217, %v2249
    %v2258 = vld [vmem:[%s2 + $0x1a0] sm:$0xff]
    %v2259 = vld [vmem:[%s2 + $0x1a8] sm:$0xff]
    %v2260 = vld [vmem:[%s2 + $0x1b0] sm:$0xff]
    %v2261 = vld [vmem:[%s2 + $0x1b8] sm:$0xff]
    %v2262 = vpack.c.bf16 %v2250, %v2250
    %2263 = vrot.lane.b32.xlu0 %v1951, 64
    %v2264 = vpop.permute.xlu0 %2263
    %v2266 = vsel %vm244, %v2262, 0
    %v2269 = vsel %vm523, %v2264, 0
    %2271 = vmatpush.bf16.msra.mxu0 0
    %2272 = vmatpush.bf16.msra.mxu0 0
    %2273 = vmatpush.bf16.msra.mxu0 0
    %2274 = vmatpush.bf16.msra.mxu0 0
    %2275 = vmatpush.bf16.msra.mxu0 0
    %2276 = vmatpush.bf16.msra.mxu0 0
    %2277 = vmatpush.bf16.msra.mxu0 0
    %2278 = vmatpush.bf16.msra.mxu0 %v2269
    %2279 = vmatmul.bf16.gmra.mxu0 %v2266
    %v2280 = vpop.f32.mrf.mxu0
    %v2281 = vadd.f32 0.0, %v2280
    %v2282 = vpop.f32.mrf.mxu0
    %2283 = vdwg.mxu0
    %v2284 = vpack.c.bf16 %v2251, %v2251
    %2285 = vrot.lane.b32.xlu0 %v1951, 56
    %v2286 = vpop.permute.xlu0 %2285
    %v2288 = vsel %vm244, %v2284, 0
    %v2291 = vsel %vm523, %v2286, 0
    %2293 = vmatpush.bf16.msra.mxu0 0
    %2294 = vmatpush.bf16.msra.mxu0 0
    %2295 = vmatpush.bf16.msra.mxu0 0
    %2296 = vmatpush.bf16.msra.mxu0 0
    %2297 = vmatpush.bf16.msra.mxu0 0
    %2298 = vmatpush.bf16.msra.mxu0 0
    %2299 = vmatpush.bf16.msra.mxu0 0
    %2300 = vmatpush.bf16.msra.mxu0 %v2291
    %2301 = vmatmul.bf16.gmra.mxu0 %v2288
    %v2302 = vpop.f32.mrf.mxu0
    %v2303 = vadd.f32 0.0, %v2302
    %v2304 = vpop.f32.mrf.mxu0
    %2305 = vdwg.mxu0
    %v2306 = vpack.c.bf16 %v2252, %v2252
    %2307 = vrot.lane.b32.xlu0 %v1951, 48
    %v2308 = vpop.permute.xlu0 %2307
    %v2310 = vsel %vm244, %v2306, 0
    %v2313 = vsel %vm523, %v2308, 0
    %2315 = vmatpush.bf16.msra.mxu0 0
    %2316 = vmatpush.bf16.msra.mxu0 0
    %2317 = vmatpush.bf16.msra.mxu0 0
    %2318 = vmatpush.bf16.msra.mxu0 0
    %2319 = vmatpush.bf16.msra.mxu0 0
    %2320 = vmatpush.bf16.msra.mxu0 0
    %2321 = vmatpush.bf16.msra.mxu0 0
    %2322 = vmatpush.bf16.msra.mxu0 %v2313
    %2323 = vmatmul.bf16.gmra.mxu0 %v2310
    %v2324 = vpop.f32.mrf.mxu0
    %v2325 = vadd.f32 0.0, %v2324
    %v2326 = vpop.f32.mrf.mxu0
    %2327 = vdwg.mxu0
    %v2328 = vpack.c.bf16 %v2253, %v2253
    %2329 = vrot.lane.b32.xlu0 %v1951, 40
    %v2330 = vpop.permute.xlu0 %2329
    %v2332 = vsel %vm244, %v2328, 0
    %v2335 = vsel %vm523, %v2330, 0
    %2337 = vmatpush.bf16.msra.mxu0 0
    %2338 = vmatpush.bf16.msra.mxu0 0
    %2339 = vmatpush.bf16.msra.mxu0 0
    %2340 = vmatpush.bf16.msra.mxu0 0
    %2341 = vmatpush.bf16.msra.mxu0 0
    %2342 = vmatpush.bf16.msra.mxu0 0
    %2343 = vmatpush.bf16.msra.mxu0 0
    %2344 = vmatpush.bf16.msra.mxu0 %v2335
    %2345 = vmatmul.bf16.gmra.mxu0 %v2332
    %v2346 = vpop.f32.mrf.mxu0
    %v2347 = vadd.f32 0.0, %v2346
    %v2348 = vpop.f32.mrf.mxu0
    %2349 = vdwg.mxu0
    %v2350 = vpack.c.bf16 %v2254, %v2254
    %2351 = vrot.lane.b32.xlu0 %v2043, 64
    %v2352 = vpop.permute.xlu0 %2351
    %v2354 = vsel %vm244, %v2350, 0
    %v2357 = vsel %vm523, %v2352, 0
    %2359 = vmatpush.bf16.msra.mxu0 0
    %2360 = vmatpush.bf16.msra.mxu0 0
    %2361 = vmatpush.bf16.msra.mxu0 0
    %2362 = vmatpush.bf16.msra.mxu0 0
    %2363 = vmatpush.bf16.msra.mxu0 0
    %2364 = vmatpush.bf16.msra.mxu0 0
    %2365 = vmatpush.bf16.msra.mxu0 0
    %2366 = vmatpush.bf16.msra.mxu0 %v2357
    %2367 = vmatmul.bf16.gmra.mxu0 %v2354
    %v2368 = vpop.f32.mrf.mxu0
    %v2369 = vadd.f32 0.0, %v2368
    %v2370 = vpop.f32.mrf.mxu0
    %2371 = vdwg.mxu0
    %v2372 = vpack.c.bf16 %v2255, %v2255
    %2373 = vrot.lane.b32.xlu0 %v2043, 56
    %v2374 = vpop.permute.xlu0 %2373
    %v2376 = vsel %vm244, %v2372, 0
    %v2379 = vsel %vm523, %v2374, 0
    %2381 = vmatpush.bf16.msra.mxu0 0
    %2382 = vmatpush.bf16.msra.mxu0 0
    %2383 = vmatpush.bf16.msra.mxu0 0
    %2384 = vmatpush.bf16.msra.mxu0 0
    %2385 = vmatpush.bf16.msra.mxu0 0
    %2386 = vmatpush.bf16.msra.mxu0 0
    %2387 = vmatpush.bf16.msra.mxu0 0
    %2388 = vmatpush.bf16.msra.mxu0 %v2379
    %2389 = vmatmul.bf16.gmra.mxu0 %v2376
    %v2390 = vpop.f32.mrf.mxu0
    %v2391 = vadd.f32 0.0, %v2390
    %v2392 = vpop.f32.mrf.mxu0
    %2393 = vdwg.mxu0
    %v2394 = vpack.c.bf16 %v2256, %v2256
    %2395 = vrot.lane.b32.xlu0 %v2043, 48
    %v2396 = vpop.permute.xlu0 %2395
    %v2398 = vsel %vm244, %v2394, 0
    %v2401 = vsel %vm523, %v2396, 0
    %2403 = vmatpush.bf16.msra.mxu0 0
    %2404 = vmatpush.bf16.msra.mxu0 0
    %2405 = vmatpush.bf16.msra.mxu0 0
    %2406 = vmatpush.bf16.msra.mxu0 0
    %2407 = vmatpush.bf16.msra.mxu0 0
    %2408 = vmatpush.bf16.msra.mxu0 0
    %2409 = vmatpush.bf16.msra.mxu0 0
    %2410 = vmatpush.bf16.msra.mxu0 %v2401
    %2411 = vmatmul.bf16.gmra.mxu0 %v2398
    %v2412 = vpop.f32.mrf.mxu0
    %v2413 = vadd.f32 0.0, %v2412
    %v2414 = vpop.f32.mrf.mxu0
    %2415 = vdwg.mxu0
    %v2416 = vpack.c.bf16 %v2257, %v2257
    %2417 = vrot.lane.b32.xlu0 %v2043, 40
    %v2418 = vpop.permute.xlu0 %2417
    %v2420 = vsel %vm244, %v2416, 0
    %v2423 = vsel %vm523, %v2418, 0
    %2425 = vmatpush.bf16.msra.mxu0 0
    %2426 = vmatpush.bf16.msra.mxu0 0
    %2427 = vmatpush.bf16.msra.mxu0 0
    %2428 = vmatpush.bf16.msra.mxu0 0
    %2429 = vmatpush.bf16.msra.mxu0 0
    %2430 = vmatpush.bf16.msra.mxu0 0
    %2431 = vmatpush.bf16.msra.mxu0 0
    %2432 = vmatpush.bf16.msra.mxu0 %v2423
    %2433 = vmatmul.bf16.gmra.mxu0 %v2420
    %v2434 = vpop.f32.mrf.mxu0
    %v2435 = vadd.f32 0.0, %v2434
    %v2436 = vpop.f32.mrf.mxu0
    %2437 = vdwg.mxu0
    %v2438 = vld [vmem:[%s2 + $0x288] sm:$0xff]
    %v2439 = vld [vmem:[%s2 + $0x290] sm:$0xff]
    %v2440 = vld [vmem:[%s2 + $0x298] sm:$0xff]
    %v2441 = vld [vmem:[%s2 + $0x2a0] sm:$0xff]
    %v2442 = vld [vmem:[%s2 + $0x2a8] sm:$0xff]
    %v2443 = vld [vmem:[%s2 + $0x2b0] sm:$0xff]
    %v2444 = vld [vmem:[%s2 + $0x2b8] sm:$0xff]
    %v2445 = vld [vmem:[%s2 + $0x2c0] sm:$0xff]
    %vm2446 = vcmask 523264
    %v2448 = vsel %vm2446, %v2438, 0
    %v2451 = vsel %vm2446, %v2439, 0
    %v2454 = vsel %vm2446, %v2440, 0
    %v2457 = vsel %vm2446, %v2441, 0
    %v2460 = vsel %vm2446, %v2442, 0
    %v2463 = vsel %vm2446, %v2443, 0
    %v2466 = vsel %vm2446, %v2444, 0
    %v2469 = vsel %vm2446, %v2445, 0
    %2471 = vmatpush.msra.mxu0 0.0
    %2472 = vmatpush.msra.mxu0 0.0
    %2473 = vmatpush.msra.mxu0 0.0
    %2474 = vmatpush.msra.mxu0 0.0
    %2475 = vmatpush.msra.mxu0 0.0
    %2476 = vmatpush.msra.mxu0 0.0
    %2477 = vmatpush.msra.mxu0 0.0
    %2478 = vmatpush.msra.mxu0 0.0
    %v2479 = vand.u32 %v2435, 4294901760
    %2480 = vmatpush.msra.mxu0 %v2479
    %v2481 = vand.u32 %v2413, 4294901760
    %2482 = vmatpush.msra.mxu0 %v2481
    %v2483 = vand.u32 %v2391, 4294901760
    %2484 = vmatpush.msra.mxu0 %v2483
    %v2485 = vand.u32 %v2369, 4294901760
    %2486 = vmatpush.msra.mxu0 %v2485
    %v2487 = vand.u32 %v2347, 4294901760
    %2488 = vmatpush.msra.mxu0 %v2487
    %v2489 = vand.u32 %v2325, 4294901760
    %2490 = vmatpush.msra.mxu0 %v2489
    %v2491 = vand.u32 %v2303, 4294901760
    %2492 = vmatpush.msra.mxu0 %v2491
    %v2493 = vand.u32 %v2281, 4294901760
    %2494 = vmatpush.msra.mxu0 %v2493
    %v2495 = vand.u32 %v2448, 4294901760
    %v2496 = vsub.f32 %v2448, %v2495
    %v2497 = vand.u32 %v2496, 4294901760
    %v2498 = vsub.f32 %v2496, %v2497
    %v2499 = vand.u32 %v2498, 4294901760
    %2500 = vmatmul.f32.gmra.mxu0 %v2499
    %v2501 = vpop.f32.mrf.mxu0
    %v2502 = vadd.f32 0.0, %v2501
    %v2503 = vand.u32 %v2451, 4294901760
    %v2504 = vsub.f32 %v2451, %v2503
    %v2505 = vand.u32 %v2504, 4294901760
    %v2506 = vsub.f32 %v2504, %v2505
    %v2507 = vand.u32 %v2506, 4294901760
    %2508 = vmatmul.f32.gmra.mxu0 %v2507
    %v2509 = vpop.f32.mrf.mxu0
    %v2510 = vadd.f32 0.0, %v2509
    %v2511 = vand.u32 %v2454, 4294901760
    %v2512 = vsub.f32 %v2454, %v2511
    %v2513 = vand.u32 %v2512, 4294901760
    %v2514 = vsub.f32 %v2512, %v2513
    %v2515 = vand.u32 %v2514, 4294901760
    %2516 = vmatmul.f32.gmra.mxu0 %v2515
    %v2517 = vpop.f32.mrf.mxu0
    %v2518 = vadd.f32 0.0, %v2517
    %v2519 = vand.u32 %v2457, 4294901760
    %v2520 = vsub.f32 %v2457, %v2519
    %v2521 = vand.u32 %v2520, 4294901760
    %v2522 = vsub.f32 %v2520, %v2521
    %v2523 = vand.u32 %v2522, 4294901760
    %2524 = vmatmul.f32.gmra.mxu0 %v2523
    %v2525 = vpop.f32.mrf.mxu0
    %v2526 = vadd.f32 0.0, %v2525
    %v2527 = vand.u32 %v2460, 4294901760
    %v2528 = vsub.f32 %v2460, %v2527
    %v2529 = vand.u32 %v2528, 4294901760
    %v2530 = vsub.f32 %v2528, %v2529
    %v2531 = vand.u32 %v2530, 4294901760
    %2532 = vmatmul.f32.gmra.mxu0 %v2531
    %v2533 = vpop.f32.mrf.mxu0
    %v2534 = vadd.f32 0.0, %v2533
    %v2535 = vand.u32 %v2463, 4294901760
    %v2536 = vsub.f32 %v2463, %v2535
    %v2537 = vand.u32 %v2536, 4294901760
    %v2538 = vsub.f32 %v2536, %v2537
    %v2539 = vand.u32 %v2538, 4294901760
    %2540 = vmatmul.f32.gmra.mxu0 %v2539
    %v2541 = vpop.f32.mrf.mxu0
    %v2542 = vadd.f32 0.0, %v2541
    %v2543 = vand.u32 %v2466, 4294901760
    %v2544 = vsub.f32 %v2466, %v2543
    %v2545 = vand.u32 %v2544, 4294901760
    %v2546 = vsub.f32 %v2544, %v2545
    %v2547 = vand.u32 %v2546, 4294901760
    %2548 = vmatmul.f32.gmra.mxu0 %v2547
    %v2549 = vpop.f32.mrf.mxu0
    %v2550 = vadd.f32 0.0, %v2549
    %v2551 = vand.u32 %v2469, 4294901760
    %v2552 = vsub.f32 %v2469, %v2551
    %v2553 = vand.u32 %v2552, 4294901760
    %v2554 = vsub.f32 %v2552, %v2553
    %v2555 = vand.u32 %v2554, 4294901760
    %2556 = vmatmul.f32.gmra.mxu0 %v2555
    %v2557 = vpop.f32.mrf.mxu0
    %v2558 = vadd.f32 0.0, %v2557
    %2559 = vdwg.mxu0
    %2560 = vmatpush.msra.mxu0 0.0
    %2561 = vmatpush.msra.mxu0 0.0
    %2562 = vmatpush.msra.mxu0 0.0
    %2563 = vmatpush.msra.mxu0 0.0
    %2564 = vmatpush.msra.mxu0 0.0
    %2565 = vmatpush.msra.mxu0 0.0
    %2566 = vmatpush.msra.mxu0 0.0
    %2567 = vmatpush.msra.mxu0 0.0
    %v2568 = vand.u32 %v2435, 4294901760
    %v2569 = vsub.f32 %v2435, %v2568
    %v2570 = vand.u32 %v2569, 4294901760
    %v2571 = vsub.f32 %v2569, %v2570
    %v2572 = vand.u32 %v2571, 4294901760
    %2573 = vmatpush.msra.mxu0 %v2572
    %v2574 = vand.u32 %v2413, 4294901760
    %v2575 = vsub.f32 %v2413, %v2574
    %v2576 = vand.u32 %v2575, 4294901760
    %v2577 = vsub.f32 %v2575, %v2576
    %v2578 = vand.u32 %v2577, 4294901760
    %2579 = vmatpush.msra.mxu0 %v2578
    %v2580 = vand.u32 %v2391, 4294901760
    %v2581 = vsub.f32 %v2391, %v2580
    %v2582 = vand.u32 %v2581, 4294901760
    %v2583 = vsub.f32 %v2581, %v2582
    %v2584 = vand.u32 %v2583, 4294901760
    %2585 = vmatpush.msra.mxu0 %v2584
    %v2586 = vand.u32 %v2369, 4294901760
    %v2587 = vsub.f32 %v2369, %v2586
    %v2588 = vand.u32 %v2587, 4294901760
    %v2589 = vsub.f32 %v2587, %v2588
    %v2590 = vand.u32 %v2589, 4294901760
    %2591 = vmatpush.msra.mxu0 %v2590
    %v2592 = vand.u32 %v2347, 4294901760
    %v2593 = vsub.f32 %v2347, %v2592
    %v2594 = vand.u32 %v2593, 4294901760
    %v2595 = vsub.f32 %v2593, %v2594
    %v2596 = vand.u32 %v2595, 4294901760
    %2597 = vmatpush.msra.mxu0 %v2596
    %v2598 = vand.u32 %v2325, 4294901760
    %v2599 = vsub.f32 %v2325, %v2598
    %v2600 = vand.u32 %v2599, 4294901760
    %v2601 = vsub.f32 %v2599, %v2600
    %v2602 = vand.u32 %v2601, 4294901760
    %2603 = vmatpush.msra.mxu0 %v2602
    %v2604 = vand.u32 %v2303, 4294901760
    %v2605 = vsub.f32 %v2303, %v2604
    %v2606 = vand.u32 %v2605, 4294901760
    %v2607 = vsub.f32 %v2605, %v2606
    %v2608 = vand.u32 %v2607, 4294901760
    %2609 = vmatpush.msra.mxu0 %v2608
    %v2610 = vand.u32 %v2281, 4294901760
    %v2611 = vsub.f32 %v2281, %v2610
    %v2612 = vand.u32 %v2611, 4294901760
    %v2613 = vsub.f32 %v2611, %v2612
    %v2614 = vand.u32 %v2613, 4294901760
    %2615 = vmatpush.msra.mxu0 %v2614
    %v2616 = vand.u32 %v2448, 4294901760
    %2617 = vmatmul.f32.gmra.mxu0 %v2616
    %v2618 = vpop.f32.mrf.mxu0
    %v2619 = vadd.f32 %v2502, %v2618
    %v2620 = vand.u32 %v2451, 4294901760
    %2621 = vmatmul.f32.gmra.mxu0 %v2620
    %v2622 = vpop.f32.mrf.mxu0
    %v2623 = vadd.f32 %v2510, %v2622
    %v2624 = vand.u32 %v2454, 4294901760
    %2625 = vmatmul.f32.gmra.mxu0 %v2624
    %v2626 = vpop.f32.mrf.mxu0
    %v2627 = vadd.f32 %v2518, %v2626
    %v2628 = vand.u32 %v2457, 4294901760
    %2629 = vmatmul.f32.gmra.mxu0 %v2628
    %v2630 = vpop.f32.mrf.mxu0
    %v2631 = vadd.f32 %v2526, %v2630
    %v2632 = vand.u32 %v2460, 4294901760
    %2633 = vmatmul.f32.gmra.mxu0 %v2632
    %v2634 = vpop.f32.mrf.mxu0
    %v2635 = vadd.f32 %v2534, %v2634
    %v2636 = vand.u32 %v2463, 4294901760
    %2637 = vmatmul.f32.gmra.mxu0 %v2636
    %v2638 = vpop.f32.mrf.mxu0
    %v2639 = vadd.f32 %v2542, %v2638
    %v2640 = vand.u32 %v2466, 4294901760
    %2641 = vmatmul.f32.gmra.mxu0 %v2640
    %v2642 = vpop.f32.mrf.mxu0
    %v2643 = vadd.f32 %v2550, %v2642
    %v2644 = vand.u32 %v2469, 4294901760
    %2645 = vmatmul.f32.gmra.mxu0 %v2644
    %v2646 = vpop.f32.mrf.mxu0
    %v2647 = vadd.f32 %v2558, %v2646
    %2648 = vdwg.mxu0
    %2649 = vmatpush.msra.mxu0 0.0
    %2650 = vmatpush.msra.mxu0 0.0
    %2651 = vmatpush.msra.mxu0 0.0
    %2652 = vmatpush.msra.mxu0 0.0
    %2653 = vmatpush.msra.mxu0 0.0
    %2654 = vmatpush.msra.mxu0 0.0
    %2655 = vmatpush.msra.mxu0 0.0
    %2656 = vmatpush.msra.mxu0 0.0
    %v2657 = vand.u32 %v2435, 4294901760
    %v2658 = vsub.f32 %v2435, %v2657
    %2659 = vmatpush.msra.mxu0 %v2658
    %v2660 = vand.u32 %v2413, 4294901760
    %v2661 = vsub.f32 %v2413, %v2660
    %2662 = vmatpush.msra.mxu0 %v2661
    %v2663 = vand.u32 %v2391, 4294901760
    %v2664 = vsub.f32 %v2391, %v2663
    %2665 = vmatpush.msra.mxu0 %v2664
    %v2666 = vand.u32 %v2369, 4294901760
    %v2667 = vsub.f32 %v2369, %v2666
    %2668 = vmatpush.msra.mxu0 %v2667
    %v2669 = vand.u32 %v2347, 4294901760
    %v2670 = vsub.f32 %v2347, %v2669
    %2671 = vmatpush.msra.mxu0 %v2670
    %v2672 = vand.u32 %v2325, 4294901760
    %v2673 = vsub.f32 %v2325, %v2672
    %2674 = vmatpush.msra.mxu0 %v2673
    %v2675 = vand.u32 %v2303, 4294901760
    %v2676 = vsub.f32 %v2303, %v2675
    %2677 = vmatpush.msra.mxu0 %v2676
    %v2678 = vand.u32 %v2281, 4294901760
    %v2679 = vsub.f32 %v2281, %v2678
    %2680 = vmatpush.msra.mxu0 %v2679
    %v2681 = vand.u32 %v2448, 4294901760
    %v2682 = vsub.f32 %v2448, %v2681
    %2683 = vmatmul.f32.gmra.mxu0 %v2682
    %v2684 = vpop.f32.mrf.mxu0
    %v2685 = vadd.f32 %v2619, %v2684
    %v2686 = vand.u32 %v2451, 4294901760
    %v2687 = vsub.f32 %v2451, %v2686
    %2688 = vmatmul.f32.gmra.mxu0 %v2687
    %v2689 = vpop.f32.mrf.mxu0
    %v2690 = vadd.f32 %v2623, %v2689
    %v2691 = vand.u32 %v2454, 4294901760
    %v2692 = vsub.f32 %v2454, %v2691
    %2693 = vmatmul.f32.gmra.mxu0 %v2692
    %v2694 = vpop.f32.mrf.mxu0
    %v2695 = vadd.f32 %v2627, %v2694
    %v2696 = vand.u32 %v2457, 4294901760
    %v2697 = vsub.f32 %v2457, %v2696
    %2698 = vmatmul.f32.gmra.mxu0 %v2697
    %v2699 = vpop.f32.mrf.mxu0
    %v2700 = vadd.f32 %v2631, %v2699
    %v2701 = vand.u32 %v2460, 4294901760
    %v2702 = vsub.f32 %v2460, %v2701
    %2703 = vmatmul.f32.gmra.mxu0 %v2702
    %v2704 = vpop.f32.mrf.mxu0
    %v2705 = vadd.f32 %v2635, %v2704
    %v2706 = vand.u32 %v2463, 4294901760
    %v2707 = vsub.f32 %v2463, %v2706
    %2708 = vmatmul.f32.gmra.mxu0 %v2707
    %v2709 = vpop.f32.mrf.mxu0
    %v2710 = vadd.f32 %v2639, %v2709
    %v2711 = vand.u32 %v2466, 4294901760
    %v2712 = vsub.f32 %v2466, %v2711
    %2713 = vmatmul.f32.gmra.mxu0 %v2712
    %v2714 = vpop.f32.mrf.mxu0
    %v2715 = vadd.f32 %v2643, %v2714
    %v2716 = vand.u32 %v2469, 4294901760
    %v2717 = vsub.f32 %v2469, %v2716
    %2718 = vmatmul.f32.gmra.mxu0 %v2717
    %v2719 = vpop.f32.mrf.mxu0
    %v2720 = vadd.f32 %v2647, %v2719
    %2721 = vdwg.mxu0
    %2722 = vmatpush.msra.mxu0 0.0
    %2723 = vmatpush.msra.mxu0 0.0
    %2724 = vmatpush.msra.mxu0 0.0
    %2725 = vmatpush.msra.mxu0 0.0
    %2726 = vmatpush.msra.mxu0 0.0
    %2727 = vmatpush.msra.mxu0 0.0
    %2728 = vmatpush.msra.mxu0 0.0
    %2729 = vmatpush.msra.mxu0 0.0
    %v2730 = vand.u32 %v2435, 4294901760
    %2731 = vmatpush.msra.mxu0 %v2730
    %v2732 = vand.u32 %v2413, 4294901760
    %2733 = vmatpush.msra.mxu0 %v2732
    %v2734 = vand.u32 %v2391, 4294901760
    %2735 = vmatpush.msra.mxu0 %v2734
    %v2736 = vand.u32 %v2369, 4294901760
    %2737 = vmatpush.msra.mxu0 %v2736
    %v2738 = vand.u32 %v2347, 4294901760
    %2739 = vmatpush.msra.mxu0 %v2738
    %v2740 = vand.u32 %v2325, 4294901760
    %2741 = vmatpush.msra.mxu0 %v2740
    %v2742 = vand.u32 %v2303, 4294901760
    %2743 = vmatpush.msra.mxu0 %v2742
    %v2744 = vand.u32 %v2281, 4294901760
    %2745 = vmatpush.msra.mxu0 %v2744
    %v2746 = vand.u32 %v2448, 4294901760
    %v2747 = vsub.f32 %v2448, %v2746
    %v2748 = vand.u32 %v2747, 4294901760
    %2749 = vmatmul.f32.gmra.mxu0 %v2748
    %v2750 = vpop.f32.mrf.mxu0
    %v2751 = vadd.f32 %v2685, %v2750
    %v2752 = vand.u32 %v2451, 4294901760
    %v2753 = vsub.f32 %v2451, %v2752
    %v2754 = vand.u32 %v2753, 4294901760
    %2755 = vmatmul.f32.gmra.mxu0 %v2754
    %v2756 = vpop.f32.mrf.mxu0
    %v2757 = vadd.f32 %v2690, %v2756
    %v2758 = vand.u32 %v2454, 4294901760
    %v2759 = vsub.f32 %v2454, %v2758
    %v2760 = vand.u32 %v2759, 4294901760
    %2761 = vmatmul.f32.gmra.mxu0 %v2760
    %v2762 = vpop.f32.mrf.mxu0
    %v2763 = vadd.f32 %v2695, %v2762
    %v2764 = vand.u32 %v2457, 4294901760
    %v2765 = vsub.f32 %v2457, %v2764
    %v2766 = vand.u32 %v2765, 4294901760
    %2767 = vmatmul.f32.gmra.mxu0 %v2766
    %v2768 = vpop.f32.mrf.mxu0
    %v2769 = vadd.f32 %v2700, %v2768
    %v2770 = vand.u32 %v2460, 4294901760
    %v2771 = vsub.f32 %v2460, %v2770
    %v2772 = vand.u32 %v2771, 4294901760
    %2773 = vmatmul.f32.gmra.mxu0 %v2772
    %v2774 = vpop.f32.mrf.mxu0
    %v2775 = vadd.f32 %v2705, %v2774
    %v2776 = vand.u32 %v2463, 4294901760
    %v2777 = vsub.f32 %v2463, %v2776
    %v2778 = vand.u32 %v2777, 4294901760
    %2779 = vmatmul.f32.gmra.mxu0 %v2778
    %v2780 = vpop.f32.mrf.mxu0
    %v2781 = vadd.f32 %v2710, %v2780
    %v2782 = vand.u32 %v2466, 4294901760
    %v2783 = vsub.f32 %v2466, %v2782
    %v2784 = vand.u32 %v2783, 4294901760
    %2785 = vmatmul.f32.gmra.mxu0 %v2784
    %v2786 = vpop.f32.mrf.mxu0
    %v2787 = vadd.f32 %v2715, %v2786
    %v2788 = vand.u32 %v2469, 4294901760
    %v2789 = vsub.f32 %v2469, %v2788
    %v2790 = vand.u32 %v2789, 4294901760
    %2791 = vmatmul.f32.gmra.mxu0 %v2790
    %v2792 = vpop.f32.mrf.mxu0
    %v2793 = vadd.f32 %v2720, %v2792
    %2794 = vdwg.mxu0
    %2795 = vmatpush.msra.mxu0 0.0
    %2796 = vmatpush.msra.mxu0 0.0
    %2797 = vmatpush.msra.mxu0 0.0
    %2798 = vmatpush.msra.mxu0 0.0
    %2799 = vmatpush.msra.mxu0 0.0
    %2800 = vmatpush.msra.mxu0 0.0
    %2801 = vmatpush.msra.mxu0 0.0
    %2802 = vmatpush.msra.mxu0 0.0
    %v2803 = vand.u32 %v2435, 4294901760
    %v2804 = vsub.f32 %v2435, %v2803
    %v2805 = vand.u32 %v2804, 4294901760
    %2806 = vmatpush.msra.mxu0 %v2805
    %v2807 = vand.u32 %v2413, 4294901760
    %v2808 = vsub.f32 %v2413, %v2807
    %v2809 = vand.u32 %v2808, 4294901760
    %2810 = vmatpush.msra.mxu0 %v2809
    %v2811 = vand.u32 %v2391, 4294901760
    %v2812 = vsub.f32 %v2391, %v2811
    %v2813 = vand.u32 %v2812, 4294901760
    %2814 = vmatpush.msra.mxu0 %v2813
    %v2815 = vand.u32 %v2369, 4294901760
    %v2816 = vsub.f32 %v2369, %v2815
    %v2817 = vand.u32 %v2816, 4294901760
    %2818 = vmatpush.msra.mxu0 %v2817
    %v2819 = vand.u32 %v2347, 4294901760
    %v2820 = vsub.f32 %v2347, %v2819
    %v2821 = vand.u32 %v2820, 4294901760
    %2822 = vmatpush.msra.mxu0 %v2821
    %v2823 = vand.u32 %v2325, 4294901760
    %v2824 = vsub.f32 %v2325, %v2823
    %v2825 = vand.u32 %v2824, 4294901760
    %2826 = vmatpush.msra.mxu0 %v2825
    %v2827 = vand.u32 %v2303, 4294901760
    %v2828 = vsub.f32 %v2303, %v2827
    %v2829 = vand.u32 %v2828, 4294901760
    %2830 = vmatpush.msra.mxu0 %v2829
    %v2831 = vand.u32 %v2281, 4294901760
    %v2832 = vsub.f32 %v2281, %v2831
    %v2833 = vand.u32 %v2832, 4294901760
    %2834 = vmatpush.msra.mxu0 %v2833
    %v2835 = vand.u32 %v2448, 4294901760
    %2836 = vmatmul.f32.gmra.mxu0 %v2835
    %v2837 = vpop.f32.mrf.mxu0
    %v2838 = vadd.f32 %v2751, %v2837
    %v2839 = vand.u32 %v2451, 4294901760
    %2840 = vmatmul.f32.gmra.mxu0 %v2839
    %v2841 = vpop.f32.mrf.mxu0
    %v2842 = vadd.f32 %v2757, %v2841
    %v2843 = vand.u32 %v2454, 4294901760
    %2844 = vmatmul.f32.gmra.mxu0 %v2843
    %v2845 = vpop.f32.mrf.mxu0
    %v2846 = vadd.f32 %v2763, %v2845
    %v2847 = vand.u32 %v2457, 4294901760
    %2848 = vmatmul.f32.gmra.mxu0 %v2847
    %v2849 = vpop.f32.mrf.mxu0
    %v2850 = vadd.f32 %v2769, %v2849
    %v2851 = vand.u32 %v2460, 4294901760
    %2852 = vmatmul.f32.gmra.mxu0 %v2851
    %v2853 = vpop.f32.mrf.mxu0
    %v2854 = vadd.f32 %v2775, %v2853
    %v2855 = vand.u32 %v2463, 4294901760
    %2856 = vmatmul.f32.gmra.mxu0 %v2855
    %v2857 = vpop.f32.mrf.mxu0
    %v2858 = vadd.f32 %v2781, %v2857
    %v2859 = vand.u32 %v2466, 4294901760
    %2860 = vmatmul.f32.gmra.mxu0 %v2859
    %v2861 = vpop.f32.mrf.mxu0
    %v2862 = vadd.f32 %v2787, %v2861
    %v2863 = vand.u32 %v2469, 4294901760
    %2864 = vmatmul.f32.gmra.mxu0 %v2863
    %v2865 = vpop.f32.mrf.mxu0
    %v2866 = vadd.f32 %v2793, %v2865
    %2867 = vdwg.mxu0
    %2868 = vmatpush.msra.mxu0 0.0
    %2869 = vmatpush.msra.mxu0 0.0
    %2870 = vmatpush.msra.mxu0 0.0
    %2871 = vmatpush.msra.mxu0 0.0
    %2872 = vmatpush.msra.mxu0 0.0
    %2873 = vmatpush.msra.mxu0 0.0
    %2874 = vmatpush.msra.mxu0 0.0
    %2875 = vmatpush.msra.mxu0 0.0
    %v2876 = vand.u32 %v2435, 4294901760
    %2877 = vmatpush.msra.mxu0 %v2876
    %v2878 = vand.u32 %v2413, 4294901760
    %2879 = vmatpush.msra.mxu0 %v2878
    %v2880 = vand.u32 %v2391, 4294901760
    %2881 = vmatpush.msra.mxu0 %v2880
    %v2882 = vand.u32 %v2369, 4294901760
    %2883 = vmatpush.msra.mxu0 %v2882
    %v2884 = vand.u32 %v2347, 4294901760
    %2885 = vmatpush.msra.mxu0 %v2884
    %v2886 = vand.u32 %v2325, 4294901760
    %2887 = vmatpush.msra.mxu0 %v2886
    %v2888 = vand.u32 %v2303, 4294901760
    %2889 = vmatpush.msra.mxu0 %v2888
    %v2890 = vand.u32 %v2281, 4294901760
    %2891 = vmatpush.msra.mxu0 %v2890
    %v2892 = vand.u32 %v2448, 4294901760
    %2893 = vmatmul.f32.gmra.mxu0 %v2892
    %v2894 = vpop.f32.mrf.mxu0
    %v2895 = vadd.f32 %v2838, %v2894
    %v2896 = vand.u32 %v2451, 4294901760
    %2897 = vmatmul.f32.gmra.mxu0 %v2896
    %v2898 = vpop.f32.mrf.mxu0
    %v2899 = vadd.f32 %v2842, %v2898
    %v2900 = vand.u32 %v2454, 4294901760
    %2901 = vmatmul.f32.gmra.mxu0 %v2900
    %v2902 = vpop.f32.mrf.mxu0
    %v2903 = vadd.f32 %v2846, %v2902
    %v2904 = vand.u32 %v2457, 4294901760
    %2905 = vmatmul.f32.gmra.mxu0 %v2904
    %v2906 = vpop.f32.mrf.mxu0
    %v2907 = vadd.f32 %v2850, %v2906
    %v2908 = vand.u32 %v2460, 4294901760
    %2909 = vmatmul.f32.gmra.mxu0 %v2908
    %v2910 = vpop.f32.mrf.mxu0
    %v2911 = vadd.f32 %v2854, %v2910
    %v2912 = vand.u32 %v2463, 4294901760
    %2913 = vmatmul.f32.gmra.mxu0 %v2912
    %v2914 = vpop.f32.mrf.mxu0
    %v2915 = vadd.f32 %v2858, %v2914
    %v2916 = vand.u32 %v2466, 4294901760
    %2917 = vmatmul.f32.gmra.mxu0 %v2916
    %v2918 = vpop.f32.mrf.mxu0
    %v2919 = vadd.f32 %v2862, %v2918
    %v2920 = vand.u32 %v2469, 4294901760
    %2921 = vmatmul.f32.gmra.mxu0 %v2920
    %v2922 = vpop.f32.mrf.mxu0
    %v2923 = vadd.f32 %v2866, %v2922
    %2924 = vdwg.mxu0
    %v2925 = vpack.c.bf16 %v2899, %v2895
    %v2926 = vpack.c.bf16 %v2258, %v2258
    %v2927 = vpack.c.bf16 %v2907, %v2903
    %v2928 = vpack.c.bf16 %v2259, %v2259
    %v2930 = vsel %vm244, %v2927, 0
    %v2933 = vsel %vm523, %v2928, 0
    %2935 = vmatpush.bf16.msra.mxu0 0
    %2936 = vmatpush.bf16.msra.mxu0 0
    %2937 = vmatpush.bf16.msra.mxu0 0
    %2938 = vmatpush.bf16.msra.mxu0 0
    %2939 = vmatpush.bf16.msra.mxu0 0
    %2940 = vmatpush.bf16.msra.mxu0 0
    %2941 = vmatpush.bf16.msra.mxu0 0
    %2942 = vmatpush.bf16.msra.mxu0 %v2933
    %2943 = vmatmul.bf16.gmra.mxu0 %v2930
    %v2944 = vpop.f32.mrf.mxu0
    %v2945 = vadd.f32 0.0, %v2944
    %v2946 = vpop.f32.mrf.mxu0
    %v2947 = vadd.f32 0.0, %v2946
    %2948 = vdwg.mxu0
    %v2950 = vsel %vm244, %v2925, 0
    %v2953 = vsel %vm523, %v2926, 0
    %2955 = vmatpush.bf16.msra.mxu0 0
    %2956 = vmatpush.bf16.msra.mxu0 0
    %2957 = vmatpush.bf16.msra.mxu0 0
    %2958 = vmatpush.bf16.msra.mxu0 0
    %2959 = vmatpush.bf16.msra.mxu0 0
    %2960 = vmatpush.bf16.msra.mxu0 0
    %2961 = vmatpush.bf16.msra.mxu0 0
    %2962 = vmatpush.bf16.msra.mxu0 %v2953
    %2963 = vmatmul.bf16.gmra.mxu0 %v2950
    %v2964 = vpop.f32.mrf.mxu0
    %v2965 = vadd.f32 %v2945, %v2964
    %v2966 = vpop.f32.mrf.mxu0
    %v2967 = vadd.f32 %v2947, %v2966
    %2968 = vdwg.mxu0
    %v2969 = vpack.c.bf16 %v2915, %v2911
    %v2970 = vpack.c.bf16 %v2260, %v2260
    %v2972 = vsel %vm244, %v2969, 0
    %v2975 = vsel %vm523, %v2970, 0
    %2977 = vmatpush.bf16.msra.mxu0 0
    %2978 = vmatpush.bf16.msra.mxu0 0
    %2979 = vmatpush.bf16.msra.mxu0 0
    %2980 = vmatpush.bf16.msra.mxu0 0
    %2981 = vmatpush.bf16.msra.mxu0 0
    %2982 = vmatpush.bf16.msra.mxu0 0
    %2983 = vmatpush.bf16.msra.mxu0 0
    %2984 = vmatpush.bf16.msra.mxu0 %v2975
    %2985 = vmatmul.bf16.gmra.mxu0 %v2972
    %v2986 = vpop.f32.mrf.mxu0
    %v2987 = vadd.f32 0.0, %v2986
    %v2988 = vpop.f32.mrf.mxu0
    %v2989 = vadd.f32 0.0, %v2988
    %2990 = vdwg.mxu0
    %v2991 = vadd.f32 %v2965, %v2987
    %v2992 = vadd.f32 %v2967, %v2989
    %v2993 = vpack.c.bf16 %v2923, %v2919
    %v2994 = vpack.c.bf16 %v2261, %v2261
    %v2996 = vsel %vm244, %v2993, 0
    %v2999 = vsel %vm523, %v2994, 0
    %3001 = vmatpush.bf16.msra.mxu0 0
    %3002 = vmatpush.bf16.msra.mxu0 0
    %3003 = vmatpush.bf16.msra.mxu0 0
    %3004 = vmatpush.bf16.msra.mxu0 0
    %3005 = vmatpush.bf16.msra.mxu0 0
    %3006 = vmatpush.bf16.msra.mxu0 0
    %3007 = vmatpush.bf16.msra.mxu0 0
    %3008 = vmatpush.bf16.msra.mxu0 %v2999
    %3009 = vmatmul.bf16.gmra.mxu0 %v2996
    %v3010 = vpop.f32.mrf.mxu0
    %v3011 = vadd.f32 0.0, %v3010
    %v3012 = vpop.f32.mrf.mxu0
    %v3013 = vadd.f32 0.0, %v3012
    %3014 = vdwg.mxu0
    %v3015 = vadd.f32 %v2991, %v3011
    %v3016 = vadd.f32 %v2992, %v3013
    %v3017 = vld [vmem:[%s3 + $0x18] sm:$0x1]
    %v3018 = vperm.slane %v3017, 0
    %v3019 = vadd.f32 %v3015, %v3018
    %v3020 = vadd.f32 %v3016, %v3018
    %v3021 = vadd.f32 %v211, %v3019
    %v3022 = vadd.f32 %v212, %v3020
    %v3023 = vld [vmem:[%s3 + $0x1e] sm:$0x1]
    %v3024 = vld [vmem:[%s3 + $0x1f] sm:$0x1]
    %v3025 = vsel %vm222, %v3021, 0.0
    %3026 = vadd.xlane.f32.xlu0 %v3025
    %v3027 = vpop.xlane.xlu0 %3026
    %v3028 = vsel %vm222, %v3022, 0.0
    %3029 = vadd.xlane.f32.xlu0 %v3028
    %v3030 = vpop.xlane.xlu0 %3029
    %v3031 = vmul.f32 %v3027, %v806
    %v3032 = vmul.f32 %v3030, %v806
    %v3033 = vsub.f32 %v3021, %v3031
    %v3034 = vsub.f32 %v3022, %v3032
    %v3035 = vmul.f32 %v3033, %v3033
    %v3036 = vmul.f32 %v3034, %v3034
    %v3037 = vsel %vm222, %v3035, 0.0
    %3038 = vadd.xlane.f32.xlu0 %v3037
    %v3039 = vpop.xlane.xlu0 %3038
    %v3040 = vsel %vm222, %v3036, 0.0
    %3041 = vadd.xlane.f32.xlu0 %v3040
    %v3042 = vpop.xlane.xlu0 %3041
    %v3043 = vmul.f32 %v3039, %v806
    %v3044 = vmul.f32 %v3042, %v806
    %v3045 = vadd.f32 %v3043, 1e-05
    %v3046 = vadd.f32 %v3044, 1e-05
    %v3047 = vrsqrt.pop %v3045
    %v3048 = vmul.f32 %v3047, %v3045
    %v3049 = vmul.f32 %v3048, %v3047
    %v3050 = vmul.f32 0.5, %v3049
    %v3051 = vsub.f32 1.5, %v3050
    %v3052 = vmul.f32 %v3047, %v3051
    %vm3053 = vweird.f32 %v3045
    %vm3054 = vweird.f32 %v3047
    %vm3055 = vmor %vm3053, %vm3054
    %v3056 = vsel %vm3055, %v3047, %v3052
    %v3057 = vrsqrt.pop %v3046
    %v3058 = vmul.f32 %v3057, %v3046
    %v3059 = vmul.f32 %v3058, %v3057
    %v3060 = vmul.f32 0.5, %v3059
    %v3061 = vsub.f32 1.5, %v3060
    %v3062 = vmul.f32 %v3057, %v3061
    %vm3063 = vweird.f32 %v3046
    %vm3064 = vweird.f32 %v3057
    %vm3065 = vmor %vm3063, %vm3064
    %v3066 = vsel %vm3065, %v3057, %v3062
    %v3067 = vmul.f32 %v3033, %v3056
    %v3068 = vmul.f32 %v3034, %v3066
    %v3069 = vperm.slane %v3023, 0
    %v3070 = vmul.f32 %v3067, %v3069
    %v3071 = vmul.f32 %v3068, %v3069
    %v3072 = vperm.slane %v3024, 0
    %v3073 = vadd.f32 %v3070, %v3072
    %v3074 = vadd.f32 %v3071, %v3072
    %v3075 = vld [vmem:[%s2 + $0x1c0] sm:$0xff]
    %v3076 = vld [vmem:[%s2 + $0x1c8] sm:$0xff]
    %v3077 = vld [vmem:[%s2 + $0x1d0] sm:$0xff]
    %v3078 = vld [vmem:[%s2 + $0x1d8] sm:$0xff]
    %v3079 = vpack.c.bf16 %v3074, %v3073
    %v3080 = vpack.c.bf16 %v3076, %v3075
    %v3081 = vpack.c.bf16 %v3078, %v3077
    %v3082 = vld [vmem:[%s3 + $0x19] sm:$0x1]
    %v3083 = vperm.slane %v3082, 0
    %v3085 = vsel %vm222, %v3079, 0
    %3087 = vmatpush.bf16.msra.mxu0 0
    %3088 = vmatpush.bf16.msra.mxu0 0
    %3089 = vmatpush.bf16.msra.mxu0 0
    %3090 = vmatpush.bf16.msra.mxu0 0
    %3091 = vmatpush.bf16.msra.mxu0 0
    %3092 = vmatpush.bf16.msra.mxu0 0
    %3093 = vmatpush.bf16.msra.mxu0 %v3081
    %3094 = vmatpush.bf16.msra.mxu0 %v3080
    %3095 = vmatmul.bf16.gmra.mxu0 %v3085
    %v3096 = vpop.f32.mrf.mxu0
    %v3097 = vadd.f32 %v3083, %v3096
    %v3098 = vpop.f32.mrf.mxu0
    %v3099 = vadd.f32 %v3083, %v3098
    %3100 = vdwg.mxu0
    %v3101 = vld [vmem:[%s2 + $0x1e0] sm:$0xff]
    %v3102 = vld [vmem:[%s2 + $0x1e8] sm:$0xff]
    %v3103 = vld [vmem:[%s2 + $0x1f0] sm:$0xff]
    %v3104 = vld [vmem:[%s2 + $0x1f8] sm:$0xff]
    %v3105 = vpack.c.bf16 %v1924, %v1924
    %v3106 = vpack.c.bf16 %v3102, %v3101
    %v3107 = vpack.c.bf16 %v3104, %v3103
    %v3108 = vld [vmem:[%s3 + $0x1a] sm:$0x1]
    %v3109 = vperm.slane %v3108, 0
    %v3111 = vsel %vm222, %v3105, 0
    %3113 = vmatpush.bf16.msra.mxu0 0
    %3114 = vmatpush.bf16.msra.mxu0 0
    %3115 = vmatpush.bf16.msra.mxu0 0
    %3116 = vmatpush.bf16.msra.mxu0 0
    %3117 = vmatpush.bf16.msra.mxu0 0
    %3118 = vmatpush.bf16.msra.mxu0 0
    %3119 = vmatpush.bf16.msra.mxu0 %v3107
    %3120 = vmatpush.bf16.msra.mxu0 %v3106
    %3121 = vmatmul.bf16.gmra.mxu0 %v3111
    %v3122 = vpop.f32.mrf.mxu0
    %v3123 = vadd.f32 %v3109, %v3122
    %v3124 = vpop.f32.mrf.mxu0
    %3125 = vdwg.mxu0
    %v3126 = vpack.c.bf16 %v3097, %v3097
    %v3127 = vpack.c.bf16 %v3123, %v3123
    %v3129 = vsel %vm244, %v3126, 0
    %v3132 = vsel %vm244, %v3127, 0
    %3134 = vmatpush.bf16.xpose.msra.mxu0 0
    %3135 = vmatpush.bf16.xpose.msra.mxu0 0
    %3136 = vmatpush.bf16.xpose.msra.mxu0 0
    %3137 = vmatpush.bf16.xpose.msra.mxu0 0
    %3138 = vmatpush.bf16.xpose.msra.mxu0 0
    %3139 = vmatpush.bf16.xpose.msra.mxu0 0
    %3140 = vmatpush.bf16.xpose.msra.mxu0 0
    %3141 = vmatpush.bf16.xpose.msra.mxu0 %v3132
    %3142 = vmatmul.bf16.gmra.mxu0 %v3129
    %v3143 = vpop.f32.mrf.mxu0
    %v3144 = vadd.f32 0.0, %v3143
    %v3145 = vpop.f32.mrf.mxu0
    %3146 = vdwg.mxu0
    %3148 = vrot.lane.b32.xlu0 %v3126, 120
    %v3149 = vpop.permute.xlu0 %3148
    %3151 = vrot.lane.b32.xlu0 %v3127, 120
    %v3152 = vpop.permute.xlu0 %3151
    %v3154 = vsel %vm244, %v3149, 0
    %v3157 = vsel %vm244, %v3152, 0
    %3159 = vmatpush.bf16.xpose.msra.mxu0 0
    %3160 = vmatpush.bf16.xpose.msra.mxu0 0
    %3161 = vmatpush.bf16.xpose.msra.mxu0 0
    %3162 = vmatpush.bf16.xpose.msra.mxu0 0
    %3163 = vmatpush.bf16.xpose.msra.mxu0 0
    %3164 = vmatpush.bf16.xpose.msra.mxu0 0
    %3165 = vmatpush.bf16.xpose.msra.mxu0 0
    %3166 = vmatpush.bf16.xpose.msra.mxu0 %v3157
    %3167 = vmatmul.bf16.gmra.mxu0 %v3154
    %v3168 = vpop.f32.mrf.mxu0
    %v3169 = vadd.f32 0.0, %v3168
    %v3170 = vpop.f32.mrf.mxu0
    %3171 = vdwg.mxu0
    %3172 = vrot.lane.b32.xlu0 %v3126, 112
    %v3173 = vpop.permute.xlu0 %3172
    %3174 = vrot.lane.b32.xlu0 %v3127, 112
    %v3175 = vpop.permute.xlu0 %3174
    %v3177 = vsel %vm244, %v3173, 0
    %v3180 = vsel %vm244, %v3175, 0
    %3182 = vmatpush.bf16.xpose.msra.mxu0 0
    %3183 = vmatpush.bf16.xpose.msra.mxu0 0
    %3184 = vmatpush.bf16.xpose.msra.mxu0 0
    %3185 = vmatpush.bf16.xpose.msra.mxu0 0
    %3186 = vmatpush.bf16.xpose.msra.mxu0 0
    %3187 = vmatpush.bf16.xpose.msra.mxu0 0
    %3188 = vmatpush.bf16.xpose.msra.mxu0 0
    %3189 = vmatpush.bf16.xpose.msra.mxu0 %v3180
    %3190 = vmatmul.bf16.gmra.mxu0 %v3177
    %v3191 = vpop.f32.mrf.mxu0
    %v3192 = vadd.f32 0.0, %v3191
    %v3193 = vpop.f32.mrf.mxu0
    %3194 = vdwg.mxu0
    %3195 = vrot.lane.b32.xlu0 %v3126, 104
    %v3196 = vpop.permute.xlu0 %3195
    %3197 = vrot.lane.b32.xlu0 %v3127, 104
    %v3198 = vpop.permute.xlu0 %3197
    %v3200 = vsel %vm244, %v3196, 0
    %v3203 = vsel %vm244, %v3198, 0
    %3205 = vmatpush.bf16.xpose.msra.mxu0 0
    %3206 = vmatpush.bf16.xpose.msra.mxu0 0
    %3207 = vmatpush.bf16.xpose.msra.mxu0 0
    %3208 = vmatpush.bf16.xpose.msra.mxu0 0
    %3209 = vmatpush.bf16.xpose.msra.mxu0 0
    %3210 = vmatpush.bf16.xpose.msra.mxu0 0
    %3211 = vmatpush.bf16.xpose.msra.mxu0 0
    %3212 = vmatpush.bf16.xpose.msra.mxu0 %v3203
    %3213 = vmatmul.bf16.gmra.mxu0 %v3200
    %v3214 = vpop.f32.mrf.mxu0
    %v3215 = vadd.f32 0.0, %v3214
    %v3216 = vpop.f32.mrf.mxu0
    %3217 = vdwg.mxu0
    %v3218 = vpack.c.bf16 %v3099, %v3099
    %v3219 = vrot.slane %v3127, 2
    %v3221 = vsel %vm244, %v3218, 0
    %v3224 = vsel %vm244, %v3219, 0
    %3226 = vmatpush.bf16.xpose.msra.mxu0 0
    %3227 = vmatpush.bf16.xpose.msra.mxu0 0
    %3228 = vmatpush.bf16.xpose.msra.mxu0 0
    %3229 = vmatpush.bf16.xpose.msra.mxu0 0
    %3230 = vmatpush.bf16.xpose.msra.mxu0 0
    %3231 = vmatpush.bf16.xpose.msra.mxu0 0
    %3232 = vmatpush.bf16.xpose.msra.mxu0 0
    %3233 = vmatpush.bf16.xpose.msra.mxu0 %v3224
    %3234 = vmatmul.bf16.gmra.mxu0 %v3221
    %v3235 = vpop.f32.mrf.mxu0
    %v3236 = vadd.f32 0.0, %v3235
    %v3237 = vpop.f32.mrf.mxu0
    %3238 = vdwg.mxu0
    %3240 = vrot.lane.b32.xlu0 %v3218, 120
    %v3241 = vpop.permute.xlu0 %3240
    %3242 = vrot.lane.b32.xlu0 %v3219, 120
    %v3243 = vpop.permute.xlu0 %3242
    %v3245 = vsel %vm244, %v3241, 0
    %v3248 = vsel %vm244, %v3243, 0
    %3250 = vmatpush.bf16.xpose.msra.mxu0 0
    %3251 = vmatpush.bf16.xpose.msra.mxu0 0
    %3252 = vmatpush.bf16.xpose.msra.mxu0 0
    %3253 = vmatpush.bf16.xpose.msra.mxu0 0
    %3254 = vmatpush.bf16.xpose.msra.mxu0 0
    %3255 = vmatpush.bf16.xpose.msra.mxu0 0
    %3256 = vmatpush.bf16.xpose.msra.mxu0 0
    %3257 = vmatpush.bf16.xpose.msra.mxu0 %v3248
    %3258 = vmatmul.bf16.gmra.mxu0 %v3245
    %v3259 = vpop.f32.mrf.mxu0
    %v3260 = vadd.f32 0.0, %v3259
    %v3261 = vpop.f32.mrf.mxu0
    %3262 = vdwg.mxu0
    %3263 = vrot.lane.b32.xlu0 %v3218, 112
    %v3264 = vpop.permute.xlu0 %3263
    %3265 = vrot.lane.b32.xlu0 %v3219, 112
    %v3266 = vpop.permute.xlu0 %3265
    %v3268 = vsel %vm244, %v3264, 0
    %v3271 = vsel %vm244, %v3266, 0
    %3273 = vmatpush.bf16.xpose.msra.mxu0 0
    %3274 = vmatpush.bf16.xpose.msra.mxu0 0
    %3275 = vmatpush.bf16.xpose.msra.mxu0 0
    %3276 = vmatpush.bf16.xpose.msra.mxu0 0
    %3277 = vmatpush.bf16.xpose.msra.mxu0 0
    %3278 = vmatpush.bf16.xpose.msra.mxu0 0
    %3279 = vmatpush.bf16.xpose.msra.mxu0 0
    %3280 = vmatpush.bf16.xpose.msra.mxu0 %v3271
    %3281 = vmatmul.bf16.gmra.mxu0 %v3268
    %v3282 = vpop.f32.mrf.mxu0
    %v3283 = vadd.f32 0.0, %v3282
    %v3284 = vpop.f32.mrf.mxu0
    %3285 = vdwg.mxu0
    %3286 = vrot.lane.b32.xlu0 %v3218, 104
    %v3287 = vpop.permute.xlu0 %3286
    %3288 = vrot.lane.b32.xlu0 %v3219, 104
    %v3289 = vpop.permute.xlu0 %3288
    %v3291 = vsel %vm244, %v3287, 0
    %v3294 = vsel %vm244, %v3289, 0
    %3296 = vmatpush.bf16.xpose.msra.mxu0 0
    %3297 = vmatpush.bf16.xpose.msra.mxu0 0
    %3298 = vmatpush.bf16.xpose.msra.mxu0 0
    %3299 = vmatpush.bf16.xpose.msra.mxu0 0
    %3300 = vmatpush.bf16.xpose.msra.mxu0 0
    %3301 = vmatpush.bf16.xpose.msra.mxu0 0
    %3302 = vmatpush.bf16.xpose.msra.mxu0 0
    %3303 = vmatpush.bf16.xpose.msra.mxu0 %v3294
    %3304 = vmatmul.bf16.gmra.mxu0 %v3291
    %v3305 = vpop.f32.mrf.mxu0
    %v3306 = vadd.f32 0.0, %v3305
    %v3307 = vpop.f32.mrf.mxu0
    %3308 = vdwg.mxu0
    %v3309 = vsel %vm50, %v3144, -inf
    %3310 = vmax.xlane.f32.xlu0 %v3309
    %v3311 = vpop.xlane.xlu0 %3310
    %v3312 = vsel %vm50, %v3169, -inf
    %3313 = vmax.xlane.f32.xlu0 %v3312
    %v3314 = vpop.xlane.xlu0 %3313
    %v3315 = vsel %vm50, %v3192, -inf
    %3316 = vmax.xlane.f32.xlu0 %v3315
    %v3317 = vpop.xlane.xlu0 %3316
    %v3318 = vsel %vm50, %v3215, -inf
    %3319 = vmax.xlane.f32.xlu0 %v3318
    %v3320 = vpop.xlane.xlu0 %3319
    %v3321 = vsel %vm50, %v3236, -inf
    %3322 = vmax.xlane.f32.xlu0 %v3321
    %v3323 = vpop.xlane.xlu0 %3322
    %v3324 = vsel %vm50, %v3260, -inf
    %3325 = vmax.xlane.f32.xlu0 %v3324
    %v3326 = vpop.xlane.xlu0 %3325
    %v3327 = vsel %vm50, %v3283, -inf
    %3328 = vmax.xlane.f32.xlu0 %v3327
    %v3329 = vpop.xlane.xlu0 %3328
    %v3330 = vsel %vm50, %v3306, -inf
    %3331 = vmax.xlane.f32.xlu0 %v3330
    %v3332 = vpop.xlane.xlu0 %3331
    %v3333 = vsub.f32 %v3144, %v3311
    %v3334 = vsub.f32 %v3169, %v3314
    %v3335 = vsub.f32 %v3192, %v3317
    %v3336 = vsub.f32 %v3215, %v3320
    %v3337 = vsub.f32 %v3236, %v3323
    %v3338 = vsub.f32 %v3260, %v3326
    %v3339 = vsub.f32 %v3283, %v3329
    %v3340 = vsub.f32 %v3306, %v3332
    %v3341 = vmul.f32 %v3333, 1.442695
    %v3342 = vpow.pop %v3341
    %v3343 = vmul.f32 %v3334, 1.442695
    %v3344 = vpow.pop %v3343
    %v3345 = vmul.f32 %v3335, 1.442695
    %v3346 = vpow.pop %v3345
    %v3347 = vmul.f32 %v3336, 1.442695
    %v3348 = vpow.pop %v3347
    %v3349 = vmul.f32 %v3337, 1.442695
    %v3350 = vpow.pop %v3349
    %v3351 = vmul.f32 %v3338, 1.442695
    %v3352 = vpow.pop %v3351
    %v3353 = vmul.f32 %v3339, 1.442695
    %v3354 = vpow.pop %v3353
    %v3355 = vmul.f32 %v3340, 1.442695
    %v3356 = vpow.pop %v3355
    %v3357 = vsel %vm50, %v3342, 0.0
    %3358 = vadd.xlane.f32.xlu0 %v3357
    %v3359 = vpop.xlane.xlu0 %3358
    %v3360 = vsel %vm50, %v3344, 0.0
    %3361 = vadd.xlane.f32.xlu0 %v3360
    %v3362 = vpop.xlane.xlu0 %3361
    %v3363 = vsel %vm50, %v3346, 0.0
    %3364 = vadd.xlane.f32.xlu0 %v3363
    %v3365 = vpop.xlane.xlu0 %3364
    %v3366 = vsel %vm50, %v3348, 0.0
    %3367 = vadd.xlane.f32.xlu0 %v3366
    %v3368 = vpop.xlane.xlu0 %3367
    %v3369 = vsel %vm50, %v3350, 0.0
    %3370 = vadd.xlane.f32.xlu0 %v3369
    %v3371 = vpop.xlane.xlu0 %3370
    %v3372 = vsel %vm50, %v3352, 0.0
    %3373 = vadd.xlane.f32.xlu0 %v3372
    %v3374 = vpop.xlane.xlu0 %3373
    %v3375 = vsel %vm50, %v3354, 0.0
    %3376 = vadd.xlane.f32.xlu0 %v3375
    %v3377 = vpop.xlane.xlu0 %3376
    %v3378 = vsel %vm50, %v3356, 0.0
    %3379 = vadd.xlane.f32.xlu0 %v3378
    %v3380 = vpop.xlane.xlu0 %3379
    %v3381 = vrcp.pop %v3359
    %v3382 = vrcp.pop %v3362
    %v3383 = vrcp.pop %v3365
    %v3384 = vrcp.pop %v3368
    %v3385 = vrcp.pop %v3371
    %v3386 = vrcp.pop %v3374
    %v3387 = vrcp.pop %v3377
    %v3388 = vrcp.pop %v3380
    %v3389 = vmul.f32 %v3342, %v3381
    %v3390 = vmul.f32 %v3344, %v3382
    %v3391 = vmul.f32 %v3346, %v3383
    %v3392 = vmul.f32 %v3348, %v3384
    %v3393 = vmul.f32 %v3350, %v3385
    %v3394 = vmul.f32 %v3352, %v3386
    %v3395 = vmul.f32 %v3354, %v3387
    %v3396 = vmul.f32 %v3356, %v3388
    %v3397 = vld [vmem:[%s2 + $0x200] sm:$0xff]
    %v3398 = vld [vmem:[%s2 + $0x208] sm:$0xff]
    %v3399 = vld [vmem:[%s2 + $0x210] sm:$0xff]
    %v3400 = vld [vmem:[%s2 + $0x218] sm:$0xff]
    %v3401 = vpack.c.bf16 %v3389, %v3389
    %3402 = vrot.lane.b32.xlu0 %v3127, 96
    %v3403 = vpop.permute.xlu0 %3402
    %v3405 = vsel %vm50, %v3401, 0
    %v3408 = vsel %vm54, %v3403, 0
    %3410 = vmatpush.bf16.msra.mxu0 0
    %3411 = vmatpush.bf16.msra.mxu0 0
    %3412 = vmatpush.bf16.msra.mxu0 0
    %3413 = vmatpush.bf16.msra.mxu0 0
    %3414 = vmatpush.bf16.msra.mxu0 0
    %3415 = vmatpush.bf16.msra.mxu0 0
    %3416 = vmatpush.bf16.msra.mxu0 0
    %3417 = vmatpush.bf16.msra.mxu0 %v3408
    %3418 = vmatmul.bf16.gmra.mxu0 %v3405
    %v3419 = vpop.f32.mrf.mxu0
    %v3420 = vadd.f32 0.0, %v3419
    %v3421 = vpop.f32.mrf.mxu0
    %3422 = vdwg.mxu0
    %v3423 = vpack.c.bf16 %v3393, %v3393
    %3424 = vrot.lane.b32.xlu0 %v3219, 96
    %v3425 = vpop.permute.xlu0 %3424
    %v3427 = vsel %vm50, %v3423, 0
    %v3430 = vsel %vm54, %v3425, 0
    %3432 = vmatpush.bf16.msra.mxu0 0
    %3433 = vmatpush.bf16.msra.mxu0 0
    %3434 = vmatpush.bf16.msra.mxu0 0
    %3435 = vmatpush.bf16.msra.mxu0 0
    %3436 = vmatpush.bf16.msra.mxu0 0
    %3437 = vmatpush.bf16.msra.mxu0 0
    %3438 = vmatpush.bf16.msra.mxu0 0
    %3439 = vmatpush.bf16.msra.mxu0 %v3430
    %3440 = vmatmul.bf16.gmra.mxu0 %v3427
    %v3441 = vpop.f32.mrf.mxu0
    %v3442 = vadd.f32 0.0, %v3441
    %v3443 = vpop.f32.mrf.mxu0
    %3444 = vdwg.mxu0
    %v3445 = vpack.c.bf16 %v3442, %v3420
    %v3446 = vpack.c.bf16 %v3397, %v3397
    %v3447 = vpack.c.bf16 %v3390, %v3390
    %3448 = vrot.lane.b32.xlu0 %v3127, 88
    %v3449 = vpop.permute.xlu0 %3448
    %v3451 = vsel %vm50, %v3447, 0
    %v3454 = vsel %vm54, %v3449, 0
    %3456 = vmatpush.bf16.msra.mxu0 0
    %3457 = vmatpush.bf16.msra.mxu0 0
    %3458 = vmatpush.bf16.msra.mxu0 0
    %3459 = vmatpush.bf16.msra.mxu0 0
    %3460 = vmatpush.bf16.msra.mxu0 0
    %3461 = vmatpush.bf16.msra.mxu0 0
    %3462 = vmatpush.bf16.msra.mxu0 0
    %3463 = vmatpush.bf16.msra.mxu0 %v3454
    %3464 = vmatmul.bf16.gmra.mxu0 %v3451
    %v3465 = vpop.f32.mrf.mxu0
    %v3466 = vadd.f32 0.0, %v3465
    %v3467 = vpop.f32.mrf.mxu0
    %3468 = vdwg.mxu0
    %v3469 = vpack.c.bf16 %v3394, %v3394
    %3470 = vrot.lane.b32.xlu0 %v3219, 88
    %v3471 = vpop.permute.xlu0 %3470
    %v3473 = vsel %vm50, %v3469, 0
    %v3476 = vsel %vm54, %v3471, 0
    %3478 = vmatpush.bf16.msra.mxu0 0
    %3479 = vmatpush.bf16.msra.mxu0 0
    %3480 = vmatpush.bf16.msra.mxu0 0
    %3481 = vmatpush.bf16.msra.mxu0 0
    %3482 = vmatpush.bf16.msra.mxu0 0
    %3483 = vmatpush.bf16.msra.mxu0 0
    %3484 = vmatpush.bf16.msra.mxu0 0
    %3485 = vmatpush.bf16.msra.mxu0 %v3476
    %3486 = vmatmul.bf16.gmra.mxu0 %v3473
    %v3487 = vpop.f32.mrf.mxu0
    %v3488 = vadd.f32 0.0, %v3487
    %v3489 = vpop.f32.mrf.mxu0
    %3490 = vdwg.mxu0
    %v3491 = vpack.c.bf16 %v3488, %v3466
    %v3492 = vpack.c.bf16 %v3398, %v3398
    %v3494 = vsel %vm244, %v3491, 0
    %v3497 = vsel %vm523, %v3492, 0
    %3499 = vmatpush.bf16.msra.mxu0 0
    %3500 = vmatpush.bf16.msra.mxu0 0
    %3501 = vmatpush.bf16.msra.mxu0 0
    %3502 = vmatpush.bf16.msra.mxu0 0
    %3503 = vmatpush.bf16.msra.mxu0 0
    %3504 = vmatpush.bf16.msra.mxu0 0
    %3505 = vmatpush.bf16.msra.mxu0 0
    %3506 = vmatpush.bf16.msra.mxu0 %v3497
    %3507 = vmatmul.bf16.gmra.mxu0 %v3494
    %v3508 = vpop.f32.mrf.mxu0
    %v3509 = vadd.f32 0.0, %v3508
    %v3510 = vpop.f32.mrf.mxu0
    %v3511 = vadd.f32 0.0, %v3510
    %3512 = vdwg.mxu0
    %v3514 = vsel %vm244, %v3445, 0
    %v3517 = vsel %vm523, %v3446, 0
    %3519 = vmatpush.bf16.msra.mxu0 0
    %3520 = vmatpush.bf16.msra.mxu0 0
    %3521 = vmatpush.bf16.msra.mxu0 0
    %3522 = vmatpush.bf16.msra.mxu0 0
    %3523 = vmatpush.bf16.msra.mxu0 0
    %3524 = vmatpush.bf16.msra.mxu0 0
    %3525 = vmatpush.bf16.msra.mxu0 0
    %3526 = vmatpush.bf16.msra.mxu0 %v3517
    %3527 = vmatmul.bf16.gmra.mxu0 %v3514
    %v3528 = vpop.f32.mrf.mxu0
    %v3529 = vadd.f32 %v3509, %v3528
    %v3530 = vpop.f32.mrf.mxu0
    %v3531 = vadd.f32 %v3511, %v3530
    %3532 = vdwg.mxu0
    %v3533 = vpack.c.bf16 %v3391, %v3391
    %3534 = vrot.lane.b32.xlu0 %v3127, 80
    %v3535 = vpop.permute.xlu0 %3534
    %v3537 = vsel %vm50, %v3533, 0
    %v3540 = vsel %vm54, %v3535, 0
    %3542 = vmatpush.bf16.msra.mxu0 0
    %3543 = vmatpush.bf16.msra.mxu0 0
    %3544 = vmatpush.bf16.msra.mxu0 0
    %3545 = vmatpush.bf16.msra.mxu0 0
    %3546 = vmatpush.bf16.msra.mxu0 0
    %3547 = vmatpush.bf16.msra.mxu0 0
    %3548 = vmatpush.bf16.msra.mxu0 0
    %3549 = vmatpush.bf16.msra.mxu0 %v3540
    %3550 = vmatmul.bf16.gmra.mxu0 %v3537
    %v3551 = vpop.f32.mrf.mxu0
    %v3552 = vadd.f32 0.0, %v3551
    %v3553 = vpop.f32.mrf.mxu0
    %3554 = vdwg.mxu0
    %v3555 = vpack.c.bf16 %v3395, %v3395
    %3556 = vrot.lane.b32.xlu0 %v3219, 80
    %v3557 = vpop.permute.xlu0 %3556
    %v3559 = vsel %vm50, %v3555, 0
    %v3562 = vsel %vm54, %v3557, 0
    %3564 = vmatpush.bf16.msra.mxu0 0
    %3565 = vmatpush.bf16.msra.mxu0 0
    %3566 = vmatpush.bf16.msra.mxu0 0
    %3567 = vmatpush.bf16.msra.mxu0 0
    %3568 = vmatpush.bf16.msra.mxu0 0
    %3569 = vmatpush.bf16.msra.mxu0 0
    %3570 = vmatpush.bf16.msra.mxu0 0
    %3571 = vmatpush.bf16.msra.mxu0 %v3562
    %3572 = vmatmul.bf16.gmra.mxu0 %v3559
    %v3573 = vpop.f32.mrf.mxu0
    %v3574 = vadd.f32 0.0, %v3573
    %v3575 = vpop.f32.mrf.mxu0
    %3576 = vdwg.mxu0
    %v3577 = vpack.c.bf16 %v3574, %v3552
    %v3578 = vpack.c.bf16 %v3399, %v3399
    %v3580 = vsel %vm244, %v3577, 0
    %v3583 = vsel %vm523, %v3578, 0
    %3585 = vmatpush.bf16.msra.mxu0 0
    %3586 = vmatpush.bf16.msra.mxu0 0
    %3587 = vmatpush.bf16.msra.mxu0 0
    %3588 = vmatpush.bf16.msra.mxu0 0
    %3589 = vmatpush.bf16.msra.mxu0 0
    %3590 = vmatpush.bf16.msra.mxu0 0
    %3591 = vmatpush.bf16.msra.mxu0 0
    %3592 = vmatpush.bf16.msra.mxu0 %v3583
    %3593 = vmatmul.bf16.gmra.mxu0 %v3580
    %v3594 = vpop.f32.mrf.mxu0
    %v3595 = vadd.f32 0.0, %v3594
    %v3596 = vpop.f32.mrf.mxu0
    %v3597 = vadd.f32 0.0, %v3596
    %3598 = vdwg.mxu0
    %v3599 = vadd.f32 %v3529, %v3595
    %v3600 = vadd.f32 %v3531, %v3597
    %v3601 = vpack.c.bf16 %v3392, %v3392
    %3602 = vrot.lane.b32.xlu0 %v3127, 72
    %v3603 = vpop.permute.xlu0 %3602
    %v3605 = vsel %vm50, %v3601, 0
    %v3608 = vsel %vm54, %v3603, 0
    %3610 = vmatpush.bf16.msra.mxu0 0
    %3611 = vmatpush.bf16.msra.mxu0 0
    %3612 = vmatpush.bf16.msra.mxu0 0
    %3613 = vmatpush.bf16.msra.mxu0 0
    %3614 = vmatpush.bf16.msra.mxu0 0
    %3615 = vmatpush.bf16.msra.mxu0 0
    %3616 = vmatpush.bf16.msra.mxu0 0
    %3617 = vmatpush.bf16.msra.mxu0 %v3608
    %3618 = vmatmul.bf16.gmra.mxu0 %v3605
    %v3619 = vpop.f32.mrf.mxu0
    %v3620 = vadd.f32 0.0, %v3619
    %v3621 = vpop.f32.mrf.mxu0
    %3622 = vdwg.mxu0
    %v3623 = vpack.c.bf16 %v3396, %v3396
    %3624 = vrot.lane.b32.xlu0 %v3219, 72
    %v3625 = vpop.permute.xlu0 %3624
    %v3627 = vsel %vm50, %v3623, 0
    %v3630 = vsel %vm54, %v3625, 0
    %3632 = vmatpush.bf16.msra.mxu0 0
    %3633 = vmatpush.bf16.msra.mxu0 0
    %3634 = vmatpush.bf16.msra.mxu0 0
    %3635 = vmatpush.bf16.msra.mxu0 0
    %3636 = vmatpush.bf16.msra.mxu0 0
    %3637 = vmatpush.bf16.msra.mxu0 0
    %3638 = vmatpush.bf16.msra.mxu0 0
    %3639 = vmatpush.bf16.msra.mxu0 %v3630
    %3640 = vmatmul.bf16.gmra.mxu0 %v3627
    %v3641 = vpop.f32.mrf.mxu0
    %v3642 = vadd.f32 0.0, %v3641
    %v3643 = vpop.f32.mrf.mxu0
    %3644 = vdwg.mxu0
    %v3645 = vpack.c.bf16 %v3642, %v3620
    %v3646 = vpack.c.bf16 %v3400, %v3400
    %v3648 = vsel %vm244, %v3645, 0
    %v3651 = vsel %vm523, %v3646, 0
    %3653 = vmatpush.bf16.msra.mxu0 0
    %3654 = vmatpush.bf16.msra.mxu0 0
    %3655 = vmatpush.bf16.msra.mxu0 0
    %3656 = vmatpush.bf16.msra.mxu0 0
    %3657 = vmatpush.bf16.msra.mxu0 0
    %3658 = vmatpush.bf16.msra.mxu0 0
    %3659 = vmatpush.bf16.msra.mxu0 0
    %3660 = vmatpush.bf16.msra.mxu0 %v3651
    %3661 = vmatmul.bf16.gmra.mxu0 %v3648
    %v3662 = vpop.f32.mrf.mxu0
    %v3663 = vadd.f32 0.0, %v3662
    %v3664 = vpop.f32.mrf.mxu0
    %v3665 = vadd.f32 0.0, %v3664
    %3666 = vdwg.mxu0
    %v3667 = vadd.f32 %v3599, %v3663
    %v3668 = vadd.f32 %v3600, %v3665
    %v3669 = vld [vmem:[%s3 + $0x1b] sm:$0x1]
    %v3670 = vperm.slane %v3669, 0
    %v3671 = vadd.f32 %v3667, %v3670
    %v3672 = vadd.f32 %v3668, %v3670
    %v3673 = vadd.f32 %v3073, %v3671
    %v3674 = vadd.f32 %v3074, %v3672
    %v3675 = vld [vmem:[%s3 + $0x20] sm:$0x1]
    %v3676 = vld [vmem:[%s3 + $0x21] sm:$0x1]
    %v3677 = vsel %vm222, %v3673, 0.0
    %3678 = vadd.xlane.f32.xlu0 %v3677
    %v3679 = vpop.xlane.xlu0 %3678
    %v3680 = vsel %vm222, %v3674, 0.0
    %3681 = vadd.xlane.f32.xlu0 %v3680
    %v3682 = vpop.xlane.xlu0 %3681
    %v3683 = vmul.f32 %v3679, %v806
    %v3684 = vmul.f32 %v3682, %v806
    %v3685 = vsub.f32 %v3673, %v3683
    %v3686 = vsub.f32 %v3674, %v3684
    %v3687 = vmul.f32 %v3685, %v3685
    %v3688 = vmul.f32 %v3686, %v3686
    %v3689 = vsel %vm222, %v3687, 0.0
    %3690 = vadd.xlane.f32.xlu0 %v3689
    %v3691 = vpop.xlane.xlu0 %3690
    %v3692 = vsel %vm222, %v3688, 0.0
    %3693 = vadd.xlane.f32.xlu0 %v3692
    %v3694 = vpop.xlane.xlu0 %3693
    %v3695 = vmul.f32 %v3691, %v806
    %v3696 = vmul.f32 %v3694, %v806
    %v3697 = vadd.f32 %v3695, 1e-05
    %v3698 = vadd.f32 %v3696, 1e-05
    %v3699 = vrsqrt.pop %v3697
    %v3700 = vmul.f32 %v3699, %v3697
    %v3701 = vmul.f32 %v3700, %v3699
    %v3702 = vmul.f32 0.5, %v3701
    %v3703 = vsub.f32 1.5, %v3702
    %v3704 = vmul.f32 %v3699, %v3703
    %vm3705 = vweird.f32 %v3697
    %vm3706 = vweird.f32 %v3699
    %vm3707 = vmor %vm3705, %vm3706
    %v3708 = vsel %vm3707, %v3699, %v3704
    %v3709 = vrsqrt.pop %v3698
    %v3710 = vmul.f32 %v3709, %v3698
    %v3711 = vmul.f32 %v3710, %v3709
    %v3712 = vmul.f32 0.5, %v3711
    %v3713 = vsub.f32 1.5, %v3712
    %v3714 = vmul.f32 %v3709, %v3713
    %vm3715 = vweird.f32 %v3698
    %vm3716 = vweird.f32 %v3709
    %vm3717 = vmor %vm3715, %vm3716
    %v3718 = vsel %vm3717, %v3709, %v3714
    %v3719 = vmul.f32 %v3685, %v3708
    %v3720 = vmul.f32 %v3686, %v3718
    %v3721 = vperm.slane %v3675, 0
    %v3722 = vmul.f32 %v3719, %v3721
    %v3723 = vmul.f32 %v3720, %v3721
    %v3724 = vperm.slane %v3676, 0
    %v3725 = vadd.f32 %v3722, %v3724
    %v3726 = vadd.f32 %v3723, %v3724
    %v3727 = vld [vmem:[%s2 + $0x220] sm:$0xff]
    %v3728 = vld [vmem:[%s2 + $0x228] sm:$0xff]
    %v3729 = vld [vmem:[%s2 + $0x230] sm:$0xff]
    %v3730 = vld [vmem:[%s2 + $0x238] sm:$0xff]
    %v3731 = vpack.c.bf16 %v3726, %v3725
    %v3732 = vpack.c.bf16 %v3728, %v3727
    %v3733 = vpack.c.bf16 %v3730, %v3729
    %v3734 = vld [vmem:[%s3 + $0x1c] sm:$0x1]
    %v3735 = vperm.slane %v3734, 0
    %v3737 = vsel %vm222, %v3731, 0
    %3739 = vmatpush.bf16.msra.mxu0 0
    %3740 = vmatpush.bf16.msra.mxu0 0
    %3741 = vmatpush.bf16.msra.mxu0 0
    %3742 = vmatpush.bf16.msra.mxu0 0
    %3743 = vmatpush.bf16.msra.mxu0 0
    %3744 = vmatpush.bf16.msra.mxu0 0
    %3745 = vmatpush.bf16.msra.mxu0 %v3733
    %3746 = vmatpush.bf16.msra.mxu0 %v3732
    %3747 = vmatmul.bf16.gmra.mxu0 %v3737
    %v3748 = vpop.f32.mrf.mxu0
    %v3749 = vadd.f32 %v3735, %v3748
    %v3750 = vpop.f32.mrf.mxu0
    %v3751 = vadd.f32 %v3735, %v3750
    %3752 = vdwg.mxu0
    %v3753 = vmul.f32 %v3749, 0.5
    %v3754 = vmul.f32 %v3751, 0.5
    %v3755 = vmul.f32 %v3749, 0.70710677
    %v3756 = vmul.f32 %v3751, 0.70710677
    %v3757 = vand.u32 2147483647, %v3755
    %v3758 = vand.u32 2147483647, %v3756
    %v3759 = vmul.f32 %v3757, 0.3275911
    %v3760 = vmul.f32 %v3758, 0.3275911
    %v3761 = vadd.f32 %v3759, 1.0
    %v3762 = vadd.f32 %v3760, 1.0
    %v3763 = vrcp.pop %v3761
    %v3764 = vmul.f32 %v3761, %v3763
    %v3765 = vsub.f32 1.0, %v3764
    %v3766 = vmul.f32 %v3763, %v3765
    %v3767 = vadd.f32 %v3763, %v3766
    %vm3768 = vweird.f32 %v3761
    %vm3769 = vweird.f32 %v3763
    %vm3770 = vmor %vm3768, %vm3769
    %v3771 = vsel %vm3770, %v3763, %v3767
    %v3772 = vand.u32 2147483647, %v3761
    %vm3773 = vcmp.eq.f32.partialorder %v3772, 8.507059e+37
    %v3774 = vand.u32 %v3761, 2147483648
    %v3775 = vor.u32 1.1754944e-38, %v3774
    %v3776 = vsel %vm3773, %v3775, %v3771
    %v3777 = vmul.f32 1.0, %v3776
    %v3778 = vrcp.pop %v3762
    %v3779 = vmul.f32 %v3762, %v3778
    %v3780 = vsub.f32 1.0, %v3779
    %v3781 = vmul.f32 %v3778, %v3780
    %v3782 = vadd.f32 %v3778, %v3781
    %vm3783 = vweird.f32 %v3762
    %vm3784 = vweird.f32 %v3778
    %vm3785 = vmor %vm3783, %vm3784
    %v3786 = vsel %vm3785, %v3778, %v3782
    %v3787 = vand.u32 2147483647, %v3762
    %vm3788 = vcmp.eq.f32.partialorder %v3787, 8.507059e+37
    %v3789 = vand.u32 %v3762, 2147483648
    %v3790 = vor.u32 1.1754944e-38, %v3789
    %v3791 = vsel %vm3788, %v3790, %v3786
    %v3792 = vmul.f32 1.0, %v3791
    %v3793 = vmul.f32 %v3777, 1.0614054
    %v3794 = vmul.f32 %v3792, 1.0614054
    %v3795 = vadd.f32 %v3793, -1.4531521
    %v3796 = vadd.f32 %v3794, -1.4531521
    %v3797 = vmul.f32 %v3795, %v3777
    %v3798 = vmul.f32 %v3796, %v3792
    %v3799 = vadd.f32 %v3797, 1.4214138
    %v3800 = vadd.f32 %v3798, 1.4214138
    %v3801 = vmul.f32 %v3799, %v3777
    %v3802 = vmul.f32 %v3800, %v3792
    %v3803 = vadd.f32 %v3801, -0.28449672
    %v3804 = vadd.f32 %v3802, -0.28449672
    %v3805 = vmul.f32 %v3803, %v3777
    %v3806 = vmul.f32 %v3804, %v3792
    %v3807 = vadd.f32 %v3805, 0.2548296
    %v3808 = vadd.f32 %v3806, 0.2548296
    %v3809 = vmul.f32 %v3807, %v3777
    %v3810 = vmul.f32 %v3808, %v3792
    %v3811 = vsub.f32 0.0, %v3757
    %v3812 = vsub.f32 0.0, %v3758
    %v3813 = vmul.f32 %v3811, %v3757
    %v3814 = vmul.f32 %v3812, %v3758
    %v3815 = vmul.f32 %v3813, 1.442695
    %v3816 = vpow.pop %v3815
    %v3817 = vmul.f32 %v3814, 1.442695
    %v3818 = vpow.pop %v3817
    %v3819 = vmul.f32 %v3809, %v3816
    %v3820 = vmul.f32 %v3810, %v3818
    %v3821 = vsub.f32 1.0, %v3819
    %v3822 = vsub.f32 1.0, %v3820
    %vm3823 = vcmp.lt.f32.partialorder %v3755, 0.0
    %vm3824 = vcmp.lt.f32.partialorder %v3756, 0.0
    %v3825 = vsub.f32 0.0, %v3821
    %v3826 = vsub.f32 0.0, %v3822
    %v3827 = vsel %vm3823, %v3825, %v3821
    %v3828 = vsel %vm3824, %v3826, %v3822
    %v3829 = vadd.f32 %v3827, 1.0
    %v3830 = vadd.f32 %v3828, 1.0
    %v3831 = vmul.f32 %v3753, %v3829
    %v3832 = vmul.f32 %v3754, %v3830
    %v3833 = vld [vmem:[%s2 + $0x240] sm:$0xff]
    %v3834 = vld [vmem:[%s2 + $0x248] sm:$0xff]
    %v3835 = vld [vmem:[%s2 + $0x250] sm:$0xff]
    %v3836 = vld [vmem:[%s2 + $0x258] sm:$0xff]
    %v3837 = vpack.c.bf16 %v3832, %v3831
    %v3838 = vpack.c.bf16 %v3834, %v3833
    %v3839 = vpack.c.bf16 %v3836, %v3835
    %v3840 = vld [vmem:[%s3 + $0x1d] sm:$0x1]
    %v3841 = vperm.slane %v3840, 0
    %v3843 = vsel %vm222, %v3837, 0
    %3845 = vmatpush.bf16.msra.mxu0 0
    %3846 = vmatpush.bf16.msra.mxu0 0
    %3847 = vmatpush.bf16.msra.mxu0 0
    %3848 = vmatpush.bf16.msra.mxu0 0
    %3849 = vmatpush.bf16.msra.mxu0 0
    %3850 = vmatpush.bf16.msra.mxu0 0
    %3851 = vmatpush.bf16.msra.mxu0 %v3839
    %3852 = vmatpush.bf16.msra.mxu0 %v3838
    %3853 = vmatmul.bf16.gmra.mxu0 %v3843
    %v3854 = vpop.f32.mrf.mxu0
    %v3855 = vadd.f32 %v3841, %v3854
    %v3856 = vpop.f32.mrf.mxu0
    %v3857 = vadd.f32 %v3841, %v3856
    %3858 = vdwg.mxu0
    %v3859 = vadd.f32 %v3725, %v3855
    %v3860 = vadd.f32 %v3726, %v3857
    %v3861 = vld [vmem:[%s3 + $0x22] sm:$0x1]
    %v3862 = vld [vmem:[%s3 + $0x23] sm:$0x1]
    %v3863 = vsel %vm222, %v3859, 0.0
    %3864 = vadd.xlane.f32.xlu0 %v3863
    %v3865 = vpop.xlane.xlu0 %3864
    %v3866 = vsel %vm222, %v3860, 0.0
    %3867 = vadd.xlane.f32.xlu0 %v3866
    %v3868 = vpop.xlane.xlu0 %3867
    %v3869 = vmul.f32 %v3865, %v806
    %v3870 = vmul.f32 %v3868, %v806
    %v3871 = vsub.f32 %v3859, %v3869
    %v3872 = vsub.f32 %v3860, %v3870
    %v3873 = vmul.f32 %v3871, %v3871
    %v3874 = vmul.f32 %v3872, %v3872
    %v3875 = vsel %vm222, %v3873, 0.0
    %3876 = vadd.xlane.f32.xlu0 %v3875
    %v3877 = vpop.xlane.xlu0 %3876
    %v3878 = vsel %vm222, %v3874, 0.0
    %3879 = vadd.xlane.f32.xlu0 %v3878
    %v3880 = vpop.xlane.xlu0 %3879
    %v3881 = vmul.f32 %v3877, %v806
    %v3882 = vmul.f32 %v3880, %v806
    %v3883 = vadd.f32 %v3881, 1e-05
    %v3884 = vadd.f32 %v3882, 1e-05
    %v3885 = vrsqrt.pop %v3883
    %v3886 = vmul.f32 %v3885, %v3883
    %v3887 = vmul.f32 %v3886, %v3885
    %v3888 = vmul.f32 0.5, %v3887
    %v3889 = vsub.f32 1.5, %v3888
    %v3890 = vmul.f32 %v3885, %v3889
    %vm3891 = vweird.f32 %v3883
    %vm3892 = vweird.f32 %v3885
    %vm3893 = vmor %vm3891, %vm3892
    %v3894 = vsel %vm3893, %v3885, %v3890
    %v3895 = vrsqrt.pop %v3884
    %v3896 = vmul.f32 %v3895, %v3884
    %v3897 = vmul.f32 %v3896, %v3895
    %v3898 = vmul.f32 0.5, %v3897
    %v3899 = vsub.f32 1.5, %v3898
    %v3900 = vmul.f32 %v3895, %v3899
    %vm3901 = vweird.f32 %v3884
    %vm3902 = vweird.f32 %v3895
    %vm3903 = vmor %vm3901, %vm3902
    %v3904 = vsel %vm3903, %v3895, %v3900
    %v3905 = vmul.f32 %v3871, %v3894
    %v3906 = vmul.f32 %v3872, %v3904
    %v3907 = vperm.slane %v3861, 0
    %v3908 = vmul.f32 %v3905, %v3907
    %v3909 = vmul.f32 %v3906, %v3907
    %v3910 = vperm.slane %v3862, 0
    %v3911 = vadd.f32 %v3908, %v3910
    %v3912 = vadd.f32 %v3909, %v3910
    %v3913 = vld [vmem:[%s3 + $0x24] sm:$0x1]
    %v3914 = vld [vmem:[%s3 + $0x25] sm:$0x1]
    %v3915 = vsel %vm222, %v3911, 0.0
    %3916 = vadd.xlane.f32.xlu0 %v3915
    %v3917 = vpop.xlane.xlu0 %3916
    %v3918 = vsel %vm222, %v3912, 0.0
    %3919 = vadd.xlane.f32.xlu0 %v3918
    %v3920 = vpop.xlane.xlu0 %3919
    %v3921 = vmul.f32 %v3917, %v806
    %v3922 = vmul.f32 %v3920, %v806
    %v3923 = vsub.f32 %v3911, %v3921
    %v3924 = vsub.f32 %v3912, %v3922
    %v3925 = vmul.f32 %v3923, %v3923
    %v3926 = vmul.f32 %v3924, %v3924
    %v3927 = vsel %vm222, %v3925, 0.0
    %3928 = vadd.xlane.f32.xlu0 %v3927
    %v3929 = vpop.xlane.xlu0 %3928
    %v3930 = vsel %vm222, %v3926, 0.0
    %3931 = vadd.xlane.f32.xlu0 %v3930
    %v3932 = vpop.xlane.xlu0 %3931
    %v3933 = vmul.f32 %v3929, %v806
    %v3934 = vmul.f32 %v3932, %v806
    %v3935 = vadd.f32 %v3933, 1e-05
    %v3936 = vadd.f32 %v3934, 1e-05
    %v3937 = vrsqrt.pop %v3935
    %v3938 = vmul.f32 %v3937, %v3935
    %v3939 = vmul.f32 %v3938, %v3937
    %v3940 = vmul.f32 0.5, %v3939
    %v3941 = vsub.f32 1.5, %v3940
    %v3942 = vmul.f32 %v3937, %v3941
    %vm3943 = vweird.f32 %v3935
    %vm3944 = vweird.f32 %v3937
    %vm3945 = vmor %vm3943, %vm3944
    %v3946 = vsel %vm3945, %v3937, %v3942
    %v3947 = vrsqrt.pop %v3936
    %v3948 = vmul.f32 %v3947, %v3936
    %v3949 = vmul.f32 %v3948, %v3947
    %v3950 = vmul.f32 0.5, %v3949
    %v3951 = vsub.f32 1.5, %v3950
    %v3952 = vmul.f32 %v3947, %v3951
    %vm3953 = vweird.f32 %v3936
    %vm3954 = vweird.f32 %v3947
    %vm3955 = vmor %vm3953, %vm3954
    %v3956 = vsel %vm3955, %v3947, %v3952
    %v3957 = vmul.f32 %v3923, %v3946
    %v3958 = vmul.f32 %v3924, %v3956
    %v3959 = vperm.slane %v3913, 0
    %v3960 = vmul.f32 %v3957, %v3959
    %v3961 = vmul.f32 %v3958, %v3959
    %v3962 = vperm.slane %v3914, 0
    %v3963 = vadd.f32 %v3960, %v3962
    %v3964 = vadd.f32 %v3961, %v3962
    %v3966 = vrot.slane %v3963, 7
    %v3969 = vrot.slane %v3964, 6
    %v3971 = vsel %vm32, %v3966, %v3969
    %v3972 = vld [vmem:[%s2 + $0x260] sm:$0xff]
    %v3973 = vld [vmem:[%s2 + $0x268] sm:$0xff]
    %v3974 = vld [vmem:[%s2 + $0x270] sm:$0xff]
    %v3975 = vld [vmem:[%s2 + $0x278] sm:$0xff]
    %v3976 = vpack.c.bf16 %v3971, %v3971
    %v3977 = vpack.c.bf16 %v3973, %v3972
    %v3978 = vpack.c.bf16 %v3975, %v3974
    %v3979 = vld [vmem:[%s3 + $0x26] sm:$0x1]
    %v3980 = vperm.slane %v3979, 0
    %v3982 = vsel %vm222, %v3976, 0
    %3984 = vmatpush.bf16.msra.mxu0 0
    %3985 = vmatpush.bf16.msra.mxu0 0
    %3986 = vmatpush.bf16.msra.mxu0 0
    %3987 = vmatpush.bf16.msra.mxu0 0
    %3988 = vmatpush.bf16.msra.mxu0 0
    %3989 = vmatpush.bf16.msra.mxu0 0
    %3990 = vmatpush.bf16.msra.mxu0 %v3978
    %3991 = vmatpush.bf16.msra.mxu0 %v3977
    %3992 = vmatmul.bf16.gmra.mxu0 %v3982
    %v3993 = vpop.f32.mrf.mxu0
    %v3994 = vadd.f32 %v3980, %v3993
    %v3995 = vpop.f32.mrf.mxu0
    %3996 = vdwg.mxu0
    %v3997 = vld [vmem:[%s2 + $0x280] sm:$0xf]
    %v3998 = vpack.c.bf16 %v3994, %v3994
    %v3999 = vpack.c.bf16 %v3997, %v3997
    %v4000 = vld [vmem:[%s3 + $0x27] sm:$0x1]
    %v4001 = vperm.slane %v4000, 0
    %v4003 = vsel %vm50, %v3998, 0
    %v4006 = vsel %vm54, %v3999, 0
    %4008 = vmatpush.bf16.msra.mxu0 0
    %4009 = vmatpush.bf16.msra.mxu0 0
    %4010 = vmatpush.bf16.msra.mxu0 0
    %4011 = vmatpush.bf16.msra.mxu0 0
    %4012 = vmatpush.bf16.msra.mxu0 0
    %4013 = vmatpush.bf16.msra.mxu0 0
    %4014 = vmatpush.bf16.msra.mxu0 0
    %4015 = vmatpush.bf16.msra.mxu0 %v4006
    %4016 = vmatmul.bf16.gmra.mxu0 %v4003
    %v4017 = vpop.f32.mrf.mxu0
    %v4018 = vadd.f32 %v4001, %v4017
    %v4019 = vpop.f32.mrf.mxu0
    %4020 = vdwg.mxu0
    %vm4021 = vcmask 17408
    %4022 = vst.msk [vmem:[#allocation2] sm:$0x3] %vm4021, %v4018
    // Predicated region
    $region18: #{informer_forward.1} parent=1 // pred_check
      _
    $region19: #{informer_forward.1} parent=1 // pred_check_branch
      %4024 = sbr.rel (0) target = $region21
    $region20: #{informer_forward.1} parent=1 // pred_region
      %4026 = vsyncadd [#allocation3], 0
      %s4028 = sshll.u32 [#allocation2], 4
      %s4029 = int_to_ptr.vmem [resolvable:$true] %s4028
      %s4030 = sshll.u32 %s4, 4
      %s4031 = int_to_ptr.hbm [resolvable:$true] %s4030
      %4033 = dma.vmem_to_hbm [thread:$0]  %s4029, 32, %s4031, [#allocation3]
    $region21: #{informer_forward.1} parent=1 // pred_fallthru
      _
    // Predicated region
    $region22: #{informer_forward.1} parent=1 // pred_check
      _
    $region23: #{informer_forward.1} parent=1 // pred_check_branch
      %4035 = sbr.rel (0) target = $region25
    $region24: #{informer_forward.1} parent=1 // pred_region
      %4037 = dma.done [#allocation3], 32
    $region25: #{informer_forward.1} parent=1 // pred_fallthru
      _
    %4038 = vsyncpa [#allocation3], 1

</llo_original>
